<compile_context>
chip_gen: v7x
topology: tpu7x:2x2x1
jax: 0.10.0
libtpu: 0.0.40
codegen_flags: <defaults>
</compile_context>

<pallas_src>
import functools

import numpy as np

import jax
import jax.numpy as jnp
from jax.experimental import pallas as pl
from jax.experimental.pallas import tpu as pltpu


_VMEM_LIMIT = 48 * 1024 * 1024   # safe under v7x's 64 MiB physical VMEM


def _choose_tiling(batch):
    """Pick a batch tile; guarantee >= 2 grid steps (v7x megacore)."""
    for tb in (32, 16, 8):
        if batch >= 2 * tb:
            return tb, ((batch + tb - 1) // tb) * tb
    return 8, 16


# --------------------------------- kernel -----------------------------------

def _cnn_kernel(xe_ref, xo_ref, w1_ref, b1_ref, w2_ref, b2_ref,
                wf1_ref, bf1_ref, wf2_ref, bf2_ref, o_ref,
                y1e_ref, y1o_ref, flat_ref, *, tb):
    f32 = jnp.float32
    bf16 = jnp.bfloat16

    # ---- conv1: banded matmul over padded width (K=32), even/odd input rows.
    w1 = w1_ref[...]
    ze = jnp.dot(xe_ref[...].reshape(tb * 16, 32), w1,
                 preferred_element_type=f32).reshape(tb, 16, 1536)
    zo = jnp.dot(xo_ref[...].reshape(tb * 16, 32), w1,
                 preferred_element_type=f32).reshape(tb, 16, 1536)
    b1 = b1_ref[...]
    # output row 2j uses padded rows (2j, 2j+1, 2j+2); row 2j+1 uses (+1 each)
    y_even = ze[:, 0:14, 0:512] + zo[:, 0:14, 512:1024] + ze[:, 1:15, 1024:1536]
    y_odd = zo[:, 0:14, 0:512] + ze[:, 1:15, 512:1024] + zo[:, 1:15, 1024:1536]
    y_even = jnp.maximum(y_even + b1, 0.0)
    y_odd = jnp.maximum(y_odd + b1, 0.0)
    # W-pool: even / odd output columns live in lane blocks [0:256) / [256:512)
    p_even = jnp.maximum(y_even[:, :, 0:256], y_even[:, :, 256:512])
    p_odd = jnp.maximum(y_odd[:, :, 0:256], y_odd[:, :, 256:512])
    pooled1 = jnp.maximum(p_even, p_odd)                # (tb, 14, 256) f32

    # ---- repack pooled1 into the even/odd rows of conv2's zero-padded input.
    #      Padded frame rows: 0 = zero, 1..14 = pooled rows 0..13, 15 = zero.
    zrow = jnp.zeros((tb, 256), bf16)
    y1e_ref[:, 0, :] = zrow
    y1o_ref[:, 7, :] = zrow
    for m in range(7):
        y1o_ref[:, m, :] = pooled1[:, 2 * m, :].astype(bf16)
        y1e_ref[:, m + 1, :] = pooled1[:, 2 * m + 1, :].astype(bf16)

    # ---- conv2: banded matmul over padded width x cin (K=256).
    w2 = w2_ref[...]
    z2e = jnp.dot(y1e_ref[...].reshape(tb * 8, 256), w2,
                  preferred_element_type=f32).reshape(tb, 8, 1536)
    z2o = jnp.dot(y1o_ref[...].reshape(tb * 8, 256), w2,
                  preferred_element_type=f32).reshape(tb, 8, 1536)
    b2 = b2_ref[...]
    y2_even = z2e[:, 0:7, 0:512] + z2o[:, 0:7, 512:1024] + z2e[:, 1:8, 1024:1536]
    y2_odd = z2o[:, 0:7, 0:512] + z2e[:, 1:8, 512:1024] + z2o[:, 1:8, 1024:1536]
    y2_even = jnp.maximum(y2_even + b2, 0.0)
    y2_odd = jnp.maximum(y2_odd + b2, 0.0)
    q_even = jnp.maximum(y2_even[:, :, 0:256], y2_even[:, :, 256:512])
    q_odd = jnp.maximum(y2_odd[:, :, 0:256], y2_odd[:, :, 256:512])
    pooled2 = jnp.maximum(q_even, q_odd)                # (tb, 7, 256) f32

    # ---- flatten (7 rows -> 1792 lanes; the padded col group is zero / has
    #      zero fc1 weight rows, so it contributes nothing).
    for u in range(7):
        flat_ref[:, 256 * u:256 * (u + 1)] = pooled2[:, u, :].astype(bf16)

    # ---- fc1 + ReLU + fc2 fused; the (tb, 256) hidden never leaves VMEM.
    h = jnp.dot(flat_ref[...], wf1_ref[...], preferred_element_type=f32)
    h = jnp.maximum(h + bf1_ref[...], 0.0)
    out = jnp.dot(h.astype(bf16), wf2_ref[...], preferred_element_type=f32)
    o_ref[...] = out + bf2_ref[...]


# ------------------------------ pallas_call wrapper --------------------------

def _cnn_pallas(xe, xo, p, b_pad, tb):
    grid = (b_pad // tb,)
    return pl.pallas_call(
        functools.partial(_cnn_kernel, tb=tb),
        out_shape=jax.ShapeDtypeStruct((b_pad, 128), jnp.float32),
        grid=grid,
        in_specs=[
            pl.BlockSpec((tb, 16, 32), lambda i: (i, 0, 0)),      # even rows
            pl.BlockSpec((tb, 16, 32), lambda i: (i, 0, 0)),      # odd rows
            pl.BlockSpec((32, 1536), lambda i: (0, 0)),           # conv1 band
            pl.BlockSpec((1, 512), lambda i: (0, 0)),             # conv1 bias
            pl.BlockSpec((256, 1536), lambda i: (0, 0)),          # conv2 band
            pl.BlockSpec((1, 512), lambda i: (0, 0)),             # conv2 bias
            pl.BlockSpec((1792, 256), lambda i: (0, 0)),          # fc1 weight
            pl.BlockSpec((1, 256), lambda i: (0, 0)),             # fc1 bias
            pl.BlockSpec((256, 128), lambda i: (0, 0)),           # fc2 weight
            pl.BlockSpec((1, 128), lambda i: (0, 0)),             # fc2 bias
        ],
        out_specs=pl.BlockSpec((tb, 128), lambda i: (i, 0)),
        scratch_shapes=[
            pltpu.VMEM((tb, 8, 256), jnp.bfloat16),   # conv2 input, even rows
            pltpu.VMEM((tb, 8, 256), jnp.bfloat16),   # conv2 input, odd rows
            pltpu.VMEM((tb, 1792), jnp.bfloat16),     # flattened fc1 input
        ],
        compiler_params=pltpu.CompilerParams(
            dimension_semantics=("parallel",),
            vmem_limit_bytes=_VMEM_LIMIT,
        ),
    )(xe, xo, p["w1band"], p["b1rep"], p["w2band"], p["b2rep"],
      p["wfc1"], p["bfc1"], p["wfc2"], p["bfc2"])


# --------------------------------- params ------------------------------------

def init_params(key):
    """Deterministic init mirroring the PyTorch module's parameter shapes,
    pre-arranged into the banded / padded layouts the kernel consumes."""
    def uniform(k, shape, fan_in):
        bound = 1.0 / (fan_in ** 0.5)
        return jax.random.uniform(k, shape, jnp.float32, -bound, bound)

    ks = jax.random.split(key, 8)
    k1 = np.asarray(uniform(ks[0], (3, 3, 16), 9))            # [dy, dx, c]
    b1 = np.asarray(uniform(ks[1], (16,), 9))
    k2 = np.asarray(uniform(ks[2], (3, 3, 16, 32), 144))       # [dy, dx, ci, co]
    b2 = np.asarray(uniform(ks[3], (32,), 144))
    wf1 = np.asarray(uniform(ks[4], (32, 7, 7, 256), 32 * 7 * 7))  # [co, u, v, n]
    bf1 = np.asarray(uniform(ks[5], (256,), 32 * 7 * 7))
    wf2 = np.asarray(uniform(ks[6], (256, 10), 256))
    bf2 = np.asarray(uniform(ks[7], (10,), 256))

    # conv1 banded weight: lanes n = dy*512 + parity*256 + g*16 + c, where
    # lane group g (1..14) is conv1 output column 2(g-1)+parity; groups 0/15
    # stay zero -> they become conv2's zero W-padding after ReLU.
    w1band = np.zeros((3, 32, 512), np.float32)
    b1rep = np.zeros((512,), np.float32)
    for pb in range(2):
        for g in range(1, 15):
            w = 2 * (g - 1) + pb
            col = pb * 256 + g * 16
            b1rep[col:col + 16] = b1
            for dx in range(3):
                w1band[:, w + dx, col:col + 16] = k1[:, dx, :]
    w1band = w1band.transpose(1, 0, 2).reshape(32, 3 * 512)

    # conv2 banded weight: rows k = wi*16 + ci (wi = padded col), lanes
    # n = dy*512 + parity*256 + j*32 + co; j=7 (pad) columns stay zero.
    w2band = np.zeros((3, 256, 512), np.float32)
    b2rep = np.zeros((512,), np.float32)
    for pb in range(2):
        for j in range(7):
            vo = 2 * j + pb
            col = pb * 256 + j * 32
            b2rep[col:col + 32] = b2
            for dx in range(3):
                wi = vo + dx
                w2band[:, wi * 16:(wi + 1) * 16, col:col + 32] = k2[:, dx, :, :]
    w2band = w2band.transpose(1, 0, 2).reshape(256, 3 * 512)

    # fc1 weight with rows ordered (u, j, co); j=7 rows zero (padded column).
    wf1big = np.zeros((7, 8, 32, 256), np.float32)
    wf1big[:, :7, :, :] = wf1.transpose(1, 2, 0, 3)            # [u, v, co, n]
    wf1big = wf1big.reshape(7 * 8 * 32, 256)                   # (1792, 256)

    # fc2 zero-padded to 128 output lanes (lane-dense store).
    wf2pad = np.zeros((256, 128), np.float32)
    wf2pad[:, :10] = wf2
    bf2pad = np.zeros((128,), np.float32)
    bf2pad[:10] = bf2

    return dict(
        w1band=jnp.asarray(w1band, jnp.bfloat16),
        b1rep=jnp.asarray(b1rep.reshape(1, 512)),
        w2band=jnp.asarray(w2band, jnp.bfloat16),
        b2rep=jnp.asarray(b2rep.reshape(1, 512)),
        wfc1=jnp.asarray(wf1big, jnp.bfloat16),
        bfc1=jnp.asarray(bf1.reshape(1, 256)),
        wfc2=jnp.asarray(wf2pad, jnp.bfloat16),
        bfc2=jnp.asarray(bf2pad.reshape(1, 128)),
    )


# --------------------------------- forward -----------------------------------

@jax.jit
def cnn_forward(x_nchw, params):
    b = x_nchw.shape[0]
    tb, b_pad = _choose_tiling(b)

    # Zero-pad spatially (+1 top/left, +3 bottom/right -> 32x32) and split the
    # padded rows into even/odd planes (tiny arrays; the only wrapper-side prep).
    x = x_nchw.reshape(b, 28, 28)
    xp = jnp.pad(x, ((0, b_pad - b), (1, 3), (1, 3)))           # (Bp, 32, 32)
    xe = xp[:, 0::2, :].astype(jnp.bfloat16)                    # (Bp, 16, 32)
    xo = xp[:, 1::2, :].astype(jnp.bfloat16)                    # (Bp, 16, 32)

    logits = _cnn_pallas(xe, xo, params, b_pad, tb)             # (Bp, 128) f32
    return logits[:b, :10]


if __name__ == "__main__":
    key = jax.random.PRNGKey(0)
    k_param, k_x = jax.random.split(key)
    params = init_params(k_param)
    # input implied by fc1 = Linear(32*7*7, 256): (B, 1, 28, 28)
    x = jax.random.normal(k_x, (2, 1, 28, 28), dtype=jnp.float32)

    logits = cnn_forward(x, params)
    jax.block_until_ready(logits)
    assert logits.shape == (2, 10) and logits.dtype == jnp.float32
    print("KERNEL_OK")
</pallas_src>

<mosaic_0001>
module attributes {stable_mosaic.version = 11 : i64} {
  func.func @_cnn_kernel(%arg0: i32, %arg1: memref<8x16x32xbf16, #tpu.memory_space<vmem>>, %arg2: memref<8x16x32xbf16, #tpu.memory_space<vmem>>, %arg3: memref<32x1536xbf16, #tpu.memory_space<vmem>>, %arg4: memref<1x512xf32, #tpu.memory_space<vmem>>, %arg5: memref<256x1536xbf16, #tpu.memory_space<vmem>>, %arg6: memref<1x512xf32, #tpu.memory_space<vmem>>, %arg7: memref<1792x256xbf16, #tpu.memory_space<vmem>>, %arg8: memref<1x256xf32, #tpu.memory_space<vmem>>, %arg9: memref<256x128xbf16, #tpu.memory_space<vmem>>, %arg10: memref<1x128xf32, #tpu.memory_space<vmem>>, %arg11: memref<8x128xf32, #tpu.memory_space<vmem>>, %arg12: memref<8x8x256xbf16, #tpu.memory_space<vmem>>, %arg13: memref<8x8x256xbf16, #tpu.memory_space<vmem>>, %arg14: memref<8x1792xbf16, #tpu.memory_space<vmem>>) attributes {dimension_semantics = [#tpu.dimension_semantics<parallel>], iteration_bounds = array<i64: 2>, scalar_prefetch = 0 : i64, scratch_operands = 3 : i64, tpu.core_type = #tpu.core_type<tc>, window_params = [{transform_indices = @transform_0, window_bounds = array<i64: 8, 16, 32>}, {transform_indices = @transform_1, window_bounds = array<i64: 8, 16, 32>}, {pipeline_mode = #tpu.pipeline_mode<synchronous>, transform_indices = @transform_2, window_bounds = array<i64: 32, 1536>}, {pipeline_mode = #tpu.pipeline_mode<synchronous>, transform_indices = @transform_3, window_bounds = array<i64: 1, 512>}, {pipeline_mode = #tpu.pipeline_mode<synchronous>, transform_indices = @transform_4, window_bounds = array<i64: 256, 1536>}, {pipeline_mode = #tpu.pipeline_mode<synchronous>, transform_indices = @transform_5, window_bounds = array<i64: 1, 512>}, {pipeline_mode = #tpu.pipeline_mode<synchronous>, transform_indices = @transform_6, window_bounds = array<i64: 1792, 256>}, {pipeline_mode = #tpu.pipeline_mode<synchronous>, transform_indices = @transform_7, window_bounds = array<i64: 1, 256>}, {pipeline_mode = #tpu.pipeline_mode<synchronous>, transform_indices = @transform_8, window_bounds = array<i64: 256, 128>}, {pipeline_mode = #tpu.pipeline_mode<synchronous>, transform_indices = @transform_9, window_bounds = array<i64: 1, 128>}, {transform_indices = @transform_10, window_bounds = array<i64: 8, 128>}]} {
    %c0 = arith.constant 0 : index
    %c0_0 = arith.constant 0 : index
    %0 = vector.load %arg3[%c0, %c0_0] : memref<32x1536xbf16, #tpu.memory_space<vmem>>, vector<32x1536xbf16>
    %c0_1 = arith.constant 0 : index
    %c0_2 = arith.constant 0 : index
    %c0_3 = arith.constant 0 : index
    %1 = vector.load %arg1[%c0_1, %c0_2, %c0_3] : memref<8x16x32xbf16, #tpu.memory_space<vmem>>, vector<8x16x32xbf16>
    %2 = vector.shape_cast %1 : vector<8x16x32xbf16> to vector<128x32xbf16>
    %cst = arith.constant dense<0.000000e+00> : vector<128x1536xf32>
    %3 = tpu.matmul %2, %0, %cst {dimension_numbers = #tpu.dot_dimension_numbers<[1], [0], [0], [1], [0, 0, 1, 1], [], []>} : vector<128x32xbf16>, vector<32x1536xbf16>, vector<128x1536xf32> -> vector<128x1536xf32>
    %4 = vector.shape_cast %3 : vector<128x1536xf32> to vector<8x16x1536xf32>
    %c0_4 = arith.constant 0 : index
    %c0_5 = arith.constant 0 : index
    %c0_6 = arith.constant 0 : index
    %5 = vector.load %arg2[%c0_4, %c0_5, %c0_6] : memref<8x16x32xbf16, #tpu.memory_space<vmem>>, vector<8x16x32xbf16>
    %6 = vector.shape_cast %5 : vector<8x16x32xbf16> to vector<128x32xbf16>
    %cst_7 = arith.constant dense<0.000000e+00> : vector<128x1536xf32>
    %7 = tpu.matmul %6, %0, %cst_7 {dimension_numbers = #tpu.dot_dimension_numbers<[1], [0], [0], [1], [0, 0, 1, 1], [], []>} : vector<128x32xbf16>, vector<32x1536xbf16>, vector<128x1536xf32> -> vector<128x1536xf32>
    %8 = vector.shape_cast %7 : vector<128x1536xf32> to vector<8x16x1536xf32>
    %c0_8 = arith.constant 0 : index
    %c0_9 = arith.constant 0 : index
    %9 = vector.load %arg4[%c0_8, %c0_9] : memref<1x512xf32, #tpu.memory_space<vmem>>, vector<1x512xf32>
    %10 = vector.extract_strided_slice %4 {offsets = [0, 0, 0], sizes = [8, 14, 512], strides = [1, 1, 1]} : vector<8x16x1536xf32> to vector<8x14x512xf32>
    %11 = vector.extract_strided_slice %8 {offsets = [0, 0, 512], sizes = [8, 14, 512], strides = [1, 1, 1]} : vector<8x16x1536xf32> to vector<8x14x512xf32>
    %12 = arith.addf %10, %11 : vector<8x14x512xf32>
    %13 = vector.extract_strided_slice %4 {offsets = [0, 1, 1024], sizes = [8, 14, 512], strides = [1, 1, 1]} : vector<8x16x1536xf32> to vector<8x14x512xf32>
    %14 = arith.addf %12, %13 : vector<8x14x512xf32>
    %15 = vector.extract_strided_slice %8 {offsets = [0, 0, 0], sizes = [8, 14, 512], strides = [1, 1, 1]} : vector<8x16x1536xf32> to vector<8x14x512xf32>
    %16 = vector.extract_strided_slice %4 {offsets = [0, 1, 512], sizes = [8, 14, 512], strides = [1, 1, 1]} : vector<8x16x1536xf32> to vector<8x14x512xf32>
    %17 = arith.addf %15, %16 : vector<8x14x512xf32>
    %18 = vector.extract_strided_slice %8 {offsets = [0, 1, 1024], sizes = [8, 14, 512], strides = [1, 1, 1]} : vector<8x16x1536xf32> to vector<8x14x512xf32>
    %19 = arith.addf %17, %18 : vector<8x14x512xf32>
    %20 = vector.shape_cast %9 : vector<1x512xf32> to vector<1x1x512xf32>
    %21 = vector.broadcast %20 : vector<1x1x512xf32> to vector<8x14x512xf32>
    %22 = arith.addf %14, %21 : vector<8x14x512xf32>
    %cst_10 = arith.constant 0.000000e+00 : f32
    %23 = vector.broadcast %cst_10 : f32 to vector<8x14x512xf32>
    %24 = arith.maximumf %22, %23 : vector<8x14x512xf32>
    %25 = vector.shape_cast %9 : vector<1x512xf32> to vector<1x1x512xf32>
    %26 = vector.broadcast %25 : vector<1x1x512xf32> to vector<8x14x512xf32>
    %27 = arith.addf %19, %26 : vector<8x14x512xf32>
    %cst_11 = arith.constant 0.000000e+00 : f32
    %28 = vector.broadcast %cst_11 : f32 to vector<8x14x512xf32>
    %29 = arith.maximumf %27, %28 : vector<8x14x512xf32>
    %30 = vector.extract_strided_slice %24 {offsets = [0, 0, 0], sizes = [8, 14, 256], strides = [1, 1, 1]} : vector<8x14x512xf32> to vector<8x14x256xf32>
    %31 = vector.extract_strided_slice %24 {offsets = [0, 0, 256], sizes = [8, 14, 256], strides = [1, 1, 1]} : vector<8x14x512xf32> to vector<8x14x256xf32>
    %32 = arith.maximumf %30, %31 : vector<8x14x256xf32>
    %33 = vector.extract_strided_slice %29 {offsets = [0, 0, 0], sizes = [8, 14, 256], strides = [1, 1, 1]} : vector<8x14x512xf32> to vector<8x14x256xf32>
    %34 = vector.extract_strided_slice %29 {offsets = [0, 0, 256], sizes = [8, 14, 256], strides = [1, 1, 1]} : vector<8x14x512xf32> to vector<8x14x256xf32>
    %35 = arith.maximumf %33, %34 : vector<8x14x256xf32>
    %36 = arith.maximumf %32, %35 : vector<8x14x256xf32>
    %cst_12 = arith.constant 0.000000e+00 : bf16
    %37 = vector.broadcast %cst_12 : bf16 to vector<8x256xbf16>
    %c0_13 = arith.constant 0 : index
    %c0_14 = arith.constant 0 : index
    %c0_15 = arith.constant 0 : index
    %38 = vector.load %arg12[%c0_13, %c0_14, %c0_15] : memref<8x8x256xbf16, #tpu.memory_space<vmem>>, vector<8x1x256xbf16>
    %39 = vector.shape_cast %38 : vector<8x1x256xbf16> to vector<8x256xbf16>
    %40 = vector.shape_cast %37 : vector<8x256xbf16> to vector<8x1x256xbf16>
    tpu.vector_store %arg12[%c0_13, %c0_14, %c0_15], %40 {strides = array<i32>} : memref<8x8x256xbf16, #tpu.memory_space<vmem>>, vector<8x1x256xbf16>,
    %c0_16 = arith.constant 0 : index
    %c7 = arith.constant 7 : index
    %c0_17 = arith.constant 0 : index
    %41 = vector.load %arg13[%c0_16, %c7, %c0_17] : memref<8x8x256xbf16, #tpu.memory_space<vmem>>, vector<8x1x256xbf16>
    %42 = vector.shape_cast %41 : vector<8x1x256xbf16> to vector<8x256xbf16>
    %43 = vector.shape_cast %37 : vector<8x256xbf16> to vector<8x1x256xbf16>
    tpu.vector_store %arg13[%c0_16, %c7, %c0_17], %43 {strides = array<i32>} : memref<8x8x256xbf16, #tpu.memory_space<vmem>>, vector<8x1x256xbf16>,
    %44 = vector.extract_strided_slice %36 {offsets = [0, 0, 0], sizes = [8, 1, 256], strides = [1, 1, 1]} : vector<8x14x256xf32> to vector<8x1x256xf32>
    %45 = vector.shape_cast %44 : vector<8x1x256xf32> to vector<8x256xf32>
    %46 = arith.truncf %45 : vector<8x256xf32> to vector<8x256xbf16>
    %c0_18 = arith.constant 0 : index
    %c0_19 = arith.constant 0 : index
    %c0_20 = arith.constant 0 : index
    %47 = vector.load %arg13[%c0_18, %c0_19, %c0_20] : memref<8x8x256xbf16, #tpu.memory_space<vmem>>, vector<8x1x256xbf16>
    %48 = vector.shape_cast %47 : vector<8x1x256xbf16> to vector<8x256xbf16>
    %49 = vector.shape_cast %46 : vector<8x256xbf16> to vector<8x1x256xbf16>
    tpu.vector_store %arg13[%c0_18, %c0_19, %c0_20], %49 {strides = array<i32>} : memref<8x8x256xbf16, #tpu.memory_space<vmem>>, vector<8x1x256xbf16>,
    %50 = vector.extract_strided_slice %36 {offsets = [0, 1, 0], sizes = [8, 1, 256], strides = [1, 1, 1]} : vector<8x14x256xf32> to vector<8x1x256xf32>
    %51 = vector.shape_cast %50 : vector<8x1x256xf32> to vector<8x256xf32>
    %52 = arith.truncf %51 : vector<8x256xf32> to vector<8x256xbf16>
    %c0_21 = arith.constant 0 : index
    %c1 = arith.constant 1 : index
    %c0_22 = arith.constant 0 : index
    %53 = vector.load %arg12[%c0_21, %c1, %c0_22] : memref<8x8x256xbf16, #tpu.memory_space<vmem>>, vector<8x1x256xbf16>
    %54 = vector.shape_cast %53 : vector<8x1x256xbf16> to vector<8x256xbf16>
    %55 = vector.shape_cast %52 : vector<8x256xbf16> to vector<8x1x256xbf16>
    tpu.vector_store %arg12[%c0_21, %c1, %c0_22], %55 {strides = array<i32>} : memref<8x8x256xbf16, #tpu.memory_space<vmem>>, vector<8x1x256xbf16>,
    %56 = vector.extract_strided_slice %36 {offsets = [0, 2, 0], sizes = [8, 1, 256], strides = [1, 1, 1]} : vector<8x14x256xf32> to vector<8x1x256xf32>
    %57 = vector.shape_cast %56 : vector<8x1x256xf32> to vector<8x256xf32>
    %58 = arith.truncf %57 : vector<8x256xf32> to vector<8x256xbf16>
    %c0_23 = arith.constant 0 : index
    %c1_24 = arith.constant 1 : index
    %c0_25 = arith.constant 0 : index
    %59 = vector.load %arg13[%c0_23, %c1_24, %c0_25] : memref<8x8x256xbf16, #tpu.memory_space<vmem>>, vector<8x1x256xbf16>
    %60 = vector.shape_cast %59 : vector<8x1x256xbf16> to vector<8x256xbf16>
    %61 = vector.shape_cast %58 : vector<8x256xbf16> to vector<8x1x256xbf16>
    tpu.vector_store %arg13[%c0_23, %c1_24, %c0_25], %61 {strides = array<i32>} : memref<8x8x256xbf16, #tpu.memory_space<vmem>>, vector<8x1x256xbf16>,
    %62 = vector.extract_strided_slice %36 {offsets = [0, 3, 0], sizes = [8, 1, 256], strides = [1, 1, 1]} : vector<8x14x256xf32> to vector<8x1x256xf32>
    %63 = vector.shape_cast %62 : vector<8x1x256xf32> to vector<8x256xf32>
    %64 = arith.truncf %63 : vector<8x256xf32> to vector<8x256xbf16>
    %c0_26 = arith.constant 0 : index
    %c2 = arith.constant 2 : index
    %c0_27 = arith.constant 0 : index
    %65 = vector.load %arg12[%c0_26, %c2, %c0_27] : memref<8x8x256xbf16, #tpu.memory_space<vmem>>, vector<8x1x256xbf16>
    %66 = vector.shape_cast %65 : vector<8x1x256xbf16> to vector<8x256xbf16>
    %67 = vector.shape_cast %64 : vector<8x256xbf16> to vector<8x1x256xbf16>
    tpu.vector_store %arg12[%c0_26, %c2, %c0_27], %67 {strides = array<i32>} : memref<8x8x256xbf16, #tpu.memory_space<vmem>>, vector<8x1x256xbf16>,
    %68 = vector.extract_strided_slice %36 {offsets = [0, 4, 0], sizes = [8, 1, 256], strides = [1, 1, 1]} : vector<8x14x256xf32> to vector<8x1x256xf32>
    %69 = vector.shape_cast %68 : vector<8x1x256xf32> to vector<8x256xf32>
    %70 = arith.truncf %69 : vector<8x256xf32> to vector<8x256xbf16>
    %c0_28 = arith.constant 0 : index
    %c2_29 = arith.constant 2 : index
    %c0_30 = arith.constant 0 : index
    %71 = vector.load %arg13[%c0_28, %c2_29, %c0_30] : memref<8x8x256xbf16, #tpu.memory_space<vmem>>, vector<8x1x256xbf16>
    %72 = vector.shape_cast %71 : vector<8x1x256xbf16> to vector<8x256xbf16>
    %73 = vector.shape_cast %70 : vector<8x256xbf16> to vector<8x1x256xbf16>
    tpu.vector_store %arg13[%c0_28, %c2_29, %c0_30], %73 {strides = array<i32>} : memref<8x8x256xbf16, #tpu.memory_space<vmem>>, vector<8x1x256xbf16>,
    %74 = vector.extract_strided_slice %36 {offsets = [0, 5, 0], sizes = [8, 1, 256], strides = [1, 1, 1]} : vector<8x14x256xf32> to vector<8x1x256xf32>
    %75 = vector.shape_cast %74 : vector<8x1x256xf32> to vector<8x256xf32>
    %76 = arith.truncf %75 : vector<8x256xf32> to vector<8x256xbf16>
    %c0_31 = arith.constant 0 : index
    %c3 = arith.constant 3 : index
    %c0_32 = arith.constant 0 : index
    %77 = vector.load %arg12[%c0_31, %c3, %c0_32] : memref<8x8x256xbf16, #tpu.memory_space<vmem>>, vector<8x1x256xbf16>
    %78 = vector.shape_cast %77 : vector<8x1x256xbf16> to vector<8x256xbf16>
    %79 = vector.shape_cast %76 : vector<8x256xbf16> to vector<8x1x256xbf16>
    tpu.vector_store %arg12[%c0_31, %c3, %c0_32], %79 {strides = array<i32>} : memref<8x8x256xbf16, #tpu.memory_space<vmem>>, vector<8x1x256xbf16>,
    %80 = vector.extract_strided_slice %36 {offsets = [0, 6, 0], sizes = [8, 1, 256], strides = [1, 1, 1]} : vector<8x14x256xf32> to vector<8x1x256xf32>
    %81 = vector.shape_cast %80 : vector<8x1x256xf32> to vector<8x256xf32>
    %82 = arith.truncf %81 : vector<8x256xf32> to vector<8x256xbf16>
    %c0_33 = arith.constant 0 : index
    %c3_34 = arith.constant 3 : index
    %c0_35 = arith.constant 0 : index
    %83 = vector.load %arg13[%c0_33, %c3_34, %c0_35] : memref<8x8x256xbf16, #tpu.memory_space<vmem>>, vector<8x1x256xbf16>
    %84 = vector.shape_cast %83 : vector<8x1x256xbf16> to vector<8x256xbf16>
    %85 = vector.shape_cast %82 : vector<8x256xbf16> to vector<8x1x256xbf16>
    tpu.vector_store %arg13[%c0_33, %c3_34, %c0_35], %85 {strides = array<i32>} : memref<8x8x256xbf16, #tpu.memory_space<vmem>>, vector<8x1x256xbf16>,
    %86 = vector.extract_strided_slice %36 {offsets = [0, 7, 0], sizes = [8, 1, 256], strides = [1, 1, 1]} : vector<8x14x256xf32> to vector<8x1x256xf32>
    %87 = vector.shape_cast %86 : vector<8x1x256xf32> to vector<8x256xf32>
    %88 = arith.truncf %87 : vector<8x256xf32> to vector<8x256xbf16>
    %c0_36 = arith.constant 0 : index
    %c4 = arith.constant 4 : index
    %c0_37 = arith.constant 0 : index
    %89 = vector.load %arg12[%c0_36, %c4, %c0_37] : memref<8x8x256xbf16, #tpu.memory_space<vmem>>, vector<8x1x256xbf16>
    %90 = vector.shape_cast %89 : vector<8x1x256xbf16> to vector<8x256xbf16>
    %91 = vector.shape_cast %88 : vector<8x256xbf16> to vector<8x1x256xbf16>
    tpu.vector_store %arg12[%c0_36, %c4, %c0_37], %91 {strides = array<i32>} : memref<8x8x256xbf16, #tpu.memory_space<vmem>>, vector<8x1x256xbf16>,
    %92 = vector.extract_strided_slice %36 {offsets = [0, 8, 0], sizes = [8, 1, 256], strides = [1, 1, 1]} : vector<8x14x256xf32> to vector<8x1x256xf32>
    %93 = vector.shape_cast %92 : vector<8x1x256xf32> to vector<8x256xf32>
    %94 = arith.truncf %93 : vector<8x256xf32> to vector<8x256xbf16>
    %c0_38 = arith.constant 0 : index
    %c4_39 = arith.constant 4 : index
    %c0_40 = arith.constant 0 : index
    %95 = vector.load %arg13[%c0_38, %c4_39, %c0_40] : memref<8x8x256xbf16, #tpu.memory_space<vmem>>, vector<8x1x256xbf16>
    %96 = vector.shape_cast %95 : vector<8x1x256xbf16> to vector<8x256xbf16>
    %97 = vector.shape_cast %94 : vector<8x256xbf16> to vector<8x1x256xbf16>
    tpu.vector_store %arg13[%c0_38, %c4_39, %c0_40], %97 {strides = array<i32>} : memref<8x8x256xbf16, #tpu.memory_space<vmem>>, vector<8x1x256xbf16>,
    %98 = vector.extract_strided_slice %36 {offsets = [0, 9, 0], sizes = [8, 1, 256], strides = [1, 1, 1]} : vector<8x14x256xf32> to vector<8x1x256xf32>
    %99 = vector.shape_cast %98 : vector<8x1x256xf32> to vector<8x256xf32>
    %100 = arith.truncf %99 : vector<8x256xf32> to vector<8x256xbf16>
    %c0_41 = arith.constant 0 : index
    %c5 = arith.constant 5 : index
    %c0_42 = arith.constant 0 : index
    %101 = vector.load %arg12[%c0_41, %c5, %c0_42] : memref<8x8x256xbf16, #tpu.memory_space<vmem>>, vector<8x1x256xbf16>
    %102 = vector.shape_cast %101 : vector<8x1x256xbf16> to vector<8x256xbf16>
    %103 = vector.shape_cast %100 : vector<8x256xbf16> to vector<8x1x256xbf16>
    tpu.vector_store %arg12[%c0_41, %c5, %c0_42], %103 {strides = array<i32>} : memref<8x8x256xbf16, #tpu.memory_space<vmem>>, vector<8x1x256xbf16>,
    %104 = vector.extract_strided_slice %36 {offsets = [0, 10, 0], sizes = [8, 1, 256], strides = [1, 1, 1]} : vector<8x14x256xf32> to vector<8x1x256xf32>
    %105 = vector.shape_cast %104 : vector<8x1x256xf32> to vector<8x256xf32>
    %106 = arith.truncf %105 : vector<8x256xf32> to vector<8x256xbf16>
    %c0_43 = arith.constant 0 : index
    %c5_44 = arith.constant 5 : index
    %c0_45 = arith.constant 0 : index
    %107 = vector.load %arg13[%c0_43, %c5_44, %c0_45] : memref<8x8x256xbf16, #tpu.memory_space<vmem>>, vector<8x1x256xbf16>
    %108 = vector.shape_cast %107 : vector<8x1x256xbf16> to vector<8x256xbf16>
    %109 = vector.shape_cast %106 : vector<8x256xbf16> to vector<8x1x256xbf16>
    tpu.vector_store %arg13[%c0_43, %c5_44, %c0_45], %109 {strides = array<i32>} : memref<8x8x256xbf16, #tpu.memory_space<vmem>>, vector<8x1x256xbf16>,
    %110 = vector.extract_strided_slice %36 {offsets = [0, 11, 0], sizes = [8, 1, 256], strides = [1, 1, 1]} : vector<8x14x256xf32> to vector<8x1x256xf32>
    %111 = vector.shape_cast %110 : vector<8x1x256xf32> to vector<8x256xf32>
    %112 = arith.truncf %111 : vector<8x256xf32> to vector<8x256xbf16>
    %c0_46 = arith.constant 0 : index
    %c6 = arith.constant 6 : index
    %c0_47 = arith.constant 0 : index
    %113 = vector.load %arg12[%c0_46, %c6, %c0_47] : memref<8x8x256xbf16, #tpu.memory_space<vmem>>, vector<8x1x256xbf16>
    %114 = vector.shape_cast %113 : vector<8x1x256xbf16> to vector<8x256xbf16>
    %115 = vector.shape_cast %112 : vector<8x256xbf16> to vector<8x1x256xbf16>
    tpu.vector_store %arg12[%c0_46, %c6, %c0_47], %115 {strides = array<i32>} : memref<8x8x256xbf16, #tpu.memory_space<vmem>>, vector<8x1x256xbf16>,
    %116 = vector.extract_strided_slice %36 {offsets = [0, 12, 0], sizes = [8, 1, 256], strides = [1, 1, 1]} : vector<8x14x256xf32> to vector<8x1x256xf32>
    %117 = vector.shape_cast %116 : vector<8x1x256xf32> to vector<8x256xf32>
    %118 = arith.truncf %117 : vector<8x256xf32> to vector<8x256xbf16>
    %c0_48 = arith.constant 0 : index
    %c6_49 = arith.constant 6 : index
    %c0_50 = arith.constant 0 : index
    %119 = vector.load %arg13[%c0_48, %c6_49, %c0_50] : memref<8x8x256xbf16, #tpu.memory_space<vmem>>, vector<8x1x256xbf16>
    %120 = vector.shape_cast %119 : vector<8x1x256xbf16> to vector<8x256xbf16>
    %121 = vector.shape_cast %118 : vector<8x256xbf16> to vector<8x1x256xbf16>
    tpu.vector_store %arg13[%c0_48, %c6_49, %c0_50], %121 {strides = array<i32>} : memref<8x8x256xbf16, #tpu.memory_space<vmem>>, vector<8x1x256xbf16>,
    %122 = vector.extract_strided_slice %36 {offsets = [0, 13, 0], sizes = [8, 1, 256], strides = [1, 1, 1]} : vector<8x14x256xf32> to vector<8x1x256xf32>
    %123 = vector.shape_cast %122 : vector<8x1x256xf32> to vector<8x256xf32>
    %124 = arith.truncf %123 : vector<8x256xf32> to vector<8x256xbf16>
    %c0_51 = arith.constant 0 : index
    %c7_52 = arith.constant 7 : index
    %c0_53 = arith.constant 0 : index
    %125 = vector.load %arg12[%c0_51, %c7_52, %c0_53] : memref<8x8x256xbf16, #tpu.memory_space<vmem>>, vector<8x1x256xbf16>
    %126 = vector.shape_cast %125 : vector<8x1x256xbf16> to vector<8x256xbf16>
    %127 = vector.shape_cast %124 : vector<8x256xbf16> to vector<8x1x256xbf16>
    tpu.vector_store %arg12[%c0_51, %c7_52, %c0_53], %127 {strides = array<i32>} : memref<8x8x256xbf16, #tpu.memory_space<vmem>>, vector<8x1x256xbf16>,
    %c0_54 = arith.constant 0 : index
    %c0_55 = arith.constant 0 : index
    %128 = vector.load %arg5[%c0_54, %c0_55] : memref<256x1536xbf16, #tpu.memory_space<vmem>>, vector<256x1536xbf16>
    %c0_56 = arith.constant 0 : index
    %c0_57 = arith.constant 0 : index
    %c0_58 = arith.constant 0 : index
    %129 = vector.load %arg12[%c0_56, %c0_57, %c0_58] : memref<8x8x256xbf16, #tpu.memory_space<vmem>>, vector<8x8x256xbf16>
    %130 = vector.shape_cast %129 : vector<8x8x256xbf16> to vector<64x256xbf16>
    %cst_59 = arith.constant dense<0.000000e+00> : vector<64x1536xf32>
    %131 = tpu.matmul %130, %128, %cst_59 {dimension_numbers = #tpu.dot_dimension_numbers<[1], [0], [0], [1], [0, 0, 1, 1], [], []>} : vector<64x256xbf16>, vector<256x1536xbf16>, vector<64x1536xf32> -> vector<64x1536xf32>
    %132 = vector.shape_cast %131 : vector<64x1536xf32> to vector<8x8x1536xf32>
    %c0_60 = arith.constant 0 : index
    %c0_61 = arith.constant 0 : index
    %c0_62 = arith.constant 0 : index
    %133 = vector.load %arg13[%c0_60, %c0_61, %c0_62] : memref<8x8x256xbf16, #tpu.memory_space<vmem>>, vector<8x8x256xbf16>
    %134 = vector.shape_cast %133 : vector<8x8x256xbf16> to vector<64x256xbf16>
    %cst_63 = arith.constant dense<0.000000e+00> : vector<64x1536xf32>
    %135 = tpu.matmul %134, %128, %cst_63 {dimension_numbers = #tpu.dot_dimension_numbers<[1], [0], [0], [1], [0, 0, 1, 1], [], []>} : vector<64x256xbf16>, vector<256x1536xbf16>, vector<64x1536xf32> -> vector<64x1536xf32>
    %136 = vector.shape_cast %135 : vector<64x1536xf32> to vector<8x8x1536xf32>
    %c0_64 = arith.constant 0 : index
    %c0_65 = arith.constant 0 : index
    %137 = vector.load %arg6[%c0_64, %c0_65] : memref<1x512xf32, #tpu.memory_space<vmem>>, vector<1x512xf32>
    %138 = vector.extract_strided_slice %132 {offsets = [0, 0, 0], sizes = [8, 7, 512], strides = [1, 1, 1]} : vector<8x8x1536xf32> to vector<8x7x512xf32>
    %139 = vector.extract_strided_slice %136 {offsets = [0, 0, 512], sizes = [8, 7, 512], strides = [1, 1, 1]} : vector<8x8x1536xf32> to vector<8x7x512xf32>
    %140 = arith.addf %138, %139 : vector<8x7x512xf32>
    %141 = vector.extract_strided_slice %132 {offsets = [0, 1, 1024], sizes = [8, 7, 512], strides = [1, 1, 1]} : vector<8x8x1536xf32> to vector<8x7x512xf32>
    %142 = arith.addf %140, %141 : vector<8x7x512xf32>
    %143 = vector.extract_strided_slice %136 {offsets = [0, 0, 0], sizes = [8, 7, 512], strides = [1, 1, 1]} : vector<8x8x1536xf32> to vector<8x7x512xf32>
    %144 = vector.extract_strided_slice %132 {offsets = [0, 1, 512], sizes = [8, 7, 512], strides = [1, 1, 1]} : vector<8x8x1536xf32> to vector<8x7x512xf32>
    %145 = arith.addf %143, %144 : vector<8x7x512xf32>
    %146 = vector.extract_strided_slice %136 {offsets = [0, 1, 1024], sizes = [8, 7, 512], strides = [1, 1, 1]} : vector<8x8x1536xf32> to vector<8x7x512xf32>
    %147 = arith.addf %145, %146 : vector<8x7x512xf32>
    %148 = vector.shape_cast %137 : vector<1x512xf32> to vector<1x1x512xf32>
    %149 = vector.broadcast %148 : vector<1x1x512xf32> to vector<8x7x512xf32>
    %150 = arith.addf %142, %149 : vector<8x7x512xf32>
    %cst_66 = arith.constant 0.000000e+00 : f32
    %151 = vector.broadcast %cst_66 : f32 to vector<8x7x512xf32>
    %152 = arith.maximumf %150, %151 : vector<8x7x512xf32>
    %153 = vector.shape_cast %137 : vector<1x512xf32> to vector<1x1x512xf32>
    %154 = vector.broadcast %153 : vector<1x1x512xf32> to vector<8x7x512xf32>
    %155 = arith.addf %147, %154 : vector<8x7x512xf32>
    %cst_67 = arith.constant 0.000000e+00 : f32
    %156 = vector.broadcast %cst_67 : f32 to vector<8x7x512xf32>
    %157 = arith.maximumf %155, %156 : vector<8x7x512xf32>
    %158 = vector.extract_strided_slice %152 {offsets = [0, 0, 0], sizes = [8, 7, 256], strides = [1, 1, 1]} : vector<8x7x512xf32> to vector<8x7x256xf32>
    %159 = vector.extract_strided_slice %152 {offsets = [0, 0, 256], sizes = [8, 7, 256], strides = [1, 1, 1]} : vector<8x7x512xf32> to vector<8x7x256xf32>
    %160 = arith.maximumf %158, %159 : vector<8x7x256xf32>
    %161 = vector.extract_strided_slice %157 {offsets = [0, 0, 0], sizes = [8, 7, 256], strides = [1, 1, 1]} : vector<8x7x512xf32> to vector<8x7x256xf32>
    %162 = vector.extract_strided_slice %157 {offsets = [0, 0, 256], sizes = [8, 7, 256], strides = [1, 1, 1]} : vector<8x7x512xf32> to vector<8x7x256xf32>
    %163 = arith.maximumf %161, %162 : vector<8x7x256xf32>
    %164 = arith.maximumf %160, %163 : vector<8x7x256xf32>
    %165 = vector.extract_strided_slice %164 {offsets = [0, 0, 0], sizes = [8, 1, 256], strides = [1, 1, 1]} : vector<8x7x256xf32> to vector<8x1x256xf32>
    %166 = vector.shape_cast %165 : vector<8x1x256xf32> to vector<8x256xf32>
    %167 = arith.truncf %166 : vector<8x256xf32> to vector<8x256xbf16>
    %c0_68 = arith.constant 0 : index
    %c0_69 = arith.constant 0 : index
    %168 = vector.load %arg14[%c0_68, %c0_69] : memref<8x1792xbf16, #tpu.memory_space<vmem>>, vector<8x256xbf16>
    tpu.vector_store %arg14[%c0_68, %c0_69], %167 {strides = array<i32>} : memref<8x1792xbf16, #tpu.memory_space<vmem>>, vector<8x256xbf16>,
    %169 = vector.extract_strided_slice %164 {offsets = [0, 1, 0], sizes = [8, 1, 256], strides = [1, 1, 1]} : vector<8x7x256xf32> to vector<8x1x256xf32>
    %170 = vector.shape_cast %169 : vector<8x1x256xf32> to vector<8x256xf32>
    %171 = arith.truncf %170 : vector<8x256xf32> to vector<8x256xbf16>
    %c0_70 = arith.constant 0 : index
    %c256 = arith.constant 256 : index
    %172 = vector.load %arg14[%c0_70, %c256] : memref<8x1792xbf16, #tpu.memory_space<vmem>>, vector<8x256xbf16>
    tpu.vector_store %arg14[%c0_70, %c256], %171 {strides = array<i32>} : memref<8x1792xbf16, #tpu.memory_space<vmem>>, vector<8x256xbf16>,
    %173 = vector.extract_strided_slice %164 {offsets = [0, 2, 0], sizes = [8, 1, 256], strides = [1, 1, 1]} : vector<8x7x256xf32> to vector<8x1x256xf32>
    %174 = vector.shape_cast %173 : vector<8x1x256xf32> to vector<8x256xf32>
    %175 = arith.truncf %174 : vector<8x256xf32> to vector<8x256xbf16>
    %c0_71 = arith.constant 0 : index
    %c512 = arith.constant 512 : index
    %176 = vector.load %arg14[%c0_71, %c512] : memref<8x1792xbf16, #tpu.memory_space<vmem>>, vector<8x256xbf16>
    tpu.vector_store %arg14[%c0_71, %c512], %175 {strides = array<i32>} : memref<8x1792xbf16, #tpu.memory_space<vmem>>, vector<8x256xbf16>,
    %177 = vector.extract_strided_slice %164 {offsets = [0, 3, 0], sizes = [8, 1, 256], strides = [1, 1, 1]} : vector<8x7x256xf32> to vector<8x1x256xf32>
    %178 = vector.shape_cast %177 : vector<8x1x256xf32> to vector<8x256xf32>
    %179 = arith.truncf %178 : vector<8x256xf32> to vector<8x256xbf16>
    %c0_72 = arith.constant 0 : index
    %c768 = arith.constant 768 : index
    %180 = vector.load %arg14[%c0_72, %c768] : memref<8x1792xbf16, #tpu.memory_space<vmem>>, vector<8x256xbf16>
    tpu.vector_store %arg14[%c0_72, %c768], %179 {strides = array<i32>} : memref<8x1792xbf16, #tpu.memory_space<vmem>>, vector<8x256xbf16>,
    %181 = vector.extract_strided_slice %164 {offsets = [0, 4, 0], sizes = [8, 1, 256], strides = [1, 1, 1]} : vector<8x7x256xf32> to vector<8x1x256xf32>
    %182 = vector.shape_cast %181 : vector<8x1x256xf32> to vector<8x256xf32>
    %183 = arith.truncf %182 : vector<8x256xf32> to vector<8x256xbf16>
    %c0_73 = arith.constant 0 : index
    %c1024 = arith.constant 1024 : index
    %184 = vector.load %arg14[%c0_73, %c1024] : memref<8x1792xbf16, #tpu.memory_space<vmem>>, vector<8x256xbf16>
    tpu.vector_store %arg14[%c0_73, %c1024], %183 {strides = array<i32>} : memref<8x1792xbf16, #tpu.memory_space<vmem>>, vector<8x256xbf16>,
    %185 = vector.extract_strided_slice %164 {offsets = [0, 5, 0], sizes = [8, 1, 256], strides = [1, 1, 1]} : vector<8x7x256xf32> to vector<8x1x256xf32>
    %186 = vector.shape_cast %185 : vector<8x1x256xf32> to vector<8x256xf32>
    %187 = arith.truncf %186 : vector<8x256xf32> to vector<8x256xbf16>
    %c0_74 = arith.constant 0 : index
    %c1280 = arith.constant 1280 : index
    %188 = vector.load %arg14[%c0_74, %c1280] : memref<8x1792xbf16, #tpu.memory_space<vmem>>, vector<8x256xbf16>
    tpu.vector_store %arg14[%c0_74, %c1280], %187 {strides = array<i32>} : memref<8x1792xbf16, #tpu.memory_space<vmem>>, vector<8x256xbf16>,
    %189 = vector.extract_strided_slice %164 {offsets = [0, 6, 0], sizes = [8, 1, 256], strides = [1, 1, 1]} : vector<8x7x256xf32> to vector<8x1x256xf32>
    %190 = vector.shape_cast %189 : vector<8x1x256xf32> to vector<8x256xf32>
    %191 = arith.truncf %190 : vector<8x256xf32> to vector<8x256xbf16>
    %c0_75 = arith.constant 0 : index
    %c1536 = arith.constant 1536 : index
    %192 = vector.load %arg14[%c0_75, %c1536] : memref<8x1792xbf16, #tpu.memory_space<vmem>>, vector<8x256xbf16>
    tpu.vector_store %arg14[%c0_75, %c1536], %191 {strides = array<i32>} : memref<8x1792xbf16, #tpu.memory_space<vmem>>, vector<8x256xbf16>,
    %c0_76 = arith.constant 0 : index
    %c0_77 = arith.constant 0 : index
    %193 = vector.load %arg14[%c0_76, %c0_77] : memref<8x1792xbf16, #tpu.memory_space<vmem>>, vector<8x1792xbf16>
    %c0_78 = arith.constant 0 : index
    %c0_79 = arith.constant 0 : index
    %194 = vector.load %arg7[%c0_78, %c0_79] : memref<1792x256xbf16, #tpu.memory_space<vmem>>, vector<1792x256xbf16>
    %cst_80 = arith.constant dense<0.000000e+00> : vector<8x256xf32>
    %195 = tpu.matmul %193, %194, %cst_80 {dimension_numbers = #tpu.dot_dimension_numbers<[1], [0], [0], [1], [0, 0, 1, 1], [], []>} : vector<8x1792xbf16>, vector<1792x256xbf16>, vector<8x256xf32> -> vector<8x256xf32>
    %c0_81 = arith.constant 0 : index
    %c0_82 = arith.constant 0 : index
    %196 = vector.load %arg8[%c0_81, %c0_82] : memref<1x256xf32, #tpu.memory_space<vmem>>, vector<1x256xf32>
    %197 = vector.broadcast %196 : vector<1x256xf32> to vector<8x256xf32>
    %198 = arith.addf %195, %197 : vector<8x256xf32>
    %cst_83 = arith.constant 0.000000e+00 : f32
    %199 = vector.broadcast %cst_83 : f32 to vector<8x256xf32>
    %200 = arith.maximumf %198, %199 : vector<8x256xf32>
    %201 = arith.truncf %200 : vector<8x256xf32> to vector<8x256xbf16>
    %c0_84 = arith.constant 0 : index
    %c0_85 = arith.constant 0 : index
    %202 = vector.load %arg9[%c0_84, %c0_85] : memref<256x128xbf16, #tpu.memory_space<vmem>>, vector<256x128xbf16>
    %cst_86 = arith.constant dense<0.000000e+00> : vector<8x128xf32>
    %203 = tpu.matmul %201, %202, %cst_86 {dimension_numbers = #tpu.dot_dimension_numbers<[1], [0], [0], [1], [0, 0, 1, 1], [], []>} : vector<8x256xbf16>, vector<256x128xbf16>, vector<8x128xf32> -> vector<8x128xf32>
    %c0_87 = arith.constant 0 : index
    %c0_88 = arith.constant 0 : index
    %204 = vector.load %arg10[%c0_87, %c0_88] : memref<1x128xf32, #tpu.memory_space<vmem>>, vector<1x128xf32>
    %205 = vector.broadcast %204 : vector<1x128xf32> to vector<8x128xf32>
    %206 = arith.addf %203, %205 : vector<8x128xf32>
    %c0_89 = arith.constant 0 : index
    %c0_90 = arith.constant 0 : index
    %207 = vector.load %arg11[%c0_89, %c0_90] : memref<8x128xf32, #tpu.memory_space<vmem>>, vector<8x128xf32>
    tpu.vector_store %arg11[%c0_89, %c0_90], %206 {strides = array<i32>} : memref<8x128xf32, #tpu.memory_space<vmem>>, vector<8x128xf32>,
    return
  }
  func.func @transform_0(%arg0: i32) -> (i32, i32, i32) {
    %c0_i32 = arith.constant 0 : i32
    %c0_i32_0 = arith.constant 0 : i32
    %c0_i32_1 = arith.constant 0 : i32
    return %arg0, %c0_i32, %c0_i32_0 : i32, i32, i32
  }
  func.func @transform_1(%arg0: i32) -> (i32, i32, i32) {
    %c0_i32 = arith.constant 0 : i32
    %c0_i32_0 = arith.constant 0 : i32
    %c0_i32_1 = arith.constant 0 : i32
    return %arg0, %c0_i32, %c0_i32_0 : i32, i32, i32
  }
  func.func @transform_2(%arg0: i32) -> (i32, i32) {
    %c0_i32 = arith.constant 0 : i32
    %c0_i32_0 = arith.constant 0 : i32
    %c0_i32_1 = arith.constant 0 : i32
    return %c0_i32, %c0_i32_0 : i32, i32
  }
  func.func @transform_3(%arg0: i32) -> (i32, i32) {
    %c0_i32 = arith.constant 0 : i32
    %c0_i32_0 = arith.constant 0 : i32
    %c0_i32_1 = arith.constant 0 : i32
    return %c0_i32, %c0_i32_0 : i32, i32
  }
  func.func @transform_4(%arg0: i32) -> (i32, i32) {
    %c0_i32 = arith.constant 0 : i32
    %c0_i32_0 = arith.constant 0 : i32
    %c0_i32_1 = arith.constant 0 : i32
    return %c0_i32, %c0_i32_0 : i32, i32
  }
  func.func @transform_5(%arg0: i32) -> (i32, i32) {
    %c0_i32 = arith.constant 0 : i32
    %c0_i32_0 = arith.constant 0 : i32
    %c0_i32_1 = arith.constant 0 : i32
    return %c0_i32, %c0_i32_0 : i32, i32
  }
  func.func @transform_6(%arg0: i32) -> (i32, i32) {
    %c0_i32 = arith.constant 0 : i32
    %c0_i32_0 = arith.constant 0 : i32
    %c0_i32_1 = arith.constant 0 : i32
    return %c0_i32, %c0_i32_0 : i32, i32
  }
  func.func @transform_7(%arg0: i32) -> (i32, i32) {
    %c0_i32 = arith.constant 0 : i32
    %c0_i32_0 = arith.constant 0 : i32
    %c0_i32_1 = arith.constant 0 : i32
    return %c0_i32, %c0_i32_0 : i32, i32
  }
  func.func @transform_8(%arg0: i32) -> (i32, i32) {
    %c0_i32 = arith.constant 0 : i32
    %c0_i32_0 = arith.constant 0 : i32
    %c0_i32_1 = arith.constant 0 : i32
    return %c0_i32, %c0_i32_0 : i32, i32
  }
  func.func @transform_9(%arg0: i32) -> (i32, i32) {
    %c0_i32 = arith.constant 0 : i32
    %c0_i32_0 = arith.constant 0 : i32
    %c0_i32_1 = arith.constant 0 : i32
    return %c0_i32, %c0_i32_0 : i32, i32
  }
  func.func @transform_10(%arg0: i32) -> (i32, i32) {
    %c0_i32 = arith.constant 0 : i32
    %c0_i32_0 = arith.constant 0 : i32
    return %arg0, %c0_i32 : i32, i32
  }
}

</mosaic_0001>

<llo_original>
// kernel: cnn_forward.1
$region0: #{cnn_forward.1}
  #allocation0 [shape = 'u32[]', space=smem, size = 0x4, offset = 0x4, fixed_abs, tag = 'smem constant byte address 0x4 - core index']
  #allocation1 [shape = 'u32[144,128]{1,0:T(1,128)}', space=vmem, size = 0x12000, scoped, tag = 'internal scratch']
  #allocation2 [shape = 'bf16[8,8,256]{2,1,0:T(8,128)(2,1)}', space=vmem, size = 0x8000, scoped, tag = 'scratch operand']
  #allocation3 [shape = 'bf16[8,8,256]{2,1,0:T(8,128)(2,1)}', space=vmem, size = 0x8000, scoped, tag = 'scratch operand']
  #allocation4 [shape = 'bf16[8,1792]{1,0:T(8,128)(2,1)}', space=vmem, size = 0x7000, scoped, tag = 'scratch operand']
  %s0 = inlined_call_operand.vmem [shape: bf16[16,16,32], index: 0, kind: input, shape index: {}]
  %s1 = inlined_call_operand.vmem [shape: bf16[16,16,32], index: 1, kind: input, shape index: {}]
  %s2 = inlined_call_operand.vmem [shape: bf16[32,1536], index: 2, kind: input, shape index: {}]
  %s3 = inlined_call_operand.vmem [shape: f32[1,512], index: 3, kind: input, shape index: {}]
  %s4 = inlined_call_operand.hbm [shape: bf16[256,1536], index: 4, kind: input, shape index: {}]
  %s5 = inlined_call_operand.vmem [shape: f32[1,512], index: 5, kind: input, shape index: {}]
  %s6 = inlined_call_operand.hbm [shape: bf16[1792,256], index: 6, kind: input, shape index: {}]
  %s7 = inlined_call_operand.vmem [shape: f32[1,256], index: 7, kind: input, shape index: {}]
  %s8 = inlined_call_operand.vmem [shape: bf16[256,128], index: 8, kind: input, shape index: {}]
  %s9 = inlined_call_operand.vmem [shape: f32[1,128], index: 9, kind: input, shape index: {}]
  %s10 = inlined_call_operand.vmem [shape: f32[16,128], index: 10, kind: output, shape index: {}]
  %s11 = sld [smem:[#allocation0]]
  $region81: #{cnn_forward.1} parent=0
    _
  %s13 = ssub.s32 1, %s11
  %s14 = scalar_select 0, %s13, %s11
  $region1: #{cnn_forward.1} parent=0
    #allocation5 [shape = 'u8[786432]{0}', space=vmem, size = 0xc0000, scoped, tag = 'input window, operand 4, single buffered']
    #allocation6 [shape = 's32[2]{0}', space=sflag, size = 0x8, scoped, tag = 'scoped memory for cnn_forward.1']
    #allocation7 [shape = 'u8[917504]{0}', space=vmem, size = 0xe0000, scoped, tag = 'input window, operand 6, single buffered']
    #allocation8 [shape = 's32[1]{0}', space=sflag, size = 0x4, scoped, tag = 'scoped memory for cnn_forward.1']
    %15 = vsyncpa [#allocation6], 0
    %16 = vsyncpa [#allocation8], 0
    loop: start=0, step=1, limit=4
    $region2: #{cnn_forward.1} parent=1 // loop_pre_header
      _
    $region3: #{cnn_forward.1} parent=1 // loop_header
      %s18 = sphi 0, %s22
      %p19 = scmp.ge.s32.totalorder %s18, 4
      %s28 = sphi 0, %s30
      %s31 = sphi 0, %s28
      %s32 = sphi 0, %s31
      %s48 = sphi 0, %s32
      %s54 = sphi 0, %s56
      %s57 = sphi 0, %s54
      %s58 = sphi 0, %s57
      %s74 = sphi 0, %s58
      %s78 = sphi 0, %s78
      %s80 = sphi 0, %s78
      %s81 = sphi 0, %s80
      %s95 = sphi 0, %s81
      %s99 = sphi 0, %s99
      %s101 = sphi 0, %s99
      %s102 = sphi 0, %s101
      %s116 = sphi 0, %s102
      %s120 = sphi 0, %s120
      %s122 = sphi 0, %s120
      %s123 = sphi 0, %s122
      %s137 = sphi 0, %s123
      %s141 = sphi 0, %s141
      %s143 = sphi 0, %s141
      %s144 = sphi 0, %s143
      %s158 = sphi 0, %s144
      %s162 = sphi 0, %s162
      %s164 = sphi 0, %s162
      %s165 = sphi 0, %s164
      %s179 = sphi 0, %s165
      %s183 = sphi 0, %s183
      %s185 = sphi 0, %s183
      %s186 = sphi 0, %s185
      %s200 = sphi 0, %s186
      %s204 = sphi 0, %s204
      %s206 = sphi 0, %s204
      %s207 = sphi 0, %s206
      %s221 = sphi 0, %s207
      %s225 = sphi 0, %s225
      %s227 = sphi 0, %s225
      %s228 = sphi 0, %s227
      %s242 = sphi 0, %s228
      %s248 = sphi 0, %s250
      %s251 = sphi 0, %s248
      %s252 = sphi 0, %s251
      %s268 = sphi 0, %s252
    $region4: #{cnn_forward.1} parent=1 // loop_header_branch
      %21 = sbr.rel (%p19) target = $region8
    $region5: #{cnn_forward.1} parent=1 // loop_body
      %s23 = ssub.s32 %s18, 1
      %s24 = ssub.s32 %s18, 2
      %s25 = sadd.s32 %s18, 1
      %s26 = ssub.s32 %s18, %s25
      %p27 = scmp.eq.s32.totalorder %s26, 0
      %s29 = sadd.s32 %s28, 1
      %s30 = scalar_select %p27, %s28, %s29
      %p33 = pneg %p27
      %p34 = scmp.eq.s32.totalorder %s18, 1
      %p35 = por %p33, %p34
      %p36 = scmp.ne.s32.totalorder %s28, %s31
      %p37 = scmp.eq.s32.totalorder %s18, 0
      %p38 = por %p36, %p37
      %p39 = scmp.ne.s32.totalorder %s28, %s31
      %p40 = scmp.eq.s32.totalorder %s23, 1
      %p41 = por %p39, %p40
      %p42 = scmp.ne.s32.totalorder %s31, %s32
      %p43 = scmp.eq.s32.totalorder %s23, 0
      %p44 = por %p42, %p43
      %p45 = scmp.ne.s32.totalorder %s31, %s32
      %p46 = scmp.eq.s32.totalorder %s24, 1
      %p47 = por %p45, %p46
      %p49 = scmp.ne.s32.totalorder %s32, %s48
      %p50 = scmp.eq.s32.totalorder %s24, 0
      %p51 = por %p49, %p50
      %s52 = ssub.s32 %s18, %s25
      %p53 = scmp.eq.s32.totalorder %s52, 0
      %s55 = sadd.s32 %s54, 1
      %s56 = scalar_select %p53, %s54, %s55
      %p59 = pneg %p53
      %p60 = scmp.eq.s32.totalorder %s18, 1
      %p61 = por %p59, %p60
      %p62 = scmp.ne.s32.totalorder %s54, %s57
      %p63 = scmp.eq.s32.totalorder %s18, 0
      %p64 = por %p62, %p63
      %p65 = scmp.ne.s32.totalorder %s54, %s57
      %p66 = scmp.eq.s32.totalorder %s23, 1
      %p67 = por %p65, %p66
      %p68 = scmp.ne.s32.totalorder %s57, %s58
      %p69 = scmp.eq.s32.totalorder %s23, 0
      %p70 = por %p68, %p69
      %p71 = scmp.ne.s32.totalorder %s57, %s58
      %p72 = scmp.eq.s32.totalorder %s24, 1
      %p73 = por %p71, %p72
      %p75 = scmp.ne.s32.totalorder %s58, %s74
      %p76 = scmp.eq.s32.totalorder %s24, 0
      %p77 = por %p75, %p76
      %s79 = sadd.s32 %s78, 1
      %p82 = scmp.eq.s32.totalorder %s18, 1
      %p83 = scmp.ne.s32.totalorder %s78, %s80
      %p84 = scmp.eq.s32.totalorder %s18, 0
      %p85 = por %p83, %p84
      %p86 = scmp.ne.s32.totalorder %s78, %s80
      %p87 = scmp.eq.s32.totalorder %s23, 1
      %p88 = por %p86, %p87
      %p89 = scmp.ne.s32.totalorder %s80, %s81
      %p90 = scmp.eq.s32.totalorder %s23, 0
      %p91 = por %p89, %p90
      %p92 = scmp.ne.s32.totalorder %s80, %s81
      %p93 = scmp.eq.s32.totalorder %s24, 1
      %p94 = por %p92, %p93
      %p96 = scmp.ne.s32.totalorder %s81, %s95
      %p97 = scmp.eq.s32.totalorder %s24, 0
      %p98 = por %p96, %p97
      %s100 = sadd.s32 %s99, 1
      %p103 = scmp.eq.s32.totalorder %s18, 1
      %p104 = scmp.ne.s32.totalorder %s99, %s101
      %p105 = scmp.eq.s32.totalorder %s18, 0
      %p106 = por %p104, %p105
      %p107 = scmp.ne.s32.totalorder %s99, %s101
      %p108 = scmp.eq.s32.totalorder %s23, 1
      %p109 = por %p107, %p108
      %p110 = scmp.ne.s32.totalorder %s101, %s102
      %p111 = scmp.eq.s32.totalorder %s23, 0
      %p112 = por %p110, %p111
      %p113 = scmp.ne.s32.totalorder %s101, %s102
      %p114 = scmp.eq.s32.totalorder %s24, 1
      %p115 = por %p113, %p114
      %p117 = scmp.ne.s32.totalorder %s102, %s116
      %p118 = scmp.eq.s32.totalorder %s24, 0
      %p119 = por %p117, %p118
      %s121 = sadd.s32 %s120, 1
      %p124 = scmp.eq.s32.totalorder %s18, 1
      %p125 = scmp.ne.s32.totalorder %s120, %s122
      %p126 = scmp.eq.s32.totalorder %s18, 0
      %p127 = por %p125, %p126
      %p128 = scmp.ne.s32.totalorder %s120, %s122
      %p129 = scmp.eq.s32.totalorder %s23, 1
      %p130 = por %p128, %p129
      %p131 = scmp.ne.s32.totalorder %s122, %s123
      %p132 = scmp.eq.s32.totalorder %s23, 0
      %p133 = por %p131, %p132
      %p134 = scmp.ne.s32.totalorder %s122, %s123
      %p135 = scmp.eq.s32.totalorder %s24, 1
      %p136 = por %p134, %p135
      %p138 = scmp.ne.s32.totalorder %s123, %s137
      %p139 = scmp.eq.s32.totalorder %s24, 0
      %p140 = por %p138, %p139
      %s142 = sadd.s32 %s141, 1
      %p145 = scmp.eq.s32.totalorder %s18, 1
      %p146 = scmp.ne.s32.totalorder %s141, %s143
      %p147 = scmp.eq.s32.totalorder %s18, 0
      %p148 = por %p146, %p147
      %p149 = scmp.ne.s32.totalorder %s141, %s143
      %p150 = scmp.eq.s32.totalorder %s23, 1
      %p151 = por %p149, %p150
      %p152 = scmp.ne.s32.totalorder %s143, %s144
      %p153 = scmp.eq.s32.totalorder %s23, 0
      %p154 = por %p152, %p153
      %p155 = scmp.ne.s32.totalorder %s143, %s144
      %p156 = scmp.eq.s32.totalorder %s24, 1
      %p157 = por %p155, %p156
      %p159 = scmp.ne.s32.totalorder %s144, %s158
      %p160 = scmp.eq.s32.totalorder %s24, 0
      %p161 = por %p159, %p160
      %s163 = sadd.s32 %s162, 1
      %p166 = scmp.eq.s32.totalorder %s18, 1
      %p167 = scmp.ne.s32.totalorder %s162, %s164
      %p168 = scmp.eq.s32.totalorder %s18, 0
      %p169 = por %p167, %p168
      %p170 = scmp.ne.s32.totalorder %s162, %s164
      %p171 = scmp.eq.s32.totalorder %s23, 1
      %p172 = por %p170, %p171
      %p173 = scmp.ne.s32.totalorder %s164, %s165
      %p174 = scmp.eq.s32.totalorder %s23, 0
      %p175 = por %p173, %p174
      %p176 = scmp.ne.s32.totalorder %s164, %s165
      %p177 = scmp.eq.s32.totalorder %s24, 1
      %p178 = por %p176, %p177
      %p180 = scmp.ne.s32.totalorder %s165, %s179
      %p181 = scmp.eq.s32.totalorder %s24, 0
      %p182 = por %p180, %p181
      %s184 = sadd.s32 %s183, 1
      %p187 = scmp.eq.s32.totalorder %s18, 1
      %p188 = scmp.ne.s32.totalorder %s183, %s185
      %p189 = scmp.eq.s32.totalorder %s18, 0
      %p190 = por %p188, %p189
      %p191 = scmp.ne.s32.totalorder %s183, %s185
      %p192 = scmp.eq.s32.totalorder %s23, 1
      %p193 = por %p191, %p192
      %p194 = scmp.ne.s32.totalorder %s185, %s186
      %p195 = scmp.eq.s32.totalorder %s23, 0
      %p196 = por %p194, %p195
      %p197 = scmp.ne.s32.totalorder %s185, %s186
      %p198 = scmp.eq.s32.totalorder %s24, 1
      %p199 = por %p197, %p198
      %p201 = scmp.ne.s32.totalorder %s186, %s200
      %p202 = scmp.eq.s32.totalorder %s24, 0
      %p203 = por %p201, %p202
      %s205 = sadd.s32 %s204, 1
      %p208 = scmp.eq.s32.totalorder %s18, 1
      %p209 = scmp.ne.s32.totalorder %s204, %s206
      %p210 = scmp.eq.s32.totalorder %s18, 0
      %p211 = por %p209, %p210
      %p212 = scmp.ne.s32.totalorder %s204, %s206
      %p213 = scmp.eq.s32.totalorder %s23, 1
      %p214 = por %p212, %p213
      %p215 = scmp.ne.s32.totalorder %s206, %s207
      %p216 = scmp.eq.s32.totalorder %s23, 0
      %p217 = por %p215, %p216
      %p218 = scmp.ne.s32.totalorder %s206, %s207
      %p219 = scmp.eq.s32.totalorder %s24, 1
      %p220 = por %p218, %p219
      %p222 = scmp.ne.s32.totalorder %s207, %s221
      %p223 = scmp.eq.s32.totalorder %s24, 0
      %p224 = por %p222, %p223
      %s226 = sadd.s32 %s225, 1
      %p229 = scmp.eq.s32.totalorder %s18, 1
      %p230 = scmp.ne.s32.totalorder %s225, %s227
      %p231 = scmp.eq.s32.totalorder %s18, 0
      %p232 = por %p230, %p231
      %p233 = scmp.ne.s32.totalorder %s225, %s227
      %p234 = scmp.eq.s32.totalorder %s23, 1
      %p235 = por %p233, %p234
      %p236 = scmp.ne.s32.totalorder %s227, %s228
      %p237 = scmp.eq.s32.totalorder %s23, 0
      %p238 = por %p236, %p237
      %p239 = scmp.ne.s32.totalorder %s227, %s228
      %p240 = scmp.eq.s32.totalorder %s24, 1
      %p241 = por %p239, %p240
      %p243 = scmp.ne.s32.totalorder %s228, %s242
      %p244 = scmp.eq.s32.totalorder %s24, 0
      %p245 = por %p243, %p244
      %s246 = ssub.s32 %s18, %s25
      %p247 = scmp.eq.s32.totalorder %s246, 0
      %s249 = sadd.s32 %s248, 1
      %s250 = scalar_select %p247, %s248, %s249
      %p253 = pneg %p247
      %p254 = scmp.eq.s32.totalorder %s18, 1
      %p255 = por %p253, %p254
      %p256 = scmp.ne.s32.totalorder %s248, %s251
      %p257 = scmp.eq.s32.totalorder %s18, 0
      %p258 = por %p256, %p257
      %p259 = scmp.ne.s32.totalorder %s248, %s251
      %p260 = scmp.eq.s32.totalorder %s23, 1
      %p261 = por %p259, %p260
      %p262 = scmp.ne.s32.totalorder %s251, %s252
      %p263 = scmp.eq.s32.totalorder %s23, 0
      %p264 = por %p262, %p263
      %p265 = scmp.ne.s32.totalorder %s251, %s252
      %p266 = scmp.eq.s32.totalorder %s24, 1
      %p267 = por %p265, %p266
      %p269 = scmp.ne.s32.totalorder %s252, %s268
      %p270 = scmp.eq.s32.totalorder %s24, 0
      %p271 = por %p269, %p270
      %p272 = scmp.le.s32.totalorder 1, %s18
      %p273 = scmp.lt.s32.totalorder %s18, 3
      %p274 = pnand %p272, %p273
      %p275 = pneg %p274
      // Predicated region
      $region9: #{cnn_forward.1} parent=5 // pred_check
        _
      $region10: #{cnn_forward.1} parent=5 // pred_check_branch
        %277 = sbr.rel (%p274) target = $region12
      $region11: #{cnn_forward.1} parent=5 // pred_region
        %s278 = ssub.s32 %s18, 1
        // Predicated region
        $region13: #{cnn_forward.1} parent=11 // pred_check
          %p279 = pneg %p91
        $region14: #{cnn_forward.1} parent=11 // pred_check_branch
          %281 = sbr.rel (%p279) target = $region16
        $region15: #{cnn_forward.1} parent=11 // pred_region
          _
        $region16: #{cnn_forward.1} parent=11 // pred_fallthru
          _
        // Predicated region
        $region17: #{cnn_forward.1} parent=11 // pred_check
          %p282 = pneg %p112
        $region18: #{cnn_forward.1} parent=11 // pred_check_branch
          %284 = sbr.rel (%p282) target = $region20
        $region19: #{cnn_forward.1} parent=11 // pred_region
          _
        $region20: #{cnn_forward.1} parent=11 // pred_fallthru
          _
        // Predicated region
        $region21: #{cnn_forward.1} parent=11 // pred_check
          %p285 = pneg %p133
        $region22: #{cnn_forward.1} parent=11 // pred_check_branch
          %287 = sbr.rel (%p285) target = $region24
        $region23: #{cnn_forward.1} parent=11 // pred_region
          %s289 = ssub.s32 24576, 24576
          %290 = vsyncadd [#allocation6], %s289
          %s291 = sshll.u32 [#allocation5], 4
          %s292 = int_to_ptr.vmem [resolvable:$true] %s291
          %297 = dma.hbm_to_vmem [thread:$0]  %s4, 24576, %s292, [#allocation6], 768, 768, 48
        $region24: #{cnn_forward.1} parent=11 // pred_fallthru
          _
        // Predicated region
        $region25: #{cnn_forward.1} parent=11 // pred_check
          %p298 = pneg %p154
        $region26: #{cnn_forward.1} parent=11 // pred_check_branch
          %300 = sbr.rel (%p298) target = $region28
        $region27: #{cnn_forward.1} parent=11 // pred_region
          _
        $region28: #{cnn_forward.1} parent=11 // pred_fallthru
          _
        // Predicated region
        $region29: #{cnn_forward.1} parent=11 // pred_check
          %p301 = pneg %p175
        $region30: #{cnn_forward.1} parent=11 // pred_check_branch
          %303 = sbr.rel (%p301) target = $region32
        $region31: #{cnn_forward.1} parent=11 // pred_region
          %s305 = ssub.s32 28672, 28672
          %306 = vsyncadd [#allocation8], %s305
          %s307 = sshll.u32 [#allocation7], 4
          %s308 = int_to_ptr.vmem [resolvable:$true] %s307
          %313 = dma.hbm_to_vmem [thread:$0]  %s6, 28672, %s308, [#allocation8], 128, 128, 8
        $region32: #{cnn_forward.1} parent=11 // pred_fallthru
          _
        // Predicated region
        $region33: #{cnn_forward.1} parent=11 // pred_check
          %p314 = pneg %p196
        $region34: #{cnn_forward.1} parent=11 // pred_check_branch
          %316 = sbr.rel (%p314) target = $region36
        $region35: #{cnn_forward.1} parent=11 // pred_region
          _
        $region36: #{cnn_forward.1} parent=11 // pred_fallthru
          _
        // Predicated region
        $region37: #{cnn_forward.1} parent=11 // pred_check
          %p317 = pneg %p217
        $region38: #{cnn_forward.1} parent=11 // pred_check_branch
          %319 = sbr.rel (%p317) target = $region40
        $region39: #{cnn_forward.1} parent=11 // pred_region
          _
        $region40: #{cnn_forward.1} parent=11 // pred_fallthru
          _
        // Predicated region
        $region41: #{cnn_forward.1} parent=11 // pred_check
          %p320 = pneg %p238
        $region42: #{cnn_forward.1} parent=11 // pred_check_branch
          %322 = sbr.rel (%p320) target = $region44
        $region43: #{cnn_forward.1} parent=11 // pred_region
          _
        $region44: #{cnn_forward.1} parent=11 // pred_fallthru
          _
      $region12: #{cnn_forward.1} parent=5 // pred_fallthru
        _
      %p323 = scmp.lt.s32.totalorder %s18, 2
      // Predicated region
      $region45: #{cnn_forward.1} parent=5 // pred_check
        %p324 = pneg %p323
      $region46: #{cnn_forward.1} parent=5 // pred_check_branch
        %326 = sbr.rel (%p324) target = $region48
      $region47: #{cnn_forward.1} parent=5 // pred_region
        // Predicated region
        $region49: #{cnn_forward.1} parent=47 // pred_check
          %p327 = pneg %p38
        $region50: #{cnn_forward.1} parent=47 // pred_check_branch
          %329 = sbr.rel (%p327) target = $region52
        $region51: #{cnn_forward.1} parent=47 // pred_region
          %s330 = smul.u32 8, %s18
          %p331 = scmp.lt.s32.totalorder %s330, 15
          %s332 = scalar_select %p331, %s330, 15
          %s333 = smul.addr %s332, 2
          %s334 = smul.addr %s333, 4
          %s335 = scalar_lea.vmem %s0, %s334
          %s336 = smul.u32 8, %s18
        $region52: #{cnn_forward.1} parent=47 // pred_fallthru
          _
        // Predicated region
        $region53: #{cnn_forward.1} parent=47 // pred_check
          %p337 = pneg %p64
        $region54: #{cnn_forward.1} parent=47 // pred_check_branch
          %339 = sbr.rel (%p337) target = $region56
        $region55: #{cnn_forward.1} parent=47 // pred_region
          %s340 = smul.u32 8, %s18
          %p341 = scmp.lt.s32.totalorder %s340, 15
          %s342 = scalar_select %p341, %s340, 15
          %s343 = smul.addr %s342, 2
          %s344 = smul.addr %s343, 4
          %s345 = scalar_lea.vmem %s1, %s344
          %s346 = smul.u32 8, %s18
        $region56: #{cnn_forward.1} parent=47 // pred_fallthru
          _
      $region48: #{cnn_forward.1} parent=5 // pred_fallthru
        _
      %p347 = scmp.le.s32.totalorder 1, %s18
      %p348 = scmp.lt.s32.totalorder %s18, 3
      %p349 = pnand %p347, %p348
      %p350 = pneg %p349
      // Predicated region
      $region57: #{cnn_forward.1} parent=5 // pred_check
        _
      $region58: #{cnn_forward.1} parent=5 // pred_check_branch
        %352 = sbr.rel (%p349) target = $region60
      $region59: #{cnn_forward.1} parent=5 // pred_region
        %s353 = ssub.s32 %s18, 1
        // Predicated region
        $region61: #{cnn_forward.1} parent=59 // pred_check
          %p354 = pneg %p133
        $region62: #{cnn_forward.1} parent=59 // pred_check_branch
          %356 = sbr.rel (%p354) target = $region64
        $region63: #{cnn_forward.1} parent=59 // pred_region
          %357 = dma.done [#allocation6], 24576
        $region64: #{cnn_forward.1} parent=59 // pred_fallthru
          _
        // Predicated region
        $region65: #{cnn_forward.1} parent=59 // pred_check
          %p358 = pneg %p175
        $region66: #{cnn_forward.1} parent=59 // pred_check_branch
          %360 = sbr.rel (%p358) target = $region68
        $region67: #{cnn_forward.1} parent=59 // pred_region
          %361 = dma.done [#allocation8], 28672
        $region68: #{cnn_forward.1} parent=59 // pred_fallthru
          _
        %s362 = smul.u32 8, %s23
        %p363 = scmp.lt.s32.totalorder %s362, 15
        %s364 = scalar_select %p363, %s362, 15
        %s365 = smul.addr %s364, 2
        %s366 = smul.addr %s365, 4
        %s367 = scalar_lea.vmem %s0, %s366
        %p368 = pneg %p44
        %p369 = pneg %p41
        %s370 = smul.u32 8, %s23
        %p371 = scmp.lt.s32.totalorder %s370, 15
        %s372 = scalar_select %p371, %s370, 15
        %s373 = smul.addr %s372, 2
        %s374 = smul.addr %s373, 4
        %s375 = scalar_lea.vmem %s1, %s374
        %p376 = pneg %p70
        %p377 = pneg %p67
        %p378 = pneg %p91
        %p379 = pneg %p88
        %p380 = pneg %p112
        %p381 = pneg %p109
        %p382 = pneg %p133
        %p383 = pneg %p130
        %p384 = pneg %p154
        %p385 = pneg %p151
        %p386 = pneg %p175
        %p387 = pneg %p172
        %p388 = pneg %p196
        %p389 = pneg %p193
        %p390 = pneg %p217
        %p391 = pneg %p214
        %p392 = pneg %p238
        %p393 = pneg %p235
        %p394 = pneg %p264
        %p395 = pneg %p261
        %p396 = scmp.lt.s32.totalorder %s23, 1
        %s397 = scalar_select %p396, %s23, 1
        %s398 = smul.addr %s397, 8
        %s399 = scalar_lea.vmem %s10, %s398
        %s400 = smul.u32 8, %s23
        %p401 = scmp.lt.s32.totalorder %s400, 15
        %s402 = scalar_select %p401, %s400, 15
        %s403 = smul.addr %s402, 2
        %s404 = smul.addr %s403, 4
        %s405 = scalar_lea.vmem %s0, %s404
        %s406 = smul.u32 8, %s23
        %s407 = smul.u32 8, %s23
        %p408 = scmp.lt.s32.totalorder %s407, 15
        %s409 = scalar_select %p408, %s407, 15
        %s410 = smul.addr %s409, 2
        %s411 = smul.addr %s410, 4
        %s412 = scalar_lea.vmem %s1, %s411
        %s413 = smul.u32 8, %s23
        %p414 = scmp.lt.s32.totalorder %s23, 1
        %s415 = scalar_select %p414, %s23, 1
        %s416 = smul.addr %s415, 8
        %s417 = scalar_lea.vmem %s10, %s416
        %v419 = vld [vmem:[%s2] sm:$0xff]
        %v420 = vld [vmem:[%s2 + $0x8] sm:$0xff]
        %v421 = vld [vmem:[%s2 + $0x10] sm:$0xff]
        %v422 = vld [vmem:[%s2 + $0x18] sm:$0xff]
        %v423 = vld [vmem:[%s2 + $0x20] sm:$0xff]
        %v424 = vld [vmem:[%s2 + $0x28] sm:$0xff]
        %v425 = vld [vmem:[%s2 + $0x30] sm:$0xff]
        %v426 = vld [vmem:[%s2 + $0x38] sm:$0xff]
        %v427 = vld [vmem:[%s2 + $0x40] sm:$0xff]
        %v428 = vld [vmem:[%s2 + $0x48] sm:$0xff]
        %v429 = vld [vmem:[%s2 + $0x50] sm:$0xff]
        %v430 = vld [vmem:[%s2 + $0x58] sm:$0xff]
        %v431 = vld [vmem:[%s2 + $0x60] sm:$0xff]
        %v432 = vld [vmem:[%s2 + $0x68] sm:$0xff]
        %v433 = vld [vmem:[%s2 + $0x70] sm:$0xff]
        %v434 = vld [vmem:[%s2 + $0x78] sm:$0xff]
        %v435 = vld [vmem:[%s2 + $0x80] sm:$0xff]
        %v436 = vld [vmem:[%s2 + $0x88] sm:$0xff]
        %v437 = vld [vmem:[%s2 + $0x90] sm:$0xff]
        %v438 = vld [vmem:[%s2 + $0x98] sm:$0xff]
        %v439 = vld [vmem:[%s2 + $0xa0] sm:$0xff]
        %v440 = vld [vmem:[%s2 + $0xa8] sm:$0xff]
        %v441 = vld [vmem:[%s2 + $0xb0] sm:$0xff]
        %v442 = vld [vmem:[%s2 + $0xb8] sm:$0xff]
        %v443 = vld [vmem:[%s405] sm:$0xf]
        %v444 = vld [vmem:[%s405 + $0x4] sm:$0xf]
        %v445 = vld [vmem:[%s405 + $0x8] sm:$0xf]
        %v446 = vld [vmem:[%s405 + $0xc] sm:$0xf]
        %v447 = vld [vmem:[%s405 + $0x10] sm:$0xf]
        %v448 = vld [vmem:[%s405 + $0x14] sm:$0xf]
        %v449 = vld [vmem:[%s405 + $0x18] sm:$0xf]
        %v450 = vld [vmem:[%s405 + $0x1c] sm:$0xf]
        %v451 = vld [vmem:[%s405 + $0x20] sm:$0xf]
        %v452 = vld [vmem:[%s405 + $0x24] sm:$0xf]
        %v453 = vld [vmem:[%s405 + $0x28] sm:$0xf]
        %v454 = vld [vmem:[%s405 + $0x2c] sm:$0xf]
        %v455 = vld [vmem:[%s405 + $0x30] sm:$0xf]
        %v456 = vld [vmem:[%s405 + $0x34] sm:$0xf]
        %v457 = vld [vmem:[%s405 + $0x38] sm:$0xf]
        %v458 = vld [vmem:[%s405 + $0x3c] sm:$0xf]
        %v475 = vunpack.c.l.b16 %v443
        %v476 = vunpack.c.l.b16 %v444
        %v477 = vunpack.c.l.b16 %v445
        %v478 = vunpack.c.l.b16 %v446
        %v479 = vunpack.c.l.b16 %v447
        %v480 = vunpack.c.l.b16 %v448
        %v481 = vunpack.c.l.b16 %v449
        %v482 = vunpack.c.l.b16 %v450
        %v483 = vunpack.c.l.b16 %v451
        %v484 = vunpack.c.l.b16 %v452
        %v485 = vunpack.c.l.b16 %v453
        %v486 = vunpack.c.l.b16 %v454
        %v487 = vunpack.c.l.b16 %v455
        %v488 = vunpack.c.l.b16 %v456
        %v489 = vunpack.c.l.b16 %v457
        %v490 = vunpack.c.l.b16 %v458
        %v491 = vpack.c.b16 %v476, %v475
        %v492 = vpack.c.b16 %v478, %v477
        %v493 = vpack.c.b16 %v480, %v479
        %v494 = vpack.c.b16 %v482, %v481
        %v495 = vpack.c.b16 %v484, %v483
        %v496 = vpack.c.b16 %v486, %v485
        %v497 = vpack.c.b16 %v488, %v487
        %v498 = vpack.c.b16 %v490, %v489
        %v523 = vunpack.c.l.b16 %v419
        %v524 = vunpack.c.h.b16 %v419
        %v525 = vunpack.c.l.b16 %v420
        %v526 = vunpack.c.h.b16 %v420
        %v527 = vunpack.c.l.b16 %v421
        %v528 = vunpack.c.h.b16 %v421
        %v529 = vunpack.c.l.b16 %v422
        %v530 = vunpack.c.h.b16 %v422
        %v531 = vunpack.c.l.b16 %v423
        %v532 = vunpack.c.h.b16 %v423
        %v533 = vunpack.c.l.b16 %v424
        %v534 = vunpack.c.h.b16 %v424
        %v535 = vunpack.c.l.b16 %v425
        %v536 = vunpack.c.h.b16 %v425
        %v537 = vunpack.c.l.b16 %v426
        %v538 = vunpack.c.h.b16 %v426
        %v539 = vunpack.c.l.b16 %v427
        %v540 = vunpack.c.h.b16 %v427
        %v541 = vunpack.c.l.b16 %v428
        %v542 = vunpack.c.h.b16 %v428
        %v543 = vunpack.c.l.b16 %v429
        %v544 = vunpack.c.h.b16 %v429
        %v545 = vunpack.c.l.b16 %v430
        %v546 = vunpack.c.h.b16 %v430
        %v547 = vunpack.c.l.b16 %v431
        %v548 = vunpack.c.h.b16 %v431
        %v549 = vunpack.c.l.b16 %v432
        %v550 = vunpack.c.h.b16 %v432
        %v551 = vunpack.c.l.b16 %v433
        %v552 = vunpack.c.h.b16 %v433
        %v553 = vunpack.c.l.b16 %v434
        %v554 = vunpack.c.h.b16 %v434
        %v555 = vunpack.c.l.b16 %v435
        %v556 = vunpack.c.h.b16 %v435
        %v557 = vunpack.c.l.b16 %v436
        %v558 = vunpack.c.h.b16 %v436
        %v559 = vunpack.c.l.b16 %v437
        %v560 = vunpack.c.h.b16 %v437
        %v561 = vunpack.c.l.b16 %v438
        %v562 = vunpack.c.h.b16 %v438
        %v563 = vunpack.c.l.b16 %v439
        %v564 = vunpack.c.h.b16 %v439
        %v565 = vunpack.c.l.b16 %v440
        %v566 = vunpack.c.h.b16 %v440
        %v567 = vunpack.c.l.b16 %v441
        %v568 = vunpack.c.h.b16 %v441
        %v569 = vunpack.c.l.b16 %v442
        %v570 = vunpack.c.h.b16 %v442
        %v571 = vpack.c.b16 %v535, %v523
        %v572 = vpack.c.b16 %v536, %v524
        %v573 = vpack.c.b16 %v537, %v525
        %v574 = vpack.c.b16 %v538, %v526
        %v575 = vpack.c.b16 %v539, %v527
        %v576 = vpack.c.b16 %v540, %v528
        %v577 = vpack.c.b16 %v541, %v529
        %v578 = vpack.c.b16 %v542, %v530
        %v579 = vpack.c.b16 %v543, %v531
        %v580 = vpack.c.b16 %v544, %v532
        %v581 = vpack.c.b16 %v545, %v533
        %v582 = vpack.c.b16 %v546, %v534
        %v583 = vpack.c.b16 %v559, %v547
        %v584 = vpack.c.b16 %v560, %v548
        %v585 = vpack.c.b16 %v561, %v549
        %v586 = vpack.c.b16 %v562, %v550
        %v587 = vpack.c.b16 %v563, %v551
        %v588 = vpack.c.b16 %v564, %v552
        %v589 = vpack.c.b16 %v565, %v553
        %v590 = vpack.c.b16 %v566, %v554
        %v591 = vpack.c.b16 %v567, %v555
        %v592 = vpack.c.b16 %v568, %v556
        %v593 = vpack.c.b16 %v569, %v557
        %v594 = vpack.c.b16 %v570, %v558
        %vm619 = vcmask 261120
        %v621 = vsel %vm619, %v491, 0
        %v624 = vsel %vm619, %v492, 0
        %v627 = vsel %vm619, %v493, 0
        %v630 = vsel %vm619, %v494, 0
        %v633 = vsel %vm619, %v495, 0
        %v636 = vsel %vm619, %v496, 0
        %v639 = vsel %vm619, %v497, 0
        %v642 = vsel %vm619, %v498, 0
        %644 = vmatprep.subr.bf16.mxu0 %v572
        %645 = vmatpush1.bf16.msra.mxu0 %v571
        %646 = vmatprep.subr.bf16.mxu0 %v584
        %647 = vmatpush1.bf16.msra.mxu0 %v583
        %648 = vmatprep.subr.bf16.mxu0 0
        %649 = vmatpush1.bf16.msra.mxu0 0
        %650 = vmatprep.subr.bf16.mxu0 0
        %651 = vmatpush1.bf16.msra.mxu0 0
        %652 = vmatprep.subr.bf16.mxu0 0
        %653 = vmatpush1.bf16.msra.mxu0 0
        %654 = vmatprep.subr.bf16.mxu0 0
        %655 = vmatpush1.bf16.msra.mxu0 0
        %656 = vmatprep.subr.bf16.mxu0 0
        %657 = vmatpush1.bf16.msra.mxu0 0
        %658 = vmatprep.subr.bf16.mxu0 0
        %659 = vmatpush1.bf16.msra.mxu0 0
        %660 = vmatprep.subr.bf16.mxu0 0
        %661 = vmatpush1.bf16.msra.mxu0 0
        %662 = vmatprep.subr.bf16.mxu0 0
        %663 = vmatpush1.bf16.msra.mxu0 0
        %664 = vmatprep.subr.bf16.mxu0 0
        %665 = vmatpush1.bf16.msra.mxu0 0
        %666 = vmatprep.subr.bf16.mxu0 0
        %667 = vmatpush1.bf16.msra.mxu0 0
        %668 = vmatprep.subr.bf16.mxu0 0
        %669 = vmatpush1.bf16.msra.mxu0 0
        %670 = vmatprep.subr.bf16.mxu0 0
        %671 = vmatpush1.bf16.msra.mxu0 0
        %672 = vmatprep.subr.bf16.mxu0 0
        %673 = vmatpush1.bf16.msra.mxu0 0
        %674 = vmatprep.subr.bf16.mxu0 0
        %675 = vmatpush1.bf16.msra.mxu0 0
        %676 = vmatprep.mubr.bf16.mxu0 0
        %677 = vmatmul.mubr.bf16.gmra.mrb[0].mxu0 %v621
        %v678 = vpop.f32.mrb[0].mxu0
        %v679 = vadd.f32 0.0, %v678
        %v680 = vpop.f32.mrb[0].mxu0
        %v681 = vadd.f32 0.0, %v680
        %v682 = vpop.f32.mrb[0].mxu0
        %v683 = vadd.f32 0.0, %v682
        %v684 = vpop.f32.mrb[0].mxu0
        %v685 = vadd.f32 0.0, %v684
        %686 = vmatprep.mubr.bf16.mxu0 0
        %687 = vmatmul.mubr.bf16.gmra.mrb[0].mxu0 %v624
        %v688 = vpop.f32.mrb[0].mxu0
        %v689 = vadd.f32 0.0, %v688
        %v690 = vpop.f32.mrb[0].mxu0
        %v691 = vadd.f32 0.0, %v690
        %v692 = vpop.f32.mrb[0].mxu0
        %v693 = vadd.f32 0.0, %v692
        %v694 = vpop.f32.mrb[0].mxu0
        %v695 = vadd.f32 0.0, %v694
        %696 = vmatprep.mubr.bf16.mxu0 0
        %697 = vmatmul.mubr.bf16.gmra.mrb[0].mxu0 %v627
        %v698 = vpop.f32.mrb[0].mxu0
        %v699 = vadd.f32 0.0, %v698
        %v700 = vpop.f32.mrb[0].mxu0
        %v701 = vadd.f32 0.0, %v700
        %v702 = vpop.f32.mrb[0].mxu0
        %v703 = vadd.f32 0.0, %v702
        %v704 = vpop.f32.mrb[0].mxu0
        %v705 = vadd.f32 0.0, %v704
        %706 = vmatprep.mubr.bf16.mxu0 0
        %707 = vmatmul.mubr.bf16.gmra.mrb[0].mxu0 %v630
        %v708 = vpop.f32.mrb[0].mxu0
        %v709 = vadd.f32 0.0, %v708
        %v710 = vpop.f32.mrb[0].mxu0
        %v711 = vadd.f32 0.0, %v710
        %v712 = vpop.f32.mrb[0].mxu0
        %v713 = vadd.f32 0.0, %v712
        %v714 = vpop.f32.mrb[0].mxu0
        %v715 = vadd.f32 0.0, %v714
        %716 = vmatprep.mubr.bf16.mxu0 0
        %717 = vmatmul.mubr.bf16.gmra.mrb[0].mxu0 %v633
        %v718 = vpop.f32.mrb[0].mxu0
        %v719 = vadd.f32 0.0, %v718
        %v720 = vpop.f32.mrb[0].mxu0
        %v721 = vadd.f32 0.0, %v720
        %v722 = vpop.f32.mrb[0].mxu0
        %v723 = vadd.f32 0.0, %v722
        %v724 = vpop.f32.mrb[0].mxu0
        %v725 = vadd.f32 0.0, %v724
        %726 = vmatprep.mubr.bf16.mxu0 0
        %727 = vmatmul.mubr.bf16.gmra.mrb[0].mxu0 %v636
        %v728 = vpop.f32.mrb[0].mxu0
        %v729 = vadd.f32 0.0, %v728
        %v730 = vpop.f32.mrb[0].mxu0
        %v731 = vadd.f32 0.0, %v730
        %v732 = vpop.f32.mrb[0].mxu0
        %v733 = vadd.f32 0.0, %v732
        %v734 = vpop.f32.mrb[0].mxu0
        %v735 = vadd.f32 0.0, %v734
        %736 = vmatprep.mubr.bf16.mxu0 0
        %737 = vmatmul.mubr.bf16.gmra.mrb[0].mxu0 %v639
        %v738 = vpop.f32.mrb[0].mxu0
        %v739 = vadd.f32 0.0, %v738
        %v740 = vpop.f32.mrb[0].mxu0
        %v741 = vadd.f32 0.0, %v740
        %v742 = vpop.f32.mrb[0].mxu0
        %v743 = vadd.f32 0.0, %v742
        %v744 = vpop.f32.mrb[0].mxu0
        %v745 = vadd.f32 0.0, %v744
        %746 = vmatprep.mubr.bf16.mxu0 0
        %747 = vmatmul.mubr.bf16.gmra.mrb[0].mxu0 %v642
        %v748 = vpop.f32.mrb[0].mxu0
        %v749 = vadd.f32 0.0, %v748
        %v750 = vpop.f32.mrb[0].mxu0
        %v751 = vadd.f32 0.0, %v750
        %v752 = vpop.f32.mrb[0].mxu0
        %v753 = vadd.f32 0.0, %v752
        %v754 = vpop.f32.mrb[0].mxu0
        %v755 = vadd.f32 0.0, %v754
        %756 = vdwg.mxu0
        %757 = vmatprep.subr.bf16.mxu0 %v574
        %758 = vmatpush1.bf16.msra.mxu0 %v573
        %759 = vmatprep.subr.bf16.mxu0 %v586
        %760 = vmatpush1.bf16.msra.mxu0 %v585
        %761 = vmatprep.subr.bf16.mxu0 0
        %762 = vmatpush1.bf16.msra.mxu0 0
        %763 = vmatprep.subr.bf16.mxu0 0
        %764 = vmatpush1.bf16.msra.mxu0 0
        %765 = vmatprep.subr.bf16.mxu0 0
        %766 = vmatpush1.bf16.msra.mxu0 0
        %767 = vmatprep.subr.bf16.mxu0 0
        %768 = vmatpush1.bf16.msra.mxu0 0
        %769 = vmatprep.subr.bf16.mxu0 0
        %770 = vmatpush1.bf16.msra.mxu0 0
        %771 = vmatprep.subr.bf16.mxu0 0
        %772 = vmatpush1.bf16.msra.mxu0 0
        %773 = vmatprep.subr.bf16.mxu0 0
        %774 = vmatpush1.bf16.msra.mxu0 0
        %775 = vmatprep.subr.bf16.mxu0 0
        %776 = vmatpush1.bf16.msra.mxu0 0
        %777 = vmatprep.subr.bf16.mxu0 0
        %778 = vmatpush1.bf16.msra.mxu0 0
        %779 = vmatprep.subr.bf16.mxu0 0
        %780 = vmatpush1.bf16.msra.mxu0 0
        %781 = vmatprep.subr.bf16.mxu0 0
        %782 = vmatpush1.bf16.msra.mxu0 0
        %783 = vmatprep.subr.bf16.mxu0 0
        %784 = vmatpush1.bf16.msra.mxu0 0
        %785 = vmatprep.subr.bf16.mxu0 0
        %786 = vmatpush1.bf16.msra.mxu0 0
        %787 = vmatprep.subr.bf16.mxu0 0
        %788 = vmatpush1.bf16.msra.mxu0 0
        %789 = vmatprep.mubr.bf16.mxu0 0
        %790 = vmatmul.mubr.bf16.gmra.mrb[0].mxu0 %v621
        %v791 = vpop.f32.mrb[0].mxu0
        %v792 = vadd.f32 0.0, %v791
        %v793 = vpop.f32.mrb[0].mxu0
        %v794 = vadd.f32 0.0, %v793
        %v795 = vpop.f32.mrb[0].mxu0
        %v796 = vadd.f32 0.0, %v795
        %v797 = vpop.f32.mrb[0].mxu0
        %v798 = vadd.f32 0.0, %v797
        %799 = vmatprep.mubr.bf16.mxu0 0
        %800 = vmatmul.mubr.bf16.gmra.mrb[0].mxu0 %v624
        %v801 = vpop.f32.mrb[0].mxu0
        %v802 = vadd.f32 0.0, %v801
        %v803 = vpop.f32.mrb[0].mxu0
        %v804 = vadd.f32 0.0, %v803
        %v805 = vpop.f32.mrb[0].mxu0
        %v806 = vadd.f32 0.0, %v805
        %v807 = vpop.f32.mrb[0].mxu0
        %v808 = vadd.f32 0.0, %v807
        %809 = vmatprep.mubr.bf16.mxu0 0
        %810 = vmatmul.mubr.bf16.gmra.mrb[0].mxu0 %v627
        %v811 = vpop.f32.mrb[0].mxu0
        %v812 = vadd.f32 0.0, %v811
        %v813 = vpop.f32.mrb[0].mxu0
        %v814 = vadd.f32 0.0, %v813
        %v815 = vpop.f32.mrb[0].mxu0
        %v816 = vadd.f32 0.0, %v815
        %v817 = vpop.f32.mrb[0].mxu0
        %v818 = vadd.f32 0.0, %v817
        %819 = vmatprep.mubr.bf16.mxu0 0
        %820 = vmatmul.mubr.bf16.gmra.mrb[0].mxu0 %v630
        %v821 = vpop.f32.mrb[0].mxu0
        %v822 = vadd.f32 0.0, %v821
        %v823 = vpop.f32.mrb[0].mxu0
        %v824 = vadd.f32 0.0, %v823
        %v825 = vpop.f32.mrb[0].mxu0
        %v826 = vadd.f32 0.0, %v825
        %v827 = vpop.f32.mrb[0].mxu0
        %v828 = vadd.f32 0.0, %v827
        %829 = vmatprep.mubr.bf16.mxu0 0
        %830 = vmatmul.mubr.bf16.gmra.mrb[0].mxu0 %v633
        %v831 = vpop.f32.mrb[0].mxu0
        %v832 = vadd.f32 0.0, %v831
        %v833 = vpop.f32.mrb[0].mxu0
        %v834 = vadd.f32 0.0, %v833
        %v835 = vpop.f32.mrb[0].mxu0
        %v836 = vadd.f32 0.0, %v835
        %v837 = vpop.f32.mrb[0].mxu0
        %v838 = vadd.f32 0.0, %v837
        %839 = vmatprep.mubr.bf16.mxu0 0
        %840 = vmatmul.mubr.bf16.gmra.mrb[0].mxu0 %v636
        %v841 = vpop.f32.mrb[0].mxu0
        %v842 = vadd.f32 0.0, %v841
        %v843 = vpop.f32.mrb[0].mxu0
        %v844 = vadd.f32 0.0, %v843
        %v845 = vpop.f32.mrb[0].mxu0
        %v846 = vadd.f32 0.0, %v845
        %v847 = vpop.f32.mrb[0].mxu0
        %v848 = vadd.f32 0.0, %v847
        %849 = vmatprep.mubr.bf16.mxu0 0
        %850 = vmatmul.mubr.bf16.gmra.mrb[0].mxu0 %v639
        %v851 = vpop.f32.mrb[0].mxu0
        %v852 = vadd.f32 0.0, %v851
        %v853 = vpop.f32.mrb[0].mxu0
        %v854 = vadd.f32 0.0, %v853
        %v855 = vpop.f32.mrb[0].mxu0
        %v856 = vadd.f32 0.0, %v855
        %v857 = vpop.f32.mrb[0].mxu0
        %v858 = vadd.f32 0.0, %v857
        %859 = vmatprep.mubr.bf16.mxu0 0
        %860 = vmatmul.mubr.bf16.gmra.mrb[0].mxu0 %v642
        %v861 = vpop.f32.mrb[0].mxu0
        %v862 = vadd.f32 0.0, %v861
        %v863 = vpop.f32.mrb[0].mxu0
        %v864 = vadd.f32 0.0, %v863
        %v865 = vpop.f32.mrb[0].mxu0
        %v866 = vadd.f32 0.0, %v865
        %v867 = vpop.f32.mrb[0].mxu0
        %v868 = vadd.f32 0.0, %v867
        %869 = vdwg.mxu0
        %870 = vmatprep.subr.bf16.mxu0 %v576
        %871 = vmatpush1.bf16.msra.mxu0 %v575
        %872 = vmatprep.subr.bf16.mxu0 %v588
        %873 = vmatpush1.bf16.msra.mxu0 %v587
        %874 = vmatprep.subr.bf16.mxu0 0
        %875 = vmatpush1.bf16.msra.mxu0 0
        %876 = vmatprep.subr.bf16.mxu0 0
        %877 = vmatpush1.bf16.msra.mxu0 0
        %878 = vmatprep.subr.bf16.mxu0 0
        %879 = vmatpush1.bf16.msra.mxu0 0
        %880 = vmatprep.subr.bf16.mxu0 0
        %881 = vmatpush1.bf16.msra.mxu0 0
        %882 = vmatprep.subr.bf16.mxu0 0
        %883 = vmatpush1.bf16.msra.mxu0 0
        %884 = vmatprep.subr.bf16.mxu0 0
        %885 = vmatpush1.bf16.msra.mxu0 0
        %886 = vmatprep.subr.bf16.mxu0 0
        %887 = vmatpush1.bf16.msra.mxu0 0
        %888 = vmatprep.subr.bf16.mxu0 0
        %889 = vmatpush1.bf16.msra.mxu0 0
        %890 = vmatprep.subr.bf16.mxu0 0
        %891 = vmatpush1.bf16.msra.mxu0 0
        %892 = vmatprep.subr.bf16.mxu0 0
        %893 = vmatpush1.bf16.msra.mxu0 0
        %894 = vmatprep.subr.bf16.mxu0 0
        %895 = vmatpush1.bf16.msra.mxu0 0
        %896 = vmatprep.subr.bf16.mxu0 0
        %897 = vmatpush1.bf16.msra.mxu0 0
        %898 = vmatprep.subr.bf16.mxu0 0
        %899 = vmatpush1.bf16.msra.mxu0 0
        %900 = vmatprep.subr.bf16.mxu0 0
        %901 = vmatpush1.bf16.msra.mxu0 0
        %902 = vmatprep.mubr.bf16.mxu0 0
        %903 = vmatmul.mubr.bf16.gmra.mrb[0].mxu0 %v621
        %v904 = vpop.f32.mrb[0].mxu0
        %v905 = vadd.f32 0.0, %v904
        %v906 = vpop.f32.mrb[0].mxu0
        %v907 = vadd.f32 0.0, %v906
        %v908 = vpop.f32.mrb[0].mxu0
        %v909 = vadd.f32 0.0, %v908
        %v910 = vpop.f32.mrb[0].mxu0
        %v911 = vadd.f32 0.0, %v910
        %912 = vmatprep.mubr.bf16.mxu0 0
        %913 = vmatmul.mubr.bf16.gmra.mrb[0].mxu0 %v624
        %v914 = vpop.f32.mrb[0].mxu0
        %v915 = vadd.f32 0.0, %v914
        %v916 = vpop.f32.mrb[0].mxu0
        %v917 = vadd.f32 0.0, %v916
        %v918 = vpop.f32.mrb[0].mxu0
        %v919 = vadd.f32 0.0, %v918
        %v920 = vpop.f32.mrb[0].mxu0
        %v921 = vadd.f32 0.0, %v920
        %922 = vmatprep.mubr.bf16.mxu0 0
        %923 = vmatmul.mubr.bf16.gmra.mrb[0].mxu0 %v627
        %v924 = vpop.f32.mrb[0].mxu0
        %v925 = vadd.f32 0.0, %v924
        %v926 = vpop.f32.mrb[0].mxu0
        %v927 = vadd.f32 0.0, %v926
        %v928 = vpop.f32.mrb[0].mxu0
        %v929 = vadd.f32 0.0, %v928
        %v930 = vpop.f32.mrb[0].mxu0
        %v931 = vadd.f32 0.0, %v930
        %932 = vmatprep.mubr.bf16.mxu0 0
        %933 = vmatmul.mubr.bf16.gmra.mrb[0].mxu0 %v630
        %v934 = vpop.f32.mrb[0].mxu0
        %v935 = vadd.f32 0.0, %v934
        %v936 = vpop.f32.mrb[0].mxu0
        %v937 = vadd.f32 0.0, %v936
        %v938 = vpop.f32.mrb[0].mxu0
        %v939 = vadd.f32 0.0, %v938
        %v940 = vpop.f32.mrb[0].mxu0
        %v941 = vadd.f32 0.0, %v940
        %942 = vmatprep.mubr.bf16.mxu0 0
        %943 = vmatmul.mubr.bf16.gmra.mrb[0].mxu0 %v633
        %v944 = vpop.f32.mrb[0].mxu0
        %v945 = vadd.f32 0.0, %v944
        %v946 = vpop.f32.mrb[0].mxu0
        %v947 = vadd.f32 0.0, %v946
        %v948 = vpop.f32.mrb[0].mxu0
        %v949 = vadd.f32 0.0, %v948
        %v950 = vpop.f32.mrb[0].mxu0
        %v951 = vadd.f32 0.0, %v950
        %952 = vmatprep.mubr.bf16.mxu0 0
        %953 = vmatmul.mubr.bf16.gmra.mrb[0].mxu0 %v636
        %v954 = vpop.f32.mrb[0].mxu0
        %v955 = vadd.f32 0.0, %v954
        %v956 = vpop.f32.mrb[0].mxu0
        %v957 = vadd.f32 0.0, %v956
        %v958 = vpop.f32.mrb[0].mxu0
        %v959 = vadd.f32 0.0, %v958
        %v960 = vpop.f32.mrb[0].mxu0
        %v961 = vadd.f32 0.0, %v960
        %962 = vmatprep.mubr.bf16.mxu0 0
        %963 = vmatmul.mubr.bf16.gmra.mrb[0].mxu0 %v639
        %v964 = vpop.f32.mrb[0].mxu0
        %v965 = vadd.f32 0.0, %v964
        %v966 = vpop.f32.mrb[0].mxu0
        %v967 = vadd.f32 0.0, %v966
        %v968 = vpop.f32.mrb[0].mxu0
        %v969 = vadd.f32 0.0, %v968
        %v970 = vpop.f32.mrb[0].mxu0
        %v971 = vadd.f32 0.0, %v970
        %972 = vmatprep.mubr.bf16.mxu0 0
        %973 = vmatmul.mubr.bf16.gmra.mrb[0].mxu0 %v642
        %v974 = vpop.f32.mrb[0].mxu0
        %v975 = vadd.f32 0.0, %v974
        %v976 = vpop.f32.mrb[0].mxu0
        %v977 = vadd.f32 0.0, %v976
        %v978 = vpop.f32.mrb[0].mxu0
        %v979 = vadd.f32 0.0, %v978
        %v980 = vpop.f32.mrb[0].mxu0
        %v981 = vadd.f32 0.0, %v980
        %982 = vdwg.mxu0
        %983 = vmatprep.subr.bf16.mxu0 %v578
        %984 = vmatpush1.bf16.msra.mxu0 %v577
        %985 = vmatprep.subr.bf16.mxu0 %v590
        %986 = vmatpush1.bf16.msra.mxu0 %v589
        %987 = vmatprep.subr.bf16.mxu0 0
        %988 = vmatpush1.bf16.msra.mxu0 0
        %989 = vmatprep.subr.bf16.mxu0 0
        %990 = vmatpush1.bf16.msra.mxu0 0
        %991 = vmatprep.subr.bf16.mxu0 0
        %992 = vmatpush1.bf16.msra.mxu0 0
        %993 = vmatprep.subr.bf16.mxu0 0
        %994 = vmatpush1.bf16.msra.mxu0 0
        %995 = vmatprep.subr.bf16.mxu0 0
        %996 = vmatpush1.bf16.msra.mxu0 0
        %997 = vmatprep.subr.bf16.mxu0 0
        %998 = vmatpush1.bf16.msra.mxu0 0
        %999 = vmatprep.subr.bf16.mxu0 0
        %1000 = vmatpush1.bf16.msra.mxu0 0
        %1001 = vmatprep.subr.bf16.mxu0 0
        %1002 = vmatpush1.bf16.msra.mxu0 0
        %1003 = vmatprep.subr.bf16.mxu0 0
        %1004 = vmatpush1.bf16.msra.mxu0 0
        %1005 = vmatprep.subr.bf16.mxu0 0
        %1006 = vmatpush1.bf16.msra.mxu0 0
        %1007 = vmatprep.subr.bf16.mxu0 0
        %1008 = vmatpush1.bf16.msra.mxu0 0
        %1009 = vmatprep.subr.bf16.mxu0 0
        %1010 = vmatpush1.bf16.msra.mxu0 0
        %1011 = vmatprep.subr.bf16.mxu0 0
        %1012 = vmatpush1.bf16.msra.mxu0 0
        %1013 = vmatprep.subr.bf16.mxu0 0
        %1014 = vmatpush1.bf16.msra.mxu0 0
        %1015 = vmatprep.mubr.bf16.mxu0 0
        %1016 = vmatmul.mubr.bf16.gmra.mrb[0].mxu0 %v621
        %v1017 = vpop.f32.mrb[0].mxu0
        %v1018 = vadd.f32 0.0, %v1017
        %v1019 = vpop.f32.mrb[0].mxu0
        %v1020 = vadd.f32 0.0, %v1019
        %v1021 = vpop.f32.mrb[0].mxu0
        %v1022 = vadd.f32 0.0, %v1021
        %v1023 = vpop.f32.mrb[0].mxu0
        %v1024 = vadd.f32 0.0, %v1023
        %1025 = vmatprep.mubr.bf16.mxu0 0
        %1026 = vmatmul.mubr.bf16.gmra.mrb[0].mxu0 %v624
        %v1027 = vpop.f32.mrb[0].mxu0
        %v1028 = vadd.f32 0.0, %v1027
        %v1029 = vpop.f32.mrb[0].mxu0
        %v1030 = vadd.f32 0.0, %v1029
        %v1031 = vpop.f32.mrb[0].mxu0
        %v1032 = vadd.f32 0.0, %v1031
        %v1033 = vpop.f32.mrb[0].mxu0
        %v1034 = vadd.f32 0.0, %v1033
        %1035 = vmatprep.mubr.bf16.mxu0 0
        %1036 = vmatmul.mubr.bf16.gmra.mrb[0].mxu0 %v627
        %v1037 = vpop.f32.mrb[0].mxu0
        %v1038 = vadd.f32 0.0, %v1037
        %v1039 = vpop.f32.mrb[0].mxu0
        %v1040 = vadd.f32 0.0, %v1039
        %v1041 = vpop.f32.mrb[0].mxu0
        %v1042 = vadd.f32 0.0, %v1041
        %v1043 = vpop.f32.mrb[0].mxu0
        %v1044 = vadd.f32 0.0, %v1043
        %1045 = vmatprep.mubr.bf16.mxu0 0
        %1046 = vmatmul.mubr.bf16.gmra.mrb[0].mxu0 %v630
        %v1047 = vpop.f32.mrb[0].mxu0
        %v1048 = vadd.f32 0.0, %v1047
        %v1049 = vpop.f32.mrb[0].mxu0
        %v1050 = vadd.f32 0.0, %v1049
        %v1051 = vpop.f32.mrb[0].mxu0
        %v1052 = vadd.f32 0.0, %v1051
        %v1053 = vpop.f32.mrb[0].mxu0
        %v1054 = vadd.f32 0.0, %v1053
        %1055 = vmatprep.mubr.bf16.mxu0 0
        %1056 = vmatmul.mubr.bf16.gmra.mrb[0].mxu0 %v633
        %v1057 = vpop.f32.mrb[0].mxu0
        %v1058 = vadd.f32 0.0, %v1057
        %v1059 = vpop.f32.mrb[0].mxu0
        %v1060 = vadd.f32 0.0, %v1059
        %v1061 = vpop.f32.mrb[0].mxu0
        %v1062 = vadd.f32 0.0, %v1061
        %v1063 = vpop.f32.mrb[0].mxu0
        %v1064 = vadd.f32 0.0, %v1063
        %1065 = vmatprep.mubr.bf16.mxu0 0
        %1066 = vmatmul.mubr.bf16.gmra.mrb[0].mxu0 %v636
        %v1067 = vpop.f32.mrb[0].mxu0
        %v1068 = vadd.f32 0.0, %v1067
        %v1069 = vpop.f32.mrb[0].mxu0
        %v1070 = vadd.f32 0.0, %v1069
        %v1071 = vpop.f32.mrb[0].mxu0
        %v1072 = vadd.f32 0.0, %v1071
        %v1073 = vpop.f32.mrb[0].mxu0
        %v1074 = vadd.f32 0.0, %v1073
        %1075 = vmatprep.mubr.bf16.mxu0 0
        %1076 = vmatmul.mubr.bf16.gmra.mrb[0].mxu0 %v639
        %v1077 = vpop.f32.mrb[0].mxu0
        %v1078 = vadd.f32 0.0, %v1077
        %v1079 = vpop.f32.mrb[0].mxu0
        %v1080 = vadd.f32 0.0, %v1079
        %v1081 = vpop.f32.mrb[0].mxu0
        %v1082 = vadd.f32 0.0, %v1081
        %v1083 = vpop.f32.mrb[0].mxu0
        %v1084 = vadd.f32 0.0, %v1083
        %1085 = vmatprep.mubr.bf16.mxu0 0
        %1086 = vmatmul.mubr.bf16.gmra.mrb[0].mxu0 %v642
        %v1087 = vpop.f32.mrb[0].mxu0
        %v1088 = vadd.f32 0.0, %v1087
        %v1089 = vpop.f32.mrb[0].mxu0
        %v1090 = vadd.f32 0.0, %v1089
        %v1091 = vpop.f32.mrb[0].mxu0
        %v1092 = vadd.f32 0.0, %v1091
        %v1093 = vpop.f32.mrb[0].mxu0
        %v1094 = vadd.f32 0.0, %v1093
        %1095 = vdwg.mxu0
        %1096 = vmatprep.subr.bf16.mxu0 %v580
        %1097 = vmatpush1.bf16.msra.mxu0 %v579
        %1098 = vmatprep.subr.bf16.mxu0 %v592
        %1099 = vmatpush1.bf16.msra.mxu0 %v591
        %1100 = vmatprep.subr.bf16.mxu0 0
        %1101 = vmatpush1.bf16.msra.mxu0 0
        %1102 = vmatprep.subr.bf16.mxu0 0
        %1103 = vmatpush1.bf16.msra.mxu0 0
        %1104 = vmatprep.subr.bf16.mxu0 0
        %1105 = vmatpush1.bf16.msra.mxu0 0
        %1106 = vmatprep.subr.bf16.mxu0 0
        %1107 = vmatpush1.bf16.msra.mxu0 0
        %1108 = vmatprep.subr.bf16.mxu0 0
        %1109 = vmatpush1.bf16.msra.mxu0 0
        %1110 = vmatprep.subr.bf16.mxu0 0
        %1111 = vmatpush1.bf16.msra.mxu0 0
        %1112 = vmatprep.subr.bf16.mxu0 0
        %1113 = vmatpush1.bf16.msra.mxu0 0
        %1114 = vmatprep.subr.bf16.mxu0 0
        %1115 = vmatpush1.bf16.msra.mxu0 0
        %1116 = vmatprep.subr.bf16.mxu0 0
        %1117 = vmatpush1.bf16.msra.mxu0 0
        %1118 = vmatprep.subr.bf16.mxu0 0
        %1119 = vmatpush1.bf16.msra.mxu0 0
        %1120 = vmatprep.subr.bf16.mxu0 0
        %1121 = vmatpush1.bf16.msra.mxu0 0
        %1122 = vmatprep.subr.bf16.mxu0 0
        %1123 = vmatpush1.bf16.msra.mxu0 0
        %1124 = vmatprep.subr.bf16.mxu0 0
        %1125 = vmatpush1.bf16.msra.mxu0 0
        %1126 = vmatprep.subr.bf16.mxu0 0
        %1127 = vmatpush1.bf16.msra.mxu0 0
        %1128 = vmatprep.mubr.bf16.mxu0 0
        %1129 = vmatmul.mubr.bf16.gmra.mrb[0].mxu0 %v621
        %v1130 = vpop.f32.mrb[0].mxu0
        %v1131 = vadd.f32 0.0, %v1130
        %v1132 = vpop.f32.mrb[0].mxu0
        %v1133 = vadd.f32 0.0, %v1132
        %v1134 = vpop.f32.mrb[0].mxu0
        %v1135 = vadd.f32 0.0, %v1134
        %v1136 = vpop.f32.mrb[0].mxu0
        %v1137 = vadd.f32 0.0, %v1136
        %1138 = vmatprep.mubr.bf16.mxu0 0
        %1139 = vmatmul.mubr.bf16.gmra.mrb[0].mxu0 %v624
        %v1140 = vpop.f32.mrb[0].mxu0
        %v1141 = vadd.f32 0.0, %v1140
        %v1142 = vpop.f32.mrb[0].mxu0
        %v1143 = vadd.f32 0.0, %v1142
        %v1144 = vpop.f32.mrb[0].mxu0
        %v1145 = vadd.f32 0.0, %v1144
        %v1146 = vpop.f32.mrb[0].mxu0
        %v1147 = vadd.f32 0.0, %v1146
        %1148 = vmatprep.mubr.bf16.mxu0 0
        %1149 = vmatmul.mubr.bf16.gmra.mrb[0].mxu0 %v627
        %v1150 = vpop.f32.mrb[0].mxu0
        %v1151 = vadd.f32 0.0, %v1150
        %v1152 = vpop.f32.mrb[0].mxu0
        %v1153 = vadd.f32 0.0, %v1152
        %v1154 = vpop.f32.mrb[0].mxu0
        %v1155 = vadd.f32 0.0, %v1154
        %v1156 = vpop.f32.mrb[0].mxu0
        %v1157 = vadd.f32 0.0, %v1156
        %1158 = vmatprep.mubr.bf16.mxu0 0
        %1159 = vmatmul.mubr.bf16.gmra.mrb[0].mxu0 %v630
        %v1160 = vpop.f32.mrb[0].mxu0
        %v1161 = vadd.f32 0.0, %v1160
        %v1162 = vpop.f32.mrb[0].mxu0
        %v1163 = vadd.f32 0.0, %v1162
        %v1164 = vpop.f32.mrb[0].mxu0
        %v1165 = vadd.f32 0.0, %v1164
        %v1166 = vpop.f32.mrb[0].mxu0
        %v1167 = vadd.f32 0.0, %v1166
        %1168 = vmatprep.mubr.bf16.mxu0 0
        %1169 = vmatmul.mubr.bf16.gmra.mrb[0].mxu0 %v633
        %v1170 = vpop.f32.mrb[0].mxu0
        %v1171 = vadd.f32 0.0, %v1170
        %v1172 = vpop.f32.mrb[0].mxu0
        %v1173 = vadd.f32 0.0, %v1172
        %v1174 = vpop.f32.mrb[0].mxu0
        %v1175 = vadd.f32 0.0, %v1174
        %v1176 = vpop.f32.mrb[0].mxu0
        %v1177 = vadd.f32 0.0, %v1176
        %1178 = vmatprep.mubr.bf16.mxu0 0
        %1179 = vmatmul.mubr.bf16.gmra.mrb[0].mxu0 %v636
        %v1180 = vpop.f32.mrb[0].mxu0
        %v1181 = vadd.f32 0.0, %v1180
        %v1182 = vpop.f32.mrb[0].mxu0
        %v1183 = vadd.f32 0.0, %v1182
        %v1184 = vpop.f32.mrb[0].mxu0
        %v1185 = vadd.f32 0.0, %v1184
        %v1186 = vpop.f32.mrb[0].mxu0
        %v1187 = vadd.f32 0.0, %v1186
        %1188 = vmatprep.mubr.bf16.mxu0 0
        %1189 = vmatmul.mubr.bf16.gmra.mrb[0].mxu0 %v639
        %v1190 = vpop.f32.mrb[0].mxu0
        %v1191 = vadd.f32 0.0, %v1190
        %v1192 = vpop.f32.mrb[0].mxu0
        %v1193 = vadd.f32 0.0, %v1192
        %v1194 = vpop.f32.mrb[0].mxu0
        %v1195 = vadd.f32 0.0, %v1194
        %v1196 = vpop.f32.mrb[0].mxu0
        %v1197 = vadd.f32 0.0, %v1196
        %1198 = vmatprep.mubr.bf16.mxu0 0
        %1199 = vmatmul.mubr.bf16.gmra.mrb[0].mxu0 %v642
        %v1200 = vpop.f32.mrb[0].mxu0
        %v1201 = vadd.f32 0.0, %v1200
        %v1202 = vpop.f32.mrb[0].mxu0
        %v1203 = vadd.f32 0.0, %v1202
        %v1204 = vpop.f32.mrb[0].mxu0
        %v1205 = vadd.f32 0.0, %v1204
        %v1206 = vpop.f32.mrb[0].mxu0
        %v1207 = vadd.f32 0.0, %v1206
        %1208 = vdwg.mxu0
        %1209 = vmatprep.subr.bf16.mxu0 %v582
        %1210 = vmatpush1.bf16.msra.mxu0 %v581
        %1211 = vmatprep.subr.bf16.mxu0 %v594
        %1212 = vmatpush1.bf16.msra.mxu0 %v593
        %1213 = vmatprep.subr.bf16.mxu0 0
        %1214 = vmatpush1.bf16.msra.mxu0 0
        %1215 = vmatprep.subr.bf16.mxu0 0
        %1216 = vmatpush1.bf16.msra.mxu0 0
        %1217 = vmatprep.subr.bf16.mxu0 0
        %1218 = vmatpush1.bf16.msra.mxu0 0
        %1219 = vmatprep.subr.bf16.mxu0 0
        %1220 = vmatpush1.bf16.msra.mxu0 0
        %1221 = vmatprep.subr.bf16.mxu0 0
        %1222 = vmatpush1.bf16.msra.mxu0 0
        %1223 = vmatprep.subr.bf16.mxu0 0
        %1224 = vmatpush1.bf16.msra.mxu0 0
        %1225 = vmatprep.subr.bf16.mxu0 0
        %1226 = vmatpush1.bf16.msra.mxu0 0
        %1227 = vmatprep.subr.bf16.mxu0 0
        %1228 = vmatpush1.bf16.msra.mxu0 0
        %1229 = vmatprep.subr.bf16.mxu0 0
        %1230 = vmatpush1.bf16.msra.mxu0 0
        %1231 = vmatprep.subr.bf16.mxu0 0
        %1232 = vmatpush1.bf16.msra.mxu0 0
        %1233 = vmatprep.subr.bf16.mxu0 0
        %1234 = vmatpush1.bf16.msra.mxu0 0
        %1235 = vmatprep.subr.bf16.mxu0 0
        %1236 = vmatpush1.bf16.msra.mxu0 0
        %1237 = vmatprep.subr.bf16.mxu0 0
        %1238 = vmatpush1.bf16.msra.mxu0 0
        %1239 = vmatprep.subr.bf16.mxu0 0
        %1240 = vmatpush1.bf16.msra.mxu0 0
        %1241 = vmatprep.mubr.bf16.mxu0 0
        %1242 = vmatmul.mubr.bf16.gmra.mrb[0].mxu0 %v621
        %v1243 = vpop.f32.mrb[0].mxu0
        %v1244 = vadd.f32 0.0, %v1243
        %v1245 = vpop.f32.mrb[0].mxu0
        %v1246 = vadd.f32 0.0, %v1245
        %v1247 = vpop.f32.mrb[0].mxu0
        %v1248 = vadd.f32 0.0, %v1247
        %v1249 = vpop.f32.mrb[0].mxu0
        %v1250 = vadd.f32 0.0, %v1249
        %1251 = vmatprep.mubr.bf16.mxu0 0
        %1252 = vmatmul.mubr.bf16.gmra.mrb[0].mxu0 %v624
        %v1253 = vpop.f32.mrb[0].mxu0
        %v1254 = vadd.f32 0.0, %v1253
        %v1255 = vpop.f32.mrb[0].mxu0
        %v1256 = vadd.f32 0.0, %v1255
        %v1257 = vpop.f32.mrb[0].mxu0
        %v1258 = vadd.f32 0.0, %v1257
        %v1259 = vpop.f32.mrb[0].mxu0
        %v1260 = vadd.f32 0.0, %v1259
        %1261 = vmatprep.mubr.bf16.mxu0 0
        %1262 = vmatmul.mubr.bf16.gmra.mrb[0].mxu0 %v627
        %v1263 = vpop.f32.mrb[0].mxu0
        %v1264 = vadd.f32 0.0, %v1263
        %v1265 = vpop.f32.mrb[0].mxu0
        %v1266 = vadd.f32 0.0, %v1265
        %v1267 = vpop.f32.mrb[0].mxu0
        %v1268 = vadd.f32 0.0, %v1267
        %v1269 = vpop.f32.mrb[0].mxu0
        %v1270 = vadd.f32 0.0, %v1269
        %1271 = vmatprep.mubr.bf16.mxu0 0
        %1272 = vmatmul.mubr.bf16.gmra.mrb[0].mxu0 %v630
        %v1273 = vpop.f32.mrb[0].mxu0
        %v1274 = vadd.f32 0.0, %v1273
        %v1275 = vpop.f32.mrb[0].mxu0
        %v1276 = vadd.f32 0.0, %v1275
        %v1277 = vpop.f32.mrb[0].mxu0
        %v1278 = vadd.f32 0.0, %v1277
        %v1279 = vpop.f32.mrb[0].mxu0
        %v1280 = vadd.f32 0.0, %v1279
        %1281 = vmatprep.mubr.bf16.mxu0 0
        %1282 = vmatmul.mubr.bf16.gmra.mrb[0].mxu0 %v633
        %v1283 = vpop.f32.mrb[0].mxu0
        %v1284 = vadd.f32 0.0, %v1283
        %v1285 = vpop.f32.mrb[0].mxu0
        %v1286 = vadd.f32 0.0, %v1285
        %v1287 = vpop.f32.mrb[0].mxu0
        %v1288 = vadd.f32 0.0, %v1287
        %v1289 = vpop.f32.mrb[0].mxu0
        %v1290 = vadd.f32 0.0, %v1289
        %1291 = vmatprep.mubr.bf16.mxu0 0
        %1292 = vmatmul.mubr.bf16.gmra.mrb[0].mxu0 %v636
        %v1293 = vpop.f32.mrb[0].mxu0
        %v1294 = vadd.f32 0.0, %v1293
        %v1295 = vpop.f32.mrb[0].mxu0
        %v1296 = vadd.f32 0.0, %v1295
        %v1297 = vpop.f32.mrb[0].mxu0
        %v1298 = vadd.f32 0.0, %v1297
        %v1299 = vpop.f32.mrb[0].mxu0
        %v1300 = vadd.f32 0.0, %v1299
        %1301 = vmatprep.mubr.bf16.mxu0 0
        %1302 = vmatmul.mubr.bf16.gmra.mrb[0].mxu0 %v639
        %v1303 = vpop.f32.mrb[0].mxu0
        %v1304 = vadd.f32 0.0, %v1303
        %v1305 = vpop.f32.mrb[0].mxu0
        %v1306 = vadd.f32 0.0, %v1305
        %v1307 = vpop.f32.mrb[0].mxu0
        %v1308 = vadd.f32 0.0, %v1307
        %v1309 = vpop.f32.mrb[0].mxu0
        %v1310 = vadd.f32 0.0, %v1309
        %1311 = vmatprep.mubr.bf16.mxu0 0
        %1312 = vmatmul.mubr.bf16.gmra.mrb[0].mxu0 %v642
        %v1313 = vpop.f32.mrb[0].mxu0
        %v1314 = vadd.f32 0.0, %v1313
        %v1315 = vpop.f32.mrb[0].mxu0
        %v1316 = vadd.f32 0.0, %v1315
        %v1317 = vpop.f32.mrb[0].mxu0
        %v1318 = vadd.f32 0.0, %v1317
        %v1319 = vpop.f32.mrb[0].mxu0
        %v1320 = vadd.f32 0.0, %v1319
        %1321 = vdwg.mxu0
        %v1322 = vld [vmem:[%s412] sm:$0xf]
        %v1323 = vld [vmem:[%s412 + $0x4] sm:$0xf]
        %v1324 = vld [vmem:[%s412 + $0x8] sm:$0xf]
        %v1325 = vld [vmem:[%s412 + $0xc] sm:$0xf]
        %v1326 = vld [vmem:[%s412 + $0x10] sm:$0xf]
        %v1327 = vld [vmem:[%s412 + $0x14] sm:$0xf]
        %v1328 = vld [vmem:[%s412 + $0x18] sm:$0xf]
        %v1329 = vld [vmem:[%s412 + $0x1c] sm:$0xf]
        %v1330 = vld [vmem:[%s412 + $0x20] sm:$0xf]
        %v1331 = vld [vmem:[%s412 + $0x24] sm:$0xf]
        %v1332 = vld [vmem:[%s412 + $0x28] sm:$0xf]
        %v1333 = vld [vmem:[%s412 + $0x2c] sm:$0xf]
        %v1334 = vld [vmem:[%s412 + $0x30] sm:$0xf]
        %v1335 = vld [vmem:[%s412 + $0x34] sm:$0xf]
        %v1336 = vld [vmem:[%s412 + $0x38] sm:$0xf]
        %v1337 = vld [vmem:[%s412 + $0x3c] sm:$0xf]
        %v1354 = vunpack.c.l.b16 %v1322
        %v1355 = vunpack.c.l.b16 %v1323
        %v1356 = vunpack.c.l.b16 %v1324
        %v1357 = vunpack.c.l.b16 %v1325
        %v1358 = vunpack.c.l.b16 %v1326
        %v1359 = vunpack.c.l.b16 %v1327
        %v1360 = vunpack.c.l.b16 %v1328
        %v1361 = vunpack.c.l.b16 %v1329
        %v1362 = vunpack.c.l.b16 %v1330
        %v1363 = vunpack.c.l.b16 %v1331
        %v1364 = vunpack.c.l.b16 %v1332
        %v1365 = vunpack.c.l.b16 %v1333
        %v1366 = vunpack.c.l.b16 %v1334
        %v1367 = vunpack.c.l.b16 %v1335
        %v1368 = vunpack.c.l.b16 %v1336
        %v1369 = vunpack.c.l.b16 %v1337
        %v1370 = vpack.c.b16 %v1355, %v1354
        %v1371 = vpack.c.b16 %v1357, %v1356
        %v1372 = vpack.c.b16 %v1359, %v1358
        %v1373 = vpack.c.b16 %v1361, %v1360
        %v1374 = vpack.c.b16 %v1363, %v1362
        %v1375 = vpack.c.b16 %v1365, %v1364
        %v1376 = vpack.c.b16 %v1367, %v1366
        %v1377 = vpack.c.b16 %v1369, %v1368
        %v1379 = vsel %vm619, %v1370, 0
        %v1382 = vsel %vm619, %v1371, 0
        %v1385 = vsel %vm619, %v1372, 0
        %v1388 = vsel %vm619, %v1373, 0
        %v1391 = vsel %vm619, %v1374, 0
        %v1394 = vsel %vm619, %v1375, 0
        %v1397 = vsel %vm619, %v1376, 0
        %v1400 = vsel %vm619, %v1377, 0
        %1402 = vmatprep.subr.bf16.mxu0 %v572
        %1403 = vmatpush1.bf16.msra.mxu0 %v571
        %1404 = vmatprep.subr.bf16.mxu0 %v584
        %1405 = vmatpush1.bf16.msra.mxu0 %v583
        %1406 = vmatprep.subr.bf16.mxu0 0
        %1407 = vmatpush1.bf16.msra.mxu0 0
        %1408 = vmatprep.subr.bf16.mxu0 0
        %1409 = vmatpush1.bf16.msra.mxu0 0
        %1410 = vmatprep.subr.bf16.mxu0 0
        %1411 = vmatpush1.bf16.msra.mxu0 0
        %1412 = vmatprep.subr.bf16.mxu0 0
        %1413 = vmatpush1.bf16.msra.mxu0 0
        %1414 = vmatprep.subr.bf16.mxu0 0
        %1415 = vmatpush1.bf16.msra.mxu0 0
        %1416 = vmatprep.subr.bf16.mxu0 0
        %1417 = vmatpush1.bf16.msra.mxu0 0
        %1418 = vmatprep.subr.bf16.mxu0 0
        %1419 = vmatpush1.bf16.msra.mxu0 0
        %1420 = vmatprep.subr.bf16.mxu0 0
        %1421 = vmatpush1.bf16.msra.mxu0 0
        %1422 = vmatprep.subr.bf16.mxu0 0
        %1423 = vmatpush1.bf16.msra.mxu0 0
        %1424 = vmatprep.subr.bf16.mxu0 0
        %1425 = vmatpush1.bf16.msra.mxu0 0
        %1426 = vmatprep.subr.bf16.mxu0 0
        %1427 = vmatpush1.bf16.msra.mxu0 0
        %1428 = vmatprep.subr.bf16.mxu0 0
        %1429 = vmatpush1.bf16.msra.mxu0 0
        %1430 = vmatprep.subr.bf16.mxu0 0
        %1431 = vmatpush1.bf16.msra.mxu0 0
        %1432 = vmatprep.subr.bf16.mxu0 0
        %1433 = vmatpush1.bf16.msra.mxu0 0
        %1434 = vmatprep.mubr.bf16.mxu0 0
        %1435 = vmatmul.mubr.bf16.gmra.mrb[0].mxu0 %v1379
        %v1436 = vpop.f32.mrb[0].mxu0
        %v1437 = vadd.f32 0.0, %v1436
        %v1438 = vpop.f32.mrb[0].mxu0
        %v1439 = vadd.f32 0.0, %v1438
        %v1440 = vpop.f32.mrb[0].mxu0
        %v1441 = vadd.f32 0.0, %v1440
        %v1442 = vpop.f32.mrb[0].mxu0
        %v1443 = vadd.f32 0.0, %v1442
        %1444 = vmatprep.mubr.bf16.mxu0 0
        %1445 = vmatmul.mubr.bf16.gmra.mrb[0].mxu0 %v1382
        %v1446 = vpop.f32.mrb[0].mxu0
        %v1447 = vadd.f32 0.0, %v1446
        %v1448 = vpop.f32.mrb[0].mxu0
        %v1449 = vadd.f32 0.0, %v1448
        %v1450 = vpop.f32.mrb[0].mxu0
        %v1451 = vadd.f32 0.0, %v1450
        %v1452 = vpop.f32.mrb[0].mxu0
        %v1453 = vadd.f32 0.0, %v1452
        %1454 = vmatprep.mubr.bf16.mxu0 0
        %1455 = vmatmul.mubr.bf16.gmra.mrb[0].mxu0 %v1385
        %v1456 = vpop.f32.mrb[0].mxu0
        %v1457 = vadd.f32 0.0, %v1456
        %v1458 = vpop.f32.mrb[0].mxu0
        %v1459 = vadd.f32 0.0, %v1458
        %v1460 = vpop.f32.mrb[0].mxu0
        %v1461 = vadd.f32 0.0, %v1460
        %v1462 = vpop.f32.mrb[0].mxu0
        %v1463 = vadd.f32 0.0, %v1462
        %1464 = vmatprep.mubr.bf16.mxu0 0
        %1465 = vmatmul.mubr.bf16.gmra.mrb[0].mxu0 %v1388
        %v1466 = vpop.f32.mrb[0].mxu0
        %v1467 = vadd.f32 0.0, %v1466
        %v1468 = vpop.f32.mrb[0].mxu0
        %v1469 = vadd.f32 0.0, %v1468
        %v1470 = vpop.f32.mrb[0].mxu0
        %v1471 = vadd.f32 0.0, %v1470
        %v1472 = vpop.f32.mrb[0].mxu0
        %v1473 = vadd.f32 0.0, %v1472
        %1474 = vmatprep.mubr.bf16.mxu0 0
        %1475 = vmatmul.mubr.bf16.gmra.mrb[0].mxu0 %v1391
        %v1476 = vpop.f32.mrb[0].mxu0
        %v1477 = vadd.f32 0.0, %v1476
        %v1478 = vpop.f32.mrb[0].mxu0
        %v1479 = vadd.f32 0.0, %v1478
        %v1480 = vpop.f32.mrb[0].mxu0
        %v1481 = vadd.f32 0.0, %v1480
        %v1482 = vpop.f32.mrb[0].mxu0
        %v1483 = vadd.f32 0.0, %v1482
        %1484 = vmatprep.mubr.bf16.mxu0 0
        %1485 = vmatmul.mubr.bf16.gmra.mrb[0].mxu0 %v1394
        %v1486 = vpop.f32.mrb[0].mxu0
        %v1487 = vadd.f32 0.0, %v1486
        %v1488 = vpop.f32.mrb[0].mxu0
        %v1489 = vadd.f32 0.0, %v1488
        %v1490 = vpop.f32.mrb[0].mxu0
        %v1491 = vadd.f32 0.0, %v1490
        %v1492 = vpop.f32.mrb[0].mxu0
        %v1493 = vadd.f32 0.0, %v1492
        %1494 = vmatprep.mubr.bf16.mxu0 0
        %1495 = vmatmul.mubr.bf16.gmra.mrb[0].mxu0 %v1397
        %v1496 = vpop.f32.mrb[0].mxu0
        %v1497 = vadd.f32 0.0, %v1496
        %v1498 = vpop.f32.mrb[0].mxu0
        %v1499 = vadd.f32 0.0, %v1498
        %v1500 = vpop.f32.mrb[0].mxu0
        %v1501 = vadd.f32 0.0, %v1500
        %v1502 = vpop.f32.mrb[0].mxu0
        %v1503 = vadd.f32 0.0, %v1502
        %1504 = vmatprep.mubr.bf16.mxu0 0
        %1505 = vmatmul.mubr.bf16.gmra.mrb[0].mxu0 %v1400
        %v1506 = vpop.f32.mrb[0].mxu0
        %v1507 = vadd.f32 0.0, %v1506
        %v1508 = vpop.f32.mrb[0].mxu0
        %v1509 = vadd.f32 0.0, %v1508
        %v1510 = vpop.f32.mrb[0].mxu0
        %v1511 = vadd.f32 0.0, %v1510
        %v1512 = vpop.f32.mrb[0].mxu0
        %v1513 = vadd.f32 0.0, %v1512
        %1514 = vdwg.mxu0
        %1515 = vmatprep.subr.bf16.mxu0 %v574
        %1516 = vmatpush1.bf16.msra.mxu0 %v573
        %1517 = vmatprep.subr.bf16.mxu0 %v586
        %1518 = vmatpush1.bf16.msra.mxu0 %v585
        %1519 = vmatprep.subr.bf16.mxu0 0
        %1520 = vmatpush1.bf16.msra.mxu0 0
        %1521 = vmatprep.subr.bf16.mxu0 0
        %1522 = vmatpush1.bf16.msra.mxu0 0
        %1523 = vmatprep.subr.bf16.mxu0 0
        %1524 = vmatpush1.bf16.msra.mxu0 0
        %1525 = vmatprep.subr.bf16.mxu0 0
        %1526 = vmatpush1.bf16.msra.mxu0 0
        %1527 = vmatprep.subr.bf16.mxu0 0
        %1528 = vmatpush1.bf16.msra.mxu0 0
        %1529 = vmatprep.subr.bf16.mxu0 0
        %1530 = vmatpush1.bf16.msra.mxu0 0
        %1531 = vmatprep.subr.bf16.mxu0 0
        %1532 = vmatpush1.bf16.msra.mxu0 0
        %1533 = vmatprep.subr.bf16.mxu0 0
        %1534 = vmatpush1.bf16.msra.mxu0 0
        %1535 = vmatprep.subr.bf16.mxu0 0
        %1536 = vmatpush1.bf16.msra.mxu0 0
        %1537 = vmatprep.subr.bf16.mxu0 0
        %1538 = vmatpush1.bf16.msra.mxu0 0
        %1539 = vmatprep.subr.bf16.mxu0 0
        %1540 = vmatpush1.bf16.msra.mxu0 0
        %1541 = vmatprep.subr.bf16.mxu0 0
        %1542 = vmatpush1.bf16.msra.mxu0 0
        %1543 = vmatprep.subr.bf16.mxu0 0
        %1544 = vmatpush1.bf16.msra.mxu0 0
        %1545 = vmatprep.subr.bf16.mxu0 0
        %1546 = vmatpush1.bf16.msra.mxu0 0
        %1547 = vmatprep.mubr.bf16.mxu0 0
        %1548 = vmatmul.mubr.bf16.gmra.mrb[0].mxu0 %v1379
        %v1549 = vpop.f32.mrb[0].mxu0
        %v1550 = vadd.f32 0.0, %v1549
        %v1551 = vpop.f32.mrb[0].mxu0
        %v1552 = vadd.f32 0.0, %v1551
        %v1553 = vpop.f32.mrb[0].mxu0
        %v1554 = vadd.f32 0.0, %v1553
        %v1555 = vpop.f32.mrb[0].mxu0
        %v1556 = vadd.f32 0.0, %v1555
        %1557 = vmatprep.mubr.bf16.mxu0 0
        %1558 = vmatmul.mubr.bf16.gmra.mrb[0].mxu0 %v1382
        %v1559 = vpop.f32.mrb[0].mxu0
        %v1560 = vadd.f32 0.0, %v1559
        %v1561 = vpop.f32.mrb[0].mxu0
        %v1562 = vadd.f32 0.0, %v1561
        %v1563 = vpop.f32.mrb[0].mxu0
        %v1564 = vadd.f32 0.0, %v1563
        %v1565 = vpop.f32.mrb[0].mxu0
        %v1566 = vadd.f32 0.0, %v1565
        %1567 = vmatprep.mubr.bf16.mxu0 0
        %1568 = vmatmul.mubr.bf16.gmra.mrb[0].mxu0 %v1385
        %v1569 = vpop.f32.mrb[0].mxu0
        %v1570 = vadd.f32 0.0, %v1569
        %v1571 = vpop.f32.mrb[0].mxu0
        %v1572 = vadd.f32 0.0, %v1571
        %v1573 = vpop.f32.mrb[0].mxu0
        %v1574 = vadd.f32 0.0, %v1573
        %v1575 = vpop.f32.mrb[0].mxu0
        %v1576 = vadd.f32 0.0, %v1575
        %1577 = vmatprep.mubr.bf16.mxu0 0
        %1578 = vmatmul.mubr.bf16.gmra.mrb[0].mxu0 %v1388
        %v1579 = vpop.f32.mrb[0].mxu0
        %v1580 = vadd.f32 0.0, %v1579
        %v1581 = vpop.f32.mrb[0].mxu0
        %v1582 = vadd.f32 0.0, %v1581
        %v1583 = vpop.f32.mrb[0].mxu0
        %v1584 = vadd.f32 0.0, %v1583
        %v1585 = vpop.f32.mrb[0].mxu0
        %v1586 = vadd.f32 0.0, %v1585
        %1587 = vmatprep.mubr.bf16.mxu0 0
        %1588 = vmatmul.mubr.bf16.gmra.mrb[0].mxu0 %v1391
        %v1589 = vpop.f32.mrb[0].mxu0
        %v1590 = vadd.f32 0.0, %v1589
        %v1591 = vpop.f32.mrb[0].mxu0
        %v1592 = vadd.f32 0.0, %v1591
        %v1593 = vpop.f32.mrb[0].mxu0
        %v1594 = vadd.f32 0.0, %v1593
        %v1595 = vpop.f32.mrb[0].mxu0
        %v1596 = vadd.f32 0.0, %v1595
        %1597 = vmatprep.mubr.bf16.mxu0 0
        %1598 = vmatmul.mubr.bf16.gmra.mrb[0].mxu0 %v1394
        %v1599 = vpop.f32.mrb[0].mxu0
        %v1600 = vadd.f32 0.0, %v1599
        %v1601 = vpop.f32.mrb[0].mxu0
        %v1602 = vadd.f32 0.0, %v1601
        %v1603 = vpop.f32.mrb[0].mxu0
        %v1604 = vadd.f32 0.0, %v1603
        %v1605 = vpop.f32.mrb[0].mxu0
        %v1606 = vadd.f32 0.0, %v1605
        %1607 = vmatprep.mubr.bf16.mxu0 0
        %1608 = vmatmul.mubr.bf16.gmra.mrb[0].mxu0 %v1397
        %v1609 = vpop.f32.mrb[0].mxu0
        %v1610 = vadd.f32 0.0, %v1609
        %v1611 = vpop.f32.mrb[0].mxu0
        %v1612 = vadd.f32 0.0, %v1611
        %v1613 = vpop.f32.mrb[0].mxu0
        %v1614 = vadd.f32 0.0, %v1613
        %v1615 = vpop.f32.mrb[0].mxu0
        %v1616 = vadd.f32 0.0, %v1615
        %1617 = vmatprep.mubr.bf16.mxu0 0
        %1618 = vmatmul.mubr.bf16.gmra.mrb[0].mxu0 %v1400
        %v1619 = vpop.f32.mrb[0].mxu0
        %v1620 = vadd.f32 0.0, %v1619
        %v1621 = vpop.f32.mrb[0].mxu0
        %v1622 = vadd.f32 0.0, %v1621
        %v1623 = vpop.f32.mrb[0].mxu0
        %v1624 = vadd.f32 0.0, %v1623
        %v1625 = vpop.f32.mrb[0].mxu0
        %v1626 = vadd.f32 0.0, %v1625
        %1627 = vdwg.mxu0
        %1628 = vmatprep.subr.bf16.mxu0 %v576
        %1629 = vmatpush1.bf16.msra.mxu0 %v575
        %1630 = vmatprep.subr.bf16.mxu0 %v588
        %1631 = vmatpush1.bf16.msra.mxu0 %v587
        %1632 = vmatprep.subr.bf16.mxu0 0
        %1633 = vmatpush1.bf16.msra.mxu0 0
        %1634 = vmatprep.subr.bf16.mxu0 0
        %1635 = vmatpush1.bf16.msra.mxu0 0
        %1636 = vmatprep.subr.bf16.mxu0 0
        %1637 = vmatpush1.bf16.msra.mxu0 0
        %1638 = vmatprep.subr.bf16.mxu0 0
        %1639 = vmatpush1.bf16.msra.mxu0 0
        %1640 = vmatprep.subr.bf16.mxu0 0
        %1641 = vmatpush1.bf16.msra.mxu0 0
        %1642 = vmatprep.subr.bf16.mxu0 0
        %1643 = vmatpush1.bf16.msra.mxu0 0
        %1644 = vmatprep.subr.bf16.mxu0 0
        %1645 = vmatpush1.bf16.msra.mxu0 0
        %1646 = vmatprep.subr.bf16.mxu0 0
        %1647 = vmatpush1.bf16.msra.mxu0 0
        %1648 = vmatprep.subr.bf16.mxu0 0
        %1649 = vmatpush1.bf16.msra.mxu0 0
        %1650 = vmatprep.subr.bf16.mxu0 0
        %1651 = vmatpush1.bf16.msra.mxu0 0
        %1652 = vmatprep.subr.bf16.mxu0 0
        %1653 = vmatpush1.bf16.msra.mxu0 0
        %1654 = vmatprep.subr.bf16.mxu0 0
        %1655 = vmatpush1.bf16.msra.mxu0 0
        %1656 = vmatprep.subr.bf16.mxu0 0
        %1657 = vmatpush1.bf16.msra.mxu0 0
        %1658 = vmatprep.subr.bf16.mxu0 0
        %1659 = vmatpush1.bf16.msra.mxu0 0
        %1660 = vmatprep.mubr.bf16.mxu0 0
        %1661 = vmatmul.mubr.bf16.gmra.mrb[0].mxu0 %v1379
        %v1662 = vpop.f32.mrb[0].mxu0
        %v1663 = vadd.f32 0.0, %v1662
        %v1664 = vpop.f32.mrb[0].mxu0
        %v1665 = vadd.f32 0.0, %v1664
        %v1666 = vpop.f32.mrb[0].mxu0
        %v1667 = vadd.f32 0.0, %v1666
        %v1668 = vpop.f32.mrb[0].mxu0
        %v1669 = vadd.f32 0.0, %v1668
        %1670 = vmatprep.mubr.bf16.mxu0 0
        %1671 = vmatmul.mubr.bf16.gmra.mrb[0].mxu0 %v1382
        %v1672 = vpop.f32.mrb[0].mxu0
        %v1673 = vadd.f32 0.0, %v1672
        %v1674 = vpop.f32.mrb[0].mxu0
        %v1675 = vadd.f32 0.0, %v1674
        %v1676 = vpop.f32.mrb[0].mxu0
        %v1677 = vadd.f32 0.0, %v1676
        %v1678 = vpop.f32.mrb[0].mxu0
        %v1679 = vadd.f32 0.0, %v1678
        %1680 = vmatprep.mubr.bf16.mxu0 0
        %1681 = vmatmul.mubr.bf16.gmra.mrb[0].mxu0 %v1385
        %v1682 = vpop.f32.mrb[0].mxu0
        %v1683 = vadd.f32 0.0, %v1682
        %v1684 = vpop.f32.mrb[0].mxu0
        %v1685 = vadd.f32 0.0, %v1684
        %v1686 = vpop.f32.mrb[0].mxu0
        %v1687 = vadd.f32 0.0, %v1686
        %v1688 = vpop.f32.mrb[0].mxu0
        %v1689 = vadd.f32 0.0, %v1688
        %1690 = vmatprep.mubr.bf16.mxu0 0
        %1691 = vmatmul.mubr.bf16.gmra.mrb[0].mxu0 %v1388
        %v1692 = vpop.f32.mrb[0].mxu0
        %v1693 = vadd.f32 0.0, %v1692
        %v1694 = vpop.f32.mrb[0].mxu0
        %v1695 = vadd.f32 0.0, %v1694
        %v1696 = vpop.f32.mrb[0].mxu0
        %v1697 = vadd.f32 0.0, %v1696
        %v1698 = vpop.f32.mrb[0].mxu0
        %v1699 = vadd.f32 0.0, %v1698
        %1700 = vmatprep.mubr.bf16.mxu0 0
        %1701 = vmatmul.mubr.bf16.gmra.mrb[0].mxu0 %v1391
        %v1702 = vpop.f32.mrb[0].mxu0
        %v1703 = vadd.f32 0.0, %v1702
        %v1704 = vpop.f32.mrb[0].mxu0
        %v1705 = vadd.f32 0.0, %v1704
        %v1706 = vpop.f32.mrb[0].mxu0
        %v1707 = vadd.f32 0.0, %v1706
        %v1708 = vpop.f32.mrb[0].mxu0
        %v1709 = vadd.f32 0.0, %v1708
        %1710 = vmatprep.mubr.bf16.mxu0 0
        %1711 = vmatmul.mubr.bf16.gmra.mrb[0].mxu0 %v1394
        %v1712 = vpop.f32.mrb[0].mxu0
        %v1713 = vadd.f32 0.0, %v1712
        %v1714 = vpop.f32.mrb[0].mxu0
        %v1715 = vadd.f32 0.0, %v1714
        %v1716 = vpop.f32.mrb[0].mxu0
        %v1717 = vadd.f32 0.0, %v1716
        %v1718 = vpop.f32.mrb[0].mxu0
        %v1719 = vadd.f32 0.0, %v1718
        %1720 = vmatprep.mubr.bf16.mxu0 0
        %1721 = vmatmul.mubr.bf16.gmra.mrb[0].mxu0 %v1397
        %v1722 = vpop.f32.mrb[0].mxu0
        %v1723 = vadd.f32 0.0, %v1722
        %v1724 = vpop.f32.mrb[0].mxu0
        %v1725 = vadd.f32 0.0, %v1724
        %v1726 = vpop.f32.mrb[0].mxu0
        %v1727 = vadd.f32 0.0, %v1726
        %v1728 = vpop.f32.mrb[0].mxu0
        %v1729 = vadd.f32 0.0, %v1728
        %1730 = vmatprep.mubr.bf16.mxu0 0
        %1731 = vmatmul.mubr.bf16.gmra.mrb[0].mxu0 %v1400
        %v1732 = vpop.f32.mrb[0].mxu0
        %v1733 = vadd.f32 0.0, %v1732
        %v1734 = vpop.f32.mrb[0].mxu0
        %v1735 = vadd.f32 0.0, %v1734
        %v1736 = vpop.f32.mrb[0].mxu0
        %v1737 = vadd.f32 0.0, %v1736
        %v1738 = vpop.f32.mrb[0].mxu0
        %v1739 = vadd.f32 0.0, %v1738
        %1740 = vdwg.mxu0
        %1741 = vmatprep.subr.bf16.mxu0 %v578
        %1742 = vmatpush1.bf16.msra.mxu0 %v577
        %1743 = vmatprep.subr.bf16.mxu0 %v590
        %1744 = vmatpush1.bf16.msra.mxu0 %v589
        %1745 = vmatprep.subr.bf16.mxu0 0
        %1746 = vmatpush1.bf16.msra.mxu0 0
        %1747 = vmatprep.subr.bf16.mxu0 0
        %1748 = vmatpush1.bf16.msra.mxu0 0
        %1749 = vmatprep.subr.bf16.mxu0 0
        %1750 = vmatpush1.bf16.msra.mxu0 0
        %1751 = vmatprep.subr.bf16.mxu0 0
        %1752 = vmatpush1.bf16.msra.mxu0 0
        %1753 = vmatprep.subr.bf16.mxu0 0
        %1754 = vmatpush1.bf16.msra.mxu0 0
        %1755 = vmatprep.subr.bf16.mxu0 0
        %1756 = vmatpush1.bf16.msra.mxu0 0
        %1757 = vmatprep.subr.bf16.mxu0 0
        %1758 = vmatpush1.bf16.msra.mxu0 0
        %1759 = vmatprep.subr.bf16.mxu0 0
        %1760 = vmatpush1.bf16.msra.mxu0 0
        %1761 = vmatprep.subr.bf16.mxu0 0
        %1762 = vmatpush1.bf16.msra.mxu0 0
        %1763 = vmatprep.subr.bf16.mxu0 0
        %1764 = vmatpush1.bf16.msra.mxu0 0
        %1765 = vmatprep.subr.bf16.mxu0 0
        %1766 = vmatpush1.bf16.msra.mxu0 0
        %1767 = vmatprep.subr.bf16.mxu0 0
        %1768 = vmatpush1.bf16.msra.mxu0 0
        %1769 = vmatprep.subr.bf16.mxu0 0
        %1770 = vmatpush1.bf16.msra.mxu0 0
        %1771 = vmatprep.subr.bf16.mxu0 0
        %1772 = vmatpush1.bf16.msra.mxu0 0
        %1773 = vmatprep.mubr.bf16.mxu0 0
        %1774 = vmatmul.mubr.bf16.gmra.mrb[0].mxu0 %v1379
        %v1775 = vpop.f32.mrb[0].mxu0
        %v1776 = vadd.f32 0.0, %v1775
        %v1777 = vpop.f32.mrb[0].mxu0
        %v1778 = vadd.f32 0.0, %v1777
        %v1779 = vpop.f32.mrb[0].mxu0
        %v1780 = vadd.f32 0.0, %v1779
        %v1781 = vpop.f32.mrb[0].mxu0
        %v1782 = vadd.f32 0.0, %v1781
        %1783 = vmatprep.mubr.bf16.mxu0 0
        %1784 = vmatmul.mubr.bf16.gmra.mrb[0].mxu0 %v1382
        %v1785 = vpop.f32.mrb[0].mxu0
        %v1786 = vadd.f32 0.0, %v1785
        %v1787 = vpop.f32.mrb[0].mxu0
        %v1788 = vadd.f32 0.0, %v1787
        %v1789 = vpop.f32.mrb[0].mxu0
        %v1790 = vadd.f32 0.0, %v1789
        %v1791 = vpop.f32.mrb[0].mxu0
        %v1792 = vadd.f32 0.0, %v1791
        %1793 = vmatprep.mubr.bf16.mxu0 0
        %1794 = vmatmul.mubr.bf16.gmra.mrb[0].mxu0 %v1385
        %v1795 = vpop.f32.mrb[0].mxu0
        %v1796 = vadd.f32 0.0, %v1795
        %v1797 = vpop.f32.mrb[0].mxu0
        %v1798 = vadd.f32 0.0, %v1797
        %v1799 = vpop.f32.mrb[0].mxu0
        %v1800 = vadd.f32 0.0, %v1799
        %v1801 = vpop.f32.mrb[0].mxu0
        %v1802 = vadd.f32 0.0, %v1801
        %1803 = vmatprep.mubr.bf16.mxu0 0
        %1804 = vmatmul.mubr.bf16.gmra.mrb[0].mxu0 %v1388
        %v1805 = vpop.f32.mrb[0].mxu0
        %v1806 = vadd.f32 0.0, %v1805
        %v1807 = vpop.f32.mrb[0].mxu0
        %v1808 = vadd.f32 0.0, %v1807
        %v1809 = vpop.f32.mrb[0].mxu0
        %v1810 = vadd.f32 0.0, %v1809
        %v1811 = vpop.f32.mrb[0].mxu0
        %v1812 = vadd.f32 0.0, %v1811
        %1813 = vmatprep.mubr.bf16.mxu0 0
        %1814 = vmatmul.mubr.bf16.gmra.mrb[0].mxu0 %v1391
        %v1815 = vpop.f32.mrb[0].mxu0
        %v1816 = vadd.f32 0.0, %v1815
        %v1817 = vpop.f32.mrb[0].mxu0
        %v1818 = vadd.f32 0.0, %v1817
        %v1819 = vpop.f32.mrb[0].mxu0
        %v1820 = vadd.f32 0.0, %v1819
        %v1821 = vpop.f32.mrb[0].mxu0
        %v1822 = vadd.f32 0.0, %v1821
        %1823 = vmatprep.mubr.bf16.mxu0 0
        %1824 = vmatmul.mubr.bf16.gmra.mrb[0].mxu0 %v1394
        %v1825 = vpop.f32.mrb[0].mxu0
        %v1826 = vadd.f32 0.0, %v1825
        %v1827 = vpop.f32.mrb[0].mxu0
        %v1828 = vadd.f32 0.0, %v1827
        %v1829 = vpop.f32.mrb[0].mxu0
        %v1830 = vadd.f32 0.0, %v1829
        %v1831 = vpop.f32.mrb[0].mxu0
        %v1832 = vadd.f32 0.0, %v1831
        %1833 = vmatprep.mubr.bf16.mxu0 0
        %1834 = vmatmul.mubr.bf16.gmra.mrb[0].mxu0 %v1397
        %v1835 = vpop.f32.mrb[0].mxu0
        %v1836 = vadd.f32 0.0, %v1835
        %v1837 = vpop.f32.mrb[0].mxu0
        %v1838 = vadd.f32 0.0, %v1837
        %v1839 = vpop.f32.mrb[0].mxu0
        %v1840 = vadd.f32 0.0, %v1839
        %v1841 = vpop.f32.mrb[0].mxu0
        %v1842 = vadd.f32 0.0, %v1841
        %1843 = vmatprep.mubr.bf16.mxu0 0
        %1844 = vmatmul.mubr.bf16.gmra.mrb[0].mxu0 %v1400
        %v1845 = vpop.f32.mrb[0].mxu0
        %v1846 = vadd.f32 0.0, %v1845
        %v1847 = vpop.f32.mrb[0].mxu0
        %v1848 = vadd.f32 0.0, %v1847
        %v1849 = vpop.f32.mrb[0].mxu0
        %v1850 = vadd.f32 0.0, %v1849
        %v1851 = vpop.f32.mrb[0].mxu0
        %v1852 = vadd.f32 0.0, %v1851
        %1853 = vdwg.mxu0
        %1854 = vmatprep.subr.bf16.mxu0 %v580
        %1855 = vmatpush1.bf16.msra.mxu0 %v579
        %1856 = vmatprep.subr.bf16.mxu0 %v592
        %1857 = vmatpush1.bf16.msra.mxu0 %v591
        %1858 = vmatprep.subr.bf16.mxu0 0
        %1859 = vmatpush1.bf16.msra.mxu0 0
        %1860 = vmatprep.subr.bf16.mxu0 0
        %1861 = vmatpush1.bf16.msra.mxu0 0
        %1862 = vmatprep.subr.bf16.mxu0 0
        %1863 = vmatpush1.bf16.msra.mxu0 0
        %1864 = vmatprep.subr.bf16.mxu0 0
        %1865 = vmatpush1.bf16.msra.mxu0 0
        %1866 = vmatprep.subr.bf16.mxu0 0
        %1867 = vmatpush1.bf16.msra.mxu0 0
        %1868 = vmatprep.subr.bf16.mxu0 0
        %1869 = vmatpush1.bf16.msra.mxu0 0
        %1870 = vmatprep.subr.bf16.mxu0 0
        %1871 = vmatpush1.bf16.msra.mxu0 0
        %1872 = vmatprep.subr.bf16.mxu0 0
        %1873 = vmatpush1.bf16.msra.mxu0 0
        %1874 = vmatprep.subr.bf16.mxu0 0
        %1875 = vmatpush1.bf16.msra.mxu0 0
        %1876 = vmatprep.subr.bf16.mxu0 0
        %1877 = vmatpush1.bf16.msra.mxu0 0
        %1878 = vmatprep.subr.bf16.mxu0 0
        %1879 = vmatpush1.bf16.msra.mxu0 0
        %1880 = vmatprep.subr.bf16.mxu0 0
        %1881 = vmatpush1.bf16.msra.mxu0 0
        %1882 = vmatprep.subr.bf16.mxu0 0
        %1883 = vmatpush1.bf16.msra.mxu0 0
        %1884 = vmatprep.subr.bf16.mxu0 0
        %1885 = vmatpush1.bf16.msra.mxu0 0
        %1886 = vmatprep.mubr.bf16.mxu0 0
        %1887 = vmatmul.mubr.bf16.gmra.mrb[0].mxu0 %v1379
        %v1888 = vpop.f32.mrb[0].mxu0
        %v1889 = vadd.f32 0.0, %v1888
        %v1890 = vpop.f32.mrb[0].mxu0
        %v1891 = vadd.f32 0.0, %v1890
        %v1892 = vpop.f32.mrb[0].mxu0
        %v1893 = vadd.f32 0.0, %v1892
        %v1894 = vpop.f32.mrb[0].mxu0
        %v1895 = vadd.f32 0.0, %v1894
        %1896 = vmatprep.mubr.bf16.mxu0 0
        %1897 = vmatmul.mubr.bf16.gmra.mrb[0].mxu0 %v1382
        %v1898 = vpop.f32.mrb[0].mxu0
        %v1899 = vadd.f32 0.0, %v1898
        %v1900 = vpop.f32.mrb[0].mxu0
        %v1901 = vadd.f32 0.0, %v1900
        %v1902 = vpop.f32.mrb[0].mxu0
        %v1903 = vadd.f32 0.0, %v1902
        %v1904 = vpop.f32.mrb[0].mxu0
        %v1905 = vadd.f32 0.0, %v1904
        %1906 = vmatprep.mubr.bf16.mxu0 0
        %1907 = vmatmul.mubr.bf16.gmra.mrb[0].mxu0 %v1385
        %v1908 = vpop.f32.mrb[0].mxu0
        %v1909 = vadd.f32 0.0, %v1908
        %v1910 = vpop.f32.mrb[0].mxu0
        %v1911 = vadd.f32 0.0, %v1910
        %v1912 = vpop.f32.mrb[0].mxu0
        %v1913 = vadd.f32 0.0, %v1912
        %v1914 = vpop.f32.mrb[0].mxu0
        %v1915 = vadd.f32 0.0, %v1914
        %1916 = vmatprep.mubr.bf16.mxu0 0
        %1917 = vmatmul.mubr.bf16.gmra.mrb[0].mxu0 %v1388
        %v1918 = vpop.f32.mrb[0].mxu0
        %v1919 = vadd.f32 0.0, %v1918
        %v1920 = vpop.f32.mrb[0].mxu0
        %v1921 = vadd.f32 0.0, %v1920
        %v1922 = vpop.f32.mrb[0].mxu0
        %v1923 = vadd.f32 0.0, %v1922
        %v1924 = vpop.f32.mrb[0].mxu0
        %v1925 = vadd.f32 0.0, %v1924
        %1926 = vmatprep.mubr.bf16.mxu0 0
        %1927 = vmatmul.mubr.bf16.gmra.mrb[0].mxu0 %v1391
        %v1928 = vpop.f32.mrb[0].mxu0
        %v1929 = vadd.f32 0.0, %v1928
        %v1930 = vpop.f32.mrb[0].mxu0
        %v1931 = vadd.f32 0.0, %v1930
        %v1932 = vpop.f32.mrb[0].mxu0
        %v1933 = vadd.f32 0.0, %v1932
        %v1934 = vpop.f32.mrb[0].mxu0
        %v1935 = vadd.f32 0.0, %v1934
        %1936 = vmatprep.mubr.bf16.mxu0 0
        %1937 = vmatmul.mubr.bf16.gmra.mrb[0].mxu0 %v1394
        %v1938 = vpop.f32.mrb[0].mxu0
        %v1939 = vadd.f32 0.0, %v1938
        %v1940 = vpop.f32.mrb[0].mxu0
        %v1941 = vadd.f32 0.0, %v1940
        %v1942 = vpop.f32.mrb[0].mxu0
        %v1943 = vadd.f32 0.0, %v1942
        %v1944 = vpop.f32.mrb[0].mxu0
        %v1945 = vadd.f32 0.0, %v1944
        %1946 = vmatprep.mubr.bf16.mxu0 0
        %1947 = vmatmul.mubr.bf16.gmra.mrb[0].mxu0 %v1397
        %v1948 = vpop.f32.mrb[0].mxu0
        %v1949 = vadd.f32 0.0, %v1948
        %v1950 = vpop.f32.mrb[0].mxu0
        %v1951 = vadd.f32 0.0, %v1950
        %v1952 = vpop.f32.mrb[0].mxu0
        %v1953 = vadd.f32 0.0, %v1952
        %v1954 = vpop.f32.mrb[0].mxu0
        %v1955 = vadd.f32 0.0, %v1954
        %1956 = vmatprep.mubr.bf16.mxu0 0
        %1957 = vmatmul.mubr.bf16.gmra.mrb[0].mxu0 %v1400
        %v1958 = vpop.f32.mrb[0].mxu0
        %v1959 = vadd.f32 0.0, %v1958
        %v1960 = vpop.f32.mrb[0].mxu0
        %v1961 = vadd.f32 0.0, %v1960
        %v1962 = vpop.f32.mrb[0].mxu0
        %v1963 = vadd.f32 0.0, %v1962
        %v1964 = vpop.f32.mrb[0].mxu0
        %v1965 = vadd.f32 0.0, %v1964
        %1966 = vdwg.mxu0
        %1967 = vmatprep.subr.bf16.mxu0 %v582
        %1968 = vmatpush1.bf16.msra.mxu0 %v581
        %1969 = vmatprep.subr.bf16.mxu0 %v594
        %1970 = vmatpush1.bf16.msra.mxu0 %v593
        %1971 = vmatprep.subr.bf16.mxu0 0
        %1972 = vmatpush1.bf16.msra.mxu0 0
        %1973 = vmatprep.subr.bf16.mxu0 0
        %1974 = vmatpush1.bf16.msra.mxu0 0
        %1975 = vmatprep.subr.bf16.mxu0 0
        %1976 = vmatpush1.bf16.msra.mxu0 0
        %1977 = vmatprep.subr.bf16.mxu0 0
        %1978 = vmatpush1.bf16.msra.mxu0 0
        %1979 = vmatprep.subr.bf16.mxu0 0
        %1980 = vmatpush1.bf16.msra.mxu0 0
        %1981 = vmatprep.subr.bf16.mxu0 0
        %1982 = vmatpush1.bf16.msra.mxu0 0
        %1983 = vmatprep.subr.bf16.mxu0 0
        %1984 = vmatpush1.bf16.msra.mxu0 0
        %1985 = vmatprep.subr.bf16.mxu0 0
        %1986 = vmatpush1.bf16.msra.mxu0 0
        %1987 = vmatprep.subr.bf16.mxu0 0
        %1988 = vmatpush1.bf16.msra.mxu0 0
        %1989 = vmatprep.subr.bf16.mxu0 0
        %1990 = vmatpush1.bf16.msra.mxu0 0
        %1991 = vmatprep.subr.bf16.mxu0 0
        %1992 = vmatpush1.bf16.msra.mxu0 0
        %1993 = vmatprep.subr.bf16.mxu0 0
        %1994 = vmatpush1.bf16.msra.mxu0 0
        %1995 = vmatprep.subr.bf16.mxu0 0
        %1996 = vmatpush1.bf16.msra.mxu0 0
        %1997 = vmatprep.subr.bf16.mxu0 0
        %1998 = vmatpush1.bf16.msra.mxu0 0
        %1999 = vmatprep.mubr.bf16.mxu0 0
        %2000 = vmatmul.mubr.bf16.gmra.mrb[0].mxu0 %v1379
        %v2001 = vpop.f32.mrb[0].mxu0
        %v2002 = vadd.f32 0.0, %v2001
        %v2003 = vpop.f32.mrb[0].mxu0
        %v2004 = vadd.f32 0.0, %v2003
        %v2005 = vpop.f32.mrb[0].mxu0
        %v2006 = vadd.f32 0.0, %v2005
        %v2007 = vpop.f32.mrb[0].mxu0
        %v2008 = vadd.f32 0.0, %v2007
        %2009 = vmatprep.mubr.bf16.mxu0 0
        %2010 = vmatmul.mubr.bf16.gmra.mrb[0].mxu0 %v1382
        %v2011 = vpop.f32.mrb[0].mxu0
        %v2012 = vadd.f32 0.0, %v2011
        %v2013 = vpop.f32.mrb[0].mxu0
        %v2014 = vadd.f32 0.0, %v2013
        %v2015 = vpop.f32.mrb[0].mxu0
        %v2016 = vadd.f32 0.0, %v2015
        %v2017 = vpop.f32.mrb[0].mxu0
        %v2018 = vadd.f32 0.0, %v2017
        %2019 = vmatprep.mubr.bf16.mxu0 0
        %2020 = vmatmul.mubr.bf16.gmra.mrb[0].mxu0 %v1385
        %v2021 = vpop.f32.mrb[0].mxu0
        %v2022 = vadd.f32 0.0, %v2021
        %v2023 = vpop.f32.mrb[0].mxu0
        %v2024 = vadd.f32 0.0, %v2023
        %v2025 = vpop.f32.mrb[0].mxu0
        %v2026 = vadd.f32 0.0, %v2025
        %v2027 = vpop.f32.mrb[0].mxu0
        %v2028 = vadd.f32 0.0, %v2027
        %2029 = vmatprep.mubr.bf16.mxu0 0
        %2030 = vmatmul.mubr.bf16.gmra.mrb[0].mxu0 %v1388
        %v2031 = vpop.f32.mrb[0].mxu0
        %v2032 = vadd.f32 0.0, %v2031
        %v2033 = vpop.f32.mrb[0].mxu0
        %v2034 = vadd.f32 0.0, %v2033
        %v2035 = vpop.f32.mrb[0].mxu0
        %v2036 = vadd.f32 0.0, %v2035
        %v2037 = vpop.f32.mrb[0].mxu0
        %v2038 = vadd.f32 0.0, %v2037
        %2039 = vmatprep.mubr.bf16.mxu0 0
        %2040 = vmatmul.mubr.bf16.gmra.mrb[0].mxu0 %v1391
        %v2041 = vpop.f32.mrb[0].mxu0
        %v2042 = vadd.f32 0.0, %v2041
        %v2043 = vpop.f32.mrb[0].mxu0
        %v2044 = vadd.f32 0.0, %v2043
        %v2045 = vpop.f32.mrb[0].mxu0
        %v2046 = vadd.f32 0.0, %v2045
        %v2047 = vpop.f32.mrb[0].mxu0
        %v2048 = vadd.f32 0.0, %v2047
        %2049 = vmatprep.mubr.bf16.mxu0 0
        %2050 = vmatmul.mubr.bf16.gmra.mrb[0].mxu0 %v1394
        %v2051 = vpop.f32.mrb[0].mxu0
        %v2052 = vadd.f32 0.0, %v2051
        %v2053 = vpop.f32.mrb[0].mxu0
        %v2054 = vadd.f32 0.0, %v2053
        %v2055 = vpop.f32.mrb[0].mxu0
        %v2056 = vadd.f32 0.0, %v2055
        %v2057 = vpop.f32.mrb[0].mxu0
        %v2058 = vadd.f32 0.0, %v2057
        %2059 = vmatprep.mubr.bf16.mxu0 0
        %2060 = vmatmul.mubr.bf16.gmra.mrb[0].mxu0 %v1397
        %v2061 = vpop.f32.mrb[0].mxu0
        %v2062 = vadd.f32 0.0, %v2061
        %v2063 = vpop.f32.mrb[0].mxu0
        %v2064 = vadd.f32 0.0, %v2063
        %v2065 = vpop.f32.mrb[0].mxu0
        %v2066 = vadd.f32 0.0, %v2065
        %v2067 = vpop.f32.mrb[0].mxu0
        %v2068 = vadd.f32 0.0, %v2067
        %2069 = vmatprep.mubr.bf16.mxu0 0
        %2070 = vmatmul.mubr.bf16.gmra.mrb[0].mxu0 %v1400
        %v2071 = vpop.f32.mrb[0].mxu0
        %v2072 = vadd.f32 0.0, %v2071
        %v2073 = vpop.f32.mrb[0].mxu0
        %v2074 = vadd.f32 0.0, %v2073
        %v2075 = vpop.f32.mrb[0].mxu0
        %v2076 = vadd.f32 0.0, %v2075
        %v2077 = vpop.f32.mrb[0].mxu0
        %v2078 = vadd.f32 0.0, %v2077
        %2079 = vdwg.mxu0
        %v2080 = vld [vmem:[%s3] sm:$0xf]
        %v2081 = vadd.f32 %v679, %v1663
        %v2082 = vadd.f32 %v681, %v1665
        %v2083 = vadd.f32 %v792, %v1776
        %v2084 = vadd.f32 %v794, %v1778
        %v2085 = vadd.f32 %v683, %v1667
        %v2086 = vadd.f32 %v685, %v1669
        %v2087 = vadd.f32 %v796, %v1780
        %v2088 = vadd.f32 %v798, %v1782
        %v2089 = vadd.f32 %v689, %v1673
        %v2090 = vadd.f32 %v691, %v1675
        %v2091 = vadd.f32 %v802, %v1786
        %v2092 = vadd.f32 %v804, %v1788
        %v2093 = vadd.f32 %v693, %v1677
        %v2094 = vadd.f32 %v695, %v1679
        %v2095 = vadd.f32 %v806, %v1790
        %v2096 = vadd.f32 %v808, %v1792
        %v2097 = vadd.f32 %v699, %v1683
        %v2098 = vadd.f32 %v701, %v1685
        %v2099 = vadd.f32 %v812, %v1796
        %v2100 = vadd.f32 %v814, %v1798
        %v2101 = vadd.f32 %v703, %v1687
        %v2102 = vadd.f32 %v705, %v1689
        %v2103 = vadd.f32 %v816, %v1800
        %v2104 = vadd.f32 %v818, %v1802
        %v2105 = vadd.f32 %v709, %v1693
        %v2106 = vadd.f32 %v711, %v1695
        %v2107 = vadd.f32 %v822, %v1806
        %v2108 = vadd.f32 %v824, %v1808
        %v2109 = vadd.f32 %v713, %v1697
        %v2110 = vadd.f32 %v715, %v1699
        %v2111 = vadd.f32 %v826, %v1810
        %v2112 = vadd.f32 %v828, %v1812
        %v2113 = vadd.f32 %v719, %v1703
        %v2114 = vadd.f32 %v721, %v1705
        %v2115 = vadd.f32 %v832, %v1816
        %v2116 = vadd.f32 %v834, %v1818
        %v2117 = vadd.f32 %v723, %v1707
        %v2118 = vadd.f32 %v725, %v1709
        %v2119 = vadd.f32 %v836, %v1820
        %v2120 = vadd.f32 %v838, %v1822
        %v2121 = vadd.f32 %v729, %v1713
        %v2122 = vadd.f32 %v731, %v1715
        %v2123 = vadd.f32 %v842, %v1826
        %v2124 = vadd.f32 %v844, %v1828
        %v2125 = vadd.f32 %v733, %v1717
        %v2126 = vadd.f32 %v735, %v1719
        %v2127 = vadd.f32 %v846, %v1830
        %v2128 = vadd.f32 %v848, %v1832
        %v2129 = vadd.f32 %v739, %v1723
        %v2130 = vadd.f32 %v741, %v1725
        %v2131 = vadd.f32 %v852, %v1836
        %v2132 = vadd.f32 %v854, %v1838
        %v2133 = vadd.f32 %v743, %v1727
        %v2134 = vadd.f32 %v745, %v1729
        %v2135 = vadd.f32 %v856, %v1840
        %v2136 = vadd.f32 %v858, %v1842
        %v2137 = vadd.f32 %v749, %v1733
        %v2138 = vadd.f32 %v751, %v1735
        %v2139 = vadd.f32 %v862, %v1846
        %v2140 = vadd.f32 %v864, %v1848
        %v2141 = vadd.f32 %v753, %v1737
        %v2142 = vadd.f32 %v755, %v1739
        %v2143 = vadd.f32 %v866, %v1850
        %v2144 = vadd.f32 %v868, %v1852
        %vm2209 = vcmask 1046528
        %v2210 = vrot.slane %v1131, 1
        %v2211 = vrot.slane %v1135, 1
        %v2212 = vsel %vm2209, %v2210, %v2211
        %v2213 = vrot.slane %v1133, 1
        %v2214 = vrot.slane %v1137, 1
        %v2215 = vsel %vm2209, %v2213, %v2214
        %v2216 = vrot.slane %v1244, 1
        %v2217 = vrot.slane %v1248, 1
        %v2218 = vsel %vm2209, %v2216, %v2217
        %v2219 = vrot.slane %v1246, 1
        %v2220 = vrot.slane %v1250, 1
        %v2221 = vsel %vm2209, %v2219, %v2220
        %v2222 = vrot.slane %v1141, 1
        %v2223 = vrot.slane %v1145, 1
        %v2224 = vsel %vm2209, %v2222, %v2223
        %v2225 = vrot.slane %v1143, 1
        %v2226 = vrot.slane %v1147, 1
        %v2227 = vsel %vm2209, %v2225, %v2226
        %v2228 = vrot.slane %v1254, 1
        %v2229 = vrot.slane %v1258, 1
        %v2230 = vsel %vm2209, %v2228, %v2229
        %v2231 = vrot.slane %v1256, 1
        %v2232 = vrot.slane %v1260, 1
        %v2233 = vsel %vm2209, %v2231, %v2232
        %v2234 = vrot.slane %v1151, 1
        %v2235 = vrot.slane %v1155, 1
        %v2236 = vsel %vm2209, %v2234, %v2235
        %v2237 = vrot.slane %v1153, 1
        %v2238 = vrot.slane %v1157, 1
        %v2239 = vsel %vm2209, %v2237, %v2238
        %v2240 = vrot.slane %v1264, 1
        %v2241 = vrot.slane %v1268, 1
        %v2242 = vsel %vm2209, %v2240, %v2241
        %v2243 = vrot.slane %v1266, 1
        %v2244 = vrot.slane %v1270, 1
        %v2245 = vsel %vm2209, %v2243, %v2244
        %v2246 = vrot.slane %v1161, 1
        %v2247 = vrot.slane %v1165, 1
        %v2248 = vsel %vm2209, %v2246, %v2247
        %v2249 = vrot.slane %v1163, 1
        %v2250 = vrot.slane %v1167, 1
        %v2251 = vsel %vm2209, %v2249, %v2250
        %v2252 = vrot.slane %v1274, 1
        %v2253 = vrot.slane %v1278, 1
        %v2254 = vsel %vm2209, %v2252, %v2253
        %v2255 = vrot.slane %v1276, 1
        %v2256 = vrot.slane %v1280, 1
        %v2257 = vsel %vm2209, %v2255, %v2256
        %v2258 = vrot.slane %v1171, 1
        %v2259 = vrot.slane %v1175, 1
        %v2260 = vsel %vm2209, %v2258, %v2259
        %v2261 = vrot.slane %v1173, 1
        %v2262 = vrot.slane %v1177, 1
        %v2263 = vsel %vm2209, %v2261, %v2262
        %v2264 = vrot.slane %v1284, 1
        %v2265 = vrot.slane %v1288, 1
        %v2266 = vsel %vm2209, %v2264, %v2265
        %v2267 = vrot.slane %v1286, 1
        %v2268 = vrot.slane %v1290, 1
        %v2269 = vsel %vm2209, %v2267, %v2268
        %v2270 = vrot.slane %v1181, 1
        %v2271 = vrot.slane %v1185, 1
        %v2272 = vsel %vm2209, %v2270, %v2271
        %v2273 = vrot.slane %v1183, 1
        %v2274 = vrot.slane %v1187, 1
        %v2275 = vsel %vm2209, %v2273, %v2274
        %v2276 = vrot.slane %v1294, 1
        %v2277 = vrot.slane %v1298, 1
        %v2278 = vsel %vm2209, %v2276, %v2277
        %v2279 = vrot.slane %v1296, 1
        %v2280 = vrot.slane %v1300, 1
        %v2281 = vsel %vm2209, %v2279, %v2280
        %v2282 = vrot.slane %v1191, 1
        %v2283 = vrot.slane %v1195, 1
        %v2284 = vsel %vm2209, %v2282, %v2283
        %v2285 = vrot.slane %v1193, 1
        %v2286 = vrot.slane %v1197, 1
        %v2287 = vsel %vm2209, %v2285, %v2286
        %v2288 = vrot.slane %v1304, 1
        %v2289 = vrot.slane %v1308, 1
        %v2290 = vsel %vm2209, %v2288, %v2289
        %v2291 = vrot.slane %v1306, 1
        %v2292 = vrot.slane %v1310, 1
        %v2293 = vsel %vm2209, %v2291, %v2292
        %v2294 = vrot.slane %v1201, 1
        %v2295 = vrot.slane %v1205, 1
        %v2296 = vsel %vm2209, %v2294, %v2295
        %v2297 = vrot.slane %v1203, 1
        %v2298 = vrot.slane %v1207, 1
        %v2299 = vsel %vm2209, %v2297, %v2298
        %v2300 = vrot.slane %v1314, 1
        %v2301 = vrot.slane %v1318, 1
        %v2302 = vsel %vm2209, %v2300, %v2301
        %v2303 = vrot.slane %v1316, 1
        %v2304 = vrot.slane %v1320, 1
        %v2305 = vsel %vm2209, %v2303, %v2304
        %v2370 = vadd.f32 %v2081, %v2212
        %v2371 = vadd.f32 %v2082, %v2215
        %v2372 = vadd.f32 %v2083, %v2218
        %v2373 = vadd.f32 %v2084, %v2221
        %v2374 = vadd.f32 %v2085, %v2211
        %v2375 = vadd.f32 %v2086, %v2214
        %v2376 = vadd.f32 %v2087, %v2217
        %v2377 = vadd.f32 %v2088, %v2220
        %v2378 = vadd.f32 %v2089, %v2224
        %v2379 = vadd.f32 %v2090, %v2227
        %v2380 = vadd.f32 %v2091, %v2230
        %v2381 = vadd.f32 %v2092, %v2233
        %v2382 = vadd.f32 %v2093, %v2223
        %v2383 = vadd.f32 %v2094, %v2226
        %v2384 = vadd.f32 %v2095, %v2229
        %v2385 = vadd.f32 %v2096, %v2232
        %v2386 = vadd.f32 %v2097, %v2236
        %v2387 = vadd.f32 %v2098, %v2239
        %v2388 = vadd.f32 %v2099, %v2242
        %v2389 = vadd.f32 %v2100, %v2245
        %v2390 = vadd.f32 %v2101, %v2235
        %v2391 = vadd.f32 %v2102, %v2238
        %v2392 = vadd.f32 %v2103, %v2241
        %v2393 = vadd.f32 %v2104, %v2244
        %v2394 = vadd.f32 %v2105, %v2248
        %v2395 = vadd.f32 %v2106, %v2251
        %v2396 = vadd.f32 %v2107, %v2254
        %v2397 = vadd.f32 %v2108, %v2257
        %v2398 = vadd.f32 %v2109, %v2247
        %v2399 = vadd.f32 %v2110, %v2250
        %v2400 = vadd.f32 %v2111, %v2253
        %v2401 = vadd.f32 %v2112, %v2256
        %v2402 = vadd.f32 %v2113, %v2260
        %v2403 = vadd.f32 %v2114, %v2263
        %v2404 = vadd.f32 %v2115, %v2266
        %v2405 = vadd.f32 %v2116, %v2269
        %v2406 = vadd.f32 %v2117, %v2259
        %v2407 = vadd.f32 %v2118, %v2262
        %v2408 = vadd.f32 %v2119, %v2265
        %v2409 = vadd.f32 %v2120, %v2268
        %v2410 = vadd.f32 %v2121, %v2272
        %v2411 = vadd.f32 %v2122, %v2275
        %v2412 = vadd.f32 %v2123, %v2278
        %v2413 = vadd.f32 %v2124, %v2281
        %v2414 = vadd.f32 %v2125, %v2271
        %v2415 = vadd.f32 %v2126, %v2274
        %v2416 = vadd.f32 %v2127, %v2277
        %v2417 = vadd.f32 %v2128, %v2280
        %v2418 = vadd.f32 %v2129, %v2284
        %v2419 = vadd.f32 %v2130, %v2287
        %v2420 = vadd.f32 %v2131, %v2290
        %v2421 = vadd.f32 %v2132, %v2293
        %v2422 = vadd.f32 %v2133, %v2283
        %v2423 = vadd.f32 %v2134, %v2286
        %v2424 = vadd.f32 %v2135, %v2289
        %v2425 = vadd.f32 %v2136, %v2292
        %v2426 = vadd.f32 %v2137, %v2296
        %v2427 = vadd.f32 %v2138, %v2299
        %v2428 = vadd.f32 %v2139, %v2302
        %v2429 = vadd.f32 %v2140, %v2305
        %v2430 = vadd.f32 %v2141, %v2295
        %v2431 = vadd.f32 %v2142, %v2298
        %v2432 = vadd.f32 %v2143, %v2301
        %v2433 = vadd.f32 %v2144, %v2304
        %v2498 = vrot.slane %v905, 1
        %v2499 = vrot.slane %v909, 1
        %v2500 = vsel %vm2209, %v2498, %v2499
        %v2501 = vrot.slane %v907, 1
        %v2502 = vrot.slane %v911, 1
        %v2503 = vsel %vm2209, %v2501, %v2502
        %v2504 = vrot.slane %v1018, 1
        %v2505 = vrot.slane %v1022, 1
        %v2506 = vsel %vm2209, %v2504, %v2505
        %v2507 = vrot.slane %v1020, 1
        %v2508 = vrot.slane %v1024, 1
        %v2509 = vsel %vm2209, %v2507, %v2508
        %v2510 = vrot.slane %v915, 1
        %v2511 = vrot.slane %v919, 1
        %v2512 = vsel %vm2209, %v2510, %v2511
        %v2513 = vrot.slane %v917, 1
        %v2514 = vrot.slane %v921, 1
        %v2515 = vsel %vm2209, %v2513, %v2514
        %v2516 = vrot.slane %v1028, 1
        %v2517 = vrot.slane %v1032, 1
        %v2518 = vsel %vm2209, %v2516, %v2517
        %v2519 = vrot.slane %v1030, 1
        %v2520 = vrot.slane %v1034, 1
        %v2521 = vsel %vm2209, %v2519, %v2520
        %v2522 = vrot.slane %v925, 1
        %v2523 = vrot.slane %v929, 1
        %v2524 = vsel %vm2209, %v2522, %v2523
        %v2525 = vrot.slane %v927, 1
        %v2526 = vrot.slane %v931, 1
        %v2527 = vsel %vm2209, %v2525, %v2526
        %v2528 = vrot.slane %v1038, 1
        %v2529 = vrot.slane %v1042, 1
        %v2530 = vsel %vm2209, %v2528, %v2529
        %v2531 = vrot.slane %v1040, 1
        %v2532 = vrot.slane %v1044, 1
        %v2533 = vsel %vm2209, %v2531, %v2532
        %v2534 = vrot.slane %v935, 1
        %v2535 = vrot.slane %v939, 1
        %v2536 = vsel %vm2209, %v2534, %v2535
        %v2537 = vrot.slane %v937, 1
        %v2538 = vrot.slane %v941, 1
        %v2539 = vsel %vm2209, %v2537, %v2538
        %v2540 = vrot.slane %v1048, 1
        %v2541 = vrot.slane %v1052, 1
        %v2542 = vsel %vm2209, %v2540, %v2541
        %v2543 = vrot.slane %v1050, 1
        %v2544 = vrot.slane %v1054, 1
        %v2545 = vsel %vm2209, %v2543, %v2544
        %v2546 = vrot.slane %v945, 1
        %v2547 = vrot.slane %v949, 1
        %v2548 = vsel %vm2209, %v2546, %v2547
        %v2549 = vrot.slane %v947, 1
        %v2550 = vrot.slane %v951, 1
        %v2551 = vsel %vm2209, %v2549, %v2550
        %v2552 = vrot.slane %v1058, 1
        %v2553 = vrot.slane %v1062, 1
        %v2554 = vsel %vm2209, %v2552, %v2553
        %v2555 = vrot.slane %v1060, 1
        %v2556 = vrot.slane %v1064, 1
        %v2557 = vsel %vm2209, %v2555, %v2556
        %v2558 = vrot.slane %v955, 1
        %v2559 = vrot.slane %v959, 1
        %v2560 = vsel %vm2209, %v2558, %v2559
        %v2561 = vrot.slane %v957, 1
        %v2562 = vrot.slane %v961, 1
        %v2563 = vsel %vm2209, %v2561, %v2562
        %v2564 = vrot.slane %v1068, 1
        %v2565 = vrot.slane %v1072, 1
        %v2566 = vsel %vm2209, %v2564, %v2565
        %v2567 = vrot.slane %v1070, 1
        %v2568 = vrot.slane %v1074, 1
        %v2569 = vsel %vm2209, %v2567, %v2568
        %v2570 = vrot.slane %v965, 1
        %v2571 = vrot.slane %v969, 1
        %v2572 = vsel %vm2209, %v2570, %v2571
        %v2573 = vrot.slane %v967, 1
        %v2574 = vrot.slane %v971, 1
        %v2575 = vsel %vm2209, %v2573, %v2574
        %v2576 = vrot.slane %v1078, 1
        %v2577 = vrot.slane %v1082, 1
        %v2578 = vsel %vm2209, %v2576, %v2577
        %v2579 = vrot.slane %v1080, 1
        %v2580 = vrot.slane %v1084, 1
        %v2581 = vsel %vm2209, %v2579, %v2580
        %v2582 = vrot.slane %v975, 1
        %v2583 = vrot.slane %v979, 1
        %v2584 = vsel %vm2209, %v2582, %v2583
        %v2585 = vrot.slane %v977, 1
        %v2586 = vrot.slane %v981, 1
        %v2587 = vsel %vm2209, %v2585, %v2586
        %v2588 = vrot.slane %v1088, 1
        %v2589 = vrot.slane %v1092, 1
        %v2590 = vsel %vm2209, %v2588, %v2589
        %v2591 = vrot.slane %v1090, 1
        %v2592 = vrot.slane %v1094, 1
        %v2593 = vsel %vm2209, %v2591, %v2592
        %v2658 = vadd.f32 %v1437, %v2500
        %v2659 = vadd.f32 %v1439, %v2503
        %v2660 = vadd.f32 %v1550, %v2506
        %v2661 = vadd.f32 %v1552, %v2509
        %v2662 = vadd.f32 %v1441, %v2499
        %v2663 = vadd.f32 %v1443, %v2502
        %v2664 = vadd.f32 %v1554, %v2505
        %v2665 = vadd.f32 %v1556, %v2508
        %v2666 = vadd.f32 %v1447, %v2512
        %v2667 = vadd.f32 %v1449, %v2515
        %v2668 = vadd.f32 %v1560, %v2518
        %v2669 = vadd.f32 %v1562, %v2521
        %v2670 = vadd.f32 %v1451, %v2511
        %v2671 = vadd.f32 %v1453, %v2514
        %v2672 = vadd.f32 %v1564, %v2517
        %v2673 = vadd.f32 %v1566, %v2520
        %v2674 = vadd.f32 %v1457, %v2524
        %v2675 = vadd.f32 %v1459, %v2527
        %v2676 = vadd.f32 %v1570, %v2530
        %v2677 = vadd.f32 %v1572, %v2533
        %v2678 = vadd.f32 %v1461, %v2523
        %v2679 = vadd.f32 %v1463, %v2526
        %v2680 = vadd.f32 %v1574, %v2529
        %v2681 = vadd.f32 %v1576, %v2532
        %v2682 = vadd.f32 %v1467, %v2536
        %v2683 = vadd.f32 %v1469, %v2539
        %v2684 = vadd.f32 %v1580, %v2542
        %v2685 = vadd.f32 %v1582, %v2545
        %v2686 = vadd.f32 %v1471, %v2535
        %v2687 = vadd.f32 %v1473, %v2538
        %v2688 = vadd.f32 %v1584, %v2541
        %v2689 = vadd.f32 %v1586, %v2544
        %v2690 = vadd.f32 %v1477, %v2548
        %v2691 = vadd.f32 %v1479, %v2551
        %v2692 = vadd.f32 %v1590, %v2554
        %v2693 = vadd.f32 %v1592, %v2557
        %v2694 = vadd.f32 %v1481, %v2547
        %v2695 = vadd.f32 %v1483, %v2550
        %v2696 = vadd.f32 %v1594, %v2553
        %v2697 = vadd.f32 %v1596, %v2556
        %v2698 = vadd.f32 %v1487, %v2560
        %v2699 = vadd.f32 %v1489, %v2563
        %v2700 = vadd.f32 %v1600, %v2566
        %v2701 = vadd.f32 %v1602, %v2569
        %v2702 = vadd.f32 %v1491, %v2559
        %v2703 = vadd.f32 %v1493, %v2562
        %v2704 = vadd.f32 %v1604, %v2565
        %v2705 = vadd.f32 %v1606, %v2568
        %v2706 = vadd.f32 %v1497, %v2572
        %v2707 = vadd.f32 %v1499, %v2575
        %v2708 = vadd.f32 %v1610, %v2578
        %v2709 = vadd.f32 %v1612, %v2581
        %v2710 = vadd.f32 %v1501, %v2571
        %v2711 = vadd.f32 %v1503, %v2574
        %v2712 = vadd.f32 %v1614, %v2577
        %v2713 = vadd.f32 %v1616, %v2580
        %v2714 = vadd.f32 %v1507, %v2584
        %v2715 = vadd.f32 %v1509, %v2587
        %v2716 = vadd.f32 %v1620, %v2590
        %v2717 = vadd.f32 %v1622, %v2593
        %v2718 = vadd.f32 %v1511, %v2583
        %v2719 = vadd.f32 %v1513, %v2586
        %v2720 = vadd.f32 %v1624, %v2589
        %v2721 = vadd.f32 %v1626, %v2592
        %v2786 = vrot.slane %v1889, 1
        %v2787 = vrot.slane %v1893, 1
        %v2788 = vsel %vm2209, %v2786, %v2787
        %v2789 = vrot.slane %v1891, 1
        %v2790 = vrot.slane %v1895, 1
        %v2791 = vsel %vm2209, %v2789, %v2790
        %v2792 = vrot.slane %v2002, 1
        %v2793 = vrot.slane %v2006, 1
        %v2794 = vsel %vm2209, %v2792, %v2793
        %v2795 = vrot.slane %v2004, 1
        %v2796 = vrot.slane %v2008, 1
        %v2797 = vsel %vm2209, %v2795, %v2796
        %v2798 = vrot.slane %v1899, 1
        %v2799 = vrot.slane %v1903, 1
        %v2800 = vsel %vm2209, %v2798, %v2799
        %v2801 = vrot.slane %v1901, 1
        %v2802 = vrot.slane %v1905, 1
        %v2803 = vsel %vm2209, %v2801, %v2802
        %v2804 = vrot.slane %v2012, 1
        %v2805 = vrot.slane %v2016, 1
        %v2806 = vsel %vm2209, %v2804, %v2805
        %v2807 = vrot.slane %v2014, 1
        %v2808 = vrot.slane %v2018, 1
        %v2809 = vsel %vm2209, %v2807, %v2808
        %v2810 = vrot.slane %v1909, 1
        %v2811 = vrot.slane %v1913, 1
        %v2812 = vsel %vm2209, %v2810, %v2811
        %v2813 = vrot.slane %v1911, 1
        %v2814 = vrot.slane %v1915, 1
        %v2815 = vsel %vm2209, %v2813, %v2814
        %v2816 = vrot.slane %v2022, 1
        %v2817 = vrot.slane %v2026, 1
        %v2818 = vsel %vm2209, %v2816, %v2817
        %v2819 = vrot.slane %v2024, 1
        %v2820 = vrot.slane %v2028, 1
        %v2821 = vsel %vm2209, %v2819, %v2820
        %v2822 = vrot.slane %v1919, 1
        %v2823 = vrot.slane %v1923, 1
        %v2824 = vsel %vm2209, %v2822, %v2823
        %v2825 = vrot.slane %v1921, 1
        %v2826 = vrot.slane %v1925, 1
        %v2827 = vsel %vm2209, %v2825, %v2826
        %v2828 = vrot.slane %v2032, 1
        %v2829 = vrot.slane %v2036, 1
        %v2830 = vsel %vm2209, %v2828, %v2829
        %v2831 = vrot.slane %v2034, 1
        %v2832 = vrot.slane %v2038, 1
        %v2833 = vsel %vm2209, %v2831, %v2832
        %v2834 = vrot.slane %v1929, 1
        %v2835 = vrot.slane %v1933, 1
        %v2836 = vsel %vm2209, %v2834, %v2835
        %v2837 = vrot.slane %v1931, 1
        %v2838 = vrot.slane %v1935, 1
        %v2839 = vsel %vm2209, %v2837, %v2838
        %v2840 = vrot.slane %v2042, 1
        %v2841 = vrot.slane %v2046, 1
        %v2842 = vsel %vm2209, %v2840, %v2841
        %v2843 = vrot.slane %v2044, 1
        %v2844 = vrot.slane %v2048, 1
        %v2845 = vsel %vm2209, %v2843, %v2844
        %v2846 = vrot.slane %v1939, 1
        %v2847 = vrot.slane %v1943, 1
        %v2848 = vsel %vm2209, %v2846, %v2847
        %v2849 = vrot.slane %v1941, 1
        %v2850 = vrot.slane %v1945, 1
        %v2851 = vsel %vm2209, %v2849, %v2850
        %v2852 = vrot.slane %v2052, 1
        %v2853 = vrot.slane %v2056, 1
        %v2854 = vsel %vm2209, %v2852, %v2853
        %v2855 = vrot.slane %v2054, 1
        %v2856 = vrot.slane %v2058, 1
        %v2857 = vsel %vm2209, %v2855, %v2856
        %v2858 = vrot.slane %v1949, 1
        %v2859 = vrot.slane %v1953, 1
        %v2860 = vsel %vm2209, %v2858, %v2859
        %v2861 = vrot.slane %v1951, 1
        %v2862 = vrot.slane %v1955, 1
        %v2863 = vsel %vm2209, %v2861, %v2862
        %v2864 = vrot.slane %v2062, 1
        %v2865 = vrot.slane %v2066, 1
        %v2866 = vsel %vm2209, %v2864, %v2865
        %v2867 = vrot.slane %v2064, 1
        %v2868 = vrot.slane %v2068, 1
        %v2869 = vsel %vm2209, %v2867, %v2868
        %v2870 = vrot.slane %v1959, 1
        %v2871 = vrot.slane %v1963, 1
        %v2872 = vsel %vm2209, %v2870, %v2871
        %v2873 = vrot.slane %v1961, 1
        %v2874 = vrot.slane %v1965, 1
        %v2875 = vsel %vm2209, %v2873, %v2874
        %v2876 = vrot.slane %v2072, 1
        %v2877 = vrot.slane %v2076, 1
        %v2878 = vsel %vm2209, %v2876, %v2877
        %v2879 = vrot.slane %v2074, 1
        %v2880 = vrot.slane %v2078, 1
        %v2881 = vsel %vm2209, %v2879, %v2880
        %v2946 = vadd.f32 %v2658, %v2788
        %v2947 = vadd.f32 %v2659, %v2791
        %v2948 = vadd.f32 %v2660, %v2794
        %v2949 = vadd.f32 %v2661, %v2797
        %v2950 = vadd.f32 %v2662, %v2787
        %v2951 = vadd.f32 %v2663, %v2790
        %v2952 = vadd.f32 %v2664, %v2793
        %v2953 = vadd.f32 %v2665, %v2796
        %v2954 = vadd.f32 %v2666, %v2800
        %v2955 = vadd.f32 %v2667, %v2803
        %v2956 = vadd.f32 %v2668, %v2806
        %v2957 = vadd.f32 %v2669, %v2809
        %v2958 = vadd.f32 %v2670, %v2799
        %v2959 = vadd.f32 %v2671, %v2802
        %v2960 = vadd.f32 %v2672, %v2805
        %v2961 = vadd.f32 %v2673, %v2808
        %v2962 = vadd.f32 %v2674, %v2812
        %v2963 = vadd.f32 %v2675, %v2815
        %v2964 = vadd.f32 %v2676, %v2818
        %v2965 = vadd.f32 %v2677, %v2821
        %v2966 = vadd.f32 %v2678, %v2811
        %v2967 = vadd.f32 %v2679, %v2814
        %v2968 = vadd.f32 %v2680, %v2817
        %v2969 = vadd.f32 %v2681, %v2820
        %v2970 = vadd.f32 %v2682, %v2824
        %v2971 = vadd.f32 %v2683, %v2827
        %v2972 = vadd.f32 %v2684, %v2830
        %v2973 = vadd.f32 %v2685, %v2833
        %v2974 = vadd.f32 %v2686, %v2823
        %v2975 = vadd.f32 %v2687, %v2826
        %v2976 = vadd.f32 %v2688, %v2829
        %v2977 = vadd.f32 %v2689, %v2832
        %v2978 = vadd.f32 %v2690, %v2836
        %v2979 = vadd.f32 %v2691, %v2839
        %v2980 = vadd.f32 %v2692, %v2842
        %v2981 = vadd.f32 %v2693, %v2845
        %v2982 = vadd.f32 %v2694, %v2835
        %v2983 = vadd.f32 %v2695, %v2838
        %v2984 = vadd.f32 %v2696, %v2841
        %v2985 = vadd.f32 %v2697, %v2844
        %v2986 = vadd.f32 %v2698, %v2848
        %v2987 = vadd.f32 %v2699, %v2851
        %v2988 = vadd.f32 %v2700, %v2854
        %v2989 = vadd.f32 %v2701, %v2857
        %v2990 = vadd.f32 %v2702, %v2847
        %v2991 = vadd.f32 %v2703, %v2850
        %v2992 = vadd.f32 %v2704, %v2853
        %v2993 = vadd.f32 %v2705, %v2856
        %v2994 = vadd.f32 %v2706, %v2860
        %v2995 = vadd.f32 %v2707, %v2863
        %v2996 = vadd.f32 %v2708, %v2866
        %v2997 = vadd.f32 %v2709, %v2869
        %v2998 = vadd.f32 %v2710, %v2859
        %v2999 = vadd.f32 %v2711, %v2862
        %v3000 = vadd.f32 %v2712, %v2865
        %v3001 = vadd.f32 %v2713, %v2868
        %v3002 = vadd.f32 %v2714, %v2872
        %v3003 = vadd.f32 %v2715, %v2875
        %v3004 = vadd.f32 %v2716, %v2878
        %v3005 = vadd.f32 %v2717, %v2881
        %v3006 = vadd.f32 %v2718, %v2871
        %v3007 = vadd.f32 %v2719, %v2874
        %v3008 = vadd.f32 %v2720, %v2877
        %v3009 = vadd.f32 %v2721, %v2880
        %v3011 = vlaneseq
        %v3012 = vshrl.u32 %v3011, 7
        %v3013 = vsub.s32 0, %v3012
        %v3014 = vrot.slane %v2080, %v3013
        %v3015 = vlaneseq
        %v3016 = vshrl.u32 %v3015, 7
        %v3017 = vsub.s32 1, %v3016
        %v3018 = vrot.slane %v2080, %v3017
        %v3019 = vlaneseq
        %v3020 = vshrl.u32 %v3019, 7
        %v3021 = vsub.s32 2, %v3020
        %v3022 = vrot.slane %v2080, %v3021
        %v3023 = vlaneseq
        %v3024 = vshrl.u32 %v3023, 7
        %v3025 = vsub.s32 3, %v3024
        %v3026 = vrot.slane %v2080, %v3025
        %v3031 = vadd.f32 %v2370, %v3014
        %v3032 = vadd.f32 %v2371, %v3018
        %v3033 = vadd.f32 %v2372, %v3022
        %v3034 = vadd.f32 %v2373, %v3026
        %v3035 = vadd.f32 %v2374, %v3014
        %v3036 = vadd.f32 %v2375, %v3018
        %v3037 = vadd.f32 %v2376, %v3022
        %v3038 = vadd.f32 %v2377, %v3026
        %v3039 = vadd.f32 %v2378, %v3014
        %v3040 = vadd.f32 %v2379, %v3018
        %v3041 = vadd.f32 %v2380, %v3022
        %v3042 = vadd.f32 %v2381, %v3026
        %v3043 = vadd.f32 %v2382, %v3014
        %v3044 = vadd.f32 %v2383, %v3018
        %v3045 = vadd.f32 %v2384, %v3022
        %v3046 = vadd.f32 %v2385, %v3026
        %v3047 = vadd.f32 %v2386, %v3014
        %v3048 = vadd.f32 %v2387, %v3018
        %v3049 = vadd.f32 %v2388, %v3022
        %v3050 = vadd.f32 %v2389, %v3026
        %v3051 = vadd.f32 %v2390, %v3014
        %v3052 = vadd.f32 %v2391, %v3018
        %v3053 = vadd.f32 %v2392, %v3022
        %v3054 = vadd.f32 %v2393, %v3026
        %v3055 = vadd.f32 %v2394, %v3014
        %v3056 = vadd.f32 %v2395, %v3018
        %v3057 = vadd.f32 %v2396, %v3022
        %v3058 = vadd.f32 %v2397, %v3026
        %v3059 = vadd.f32 %v2398, %v3014
        %v3060 = vadd.f32 %v2399, %v3018
        %v3061 = vadd.f32 %v2400, %v3022
        %v3062 = vadd.f32 %v2401, %v3026
        %v3063 = vadd.f32 %v2402, %v3014
        %v3064 = vadd.f32 %v2403, %v3018
        %v3065 = vadd.f32 %v2404, %v3022
        %v3066 = vadd.f32 %v2405, %v3026
        %v3067 = vadd.f32 %v2406, %v3014
        %v3068 = vadd.f32 %v2407, %v3018
        %v3069 = vadd.f32 %v2408, %v3022
        %v3070 = vadd.f32 %v2409, %v3026
        %v3071 = vadd.f32 %v2410, %v3014
        %v3072 = vadd.f32 %v2411, %v3018
        %v3073 = vadd.f32 %v2412, %v3022
        %v3074 = vadd.f32 %v2413, %v3026
        %v3075 = vadd.f32 %v2414, %v3014
        %v3076 = vadd.f32 %v2415, %v3018
        %v3077 = vadd.f32 %v2416, %v3022
        %v3078 = vadd.f32 %v2417, %v3026
        %v3079 = vadd.f32 %v2418, %v3014
        %v3080 = vadd.f32 %v2419, %v3018
        %v3081 = vadd.f32 %v2420, %v3022
        %v3082 = vadd.f32 %v2421, %v3026
        %v3083 = vadd.f32 %v2422, %v3014
        %v3084 = vadd.f32 %v2423, %v3018
        %v3085 = vadd.f32 %v2424, %v3022
        %v3086 = vadd.f32 %v2425, %v3026
        %v3087 = vadd.f32 %v2426, %v3014
        %v3088 = vadd.f32 %v2427, %v3018
        %v3089 = vadd.f32 %v2428, %v3022
        %v3090 = vadd.f32 %v2429, %v3026
        %v3091 = vadd.f32 %v2430, %v3014
        %v3092 = vadd.f32 %v2431, %v3018
        %v3093 = vadd.f32 %v2432, %v3022
        %v3094 = vadd.f32 %v2433, %v3026
        %v3095 = vmax.f32 %v3031, 0.0
        %v3096 = vmax.f32 %v3032, 0.0
        %v3097 = vmax.f32 %v3033, 0.0
        %v3098 = vmax.f32 %v3034, 0.0
        %v3099 = vmax.f32 %v3035, 0.0
        %v3100 = vmax.f32 %v3036, 0.0
        %v3101 = vmax.f32 %v3037, 0.0
        %v3102 = vmax.f32 %v3038, 0.0
        %v3103 = vmax.f32 %v3039, 0.0
        %v3104 = vmax.f32 %v3040, 0.0
        %v3105 = vmax.f32 %v3041, 0.0
        %v3106 = vmax.f32 %v3042, 0.0
        %v3107 = vmax.f32 %v3043, 0.0
        %v3108 = vmax.f32 %v3044, 0.0
        %v3109 = vmax.f32 %v3045, 0.0
        %v3110 = vmax.f32 %v3046, 0.0
        %v3111 = vmax.f32 %v3047, 0.0
        %v3112 = vmax.f32 %v3048, 0.0
        %v3113 = vmax.f32 %v3049, 0.0
        %v3114 = vmax.f32 %v3050, 0.0
        %v3115 = vmax.f32 %v3051, 0.0
        %v3116 = vmax.f32 %v3052, 0.0
        %v3117 = vmax.f32 %v3053, 0.0
        %v3118 = vmax.f32 %v3054, 0.0
        %v3119 = vmax.f32 %v3055, 0.0
        %v3120 = vmax.f32 %v3056, 0.0
        %v3121 = vmax.f32 %v3057, 0.0
        %v3122 = vmax.f32 %v3058, 0.0
        %v3123 = vmax.f32 %v3059, 0.0
        %v3124 = vmax.f32 %v3060, 0.0
        %v3125 = vmax.f32 %v3061, 0.0
        %v3126 = vmax.f32 %v3062, 0.0
        %v3127 = vmax.f32 %v3063, 0.0
        %v3128 = vmax.f32 %v3064, 0.0
        %v3129 = vmax.f32 %v3065, 0.0
        %v3130 = vmax.f32 %v3066, 0.0
        %v3131 = vmax.f32 %v3067, 0.0
        %v3132 = vmax.f32 %v3068, 0.0
        %v3133 = vmax.f32 %v3069, 0.0
        %v3134 = vmax.f32 %v3070, 0.0
        %v3135 = vmax.f32 %v3071, 0.0
        %v3136 = vmax.f32 %v3072, 0.0
        %v3137 = vmax.f32 %v3073, 0.0
        %v3138 = vmax.f32 %v3074, 0.0
        %v3139 = vmax.f32 %v3075, 0.0
        %v3140 = vmax.f32 %v3076, 0.0
        %v3141 = vmax.f32 %v3077, 0.0
        %v3142 = vmax.f32 %v3078, 0.0
        %v3143 = vmax.f32 %v3079, 0.0
        %v3144 = vmax.f32 %v3080, 0.0
        %v3145 = vmax.f32 %v3081, 0.0
        %v3146 = vmax.f32 %v3082, 0.0
        %v3147 = vmax.f32 %v3083, 0.0
        %v3148 = vmax.f32 %v3084, 0.0
        %v3149 = vmax.f32 %v3085, 0.0
        %v3150 = vmax.f32 %v3086, 0.0
        %v3151 = vmax.f32 %v3087, 0.0
        %v3152 = vmax.f32 %v3088, 0.0
        %v3153 = vmax.f32 %v3089, 0.0
        %v3154 = vmax.f32 %v3090, 0.0
        %v3155 = vmax.f32 %v3091, 0.0
        %v3156 = vmax.f32 %v3092, 0.0
        %v3157 = vmax.f32 %v3093, 0.0
        %v3158 = vmax.f32 %v3094, 0.0
        %v3159 = vadd.f32 %v2946, %v3014
        %v3160 = vadd.f32 %v2947, %v3018
        %v3161 = vadd.f32 %v2948, %v3022
        %v3162 = vadd.f32 %v2949, %v3026
        %v3163 = vadd.f32 %v2950, %v3014
        %v3164 = vadd.f32 %v2951, %v3018
        %v3165 = vadd.f32 %v2952, %v3022
        %v3166 = vadd.f32 %v2953, %v3026
        %v3167 = vadd.f32 %v2954, %v3014
        %v3168 = vadd.f32 %v2955, %v3018
        %v3169 = vadd.f32 %v2956, %v3022
        %v3170 = vadd.f32 %v2957, %v3026
        %v3171 = vadd.f32 %v2958, %v3014
        %v3172 = vadd.f32 %v2959, %v3018
        %v3173 = vadd.f32 %v2960, %v3022
        %v3174 = vadd.f32 %v2961, %v3026
        %v3175 = vadd.f32 %v2962, %v3014
        %v3176 = vadd.f32 %v2963, %v3018
        %v3177 = vadd.f32 %v2964, %v3022
        %v3178 = vadd.f32 %v2965, %v3026
        %v3179 = vadd.f32 %v2966, %v3014
        %v3180 = vadd.f32 %v2967, %v3018
        %v3181 = vadd.f32 %v2968, %v3022
        %v3182 = vadd.f32 %v2969, %v3026
        %v3183 = vadd.f32 %v2970, %v3014
        %v3184 = vadd.f32 %v2971, %v3018
        %v3185 = vadd.f32 %v2972, %v3022
        %v3186 = vadd.f32 %v2973, %v3026
        %v3187 = vadd.f32 %v2974, %v3014
        %v3188 = vadd.f32 %v2975, %v3018
        %v3189 = vadd.f32 %v2976, %v3022
        %v3190 = vadd.f32 %v2977, %v3026
        %v3191 = vadd.f32 %v2978, %v3014
        %v3192 = vadd.f32 %v2979, %v3018
        %v3193 = vadd.f32 %v2980, %v3022
        %v3194 = vadd.f32 %v2981, %v3026
        %v3195 = vadd.f32 %v2982, %v3014
        %v3196 = vadd.f32 %v2983, %v3018
        %v3197 = vadd.f32 %v2984, %v3022
        %v3198 = vadd.f32 %v2985, %v3026
        %v3199 = vadd.f32 %v2986, %v3014
        %v3200 = vadd.f32 %v2987, %v3018
        %v3201 = vadd.f32 %v2988, %v3022
        %v3202 = vadd.f32 %v2989, %v3026
        %v3203 = vadd.f32 %v2990, %v3014
        %v3204 = vadd.f32 %v2991, %v3018
        %v3205 = vadd.f32 %v2992, %v3022
        %v3206 = vadd.f32 %v2993, %v3026
        %v3207 = vadd.f32 %v2994, %v3014
        %v3208 = vadd.f32 %v2995, %v3018
        %v3209 = vadd.f32 %v2996, %v3022
        %v3210 = vadd.f32 %v2997, %v3026
        %v3211 = vadd.f32 %v2998, %v3014
        %v3212 = vadd.f32 %v2999, %v3018
        %v3213 = vadd.f32 %v3000, %v3022
        %v3214 = vadd.f32 %v3001, %v3026
        %v3215 = vadd.f32 %v3002, %v3014
        %v3216 = vadd.f32 %v3003, %v3018
        %v3217 = vadd.f32 %v3004, %v3022
        %v3218 = vadd.f32 %v3005, %v3026
        %v3219 = vadd.f32 %v3006, %v3014
        %v3220 = vadd.f32 %v3007, %v3018
        %v3221 = vadd.f32 %v3008, %v3022
        %v3222 = vadd.f32 %v3009, %v3026
        %v3223 = vmax.f32 %v3159, 0.0
        %v3224 = vmax.f32 %v3160, 0.0
        %v3225 = vmax.f32 %v3161, 0.0
        %v3226 = vmax.f32 %v3162, 0.0
        %v3227 = vmax.f32 %v3163, 0.0
        %v3228 = vmax.f32 %v3164, 0.0
        %v3229 = vmax.f32 %v3165, 0.0
        %v3230 = vmax.f32 %v3166, 0.0
        %v3231 = vmax.f32 %v3167, 0.0
        %v3232 = vmax.f32 %v3168, 0.0
        %v3233 = vmax.f32 %v3169, 0.0
        %v3234 = vmax.f32 %v3170, 0.0
        %v3235 = vmax.f32 %v3171, 0.0
        %v3236 = vmax.f32 %v3172, 0.0
        %v3237 = vmax.f32 %v3173, 0.0
        %v3238 = vmax.f32 %v3174, 0.0
        %v3239 = vmax.f32 %v3175, 0.0
        %v3240 = vmax.f32 %v3176, 0.0
        %v3241 = vmax.f32 %v3177, 0.0
        %v3242 = vmax.f32 %v3178, 0.0
        %v3243 = vmax.f32 %v3179, 0.0
        %v3244 = vmax.f32 %v3180, 0.0
        %v3245 = vmax.f32 %v3181, 0.0
        %v3246 = vmax.f32 %v3182, 0.0
        %v3247 = vmax.f32 %v3183, 0.0
        %v3248 = vmax.f32 %v3184, 0.0
        %v3249 = vmax.f32 %v3185, 0.0
        %v3250 = vmax.f32 %v3186, 0.0
        %v3251 = vmax.f32 %v3187, 0.0
        %v3252 = vmax.f32 %v3188, 0.0
        %v3253 = vmax.f32 %v3189, 0.0
        %v3254 = vmax.f32 %v3190, 0.0
        %v3255 = vmax.f32 %v3191, 0.0
        %v3256 = vmax.f32 %v3192, 0.0
        %v3257 = vmax.f32 %v3193, 0.0
        %v3258 = vmax.f32 %v3194, 0.0
        %v3259 = vmax.f32 %v3195, 0.0
        %v3260 = vmax.f32 %v3196, 0.0
        %v3261 = vmax.f32 %v3197, 0.0
        %v3262 = vmax.f32 %v3198, 0.0
        %v3263 = vmax.f32 %v3199, 0.0
        %v3264 = vmax.f32 %v3200, 0.0
        %v3265 = vmax.f32 %v3201, 0.0
        %v3266 = vmax.f32 %v3202, 0.0
        %v3267 = vmax.f32 %v3203, 0.0
        %v3268 = vmax.f32 %v3204, 0.0
        %v3269 = vmax.f32 %v3205, 0.0
        %v3270 = vmax.f32 %v3206, 0.0
        %v3271 = vmax.f32 %v3207, 0.0
        %v3272 = vmax.f32 %v3208, 0.0
        %v3273 = vmax.f32 %v3209, 0.0
        %v3274 = vmax.f32 %v3210, 0.0
        %v3275 = vmax.f32 %v3211, 0.0
        %v3276 = vmax.f32 %v3212, 0.0
        %v3277 = vmax.f32 %v3213, 0.0
        %v3278 = vmax.f32 %v3214, 0.0
        %v3279 = vmax.f32 %v3215, 0.0
        %v3280 = vmax.f32 %v3216, 0.0
        %v3281 = vmax.f32 %v3217, 0.0
        %v3282 = vmax.f32 %v3218, 0.0
        %v3283 = vmax.f32 %v3219, 0.0
        %v3284 = vmax.f32 %v3220, 0.0
        %v3285 = vmax.f32 %v3221, 0.0
        %v3286 = vmax.f32 %v3222, 0.0
        %v3287 = vmax.f32 %v3095, %v3097
        %v3288 = vmax.f32 %v3096, %v3098
        %v3289 = vmax.f32 %v3099, %v3101
        %v3290 = vmax.f32 %v3100, %v3102
        %v3291 = vmax.f32 %v3103, %v3105
        %v3292 = vmax.f32 %v3104, %v3106
        %v3293 = vmax.f32 %v3107, %v3109
        %v3294 = vmax.f32 %v3108, %v3110
        %v3295 = vmax.f32 %v3111, %v3113
        %v3296 = vmax.f32 %v3112, %v3114
        %v3297 = vmax.f32 %v3115, %v3117
        %v3298 = vmax.f32 %v3116, %v3118
        %v3299 = vmax.f32 %v3119, %v3121
        %v3300 = vmax.f32 %v3120, %v3122
        %v3301 = vmax.f32 %v3123, %v3125
        %v3302 = vmax.f32 %v3124, %v3126
        %v3303 = vmax.f32 %v3127, %v3129
        %v3304 = vmax.f32 %v3128, %v3130
        %v3305 = vmax.f32 %v3131, %v3133
        %v3306 = vmax.f32 %v3132, %v3134
        %v3307 = vmax.f32 %v3135, %v3137
        %v3308 = vmax.f32 %v3136, %v3138
        %v3309 = vmax.f32 %v3139, %v3141
        %v3310 = vmax.f32 %v3140, %v3142
        %v3311 = vmax.f32 %v3143, %v3145
        %v3312 = vmax.f32 %v3144, %v3146
        %v3313 = vmax.f32 %v3147, %v3149
        %v3314 = vmax.f32 %v3148, %v3150
        %v3315 = vmax.f32 %v3151, %v3153
        %v3316 = vmax.f32 %v3152, %v3154
        %v3317 = vmax.f32 %v3155, %v3157
        %v3318 = vmax.f32 %v3156, %v3158
        %v3319 = vmax.f32 %v3223, %v3225
        %v3320 = vmax.f32 %v3224, %v3226
        %v3321 = vmax.f32 %v3227, %v3229
        %v3322 = vmax.f32 %v3228, %v3230
        %v3323 = vmax.f32 %v3231, %v3233
        %v3324 = vmax.f32 %v3232, %v3234
        %v3325 = vmax.f32 %v3235, %v3237
        %v3326 = vmax.f32 %v3236, %v3238
        %v3327 = vmax.f32 %v3239, %v3241
        %v3328 = vmax.f32 %v3240, %v3242
        %v3329 = vmax.f32 %v3243, %v3245
        %v3330 = vmax.f32 %v3244, %v3246
        %v3331 = vmax.f32 %v3247, %v3249
        %v3332 = vmax.f32 %v3248, %v3250
        %v3333 = vmax.f32 %v3251, %v3253
        %v3334 = vmax.f32 %v3252, %v3254
        %v3335 = vmax.f32 %v3255, %v3257
        %v3336 = vmax.f32 %v3256, %v3258
        %v3337 = vmax.f32 %v3259, %v3261
        %v3338 = vmax.f32 %v3260, %v3262
        %v3339 = vmax.f32 %v3263, %v3265
        %v3340 = vmax.f32 %v3264, %v3266
        %v3341 = vmax.f32 %v3267, %v3269
        %v3342 = vmax.f32 %v3268, %v3270
        %v3343 = vmax.f32 %v3271, %v3273
        %v3344 = vmax.f32 %v3272, %v3274
        %v3345 = vmax.f32 %v3275, %v3277
        %v3346 = vmax.f32 %v3276, %v3278
        %v3347 = vmax.f32 %v3279, %v3281
        %v3348 = vmax.f32 %v3280, %v3282
        %v3349 = vmax.f32 %v3283, %v3285
        %v3350 = vmax.f32 %v3284, %v3286
        %v3351 = vmax.f32 %v3287, %v3319
        %v3352 = vmax.f32 %v3288, %v3320
        %v3353 = vmax.f32 %v3289, %v3321
        %v3354 = vmax.f32 %v3290, %v3322
        %v3355 = vmax.f32 %v3291, %v3323
        %v3356 = vmax.f32 %v3292, %v3324
        %v3357 = vmax.f32 %v3293, %v3325
        %v3358 = vmax.f32 %v3294, %v3326
        %v3359 = vmax.f32 %v3295, %v3327
        %v3360 = vmax.f32 %v3296, %v3328
        %v3361 = vmax.f32 %v3297, %v3329
        %v3362 = vmax.f32 %v3298, %v3330
        %v3363 = vmax.f32 %v3299, %v3331
        %v3364 = vmax.f32 %v3300, %v3332
        %v3365 = vmax.f32 %v3301, %v3333
        %v3366 = vmax.f32 %v3302, %v3334
        %v3367 = vmax.f32 %v3303, %v3335
        %v3368 = vmax.f32 %v3304, %v3336
        %v3369 = vmax.f32 %v3305, %v3337
        %v3370 = vmax.f32 %v3306, %v3338
        %v3371 = vmax.f32 %v3307, %v3339
        %v3372 = vmax.f32 %v3308, %v3340
        %v3373 = vmax.f32 %v3309, %v3341
        %v3374 = vmax.f32 %v3310, %v3342
        %v3375 = vmax.f32 %v3311, %v3343
        %v3376 = vmax.f32 %v3312, %v3344
        %v3377 = vmax.f32 %v3313, %v3345
        %v3378 = vmax.f32 %v3314, %v3346
        %v3379 = vmax.f32 %v3315, %v3347
        %v3380 = vmax.f32 %v3316, %v3348
        %v3381 = vmax.f32 %v3317, %v3349
        %v3382 = vmax.f32 %v3318, %v3350
        %vm3383 = vcmask 1040384
        %vm3384 = vsmask.f32 256
        %vm3385 = vmand %vm3383, %vm3384
        %vm3386 = vcmask 1044484
        %vm3387 = vsmask.f32 4352
        %vm3388 = vmand %vm3386, %vm3387
        %vm3389 = vmor %vm3388, %vm3385
        %v3390 = vld [vmem:[#allocation2] sm:$0x11]
        %v3391 = vsel %vm3389, 0, %v3390
        %3392 = vst [vmem:[#allocation2] sm:$0x11] %v3391
        %v3393 = vld [vmem:[#allocation2 + $0x8] sm:$0x11]
        %v3394 = vsel %vm3389, 0, %v3393
        %3395 = vst [vmem:[#allocation2 + $0x8] sm:$0x11] %v3394
        %v3396 = vld [vmem:[#allocation2 + $0x10] sm:$0x11]
        %v3397 = vsel %vm3389, 0, %v3396
        %3398 = vst [vmem:[#allocation2 + $0x10] sm:$0x11] %v3397
        %v3399 = vld [vmem:[#allocation2 + $0x18] sm:$0x11]
        %v3400 = vsel %vm3389, 0, %v3399
        %3401 = vst [vmem:[#allocation2 + $0x18] sm:$0x11] %v3400
        %v3402 = vld [vmem:[#allocation2 + $0x20] sm:$0x11]
        %v3403 = vsel %vm3389, 0, %v3402
        %3404 = vst [vmem:[#allocation2 + $0x20] sm:$0x11] %v3403
        %v3405 = vld [vmem:[#allocation2 + $0x28] sm:$0x11]
        %v3406 = vsel %vm3389, 0, %v3405
        %3407 = vst [vmem:[#allocation2 + $0x28] sm:$0x11] %v3406
        %v3408 = vld [vmem:[#allocation2 + $0x30] sm:$0x11]
        %v3409 = vsel %vm3389, 0, %v3408
        %3410 = vst [vmem:[#allocation2 + $0x30] sm:$0x11] %v3409
        %v3411 = vld [vmem:[#allocation2 + $0x38] sm:$0x11]
        %v3412 = vsel %vm3389, 0, %v3411
        %3413 = vst [vmem:[#allocation2 + $0x38] sm:$0x11] %v3412
        %vm3414 = vcmask 1043459
        %vm3415 = vsmask.f32 7950
        %vm3416 = vmand %vm3414, %vm3415
        %vm3417 = vcmask 1047559
        %vm3418 = vsmask.f32 7966
        %vm3419 = vmand %vm3417, %vm3418
        %vm3420 = vmor %vm3419, %vm3416
        %v3421 = vld [vmem:[#allocation3] sm:$0x88]
        %v3422 = vsel %vm3420, 0, %v3421
        %3423 = vst [vmem:[#allocation3] sm:$0x88] %v3422
        %v3424 = vld [vmem:[#allocation3 + $0x8] sm:$0x88]
        %v3425 = vsel %vm3420, 0, %v3424
        %3426 = vst [vmem:[#allocation3 + $0x8] sm:$0x88] %v3425
        %v3427 = vld [vmem:[#allocation3 + $0x10] sm:$0x88]
        %v3428 = vsel %vm3420, 0, %v3427
        %3429 = vst [vmem:[#allocation3 + $0x10] sm:$0x88] %v3428
        %v3430 = vld [vmem:[#allocation3 + $0x18] sm:$0x88]
        %v3431 = vsel %vm3420, 0, %v3430
        %3432 = vst [vmem:[#allocation3 + $0x18] sm:$0x88] %v3431
        %v3433 = vld [vmem:[#allocation3 + $0x20] sm:$0x88]
        %v3434 = vsel %vm3420, 0, %v3433
        %3435 = vst [vmem:[#allocation3 + $0x20] sm:$0x88] %v3434
        %v3436 = vld [vmem:[#allocation3 + $0x28] sm:$0x88]
        %v3437 = vsel %vm3420, 0, %v3436
        %3438 = vst [vmem:[#allocation3 + $0x28] sm:$0x88] %v3437
        %v3439 = vld [vmem:[#allocation3 + $0x30] sm:$0x88]
        %v3440 = vsel %vm3420, 0, %v3439
        %3441 = vst [vmem:[#allocation3 + $0x30] sm:$0x88] %v3440
        %v3442 = vld [vmem:[#allocation3 + $0x38] sm:$0x88]
        %v3443 = vsel %vm3420, 0, %v3442
        %3444 = vst [vmem:[#allocation3 + $0x38] sm:$0x88] %v3443
        %v3445 = vpack.c.bf16 %v3351, %v3351
        %v3446 = vpack.c.bf16 %v3352, %v3352
        %v3447 = vpack.c.bf16 %v3355, %v3355
        %v3448 = vpack.c.bf16 %v3356, %v3356
        %v3449 = vpack.c.bf16 %v3359, %v3359
        %v3450 = vpack.c.bf16 %v3360, %v3360
        %v3451 = vpack.c.bf16 %v3363, %v3363
        %v3452 = vpack.c.bf16 %v3364, %v3364
        %v3453 = vpack.c.bf16 %v3367, %v3367
        %v3454 = vpack.c.bf16 %v3368, %v3368
        %v3455 = vpack.c.bf16 %v3371, %v3371
        %v3456 = vpack.c.bf16 %v3372, %v3372
        %v3457 = vpack.c.bf16 %v3375, %v3375
        %v3458 = vpack.c.bf16 %v3376, %v3376
        %v3459 = vpack.c.bf16 %v3379, %v3379
        %v3460 = vpack.c.bf16 %v3380, %v3380
        %v3477 = vunpack.c.l.b16 %v3445
        %v3478 = vunpack.c.l.b16 %v3446
        %v3479 = vunpack.c.l.b16 %v3447
        %v3480 = vunpack.c.l.b16 %v3448
        %v3481 = vunpack.c.l.b16 %v3449
        %v3482 = vunpack.c.l.b16 %v3450
        %v3483 = vunpack.c.l.b16 %v3451
        %v3484 = vunpack.c.l.b16 %v3452
        %v3485 = vunpack.c.l.b16 %v3453
        %v3486 = vunpack.c.l.b16 %v3454
        %v3487 = vunpack.c.l.b16 %v3455
        %v3488 = vunpack.c.l.b16 %v3456
        %v3489 = vunpack.c.l.b16 %v3457
        %v3490 = vunpack.c.l.b16 %v3458
        %v3491 = vunpack.c.l.b16 %v3459
        %v3492 = vunpack.c.l.b16 %v3460
        %v3493 = vpack.c.b16 %v3478, %v3477
        %v3494 = vpack.c.b16 %v3480, %v3479
        %v3495 = vpack.c.b16 %v3482, %v3481
        %v3496 = vpack.c.b16 %v3484, %v3483
        %v3497 = vpack.c.b16 %v3486, %v3485
        %v3498 = vpack.c.b16 %v3488, %v3487
        %v3499 = vpack.c.b16 %v3490, %v3489
        %v3500 = vpack.c.b16 %v3492, %v3491
        %v3509 = vld [vmem:[#allocation3] sm:$0x11]
        %v3510 = vsel %vm3389, %v3493, %v3509
        %3511 = vst [vmem:[#allocation3] sm:$0x11] %v3510
        %v3512 = vld [vmem:[#allocation3 + $0x8] sm:$0x11]
        %v3513 = vsel %vm3389, %v3494, %v3512
        %3514 = vst [vmem:[#allocation3 + $0x8] sm:$0x11] %v3513
        %v3515 = vld [vmem:[#allocation3 + $0x10] sm:$0x11]
        %v3516 = vsel %vm3389, %v3495, %v3515
        %3517 = vst [vmem:[#allocation3 + $0x10] sm:$0x11] %v3516
        %v3518 = vld [vmem:[#allocation3 + $0x18] sm:$0x11]
        %v3519 = vsel %vm3389, %v3496, %v3518
        %3520 = vst [vmem:[#allocation3 + $0x18] sm:$0x11] %v3519
        %v3521 = vld [vmem:[#allocation3 + $0x20] sm:$0x11]
        %v3522 = vsel %vm3389, %v3497, %v3521
        %3523 = vst [vmem:[#allocation3 + $0x20] sm:$0x11] %v3522
        %v3524 = vld [vmem:[#allocation3 + $0x28] sm:$0x11]
        %v3525 = vsel %vm3389, %v3498, %v3524
        %3526 = vst [vmem:[#allocation3 + $0x28] sm:$0x11] %v3525
        %v3527 = vld [vmem:[#allocation3 + $0x30] sm:$0x11]
        %v3528 = vsel %vm3389, %v3499, %v3527
        %3529 = vst [vmem:[#allocation3 + $0x30] sm:$0x11] %v3528
        %v3530 = vld [vmem:[#allocation3 + $0x38] sm:$0x11]
        %v3531 = vsel %vm3389, %v3500, %v3530
        %3532 = vst [vmem:[#allocation3 + $0x38] sm:$0x11] %v3531
        %vm3533 = vsmask.f32 7938
        %vm3534 = vmand %vm3383, %vm3533
        %vm3535 = vsmask.f32 7954
        %vm3536 = vmand %vm3386, %vm3535
        %vm3537 = vmor %vm3536, %vm3534
        %v3538 = vld [vmem:[#allocation2] sm:$0x11]
        %v3539 = vsel %vm3537, %v3493, %v3538
        %3540 = vst [vmem:[#allocation2] sm:$0x11] %v3539
        %v3541 = vld [vmem:[#allocation2 + $0x8] sm:$0x11]
        %v3542 = vsel %vm3537, %v3494, %v3541
        %3543 = vst [vmem:[#allocation2 + $0x8] sm:$0x11] %v3542
        %v3544 = vld [vmem:[#allocation2 + $0x10] sm:$0x11]
        %v3545 = vsel %vm3537, %v3495, %v3544
        %3546 = vst [vmem:[#allocation2 + $0x10] sm:$0x11] %v3545
        %v3547 = vld [vmem:[#allocation2 + $0x18] sm:$0x11]
        %v3548 = vsel %vm3537, %v3496, %v3547
        %3549 = vst [vmem:[#allocation2 + $0x18] sm:$0x11] %v3548
        %v3550 = vld [vmem:[#allocation2 + $0x20] sm:$0x11]
        %v3551 = vsel %vm3537, %v3497, %v3550
        %3552 = vst [vmem:[#allocation2 + $0x20] sm:$0x11] %v3551
        %v3553 = vld [vmem:[#allocation2 + $0x28] sm:$0x11]
        %v3554 = vsel %vm3537, %v3498, %v3553
        %3555 = vst [vmem:[#allocation2 + $0x28] sm:$0x11] %v3554
        %v3556 = vld [vmem:[#allocation2 + $0x30] sm:$0x11]
        %v3557 = vsel %vm3537, %v3499, %v3556
        %3558 = vst [vmem:[#allocation2 + $0x30] sm:$0x11] %v3557
        %v3559 = vld [vmem:[#allocation2 + $0x38] sm:$0x11]
        %v3560 = vsel %vm3537, %v3500, %v3559
        %3561 = vst [vmem:[#allocation2 + $0x38] sm:$0x11] %v3560
        %v3563 = vshll.u32 %v3493, 16
        %v3565 = vrot.slane %v3563, 5
        %v3566 = vrot.slane %v3565, 4
        %v3568 = vshll.u32 %v3494, 16
        %v3570 = vrot.slane %v3568, 5
        %v3571 = vrot.slane %v3570, 4
        %v3573 = vshll.u32 %v3495, 16
        %v3575 = vrot.slane %v3573, 5
        %v3576 = vrot.slane %v3575, 4
        %v3578 = vshll.u32 %v3496, 16
        %v3580 = vrot.slane %v3578, 5
        %v3581 = vrot.slane %v3580, 4
        %v3583 = vshll.u32 %v3497, 16
        %v3585 = vrot.slane %v3583, 5
        %v3586 = vrot.slane %v3585, 4
        %v3588 = vshll.u32 %v3498, 16
        %v3590 = vrot.slane %v3588, 5
        %v3591 = vrot.slane %v3590, 4
        %v3593 = vshll.u32 %v3499, 16
        %v3595 = vrot.slane %v3593, 5
        %v3596 = vrot.slane %v3595, 4
        %v3598 = vshll.u32 %v3500, 16
        %v3600 = vrot.slane %v3598, 5
        %v3601 = vrot.slane %v3600, 4
        %v3610 = vld [vmem:[#allocation3] sm:$0x11]
        %v3611 = vsel %vm3537, %v3566, %v3610
        %3612 = vst [vmem:[#allocation3] sm:$0x11] %v3611
        %v3613 = vld [vmem:[#allocation3 + $0x8] sm:$0x11]
        %v3614 = vsel %vm3537, %v3571, %v3613
        %3615 = vst [vmem:[#allocation3 + $0x8] sm:$0x11] %v3614
        %v3616 = vld [vmem:[#allocation3 + $0x10] sm:$0x11]
        %v3617 = vsel %vm3537, %v3576, %v3616
        %3618 = vst [vmem:[#allocation3 + $0x10] sm:$0x11] %v3617
        %v3619 = vld [vmem:[#allocation3 + $0x18] sm:$0x11]
        %v3620 = vsel %vm3537, %v3581, %v3619
        %3621 = vst [vmem:[#allocation3 + $0x18] sm:$0x11] %v3620
        %v3622 = vld [vmem:[#allocation3 + $0x20] sm:$0x11]
        %v3623 = vsel %vm3537, %v3586, %v3622
        %3624 = vst [vmem:[#allocation3 + $0x20] sm:$0x11] %v3623
        %v3625 = vld [vmem:[#allocation3 + $0x28] sm:$0x11]
        %v3626 = vsel %vm3537, %v3591, %v3625
        %3627 = vst [vmem:[#allocation3 + $0x28] sm:$0x11] %v3626
        %v3628 = vld [vmem:[#allocation3 + $0x30] sm:$0x11]
        %v3629 = vsel %vm3537, %v3596, %v3628
        %3630 = vst [vmem:[#allocation3 + $0x30] sm:$0x11] %v3629
        %v3631 = vld [vmem:[#allocation3 + $0x38] sm:$0x11]
        %v3632 = vsel %vm3537, %v3601, %v3631
        %3633 = vst [vmem:[#allocation3 + $0x38] sm:$0x11] %v3632
        %v3634 = vshrl.u32 %v3493, 16
        %v3636 = vrot.slane %v3634, 4
        %v3637 = vrot.slane %v3636, 4
        %v3638 = vshrl.u32 %v3494, 16
        %v3640 = vrot.slane %v3638, 4
        %v3641 = vrot.slane %v3640, 4
        %v3642 = vshrl.u32 %v3495, 16
        %v3644 = vrot.slane %v3642, 4
        %v3645 = vrot.slane %v3644, 4
        %v3646 = vshrl.u32 %v3496, 16
        %v3648 = vrot.slane %v3646, 4
        %v3649 = vrot.slane %v3648, 4
        %v3650 = vshrl.u32 %v3497, 16
        %v3652 = vrot.slane %v3650, 4
        %v3653 = vrot.slane %v3652, 4
        %v3654 = vshrl.u32 %v3498, 16
        %v3656 = vrot.slane %v3654, 4
        %v3657 = vrot.slane %v3656, 4
        %v3658 = vshrl.u32 %v3499, 16
        %v3660 = vrot.slane %v3658, 4
        %v3661 = vrot.slane %v3660, 4
        %v3662 = vshrl.u32 %v3500, 16
        %v3664 = vrot.slane %v3662, 4
        %v3665 = vrot.slane %v3664, 4
        %vm3674 = vcmask 1041409
        %vm3675 = vsmask.f32 1280
        %vm3676 = vmand %vm3674, %vm3675
        %vm3677 = vcmask 1045509
        %vm3678 = vsmask.f32 5376
        %vm3679 = vmand %vm3677, %vm3678
        %vm3680 = vmor %vm3679, %vm3676
        %v3681 = vld [vmem:[#allocation2] sm:$0x22]
        %v3682 = vsel %vm3680, %v3637, %v3681
        %3683 = vst [vmem:[#allocation2] sm:$0x22] %v3682
        %v3684 = vld [vmem:[#allocation2 + $0x8] sm:$0x22]
        %v3685 = vsel %vm3680, %v3641, %v3684
        %3686 = vst [vmem:[#allocation2 + $0x8] sm:$0x22] %v3685
        %v3687 = vld [vmem:[#allocation2 + $0x10] sm:$0x22]
        %v3688 = vsel %vm3680, %v3645, %v3687
        %3689 = vst [vmem:[#allocation2 + $0x10] sm:$0x22] %v3688
        %v3690 = vld [vmem:[#allocation2 + $0x18] sm:$0x22]
        %v3691 = vsel %vm3680, %v3649, %v3690
        %3692 = vst [vmem:[#allocation2 + $0x18] sm:$0x22] %v3691
        %v3693 = vld [vmem:[#allocation2 + $0x20] sm:$0x22]
        %v3694 = vsel %vm3680, %v3653, %v3693
        %3695 = vst [vmem:[#allocation2 + $0x20] sm:$0x22] %v3694
        %v3696 = vld [vmem:[#allocation2 + $0x28] sm:$0x22]
        %v3697 = vsel %vm3680, %v3657, %v3696
        %3698 = vst [vmem:[#allocation2 + $0x28] sm:$0x22] %v3697
        %v3699 = vld [vmem:[#allocation2 + $0x30] sm:$0x22]
        %v3700 = vsel %vm3680, %v3661, %v3699
        %3701 = vst [vmem:[#allocation2 + $0x30] sm:$0x22] %v3700
        %v3702 = vld [vmem:[#allocation2 + $0x38] sm:$0x22]
        %v3703 = vsel %vm3680, %v3665, %v3702
        %3704 = vst [vmem:[#allocation2 + $0x38] sm:$0x22] %v3703
        %v3705 = vrot.slane %v3493, 5
        %v3706 = vrot.slane %v3705, 4
        %v3707 = vrot.slane %v3494, 5
        %v3708 = vrot.slane %v3707, 4
        %v3709 = vrot.slane %v3495, 5
        %v3710 = vrot.slane %v3709, 4
        %v3711 = vrot.slane %v3496, 5
        %v3712 = vrot.slane %v3711, 4
        %v3713 = vrot.slane %v3497, 5
        %v3714 = vrot.slane %v3713, 4
        %v3715 = vrot.slane %v3498, 5
        %v3716 = vrot.slane %v3715, 4
        %v3717 = vrot.slane %v3499, 5
        %v3718 = vrot.slane %v3717, 4
        %v3719 = vrot.slane %v3500, 5
        %v3720 = vrot.slane %v3719, 4
        %v3729 = vld [vmem:[#allocation3] sm:$0x22]
        %v3730 = vsel %vm3680, %v3706, %v3729
        %3731 = vst [vmem:[#allocation3] sm:$0x22] %v3730
        %v3732 = vld [vmem:[#allocation3 + $0x8] sm:$0x22]
        %v3733 = vsel %vm3680, %v3708, %v3732
        %3734 = vst [vmem:[#allocation3 + $0x8] sm:$0x22] %v3733
        %v3735 = vld [vmem:[#allocation3 + $0x10] sm:$0x22]
        %v3736 = vsel %vm3680, %v3710, %v3735
        %3737 = vst [vmem:[#allocation3 + $0x10] sm:$0x22] %v3736
        %v3738 = vld [vmem:[#allocation3 + $0x18] sm:$0x22]
        %v3739 = vsel %vm3680, %v3712, %v3738
        %3740 = vst [vmem:[#allocation3 + $0x18] sm:$0x22] %v3739
        %v3741 = vld [vmem:[#allocation3 + $0x20] sm:$0x22]
        %v3742 = vsel %vm3680, %v3714, %v3741
        %3743 = vst [vmem:[#allocation3 + $0x20] sm:$0x22] %v3742
        %v3744 = vld [vmem:[#allocation3 + $0x28] sm:$0x22]
        %v3745 = vsel %vm3680, %v3716, %v3744
        %3746 = vst [vmem:[#allocation3 + $0x28] sm:$0x22] %v3745
        %v3747 = vld [vmem:[#allocation3 + $0x30] sm:$0x22]
        %v3748 = vsel %vm3680, %v3718, %v3747
        %3749 = vst [vmem:[#allocation3 + $0x30] sm:$0x22] %v3748
        %v3750 = vld [vmem:[#allocation3 + $0x38] sm:$0x22]
        %v3751 = vsel %vm3680, %v3720, %v3750
        %3752 = vst [vmem:[#allocation3 + $0x38] sm:$0x22] %v3751
        %vm3753 = vsmask.f32 7942
        %vm3754 = vmand %vm3674, %vm3753
        %vm3755 = vsmask.f32 7958
        %vm3756 = vmand %vm3677, %vm3755
        %vm3757 = vmor %vm3756, %vm3754
        %v3758 = vld [vmem:[#allocation2] sm:$0x22]
        %v3759 = vsel %vm3757, %v3706, %v3758
        %3760 = vst [vmem:[#allocation2] sm:$0x22] %v3759
        %v3761 = vld [vmem:[#allocation2 + $0x8] sm:$0x22]
        %v3762 = vsel %vm3757, %v3708, %v3761
        %3763 = vst [vmem:[#allocation2 + $0x8] sm:$0x22] %v3762
        %v3764 = vld [vmem:[#allocation2 + $0x10] sm:$0x22]
        %v3765 = vsel %vm3757, %v3710, %v3764
        %3766 = vst [vmem:[#allocation2 + $0x10] sm:$0x22] %v3765
        %v3767 = vld [vmem:[#allocation2 + $0x18] sm:$0x22]
        %v3768 = vsel %vm3757, %v3712, %v3767
        %3769 = vst [vmem:[#allocation2 + $0x18] sm:$0x22] %v3768
        %v3770 = vld [vmem:[#allocation2 + $0x20] sm:$0x22]
        %v3771 = vsel %vm3757, %v3714, %v3770
        %3772 = vst [vmem:[#allocation2 + $0x20] sm:$0x22] %v3771
        %v3773 = vld [vmem:[#allocation2 + $0x28] sm:$0x22]
        %v3774 = vsel %vm3757, %v3716, %v3773
        %3775 = vst [vmem:[#allocation2 + $0x28] sm:$0x22] %v3774
        %v3776 = vld [vmem:[#allocation2 + $0x30] sm:$0x22]
        %v3777 = vsel %vm3757, %v3718, %v3776
        %3778 = vst [vmem:[#allocation2 + $0x30] sm:$0x22] %v3777
        %v3779 = vld [vmem:[#allocation2 + $0x38] sm:$0x22]
        %v3780 = vsel %vm3757, %v3720, %v3779
        %3781 = vst [vmem:[#allocation2 + $0x38] sm:$0x22] %v3780
        %v3782 = vrot.slane %v3563, 6
        %v3783 = vrot.slane %v3782, 4
        %v3784 = vrot.slane %v3568, 6
        %v3785 = vrot.slane %v3784, 4
        %v3786 = vrot.slane %v3573, 6
        %v3787 = vrot.slane %v3786, 4
        %v3788 = vrot.slane %v3578, 6
        %v3789 = vrot.slane %v3788, 4
        %v3790 = vrot.slane %v3583, 6
        %v3791 = vrot.slane %v3790, 4
        %v3792 = vrot.slane %v3588, 6
        %v3793 = vrot.slane %v3792, 4
        %v3794 = vrot.slane %v3593, 6
        %v3795 = vrot.slane %v3794, 4
        %v3796 = vrot.slane %v3598, 6
        %v3797 = vrot.slane %v3796, 4
        %v3806 = vld [vmem:[#allocation3] sm:$0x22]
        %v3807 = vsel %vm3757, %v3783, %v3806
        %3808 = vst [vmem:[#allocation3] sm:$0x22] %v3807
        %v3809 = vld [vmem:[#allocation3 + $0x8] sm:$0x22]
        %v3810 = vsel %vm3757, %v3785, %v3809
        %3811 = vst [vmem:[#allocation3 + $0x8] sm:$0x22] %v3810
        %v3812 = vld [vmem:[#allocation3 + $0x10] sm:$0x22]
        %v3813 = vsel %vm3757, %v3787, %v3812
        %3814 = vst [vmem:[#allocation3 + $0x10] sm:$0x22] %v3813
        %v3815 = vld [vmem:[#allocation3 + $0x18] sm:$0x22]
        %v3816 = vsel %vm3757, %v3789, %v3815
        %3817 = vst [vmem:[#allocation3 + $0x18] sm:$0x22] %v3816
        %v3818 = vld [vmem:[#allocation3 + $0x20] sm:$0x22]
        %v3819 = vsel %vm3757, %v3791, %v3818
        %3820 = vst [vmem:[#allocation3 + $0x20] sm:$0x22] %v3819
        %v3821 = vld [vmem:[#allocation3 + $0x28] sm:$0x22]
        %v3822 = vsel %vm3757, %v3793, %v3821
        %3823 = vst [vmem:[#allocation3 + $0x28] sm:$0x22] %v3822
        %v3824 = vld [vmem:[#allocation3 + $0x30] sm:$0x22]
        %v3825 = vsel %vm3757, %v3795, %v3824
        %3826 = vst [vmem:[#allocation3 + $0x30] sm:$0x22] %v3825
        %v3827 = vld [vmem:[#allocation3 + $0x38] sm:$0x22]
        %v3828 = vsel %vm3757, %v3797, %v3827
        %3829 = vst [vmem:[#allocation3 + $0x38] sm:$0x22] %v3828
        %v3830 = vrot.slane %v3634, 5
        %v3831 = vrot.slane %v3830, 4
        %v3832 = vrot.slane %v3638, 5
        %v3833 = vrot.slane %v3832, 4
        %v3834 = vrot.slane %v3642, 5
        %v3835 = vrot.slane %v3834, 4
        %v3836 = vrot.slane %v3646, 5
        %v3837 = vrot.slane %v3836, 4
        %v3838 = vrot.slane %v3650, 5
        %v3839 = vrot.slane %v3838, 4
        %v3840 = vrot.slane %v3654, 5
        %v3841 = vrot.slane %v3840, 4
        %v3842 = vrot.slane %v3658, 5
        %v3843 = vrot.slane %v3842, 4
        %v3844 = vrot.slane %v3662, 5
        %v3845 = vrot.slane %v3844, 4
        %vm3854 = vcmask 1042434
        %vm3855 = vsmask.f32 2304
        %vm3856 = vmand %vm3854, %vm3855
        %vm3857 = vcmask 1046534
        %vm3858 = vsmask.f32 6400
        %vm3859 = vmand %vm3857, %vm3858
        %vm3860 = vmor %vm3859, %vm3856
        %v3861 = vld [vmem:[#allocation2] sm:$0x44]
        %v3862 = vsel %vm3860, %v3831, %v3861
        %3863 = vst [vmem:[#allocation2] sm:$0x44] %v3862
        %v3864 = vld [vmem:[#allocation2 + $0x8] sm:$0x44]
        %v3865 = vsel %vm3860, %v3833, %v3864
        %3866 = vst [vmem:[#allocation2 + $0x8] sm:$0x44] %v3865
        %v3867 = vld [vmem:[#allocation2 + $0x10] sm:$0x44]
        %v3868 = vsel %vm3860, %v3835, %v3867
        %3869 = vst [vmem:[#allocation2 + $0x10] sm:$0x44] %v3868
        %v3870 = vld [vmem:[#allocation2 + $0x18] sm:$0x44]
        %v3871 = vsel %vm3860, %v3837, %v3870
        %3872 = vst [vmem:[#allocation2 + $0x18] sm:$0x44] %v3871
        %v3873 = vld [vmem:[#allocation2 + $0x20] sm:$0x44]
        %v3874 = vsel %vm3860, %v3839, %v3873
        %3875 = vst [vmem:[#allocation2 + $0x20] sm:$0x44] %v3874
        %v3876 = vld [vmem:[#allocation2 + $0x28] sm:$0x44]
        %v3877 = vsel %vm3860, %v3841, %v3876
        %3878 = vst [vmem:[#allocation2 + $0x28] sm:$0x44] %v3877
        %v3879 = vld [vmem:[#allocation2 + $0x30] sm:$0x44]
        %v3880 = vsel %vm3860, %v3843, %v3879
        %3881 = vst [vmem:[#allocation2 + $0x30] sm:$0x44] %v3880
        %v3882 = vld [vmem:[#allocation2 + $0x38] sm:$0x44]
        %v3883 = vsel %vm3860, %v3845, %v3882
        %3884 = vst [vmem:[#allocation2 + $0x38] sm:$0x44] %v3883
        %v3885 = vpack.c.bf16 %v3353, %v3353
        %v3886 = vpack.c.bf16 %v3354, %v3354
        %v3887 = vpack.c.bf16 %v3357, %v3357
        %v3888 = vpack.c.bf16 %v3358, %v3358
        %v3889 = vpack.c.bf16 %v3361, %v3361
        %v3890 = vpack.c.bf16 %v3362, %v3362
        %v3891 = vpack.c.bf16 %v3365, %v3365
        %v3892 = vpack.c.bf16 %v3366, %v3366
        %v3893 = vpack.c.bf16 %v3369, %v3369
        %v3894 = vpack.c.bf16 %v3370, %v3370
        %v3895 = vpack.c.bf16 %v3373, %v3373
        %v3896 = vpack.c.bf16 %v3374, %v3374
        %v3897 = vpack.c.bf16 %v3377, %v3377
        %v3898 = vpack.c.bf16 %v3378, %v3378
        %v3899 = vpack.c.bf16 %v3381, %v3381
        %v3900 = vpack.c.bf16 %v3382, %v3382
        %v3917 = vunpack.c.l.b16 %v3885
        %v3918 = vunpack.c.l.b16 %v3886
        %v3919 = vunpack.c.l.b16 %v3887
        %v3920 = vunpack.c.l.b16 %v3888
        %v3921 = vunpack.c.l.b16 %v3889
        %v3922 = vunpack.c.l.b16 %v3890
        %v3923 = vunpack.c.l.b16 %v3891
        %v3924 = vunpack.c.l.b16 %v3892
        %v3925 = vunpack.c.l.b16 %v3893
        %v3926 = vunpack.c.l.b16 %v3894
        %v3927 = vunpack.c.l.b16 %v3895
        %v3928 = vunpack.c.l.b16 %v3896
        %v3929 = vunpack.c.l.b16 %v3897
        %v3930 = vunpack.c.l.b16 %v3898
        %v3931 = vunpack.c.l.b16 %v3899
        %v3932 = vunpack.c.l.b16 %v3900
        %v3933 = vpack.c.b16 %v3918, %v3917
        %v3934 = vpack.c.b16 %v3920, %v3919
        %v3935 = vpack.c.b16 %v3922, %v3921
        %v3936 = vpack.c.b16 %v3924, %v3923
        %v3937 = vpack.c.b16 %v3926, %v3925
        %v3938 = vpack.c.b16 %v3928, %v3927
        %v3939 = vpack.c.b16 %v3930, %v3929
        %v3940 = vpack.c.b16 %v3932, %v3931
        %v3941 = vrot.slane %v3933, 6
        %v3942 = vrot.slane %v3934, 6
        %v3943 = vrot.slane %v3935, 6
        %v3944 = vrot.slane %v3936, 6
        %v3945 = vrot.slane %v3937, 6
        %v3946 = vrot.slane %v3938, 6
        %v3947 = vrot.slane %v3939, 6
        %v3948 = vrot.slane %v3940, 6
        %v3957 = vld [vmem:[#allocation3] sm:$0x44]
        %v3958 = vsel %vm3860, %v3941, %v3957
        %3959 = vst [vmem:[#allocation3] sm:$0x44] %v3958
        %v3960 = vld [vmem:[#allocation3 + $0x8] sm:$0x44]
        %v3961 = vsel %vm3860, %v3942, %v3960
        %3962 = vst [vmem:[#allocation3 + $0x8] sm:$0x44] %v3961
        %v3963 = vld [vmem:[#allocation3 + $0x10] sm:$0x44]
        %v3964 = vsel %vm3860, %v3943, %v3963
        %3965 = vst [vmem:[#allocation3 + $0x10] sm:$0x44] %v3964
        %v3966 = vld [vmem:[#allocation3 + $0x18] sm:$0x44]
        %v3967 = vsel %vm3860, %v3944, %v3966
        %3968 = vst [vmem:[#allocation3 + $0x18] sm:$0x44] %v3967
        %v3969 = vld [vmem:[#allocation3 + $0x20] sm:$0x44]
        %v3970 = vsel %vm3860, %v3945, %v3969
        %3971 = vst [vmem:[#allocation3 + $0x20] sm:$0x44] %v3970
        %v3972 = vld [vmem:[#allocation3 + $0x28] sm:$0x44]
        %v3973 = vsel %vm3860, %v3946, %v3972
        %3974 = vst [vmem:[#allocation3 + $0x28] sm:$0x44] %v3973
        %v3975 = vld [vmem:[#allocation3 + $0x30] sm:$0x44]
        %v3976 = vsel %vm3860, %v3947, %v3975
        %3977 = vst [vmem:[#allocation3 + $0x30] sm:$0x44] %v3976
        %v3978 = vld [vmem:[#allocation3 + $0x38] sm:$0x44]
        %v3979 = vsel %vm3860, %v3948, %v3978
        %3980 = vst [vmem:[#allocation3 + $0x38] sm:$0x44] %v3979
        %vm3981 = vsmask.f32 7946
        %vm3982 = vmand %vm3854, %vm3981
        %vm3983 = vsmask.f32 7962
        %vm3984 = vmand %vm3857, %vm3983
        %vm3985 = vmor %vm3984, %vm3982
        %v3986 = vld [vmem:[#allocation2] sm:$0x44]
        %v3987 = vsel %vm3985, %v3941, %v3986
        %3988 = vst [vmem:[#allocation2] sm:$0x44] %v3987
        %v3989 = vld [vmem:[#allocation2 + $0x8] sm:$0x44]
        %v3990 = vsel %vm3985, %v3942, %v3989
        %3991 = vst [vmem:[#allocation2 + $0x8] sm:$0x44] %v3990
        %v3992 = vld [vmem:[#allocation2 + $0x10] sm:$0x44]
        %v3993 = vsel %vm3985, %v3943, %v3992
        %3994 = vst [vmem:[#allocation2 + $0x10] sm:$0x44] %v3993
        %v3995 = vld [vmem:[#allocation2 + $0x18] sm:$0x44]
        %v3996 = vsel %vm3985, %v3944, %v3995
        %3997 = vst [vmem:[#allocation2 + $0x18] sm:$0x44] %v3996
        %v3998 = vld [vmem:[#allocation2 + $0x20] sm:$0x44]
        %v3999 = vsel %vm3985, %v3945, %v3998
        %4000 = vst [vmem:[#allocation2 + $0x20] sm:$0x44] %v3999
        %v4001 = vld [vmem:[#allocation2 + $0x28] sm:$0x44]
        %v4002 = vsel %vm3985, %v3946, %v4001
        %4003 = vst [vmem:[#allocation2 + $0x28] sm:$0x44] %v4002
        %v4004 = vld [vmem:[#allocation2 + $0x30] sm:$0x44]
        %v4005 = vsel %vm3985, %v3947, %v4004
        %4006 = vst [vmem:[#allocation2 + $0x30] sm:$0x44] %v4005
        %v4007 = vld [vmem:[#allocation2 + $0x38] sm:$0x44]
        %v4008 = vsel %vm3985, %v3948, %v4007
        %4009 = vst [vmem:[#allocation2 + $0x38] sm:$0x44] %v4008
        %v4011 = vshll.u32 %v3933, 16
        %v4013 = vrot.slane %v4011, 7
        %v4015 = vshll.u32 %v3934, 16
        %v4017 = vrot.slane %v4015, 7
        %v4019 = vshll.u32 %v3935, 16
        %v4021 = vrot.slane %v4019, 7
        %v4023 = vshll.u32 %v3936, 16
        %v4025 = vrot.slane %v4023, 7
        %v4027 = vshll.u32 %v3937, 16
        %v4029 = vrot.slane %v4027, 7
        %v4031 = vshll.u32 %v3938, 16
        %v4033 = vrot.slane %v4031, 7
        %v4035 = vshll.u32 %v3939, 16
        %v4037 = vrot.slane %v4035, 7
        %v4039 = vshll.u32 %v3940, 16
        %v4041 = vrot.slane %v4039, 7
        %v4050 = vld [vmem:[#allocation3] sm:$0x44]
        %v4051 = vsel %vm3985, %v4013, %v4050
        %4052 = vst [vmem:[#allocation3] sm:$0x44] %v4051
        %v4053 = vld [vmem:[#allocation3 + $0x8] sm:$0x44]
        %v4054 = vsel %vm3985, %v4017, %v4053
        %4055 = vst [vmem:[#allocation3 + $0x8] sm:$0x44] %v4054
        %v4056 = vld [vmem:[#allocation3 + $0x10] sm:$0x44]
        %v4057 = vsel %vm3985, %v4021, %v4056
        %4058 = vst [vmem:[#allocation3 + $0x10] sm:$0x44] %v4057
        %v4059 = vld [vmem:[#allocation3 + $0x18] sm:$0x44]
        %v4060 = vsel %vm3985, %v4025, %v4059
        %4061 = vst [vmem:[#allocation3 + $0x18] sm:$0x44] %v4060
        %v4062 = vld [vmem:[#allocation3 + $0x20] sm:$0x44]
        %v4063 = vsel %vm3985, %v4029, %v4062
        %4064 = vst [vmem:[#allocation3 + $0x20] sm:$0x44] %v4063
        %v4065 = vld [vmem:[#allocation3 + $0x28] sm:$0x44]
        %v4066 = vsel %vm3985, %v4033, %v4065
        %4067 = vst [vmem:[#allocation3 + $0x28] sm:$0x44] %v4066
        %v4068 = vld [vmem:[#allocation3 + $0x30] sm:$0x44]
        %v4069 = vsel %vm3985, %v4037, %v4068
        %4070 = vst [vmem:[#allocation3 + $0x30] sm:$0x44] %v4069
        %v4071 = vld [vmem:[#allocation3 + $0x38] sm:$0x44]
        %v4072 = vsel %vm3985, %v4041, %v4071
        %4073 = vst [vmem:[#allocation3 + $0x38] sm:$0x44] %v4072
        %v4074 = vshrl.u32 %v3933, 16
        %v4076 = vrot.slane %v4074, 6
        %v4077 = vshrl.u32 %v3934, 16
        %v4079 = vrot.slane %v4077, 6
        %v4080 = vshrl.u32 %v3935, 16
        %v4082 = vrot.slane %v4080, 6
        %v4083 = vshrl.u32 %v3936, 16
        %v4085 = vrot.slane %v4083, 6
        %v4086 = vshrl.u32 %v3937, 16
        %v4088 = vrot.slane %v4086, 6
        %v4089 = vshrl.u32 %v3938, 16
        %v4091 = vrot.slane %v4089, 6
        %v4092 = vshrl.u32 %v3939, 16
        %v4094 = vrot.slane %v4092, 6
        %v4095 = vshrl.u32 %v3940, 16
        %v4097 = vrot.slane %v4095, 6
        %vm4106 = vsmask.f32 3328
        %vm4107 = vmand %vm3414, %vm4106
        %vm4108 = vsmask.f32 7424
        %vm4109 = vmand %vm3417, %vm4108
        %vm4110 = vmor %vm4109, %vm4107
        %v4111 = vld [vmem:[#allocation2] sm:$0x88]
        %v4112 = vsel %vm4110, %v4076, %v4111
        %4113 = vst [vmem:[#allocation2] sm:$0x88] %v4112
        %v4114 = vld [vmem:[#allocation2 + $0x8] sm:$0x88]
        %v4115 = vsel %vm4110, %v4079, %v4114
        %4116 = vst [vmem:[#allocation2 + $0x8] sm:$0x88] %v4115
        %v4117 = vld [vmem:[#allocation2 + $0x10] sm:$0x88]
        %v4118 = vsel %vm4110, %v4082, %v4117
        %4119 = vst [vmem:[#allocation2 + $0x10] sm:$0x88] %v4118
        %v4120 = vld [vmem:[#allocation2 + $0x18] sm:$0x88]
        %v4121 = vsel %vm4110, %v4085, %v4120
        %4122 = vst [vmem:[#allocation2 + $0x18] sm:$0x88] %v4121
        %v4123 = vld [vmem:[#allocation2 + $0x20] sm:$0x88]
        %v4124 = vsel %vm4110, %v4088, %v4123
        %4125 = vst [vmem:[#allocation2 + $0x20] sm:$0x88] %v4124
        %v4126 = vld [vmem:[#allocation2 + $0x28] sm:$0x88]
        %v4127 = vsel %vm4110, %v4091, %v4126
        %4128 = vst [vmem:[#allocation2 + $0x28] sm:$0x88] %v4127
        %v4129 = vld [vmem:[#allocation2 + $0x30] sm:$0x88]
        %v4130 = vsel %vm4110, %v4094, %v4129
        %4131 = vst [vmem:[#allocation2 + $0x30] sm:$0x88] %v4130
        %v4132 = vld [vmem:[#allocation2 + $0x38] sm:$0x88]
        %v4133 = vsel %vm4110, %v4097, %v4132
        %4134 = vst [vmem:[#allocation2 + $0x38] sm:$0x88] %v4133
        %v4135 = vrot.slane %v3933, 7
        %v4136 = vrot.slane %v3934, 7
        %v4137 = vrot.slane %v3935, 7
        %v4138 = vrot.slane %v3936, 7
        %v4139 = vrot.slane %v3937, 7
        %v4140 = vrot.slane %v3938, 7
        %v4141 = vrot.slane %v3939, 7
        %v4142 = vrot.slane %v3940, 7
        %v4151 = vld [vmem:[#allocation3] sm:$0x88]
        %v4152 = vsel %vm4110, %v4135, %v4151
        %4153 = vst [vmem:[#allocation3] sm:$0x88] %v4152
        %v4154 = vld [vmem:[#allocation3 + $0x8] sm:$0x88]
        %v4155 = vsel %vm4110, %v4136, %v4154
        %4156 = vst [vmem:[#allocation3 + $0x8] sm:$0x88] %v4155
        %v4157 = vld [vmem:[#allocation3 + $0x10] sm:$0x88]
        %v4158 = vsel %vm4110, %v4137, %v4157
        %4159 = vst [vmem:[#allocation3 + $0x10] sm:$0x88] %v4158
        %v4160 = vld [vmem:[#allocation3 + $0x18] sm:$0x88]
        %v4161 = vsel %vm4110, %v4138, %v4160
        %4162 = vst [vmem:[#allocation3 + $0x18] sm:$0x88] %v4161
        %v4163 = vld [vmem:[#allocation3 + $0x20] sm:$0x88]
        %v4164 = vsel %vm4110, %v4139, %v4163
        %4165 = vst [vmem:[#allocation3 + $0x20] sm:$0x88] %v4164
        %v4166 = vld [vmem:[#allocation3 + $0x28] sm:$0x88]
        %v4167 = vsel %vm4110, %v4140, %v4166
        %4168 = vst [vmem:[#allocation3 + $0x28] sm:$0x88] %v4167
        %v4169 = vld [vmem:[#allocation3 + $0x30] sm:$0x88]
        %v4170 = vsel %vm4110, %v4141, %v4169
        %4171 = vst [vmem:[#allocation3 + $0x30] sm:$0x88] %v4170
        %v4172 = vld [vmem:[#allocation3 + $0x38] sm:$0x88]
        %v4173 = vsel %vm4110, %v4142, %v4172
        %4174 = vst [vmem:[#allocation3 + $0x38] sm:$0x88] %v4173
        %v4175 = vld [vmem:[#allocation2] sm:$0x88]
        %v4176 = vsel %vm3420, %v4135, %v4175
        %4177 = vst [vmem:[#allocation2] sm:$0x88] %v4176
        %v4178 = vld [vmem:[#allocation2 + $0x8] sm:$0x88]
        %v4179 = vsel %vm3420, %v4136, %v4178
        %4180 = vst [vmem:[#allocation2 + $0x8] sm:$0x88] %v4179
        %v4181 = vld [vmem:[#allocation2 + $0x10] sm:$0x88]
        %v4182 = vsel %vm3420, %v4137, %v4181
        %4183 = vst [vmem:[#allocation2 + $0x10] sm:$0x88] %v4182
        %v4184 = vld [vmem:[#allocation2 + $0x18] sm:$0x88]
        %v4185 = vsel %vm3420, %v4138, %v4184
        %4186 = vst [vmem:[#allocation2 + $0x18] sm:$0x88] %v4185
        %v4187 = vld [vmem:[#allocation2 + $0x20] sm:$0x88]
        %v4188 = vsel %vm3420, %v4139, %v4187
        %4189 = vst [vmem:[#allocation2 + $0x20] sm:$0x88] %v4188
        %v4190 = vld [vmem:[#allocation2 + $0x28] sm:$0x88]
        %v4191 = vsel %vm3420, %v4140, %v4190
        %4192 = vst [vmem:[#allocation2 + $0x28] sm:$0x88] %v4191
        %v4193 = vld [vmem:[#allocation2 + $0x30] sm:$0x88]
        %v4194 = vsel %vm3420, %v4141, %v4193
        %4195 = vst [vmem:[#allocation2 + $0x30] sm:$0x88] %v4194
        %v4196 = vld [vmem:[#allocation2 + $0x38] sm:$0x88]
        %v4197 = vsel %vm3420, %v4142, %v4196
        %4198 = vst [vmem:[#allocation2 + $0x38] sm:$0x88] %v4197
        %v4199 = vld [vmem:[#allocation5] sm:$0xff]
        %v4200 = vld [vmem:[#allocation5 + $0x8] sm:$0xff]
        %v4201 = vld [vmem:[#allocation5 + $0x10] sm:$0xff]
        %v4202 = vld [vmem:[#allocation5 + $0x18] sm:$0xff]
        %v4203 = vld [vmem:[#allocation5 + $0x20] sm:$0xff]
        %v4204 = vld [vmem:[#allocation5 + $0x28] sm:$0xff]
        %v4205 = vld [vmem:[#allocation5 + $0x30] sm:$0xff]
        %v4206 = vld [vmem:[#allocation5 + $0x38] sm:$0xff]
        %v4207 = vld [vmem:[#allocation5 + $0x40] sm:$0xff]
        %v4208 = vld [vmem:[#allocation5 + $0x48] sm:$0xff]
        %v4209 = vld [vmem:[#allocation5 + $0x50] sm:$0xff]
        %v4210 = vld [vmem:[#allocation5 + $0x58] sm:$0xff]
        %v4211 = vld [vmem:[#allocation5 + $0x60] sm:$0xff]
        %v4212 = vld [vmem:[#allocation5 + $0x68] sm:$0xff]
        %v4213 = vld [vmem:[#allocation5 + $0x70] sm:$0xff]
        %v4214 = vld [vmem:[#allocation5 + $0x78] sm:$0xff]
        %v4215 = vld [vmem:[#allocation5 + $0x80] sm:$0xff]
        %v4216 = vld [vmem:[#allocation5 + $0x88] sm:$0xff]
        %v4217 = vld [vmem:[#allocation5 + $0x90] sm:$0xff]
        %v4218 = vld [vmem:[#allocation5 + $0x98] sm:$0xff]
        %v4219 = vld [vmem:[#allocation5 + $0xa0] sm:$0xff]
        %v4220 = vld [vmem:[#allocation5 + $0xa8] sm:$0xff]
        %v4221 = vld [vmem:[#allocation5 + $0xb0] sm:$0xff]
        %v4222 = vld [vmem:[#allocation5 + $0xb8] sm:$0xff]
        %v4223 = vld [vmem:[#allocation5 + $0xc0] sm:$0xff]
        %v4224 = vld [vmem:[#allocation5 + $0xc8] sm:$0xff]
        %v4225 = vld [vmem:[#allocation5 + $0xd0] sm:$0xff]
        %v4226 = vld [vmem:[#allocation5 + $0xd8] sm:$0xff]
        %v4227 = vld [vmem:[#allocation5 + $0xe0] sm:$0xff]
        %v4228 = vld [vmem:[#allocation5 + $0xe8] sm:$0xff]
        %v4229 = vld [vmem:[#allocation5 + $0xf0] sm:$0xff]
        %v4230 = vld [vmem:[#allocation5 + $0xf8] sm:$0xff]
        %v4231 = vld [vmem:[#allocation5 + $0x100] sm:$0xff]
        %v4232 = vld [vmem:[#allocation5 + $0x108] sm:$0xff]
        %v4233 = vld [vmem:[#allocation5 + $0x110] sm:$0xff]
        %v4234 = vld [vmem:[#allocation5 + $0x118] sm:$0xff]
        %v4235 = vld [vmem:[#allocation5 + $0x120] sm:$0xff]
        %v4236 = vld [vmem:[#allocation5 + $0x128] sm:$0xff]
        %v4237 = vld [vmem:[#allocation5 + $0x130] sm:$0xff]
        %v4238 = vld [vmem:[#allocation5 + $0x138] sm:$0xff]
        %v4239 = vld [vmem:[#allocation5 + $0x140] sm:$0xff]
        %v4240 = vld [vmem:[#allocation5 + $0x148] sm:$0xff]
        %v4241 = vld [vmem:[#allocation5 + $0x150] sm:$0xff]
        %v4242 = vld [vmem:[#allocation5 + $0x158] sm:$0xff]
        %v4243 = vld [vmem:[#allocation5 + $0x160] sm:$0xff]
        %v4244 = vld [vmem:[#allocation5 + $0x168] sm:$0xff]
        %v4245 = vld [vmem:[#allocation5 + $0x170] sm:$0xff]
        %v4246 = vld [vmem:[#allocation5 + $0x178] sm:$0xff]
        %v4247 = vld [vmem:[#allocation5 + $0x180] sm:$0xff]
        %v4248 = vld [vmem:[#allocation5 + $0x188] sm:$0xff]
        %v4249 = vld [vmem:[#allocation5 + $0x190] sm:$0xff]
        %v4250 = vld [vmem:[#allocation5 + $0x198] sm:$0xff]
        %v4251 = vld [vmem:[#allocation5 + $0x1a0] sm:$0xff]
        %v4252 = vld [vmem:[#allocation5 + $0x1a8] sm:$0xff]
        %v4253 = vld [vmem:[#allocation5 + $0x1b0] sm:$0xff]
        %v4254 = vld [vmem:[#allocation5 + $0x1b8] sm:$0xff]
        %v4255 = vld [vmem:[#allocation5 + $0x1c0] sm:$0xff]
        %v4256 = vld [vmem:[#allocation5 + $0x1c8] sm:$0xff]
        %v4257 = vld [vmem:[#allocation5 + $0x1d0] sm:$0xff]
        %v4258 = vld [vmem:[#allocation5 + $0x1d8] sm:$0xff]
        %v4259 = vld [vmem:[#allocation5 + $0x1e0] sm:$0xff]
        %v4260 = vld [vmem:[#allocation5 + $0x1e8] sm:$0xff]
        %v4261 = vld [vmem:[#allocation5 + $0x1f0] sm:$0xff]
        %v4262 = vld [vmem:[#allocation5 + $0x1f8] sm:$0xff]
        %v4263 = vld [vmem:[#allocation5 + $0x200] sm:$0xff]
        %v4264 = vld [vmem:[#allocation5 + $0x208] sm:$0xff]
        %v4265 = vld [vmem:[#allocation5 + $0x210] sm:$0xff]
        %v4266 = vld [vmem:[#allocation5 + $0x218] sm:$0xff]
        %v4267 = vld [vmem:[#allocation5 + $0x220] sm:$0xff]
        %v4268 = vld [vmem:[#allocation5 + $0x228] sm:$0xff]
        %v4269 = vld [vmem:[#allocation5 + $0x230] sm:$0xff]
        %v4270 = vld [vmem:[#allocation5 + $0x238] sm:$0xff]
        %v4271 = vld [vmem:[#allocation5 + $0x240] sm:$0xff]
        %v4272 = vld [vmem:[#allocation5 + $0x248] sm:$0xff]
        %v4273 = vld [vmem:[#allocation5 + $0x250] sm:$0xff]
        %v4274 = vld [vmem:[#allocation5 + $0x258] sm:$0xff]
        %v4275 = vld [vmem:[#allocation5 + $0x260] sm:$0xff]
        %v4276 = vld [vmem:[#allocation5 + $0x268] sm:$0xff]
        %v4277 = vld [vmem:[#allocation5 + $0x270] sm:$0xff]
        %v4278 = vld [vmem:[#allocation5 + $0x278] sm:$0xff]
        %v4279 = vld [vmem:[#allocation5 + $0x280] sm:$0xff]
        %v4280 = vld [vmem:[#allocation5 + $0x288] sm:$0xff]
        %v4281 = vld [vmem:[#allocation5 + $0x290] sm:$0xff]
        %v4282 = vld [vmem:[#allocation5 + $0x298] sm:$0xff]
        %v4283 = vld [vmem:[#allocation5 + $0x2a0] sm:$0xff]
        %v4284 = vld [vmem:[#allocation5 + $0x2a8] sm:$0xff]
        %v4285 = vld [vmem:[#allocation5 + $0x2b0] sm:$0xff]
        %v4286 = vld [vmem:[#allocation5 + $0x2b8] sm:$0xff]
        %v4287 = vld [vmem:[#allocation5 + $0x2c0] sm:$0xff]
        %v4288 = vld [vmem:[#allocation5 + $0x2c8] sm:$0xff]
        %v4289 = vld [vmem:[#allocation5 + $0x2d0] sm:$0xff]
        %v4290 = vld [vmem:[#allocation5 + $0x2d8] sm:$0xff]
        %v4291 = vld [vmem:[#allocation5 + $0x2e0] sm:$0xff]
        %v4292 = vld [vmem:[#allocation5 + $0x2e8] sm:$0xff]
        %v4293 = vld [vmem:[#allocation5 + $0x2f0] sm:$0xff]
        %v4294 = vld [vmem:[#allocation5 + $0x2f8] sm:$0xff]
        %v4295 = vld [vmem:[#allocation5 + $0x300] sm:$0xff]
        %v4296 = vld [vmem:[#allocation5 + $0x308] sm:$0xff]
        %v4297 = vld [vmem:[#allocation5 + $0x310] sm:$0xff]
        %v4298 = vld [vmem:[#allocation5 + $0x318] sm:$0xff]
        %v4299 = vld [vmem:[#allocation5 + $0x320] sm:$0xff]
        %v4300 = vld [vmem:[#allocation5 + $0x328] sm:$0xff]
        %v4301 = vld [vmem:[#allocation5 + $0x330] sm:$0xff]
        %v4302 = vld [vmem:[#allocation5 + $0x338] sm:$0xff]
        %v4303 = vld [vmem:[#allocation5 + $0x340] sm:$0xff]
        %v4304 = vld [vmem:[#allocation5 + $0x348] sm:$0xff]
        %v4305 = vld [vmem:[#allocation5 + $0x350] sm:$0xff]
        %v4306 = vld [vmem:[#allocation5 + $0x358] sm:$0xff]
        %v4307 = vld [vmem:[#allocation5 + $0x360] sm:$0xff]
        %v4308 = vld [vmem:[#allocation5 + $0x368] sm:$0xff]
        %v4309 = vld [vmem:[#allocation5 + $0x370] sm:$0xff]
        %v4310 = vld [vmem:[#allocation5 + $0x378] sm:$0xff]
        %v4311 = vld [vmem:[#allocation5 + $0x380] sm:$0xff]
        %v4312 = vld [vmem:[#allocation5 + $0x388] sm:$0xff]
        %v4313 = vld [vmem:[#allocation5 + $0x390] sm:$0xff]
        %v4314 = vld [vmem:[#allocation5 + $0x398] sm:$0xff]
        %v4315 = vld [vmem:[#allocation5 + $0x3a0] sm:$0xff]
        %v4316 = vld [vmem:[#allocation5 + $0x3a8] sm:$0xff]
        %v4317 = vld [vmem:[#allocation5 + $0x3b0] sm:$0xff]
        %v4318 = vld [vmem:[#allocation5 + $0x3b8] sm:$0xff]
        %v4319 = vld [vmem:[#allocation5 + $0x3c0] sm:$0xff]
        %v4320 = vld [vmem:[#allocation5 + $0x3c8] sm:$0xff]
        %v4321 = vld [vmem:[#allocation5 + $0x3d0] sm:$0xff]
        %v4322 = vld [vmem:[#allocation5 + $0x3d8] sm:$0xff]
        %v4323 = vld [vmem:[#allocation5 + $0x3e0] sm:$0xff]
        %v4324 = vld [vmem:[#allocation5 + $0x3e8] sm:$0xff]
        %v4325 = vld [vmem:[#allocation5 + $0x3f0] sm:$0xff]
        %v4326 = vld [vmem:[#allocation5 + $0x3f8] sm:$0xff]
        %v4327 = vld [vmem:[#allocation5 + $0x400] sm:$0xff]
        %v4328 = vld [vmem:[#allocation5 + $0x408] sm:$0xff]
        %v4329 = vld [vmem:[#allocation5 + $0x410] sm:$0xff]
        %v4330 = vld [vmem:[#allocation5 + $0x418] sm:$0xff]
        %v4331 = vld [vmem:[#allocation5 + $0x420] sm:$0xff]
        %v4332 = vld [vmem:[#allocation5 + $0x428] sm:$0xff]
        %v4333 = vld [vmem:[#allocation5 + $0x430] sm:$0xff]
        %v4334 = vld [vmem:[#allocation5 + $0x438] sm:$0xff]
        %v4335 = vld [vmem:[#allocation5 + $0x440] sm:$0xff]
        %v4336 = vld [vmem:[#allocation5 + $0x448] sm:$0xff]
        %v4337 = vld [vmem:[#allocation5 + $0x450] sm:$0xff]
        %v4338 = vld [vmem:[#allocation5 + $0x458] sm:$0xff]
        %v4339 = vld [vmem:[#allocation5 + $0x460] sm:$0xff]
        %v4340 = vld [vmem:[#allocation5 + $0x468] sm:$0xff]
        %v4341 = vld [vmem:[#allocation5 + $0x470] sm:$0xff]
        %v4342 = vld [vmem:[#allocation5 + $0x478] sm:$0xff]
        %v4343 = vld [vmem:[#allocation5 + $0x480] sm:$0xff]
        %v4344 = vld [vmem:[#allocation5 + $0x488] sm:$0xff]
        %v4345 = vld [vmem:[#allocation5 + $0x490] sm:$0xff]
        %v4346 = vld [vmem:[#allocation5 + $0x498] sm:$0xff]
        %v4347 = vld [vmem:[#allocation5 + $0x4a0] sm:$0xff]
        %v4348 = vld [vmem:[#allocation5 + $0x4a8] sm:$0xff]
        %v4349 = vld [vmem:[#allocation5 + $0x4b0] sm:$0xff]
        %v4350 = vld [vmem:[#allocation5 + $0x4b8] sm:$0xff]
        %v4351 = vld [vmem:[#allocation5 + $0x4c0] sm:$0xff]
        %v4352 = vld [vmem:[#allocation5 + $0x4c8] sm:$0xff]
        %v4353 = vld [vmem:[#allocation5 + $0x4d0] sm:$0xff]
        %v4354 = vld [vmem:[#allocation5 + $0x4d8] sm:$0xff]
        %v4355 = vld [vmem:[#allocation5 + $0x4e0] sm:$0xff]
        %v4356 = vld [vmem:[#allocation5 + $0x4e8] sm:$0xff]
        %v4357 = vld [vmem:[#allocation5 + $0x4f0] sm:$0xff]
        %v4358 = vld [vmem:[#allocation5 + $0x4f8] sm:$0xff]
        %v4359 = vld [vmem:[#allocation5 + $0x500] sm:$0xff]
        %v4360 = vld [vmem:[#allocation5 + $0x508] sm:$0xff]
        %v4361 = vld [vmem:[#allocation5 + $0x510] sm:$0xff]
        %v4362 = vld [vmem:[#allocation5 + $0x518] sm:$0xff]
        %v4363 = vld [vmem:[#allocation5 + $0x520] sm:$0xff]
        %v4364 = vld [vmem:[#allocation5 + $0x528] sm:$0xff]
        %v4365 = vld [vmem:[#allocation5 + $0x530] sm:$0xff]
        %v4366 = vld [vmem:[#allocation5 + $0x538] sm:$0xff]
        %v4367 = vld [vmem:[#allocation5 + $0x540] sm:$0xff]
        %v4368 = vld [vmem:[#allocation5 + $0x548] sm:$0xff]
        %v4369 = vld [vmem:[#allocation5 + $0x550] sm:$0xff]
        %v4370 = vld [vmem:[#allocation5 + $0x558] sm:$0xff]
        %v4371 = vld [vmem:[#allocation5 + $0x560] sm:$0xff]
        %v4372 = vld [vmem:[#allocation5 + $0x568] sm:$0xff]
        %v4373 = vld [vmem:[#allocation5 + $0x570] sm:$0xff]
        %v4374 = vld [vmem:[#allocation5 + $0x578] sm:$0xff]
        %v4375 = vld [vmem:[#allocation5 + $0x580] sm:$0xff]
        %v4376 = vld [vmem:[#allocation5 + $0x588] sm:$0xff]
        %v4377 = vld [vmem:[#allocation5 + $0x590] sm:$0xff]
        %v4378 = vld [vmem:[#allocation5 + $0x598] sm:$0xff]
        %v4379 = vld [vmem:[#allocation5 + $0x5a0] sm:$0xff]
        %v4380 = vld [vmem:[#allocation5 + $0x5a8] sm:$0xff]
        %v4381 = vld [vmem:[#allocation5 + $0x5b0] sm:$0xff]
        %v4382 = vld [vmem:[#allocation5 + $0x5b8] sm:$0xff]
        %v4383 = vld [vmem:[#allocation5 + $0x5c0] sm:$0xff]
        %v4384 = vld [vmem:[#allocation5 + $0x5c8] sm:$0xff]
        %v4385 = vld [vmem:[#allocation5 + $0x5d0] sm:$0xff]
        %v4386 = vld [vmem:[#allocation5 + $0x5d8] sm:$0xff]
        %v4387 = vld [vmem:[#allocation5 + $0x5e0] sm:$0xff]
        %v4388 = vld [vmem:[#allocation5 + $0x5e8] sm:$0xff]
        %v4389 = vld [vmem:[#allocation5 + $0x5f0] sm:$0xff]
        %v4390 = vld [vmem:[#allocation5 + $0x5f8] sm:$0xff]
        %v4391 = vld [vmem:[#allocation2] sm:$0xff]
        %v4392 = vld [vmem:[#allocation2 + $0x8] sm:$0xff]
        %v4393 = vld [vmem:[#allocation2 + $0x10] sm:$0xff]
        %v4394 = vld [vmem:[#allocation2 + $0x18] sm:$0xff]
        %v4395 = vld [vmem:[#allocation2 + $0x20] sm:$0xff]
        %v4396 = vld [vmem:[#allocation2 + $0x28] sm:$0xff]
        %v4397 = vld [vmem:[#allocation2 + $0x30] sm:$0xff]
        %v4398 = vld [vmem:[#allocation2 + $0x38] sm:$0xff]
        %v4407 = vunpack.c.l.b16 %v4391
        %v4408 = vunpack.c.h.b16 %v4391
        %v4409 = vunpack.c.l.b16 %v4392
        %v4410 = vunpack.c.h.b16 %v4392
        %v4411 = vunpack.c.l.b16 %v4393
        %v4412 = vunpack.c.h.b16 %v4393
        %v4413 = vunpack.c.l.b16 %v4394
        %v4414 = vunpack.c.h.b16 %v4394
        %v4415 = vunpack.c.l.b16 %v4395
        %v4416 = vunpack.c.h.b16 %v4395
        %v4417 = vunpack.c.l.b16 %v4396
        %v4418 = vunpack.c.h.b16 %v4396
        %v4419 = vunpack.c.l.b16 %v4397
        %v4420 = vunpack.c.h.b16 %v4397
        %v4421 = vunpack.c.l.b16 %v4398
        %v4422 = vunpack.c.h.b16 %v4398
        %v4423 = vpack.c.b16 %v4409, %v4407
        %v4424 = vpack.c.b16 %v4410, %v4408
        %v4425 = vpack.c.b16 %v4413, %v4411
        %v4426 = vpack.c.b16 %v4414, %v4412
        %v4427 = vpack.c.b16 %v4417, %v4415
        %v4428 = vpack.c.b16 %v4418, %v4416
        %v4429 = vpack.c.b16 %v4421, %v4419
        %v4430 = vpack.c.b16 %v4422, %v4420
        %v4631 = vunpack.c.l.b16 %v4199
        %v4632 = vunpack.c.h.b16 %v4199
        %v4633 = vunpack.c.l.b16 %v4200
        %v4634 = vunpack.c.h.b16 %v4200
        %v4635 = vunpack.c.l.b16 %v4201
        %v4636 = vunpack.c.h.b16 %v4201
        %v4637 = vunpack.c.l.b16 %v4202
        %v4638 = vunpack.c.h.b16 %v4202
        %v4639 = vunpack.c.l.b16 %v4203
        %v4640 = vunpack.c.h.b16 %v4203
        %v4641 = vunpack.c.l.b16 %v4204
        %v4642 = vunpack.c.h.b16 %v4204
        %v4643 = vunpack.c.l.b16 %v4205
        %v4644 = vunpack.c.h.b16 %v4205
        %v4645 = vunpack.c.l.b16 %v4206
        %v4646 = vunpack.c.h.b16 %v4206
        %v4647 = vunpack.c.l.b16 %v4207
        %v4648 = vunpack.c.h.b16 %v4207
        %v4649 = vunpack.c.l.b16 %v4208
        %v4650 = vunpack.c.h.b16 %v4208
        %v4651 = vunpack.c.l.b16 %v4209
        %v4652 = vunpack.c.h.b16 %v4209
        %v4653 = vunpack.c.l.b16 %v4210
        %v4654 = vunpack.c.h.b16 %v4210
        %v4655 = vunpack.c.l.b16 %v4211
        %v4656 = vunpack.c.h.b16 %v4211
        %v4657 = vunpack.c.l.b16 %v4212
        %v4658 = vunpack.c.h.b16 %v4212
        %v4659 = vunpack.c.l.b16 %v4213
        %v4660 = vunpack.c.h.b16 %v4213
        %v4661 = vunpack.c.l.b16 %v4214
        %v4662 = vunpack.c.h.b16 %v4214
        %v4663 = vunpack.c.l.b16 %v4215
        %v4664 = vunpack.c.h.b16 %v4215
        %v4665 = vunpack.c.l.b16 %v4216
        %v4666 = vunpack.c.h.b16 %v4216
        %v4667 = vunpack.c.l.b16 %v4217
        %v4668 = vunpack.c.h.b16 %v4217
        %v4669 = vunpack.c.l.b16 %v4218
        %v4670 = vunpack.c.h.b16 %v4218
        %v4671 = vunpack.c.l.b16 %v4219
        %v4672 = vunpack.c.h.b16 %v4219
        %v4673 = vunpack.c.l.b16 %v4220
        %v4674 = vunpack.c.h.b16 %v4220
        %v4675 = vunpack.c.l.b16 %v4221
        %v4676 = vunpack.c.h.b16 %v4221
        %v4677 = vunpack.c.l.b16 %v4222
        %v4678 = vunpack.c.h.b16 %v4222
        %v4679 = vunpack.c.l.b16 %v4223
        %v4680 = vunpack.c.h.b16 %v4223
        %v4681 = vunpack.c.l.b16 %v4224
        %v4682 = vunpack.c.h.b16 %v4224
        %v4683 = vunpack.c.l.b16 %v4225
        %v4684 = vunpack.c.h.b16 %v4225
        %v4685 = vunpack.c.l.b16 %v4226
        %v4686 = vunpack.c.h.b16 %v4226
        %v4687 = vunpack.c.l.b16 %v4227
        %v4688 = vunpack.c.h.b16 %v4227
        %v4689 = vunpack.c.l.b16 %v4228
        %v4690 = vunpack.c.h.b16 %v4228
        %v4691 = vunpack.c.l.b16 %v4229
        %v4692 = vunpack.c.h.b16 %v4229
        %v4693 = vunpack.c.l.b16 %v4230
        %v4694 = vunpack.c.h.b16 %v4230
        %v4695 = vunpack.c.l.b16 %v4231
        %v4696 = vunpack.c.h.b16 %v4231
        %v4697 = vunpack.c.l.b16 %v4232
        %v4698 = vunpack.c.h.b16 %v4232
        %v4699 = vunpack.c.l.b16 %v4233
        %v4700 = vunpack.c.h.b16 %v4233
        %v4701 = vunpack.c.l.b16 %v4234
        %v4702 = vunpack.c.h.b16 %v4234
        %v4703 = vunpack.c.l.b16 %v4235
        %v4704 = vunpack.c.h.b16 %v4235
        %v4705 = vunpack.c.l.b16 %v4236
        %v4706 = vunpack.c.h.b16 %v4236
        %v4707 = vunpack.c.l.b16 %v4237
        %v4708 = vunpack.c.h.b16 %v4237
        %v4709 = vunpack.c.l.b16 %v4238
        %v4710 = vunpack.c.h.b16 %v4238
        %v4711 = vunpack.c.l.b16 %v4239
        %v4712 = vunpack.c.h.b16 %v4239
        %v4713 = vunpack.c.l.b16 %v4240
        %v4714 = vunpack.c.h.b16 %v4240
        %v4715 = vunpack.c.l.b16 %v4241
        %v4716 = vunpack.c.h.b16 %v4241
        %v4717 = vunpack.c.l.b16 %v4242
        %v4718 = vunpack.c.h.b16 %v4242
        %v4719 = vunpack.c.l.b16 %v4243
        %v4720 = vunpack.c.h.b16 %v4243
        %v4721 = vunpack.c.l.b16 %v4244
        %v4722 = vunpack.c.h.b16 %v4244
        %v4723 = vunpack.c.l.b16 %v4245
        %v4724 = vunpack.c.h.b16 %v4245
        %v4725 = vunpack.c.l.b16 %v4246
        %v4726 = vunpack.c.h.b16 %v4246
        %v4727 = vunpack.c.l.b16 %v4247
        %v4728 = vunpack.c.h.b16 %v4247
        %v4729 = vunpack.c.l.b16 %v4248
        %v4730 = vunpack.c.h.b16 %v4248
        %v4731 = vunpack.c.l.b16 %v4249
        %v4732 = vunpack.c.h.b16 %v4249
        %v4733 = vunpack.c.l.b16 %v4250
        %v4734 = vunpack.c.h.b16 %v4250
        %v4735 = vunpack.c.l.b16 %v4251
        %v4736 = vunpack.c.h.b16 %v4251
        %v4737 = vunpack.c.l.b16 %v4252
        %v4738 = vunpack.c.h.b16 %v4252
        %v4739 = vunpack.c.l.b16 %v4253
        %v4740 = vunpack.c.h.b16 %v4253
        %v4741 = vunpack.c.l.b16 %v4254
        %v4742 = vunpack.c.h.b16 %v4254
        %v4743 = vunpack.c.l.b16 %v4255
        %v4744 = vunpack.c.h.b16 %v4255
        %v4745 = vunpack.c.l.b16 %v4256
        %v4746 = vunpack.c.h.b16 %v4256
        %v4747 = vunpack.c.l.b16 %v4257
        %v4748 = vunpack.c.h.b16 %v4257
        %v4749 = vunpack.c.l.b16 %v4258
        %v4750 = vunpack.c.h.b16 %v4258
        %v4751 = vunpack.c.l.b16 %v4259
        %v4752 = vunpack.c.h.b16 %v4259
        %v4753 = vunpack.c.l.b16 %v4260
        %v4754 = vunpack.c.h.b16 %v4260
        %v4755 = vunpack.c.l.b16 %v4261
        %v4756 = vunpack.c.h.b16 %v4261
        %v4757 = vunpack.c.l.b16 %v4262
        %v4758 = vunpack.c.h.b16 %v4262
        %v4759 = vunpack.c.l.b16 %v4263
        %v4760 = vunpack.c.h.b16 %v4263
        %v4761 = vunpack.c.l.b16 %v4264
        %v4762 = vunpack.c.h.b16 %v4264
        %v4763 = vunpack.c.l.b16 %v4265
        %v4764 = vunpack.c.h.b16 %v4265
        %v4765 = vunpack.c.l.b16 %v4266
        %v4766 = vunpack.c.h.b16 %v4266
        %v4767 = vunpack.c.l.b16 %v4267
        %v4768 = vunpack.c.h.b16 %v4267
        %v4769 = vunpack.c.l.b16 %v4268
        %v4770 = vunpack.c.h.b16 %v4268
        %v4771 = vunpack.c.l.b16 %v4269
        %v4772 = vunpack.c.h.b16 %v4269
        %v4773 = vunpack.c.l.b16 %v4270
        %v4774 = vunpack.c.h.b16 %v4270
        %v4775 = vunpack.c.l.b16 %v4271
        %v4776 = vunpack.c.h.b16 %v4271
        %v4777 = vunpack.c.l.b16 %v4272
        %v4778 = vunpack.c.h.b16 %v4272
        %v4779 = vunpack.c.l.b16 %v4273
        %v4780 = vunpack.c.h.b16 %v4273
        %v4781 = vunpack.c.l.b16 %v4274
        %v4782 = vunpack.c.h.b16 %v4274
        %v4783 = vunpack.c.l.b16 %v4275
        %v4784 = vunpack.c.h.b16 %v4275
        %v4785 = vunpack.c.l.b16 %v4276
        %v4786 = vunpack.c.h.b16 %v4276
        %v4787 = vunpack.c.l.b16 %v4277
        %v4788 = vunpack.c.h.b16 %v4277
        %v4789 = vunpack.c.l.b16 %v4278
        %v4790 = vunpack.c.h.b16 %v4278
        %v4791 = vunpack.c.l.b16 %v4279
        %v4792 = vunpack.c.h.b16 %v4279
        %v4793 = vunpack.c.l.b16 %v4280
        %v4794 = vunpack.c.h.b16 %v4280
        %v4795 = vunpack.c.l.b16 %v4281
        %v4796 = vunpack.c.h.b16 %v4281
        %v4797 = vunpack.c.l.b16 %v4282
        %v4798 = vunpack.c.h.b16 %v4282
        %v4799 = vunpack.c.l.b16 %v4283
        %v4800 = vunpack.c.h.b16 %v4283
        %v4801 = vunpack.c.l.b16 %v4284
        %v4802 = vunpack.c.h.b16 %v4284
        %v4803 = vunpack.c.l.b16 %v4285
        %v4804 = vunpack.c.h.b16 %v4285
        %v4805 = vunpack.c.l.b16 %v4286
        %v4806 = vunpack.c.h.b16 %v4286
        %v4807 = vunpack.c.l.b16 %v4287
        %v4808 = vunpack.c.h.b16 %v4287
        %v4809 = vunpack.c.l.b16 %v4288
        %v4810 = vunpack.c.h.b16 %v4288
        %v4811 = vunpack.c.l.b16 %v4289
        %v4812 = vunpack.c.h.b16 %v4289
        %v4813 = vunpack.c.l.b16 %v4290
        %v4814 = vunpack.c.h.b16 %v4290
        %v4815 = vunpack.c.l.b16 %v4291
        %v4816 = vunpack.c.h.b16 %v4291
        %v4817 = vunpack.c.l.b16 %v4292
        %v4818 = vunpack.c.h.b16 %v4292
        %v4819 = vunpack.c.l.b16 %v4293
        %v4820 = vunpack.c.h.b16 %v4293
        %v4821 = vunpack.c.l.b16 %v4294
        %v4822 = vunpack.c.h.b16 %v4294
        %v4823 = vunpack.c.l.b16 %v4295
        %v4824 = vunpack.c.h.b16 %v4295
        %v4825 = vunpack.c.l.b16 %v4296
        %v4826 = vunpack.c.h.b16 %v4296
        %v4827 = vunpack.c.l.b16 %v4297
        %v4828 = vunpack.c.h.b16 %v4297
        %v4829 = vunpack.c.l.b16 %v4298
        %v4830 = vunpack.c.h.b16 %v4298
        %v4831 = vunpack.c.l.b16 %v4299
        %v4832 = vunpack.c.h.b16 %v4299
        %v4833 = vunpack.c.l.b16 %v4300
        %v4834 = vunpack.c.h.b16 %v4300
        %v4835 = vunpack.c.l.b16 %v4301
        %v4836 = vunpack.c.h.b16 %v4301
        %v4837 = vunpack.c.l.b16 %v4302
        %v4838 = vunpack.c.h.b16 %v4302
        %v4839 = vunpack.c.l.b16 %v4303
        %v4840 = vunpack.c.h.b16 %v4303
        %v4841 = vunpack.c.l.b16 %v4304
        %v4842 = vunpack.c.h.b16 %v4304
        %v4843 = vunpack.c.l.b16 %v4305
        %v4844 = vunpack.c.h.b16 %v4305
        %v4845 = vunpack.c.l.b16 %v4306
        %v4846 = vunpack.c.h.b16 %v4306
        %v4847 = vunpack.c.l.b16 %v4307
        %v4848 = vunpack.c.h.b16 %v4307
        %v4849 = vunpack.c.l.b16 %v4308
        %v4850 = vunpack.c.h.b16 %v4308
        %v4851 = vunpack.c.l.b16 %v4309
        %v4852 = vunpack.c.h.b16 %v4309
        %v4853 = vunpack.c.l.b16 %v4310
        %v4854 = vunpack.c.h.b16 %v4310
        %v4855 = vunpack.c.l.b16 %v4311
        %v4856 = vunpack.c.h.b16 %v4311
        %v4857 = vunpack.c.l.b16 %v4312
        %v4858 = vunpack.c.h.b16 %v4312
        %v4859 = vunpack.c.l.b16 %v4313
        %v4860 = vunpack.c.h.b16 %v4313
        %v4861 = vunpack.c.l.b16 %v4314
        %v4862 = vunpack.c.h.b16 %v4314
        %v4863 = vunpack.c.l.b16 %v4315
        %v4864 = vunpack.c.h.b16 %v4315
        %v4865 = vunpack.c.l.b16 %v4316
        %v4866 = vunpack.c.h.b16 %v4316
        %v4867 = vunpack.c.l.b16 %v4317
        %v4868 = vunpack.c.h.b16 %v4317
        %v4869 = vunpack.c.l.b16 %v4318
        %v4870 = vunpack.c.h.b16 %v4318
        %v4871 = vunpack.c.l.b16 %v4319
        %v4872 = vunpack.c.h.b16 %v4319
        %v4873 = vunpack.c.l.b16 %v4320
        %v4874 = vunpack.c.h.b16 %v4320
        %v4875 = vunpack.c.l.b16 %v4321
        %v4876 = vunpack.c.h.b16 %v4321
        %v4877 = vunpack.c.l.b16 %v4322
        %v4878 = vunpack.c.h.b16 %v4322
        %v4879 = vunpack.c.l.b16 %v4323
        %v4880 = vunpack.c.h.b16 %v4323
        %v4881 = vunpack.c.l.b16 %v4324
        %v4882 = vunpack.c.h.b16 %v4324
        %v4883 = vunpack.c.l.b16 %v4325
        %v4884 = vunpack.c.h.b16 %v4325
        %v4885 = vunpack.c.l.b16 %v4326
        %v4886 = vunpack.c.h.b16 %v4326
        %v4887 = vunpack.c.l.b16 %v4327
        %v4888 = vunpack.c.h.b16 %v4327
        %v4889 = vunpack.c.l.b16 %v4328
        %v4890 = vunpack.c.h.b16 %v4328
        %v4891 = vunpack.c.l.b16 %v4329
        %v4892 = vunpack.c.h.b16 %v4329
        %v4893 = vunpack.c.l.b16 %v4330
        %v4894 = vunpack.c.h.b16 %v4330
        %v4895 = vunpack.c.l.b16 %v4331
        %v4896 = vunpack.c.h.b16 %v4331
        %v4897 = vunpack.c.l.b16 %v4332
        %v4898 = vunpack.c.h.b16 %v4332
        %v4899 = vunpack.c.l.b16 %v4333
        %v4900 = vunpack.c.h.b16 %v4333
        %v4901 = vunpack.c.l.b16 %v4334
        %v4902 = vunpack.c.h.b16 %v4334
        %v4903 = vunpack.c.l.b16 %v4335
        %v4904 = vunpack.c.h.b16 %v4335
        %v4905 = vunpack.c.l.b16 %v4336
        %v4906 = vunpack.c.h.b16 %v4336
        %v4907 = vunpack.c.l.b16 %v4337
        %v4908 = vunpack.c.h.b16 %v4337
        %v4909 = vunpack.c.l.b16 %v4338
        %v4910 = vunpack.c.h.b16 %v4338
        %v4911 = vunpack.c.l.b16 %v4339
        %v4912 = vunpack.c.h.b16 %v4339
        %v4913 = vunpack.c.l.b16 %v4340
        %v4914 = vunpack.c.h.b16 %v4340
        %v4915 = vunpack.c.l.b16 %v4341
        %v4916 = vunpack.c.h.b16 %v4341
        %v4917 = vunpack.c.l.b16 %v4342
        %v4918 = vunpack.c.h.b16 %v4342
        %v4919 = vunpack.c.l.b16 %v4343
        %v4920 = vunpack.c.h.b16 %v4343
        %v4921 = vunpack.c.l.b16 %v4344
        %v4922 = vunpack.c.h.b16 %v4344
        %v4923 = vunpack.c.l.b16 %v4345
        %v4924 = vunpack.c.h.b16 %v4345
        %v4925 = vunpack.c.l.b16 %v4346
        %v4926 = vunpack.c.h.b16 %v4346
        %v4927 = vunpack.c.l.b16 %v4347
        %v4928 = vunpack.c.h.b16 %v4347
        %v4929 = vunpack.c.l.b16 %v4348
        %v4930 = vunpack.c.h.b16 %v4348
        %v4931 = vunpack.c.l.b16 %v4349
        %v4932 = vunpack.c.h.b16 %v4349
        %v4933 = vunpack.c.l.b16 %v4350
        %v4934 = vunpack.c.h.b16 %v4350
        %v4935 = vunpack.c.l.b16 %v4351
        %v4936 = vunpack.c.h.b16 %v4351
        %v4937 = vunpack.c.l.b16 %v4352
        %v4938 = vunpack.c.h.b16 %v4352
        %v4939 = vunpack.c.l.b16 %v4353
        %v4940 = vunpack.c.h.b16 %v4353
        %v4941 = vunpack.c.l.b16 %v4354
        %v4942 = vunpack.c.h.b16 %v4354
        %v4943 = vunpack.c.l.b16 %v4355
        %v4944 = vunpack.c.h.b16 %v4355
        %v4945 = vunpack.c.l.b16 %v4356
        %v4946 = vunpack.c.h.b16 %v4356
        %v4947 = vunpack.c.l.b16 %v4357
        %v4948 = vunpack.c.h.b16 %v4357
        %v4949 = vunpack.c.l.b16 %v4358
        %v4950 = vunpack.c.h.b16 %v4358
        %v4951 = vunpack.c.l.b16 %v4359
        %v4952 = vunpack.c.h.b16 %v4359
        %v4953 = vunpack.c.l.b16 %v4360
        %v4954 = vunpack.c.h.b16 %v4360
        %v4955 = vunpack.c.l.b16 %v4361
        %v4956 = vunpack.c.h.b16 %v4361
        %v4957 = vunpack.c.l.b16 %v4362
        %v4958 = vunpack.c.h.b16 %v4362
        %v4959 = vunpack.c.l.b16 %v4363
        %v4960 = vunpack.c.h.b16 %v4363
        %v4961 = vunpack.c.l.b16 %v4364
        %v4962 = vunpack.c.h.b16 %v4364
        %v4963 = vunpack.c.l.b16 %v4365
        %v4964 = vunpack.c.h.b16 %v4365
        %v4965 = vunpack.c.l.b16 %v4366
        %v4966 = vunpack.c.h.b16 %v4366
        %v4967 = vunpack.c.l.b16 %v4367
        %v4968 = vunpack.c.h.b16 %v4367
        %v4969 = vunpack.c.l.b16 %v4368
        %v4970 = vunpack.c.h.b16 %v4368
        %v4971 = vunpack.c.l.b16 %v4369
        %v4972 = vunpack.c.h.b16 %v4369
        %v4973 = vunpack.c.l.b16 %v4370
        %v4974 = vunpack.c.h.b16 %v4370
        %v4975 = vunpack.c.l.b16 %v4371
        %v4976 = vunpack.c.h.b16 %v4371
        %v4977 = vunpack.c.l.b16 %v4372
        %v4978 = vunpack.c.h.b16 %v4372
        %v4979 = vunpack.c.l.b16 %v4373
        %v4980 = vunpack.c.h.b16 %v4373
        %v4981 = vunpack.c.l.b16 %v4374
        %v4982 = vunpack.c.h.b16 %v4374
        %v4983 = vunpack.c.l.b16 %v4375
        %v4984 = vunpack.c.h.b16 %v4375
        %v4985 = vunpack.c.l.b16 %v4376
        %v4986 = vunpack.c.h.b16 %v4376
        %v4987 = vunpack.c.l.b16 %v4377
        %v4988 = vunpack.c.h.b16 %v4377
        %v4989 = vunpack.c.l.b16 %v4378
        %v4990 = vunpack.c.h.b16 %v4378
        %v4991 = vunpack.c.l.b16 %v4379
        %v4992 = vunpack.c.h.b16 %v4379
        %v4993 = vunpack.c.l.b16 %v4380
        %v4994 = vunpack.c.h.b16 %v4380
        %v4995 = vunpack.c.l.b16 %v4381
        %v4996 = vunpack.c.h.b16 %v4381
        %v4997 = vunpack.c.l.b16 %v4382
        %v4998 = vunpack.c.h.b16 %v4382
        %v4999 = vunpack.c.l.b16 %v4383
        %v5000 = vunpack.c.h.b16 %v4383
        %v5001 = vunpack.c.l.b16 %v4384
        %v5002 = vunpack.c.h.b16 %v4384
        %v5003 = vunpack.c.l.b16 %v4385
        %v5004 = vunpack.c.h.b16 %v4385
        %v5005 = vunpack.c.l.b16 %v4386
        %v5006 = vunpack.c.h.b16 %v4386
        %v5007 = vunpack.c.l.b16 %v4387
        %v5008 = vunpack.c.h.b16 %v4387
        %v5009 = vunpack.c.l.b16 %v4388
        %v5010 = vunpack.c.h.b16 %v4388
        %v5011 = vunpack.c.l.b16 %v4389
        %v5012 = vunpack.c.h.b16 %v4389
        %v5013 = vunpack.c.l.b16 %v4390
        %v5014 = vunpack.c.h.b16 %v4390
        %v5015 = vpack.c.b16 %v4643, %v4631
        %v5016 = vpack.c.b16 %v4644, %v4632
        %v5017 = vpack.c.b16 %v4645, %v4633
        %v5018 = vpack.c.b16 %v4646, %v4634
        %v5019 = vpack.c.b16 %v4647, %v4635
        %v5020 = vpack.c.b16 %v4648, %v4636
        %v5021 = vpack.c.b16 %v4649, %v4637
        %v5022 = vpack.c.b16 %v4650, %v4638
        %v5023 = vpack.c.b16 %v4651, %v4639
        %v5024 = vpack.c.b16 %v4652, %v4640
        %v5025 = vpack.c.b16 %v4653, %v4641
        %v5026 = vpack.c.b16 %v4654, %v4642
        %v5027 = vpack.c.b16 %v4667, %v4655
        %v5028 = vpack.c.b16 %v4668, %v4656
        %v5029 = vpack.c.b16 %v4669, %v4657
        %v5030 = vpack.c.b16 %v4670, %v4658
        %v5031 = vpack.c.b16 %v4671, %v4659
        %v5032 = vpack.c.b16 %v4672, %v4660
        %v5033 = vpack.c.b16 %v4673, %v4661
        %v5034 = vpack.c.b16 %v4674, %v4662
        %v5035 = vpack.c.b16 %v4675, %v4663
        %v5036 = vpack.c.b16 %v4676, %v4664
        %v5037 = vpack.c.b16 %v4677, %v4665
        %v5038 = vpack.c.b16 %v4678, %v4666
        %v5039 = vpack.c.b16 %v4691, %v4679
        %v5040 = vpack.c.b16 %v4692, %v4680
        %v5041 = vpack.c.b16 %v4693, %v4681
        %v5042 = vpack.c.b16 %v4694, %v4682
        %v5043 = vpack.c.b16 %v4695, %v4683
        %v5044 = vpack.c.b16 %v4696, %v4684
        %v5045 = vpack.c.b16 %v4697, %v4685
        %v5046 = vpack.c.b16 %v4698, %v4686
        %v5047 = vpack.c.b16 %v4699, %v4687
        %v5048 = vpack.c.b16 %v4700, %v4688
        %v5049 = vpack.c.b16 %v4701, %v4689
        %v5050 = vpack.c.b16 %v4702, %v4690
        %v5051 = vpack.c.b16 %v4715, %v4703
        %v5052 = vpack.c.b16 %v4716, %v4704
        %v5053 = vpack.c.b16 %v4717, %v4705
        %v5054 = vpack.c.b16 %v4718, %v4706
        %v5055 = vpack.c.b16 %v4719, %v4707
        %v5056 = vpack.c.b16 %v4720, %v4708
        %v5057 = vpack.c.b16 %v4721, %v4709
        %v5058 = vpack.c.b16 %v4722, %v4710
        %v5059 = vpack.c.b16 %v4723, %v4711
        %v5060 = vpack.c.b16 %v4724, %v4712
        %v5061 = vpack.c.b16 %v4725, %v4713
        %v5062 = vpack.c.b16 %v4726, %v4714
        %v5063 = vpack.c.b16 %v4739, %v4727
        %v5064 = vpack.c.b16 %v4740, %v4728
        %v5065 = vpack.c.b16 %v4741, %v4729
        %v5066 = vpack.c.b16 %v4742, %v4730
        %v5067 = vpack.c.b16 %v4743, %v4731
        %v5068 = vpack.c.b16 %v4744, %v4732
        %v5069 = vpack.c.b16 %v4745, %v4733
        %v5070 = vpack.c.b16 %v4746, %v4734
        %v5071 = vpack.c.b16 %v4747, %v4735
        %v5072 = vpack.c.b16 %v4748, %v4736
        %v5073 = vpack.c.b16 %v4749, %v4737
        %v5074 = vpack.c.b16 %v4750, %v4738
        %v5075 = vpack.c.b16 %v4763, %v4751
        %v5076 = vpack.c.b16 %v4764, %v4752
        %v5077 = vpack.c.b16 %v4765, %v4753
        %v5078 = vpack.c.b16 %v4766, %v4754
        %v5079 = vpack.c.b16 %v4767, %v4755
        %v5080 = vpack.c.b16 %v4768, %v4756
        %v5081 = vpack.c.b16 %v4769, %v4757
        %v5082 = vpack.c.b16 %v4770, %v4758
        %v5083 = vpack.c.b16 %v4771, %v4759
        %v5084 = vpack.c.b16 %v4772, %v4760
        %v5085 = vpack.c.b16 %v4773, %v4761
        %v5086 = vpack.c.b16 %v4774, %v4762
        %v5087 = vpack.c.b16 %v4787, %v4775
        %v5088 = vpack.c.b16 %v4788, %v4776
        %v5089 = vpack.c.b16 %v4789, %v4777
        %v5090 = vpack.c.b16 %v4790, %v4778
        %v5091 = vpack.c.b16 %v4791, %v4779
        %v5092 = vpack.c.b16 %v4792, %v4780
        %v5093 = vpack.c.b16 %v4793, %v4781
        %v5094 = vpack.c.b16 %v4794, %v4782
        %v5095 = vpack.c.b16 %v4795, %v4783
        %v5096 = vpack.c.b16 %v4796, %v4784
        %v5097 = vpack.c.b16 %v4797, %v4785
        %v5098 = vpack.c.b16 %v4798, %v4786
        %v5099 = vpack.c.b16 %v4811, %v4799
        %v5100 = vpack.c.b16 %v4812, %v4800
        %v5101 = vpack.c.b16 %v4813, %v4801
        %v5102 = vpack.c.b16 %v4814, %v4802
        %v5103 = vpack.c.b16 %v4815, %v4803
        %v5104 = vpack.c.b16 %v4816, %v4804
        %v5105 = vpack.c.b16 %v4817, %v4805
        %v5106 = vpack.c.b16 %v4818, %v4806
        %v5107 = vpack.c.b16 %v4819, %v4807
        %v5108 = vpack.c.b16 %v4820, %v4808
        %v5109 = vpack.c.b16 %v4821, %v4809
        %v5110 = vpack.c.b16 %v4822, %v4810
        %v5111 = vpack.c.b16 %v4835, %v4823
        %v5112 = vpack.c.b16 %v4836, %v4824
        %v5113 = vpack.c.b16 %v4837, %v4825
        %v5114 = vpack.c.b16 %v4838, %v4826
        %v5115 = vpack.c.b16 %v4839, %v4827
        %v5116 = vpack.c.b16 %v4840, %v4828
        %v5117 = vpack.c.b16 %v4841, %v4829
        %v5118 = vpack.c.b16 %v4842, %v4830
        %v5119 = vpack.c.b16 %v4843, %v4831
        %v5120 = vpack.c.b16 %v4844, %v4832
        %v5121 = vpack.c.b16 %v4845, %v4833
        %v5122 = vpack.c.b16 %v4846, %v4834
        %v5123 = vpack.c.b16 %v4859, %v4847
        %v5124 = vpack.c.b16 %v4860, %v4848
        %v5125 = vpack.c.b16 %v4861, %v4849
        %v5126 = vpack.c.b16 %v4862, %v4850
        %v5127 = vpack.c.b16 %v4863, %v4851
        %v5128 = vpack.c.b16 %v4864, %v4852
        %v5129 = vpack.c.b16 %v4865, %v4853
        %v5130 = vpack.c.b16 %v4866, %v4854
        %v5131 = vpack.c.b16 %v4867, %v4855
        %v5132 = vpack.c.b16 %v4868, %v4856
        %v5133 = vpack.c.b16 %v4869, %v4857
        %v5134 = vpack.c.b16 %v4870, %v4858
        %v5135 = vpack.c.b16 %v4883, %v4871
        %v5136 = vpack.c.b16 %v4884, %v4872
        %v5137 = vpack.c.b16 %v4885, %v4873
        %v5138 = vpack.c.b16 %v4886, %v4874
        %v5139 = vpack.c.b16 %v4887, %v4875
        %v5140 = vpack.c.b16 %v4888, %v4876
        %v5141 = vpack.c.b16 %v4889, %v4877
        %v5142 = vpack.c.b16 %v4890, %v4878
        %v5143 = vpack.c.b16 %v4891, %v4879
        %v5144 = vpack.c.b16 %v4892, %v4880
        %v5145 = vpack.c.b16 %v4893, %v4881
        %v5146 = vpack.c.b16 %v4894, %v4882
        %v5147 = vpack.c.b16 %v4907, %v4895
        %v5148 = vpack.c.b16 %v4908, %v4896
        %v5149 = vpack.c.b16 %v4909, %v4897
        %v5150 = vpack.c.b16 %v4910, %v4898
        %v5151 = vpack.c.b16 %v4911, %v4899
        %v5152 = vpack.c.b16 %v4912, %v4900
        %v5153 = vpack.c.b16 %v4913, %v4901
        %v5154 = vpack.c.b16 %v4914, %v4902
        %v5155 = vpack.c.b16 %v4915, %v4903
        %v5156 = vpack.c.b16 %v4916, %v4904
        %v5157 = vpack.c.b16 %v4917, %v4905
        %v5158 = vpack.c.b16 %v4918, %v4906
        %v5159 = vpack.c.b16 %v4931, %v4919
        %v5160 = vpack.c.b16 %v4932, %v4920
        %v5161 = vpack.c.b16 %v4933, %v4921
        %v5162 = vpack.c.b16 %v4934, %v4922
        %v5163 = vpack.c.b16 %v4935, %v4923
        %v5164 = vpack.c.b16 %v4936, %v4924
        %v5165 = vpack.c.b16 %v4937, %v4925
        %v5166 = vpack.c.b16 %v4938, %v4926
        %v5167 = vpack.c.b16 %v4939, %v4927
        %v5168 = vpack.c.b16 %v4940, %v4928
        %v5169 = vpack.c.b16 %v4941, %v4929
        %v5170 = vpack.c.b16 %v4942, %v4930
        %v5171 = vpack.c.b16 %v4955, %v4943
        %v5172 = vpack.c.b16 %v4956, %v4944
        %v5173 = vpack.c.b16 %v4957, %v4945
        %v5174 = vpack.c.b16 %v4958, %v4946
        %v5175 = vpack.c.b16 %v4959, %v4947
        %v5176 = vpack.c.b16 %v4960, %v4948
        %v5177 = vpack.c.b16 %v4961, %v4949
        %v5178 = vpack.c.b16 %v4962, %v4950
        %v5179 = vpack.c.b16 %v4963, %v4951
        %v5180 = vpack.c.b16 %v4964, %v4952
        %v5181 = vpack.c.b16 %v4965, %v4953
        %v5182 = vpack.c.b16 %v4966, %v4954
        %v5183 = vpack.c.b16 %v4979, %v4967
        %v5184 = vpack.c.b16 %v4980, %v4968
        %v5185 = vpack.c.b16 %v4981, %v4969
        %v5186 = vpack.c.b16 %v4982, %v4970
        %v5187 = vpack.c.b16 %v4983, %v4971
        %v5188 = vpack.c.b16 %v4984, %v4972
        %v5189 = vpack.c.b16 %v4985, %v4973
        %v5190 = vpack.c.b16 %v4986, %v4974
        %v5191 = vpack.c.b16 %v4987, %v4975
        %v5192 = vpack.c.b16 %v4988, %v4976
        %v5193 = vpack.c.b16 %v4989, %v4977
        %v5194 = vpack.c.b16 %v4990, %v4978
        %v5195 = vpack.c.b16 %v5003, %v4991
        %v5196 = vpack.c.b16 %v5004, %v4992
        %v5197 = vpack.c.b16 %v5005, %v4993
        %v5198 = vpack.c.b16 %v5006, %v4994
        %v5199 = vpack.c.b16 %v5007, %v4995
        %v5200 = vpack.c.b16 %v5008, %v4996
        %v5201 = vpack.c.b16 %v5009, %v4997
        %v5202 = vpack.c.b16 %v5010, %v4998
        %v5203 = vpack.c.b16 %v5011, %v4999
        %v5204 = vpack.c.b16 %v5012, %v5000
        %v5205 = vpack.c.b16 %v5013, %v5001
        %v5206 = vpack.c.b16 %v5014, %v5002
        %5399 = vmatprep.subr.bf16.mxu0 %v5016
        %5400 = vmatpush1.bf16.msra.mxu0 %v5015
        %5401 = vmatprep.subr.bf16.mxu0 %v5028
        %5402 = vmatpush1.bf16.msra.mxu0 %v5027
        %5403 = vmatprep.subr.bf16.mxu0 %v5040
        %5404 = vmatpush1.bf16.msra.mxu0 %v5039
        %5405 = vmatprep.subr.bf16.mxu0 %v5052
        %5406 = vmatpush1.bf16.msra.mxu0 %v5051
        %5407 = vmatprep.subr.bf16.mxu0 %v5064
        %5408 = vmatpush1.bf16.msra.mxu0 %v5063
        %5409 = vmatprep.subr.bf16.mxu0 %v5076
        %5410 = vmatpush1.bf16.msra.mxu0 %v5075
        %5411 = vmatprep.subr.bf16.mxu0 %v5088
        %5412 = vmatpush1.bf16.msra.mxu0 %v5087
        %5413 = vmatprep.subr.bf16.mxu0 %v5100
        %5414 = vmatpush1.bf16.msra.mxu0 %v5099
        %5415 = vmatprep.subr.bf16.mxu0 %v5112
        %5416 = vmatpush1.bf16.msra.mxu0 %v5111
        %5417 = vmatprep.subr.bf16.mxu0 %v5124
        %5418 = vmatpush1.bf16.msra.mxu0 %v5123
        %5419 = vmatprep.subr.bf16.mxu0 %v5136
        %5420 = vmatpush1.bf16.msra.mxu0 %v5135
        %5421 = vmatprep.subr.bf16.mxu0 %v5148
        %5422 = vmatpush1.bf16.msra.mxu0 %v5147
        %5423 = vmatprep.subr.bf16.mxu0 %v5160
        %5424 = vmatpush1.bf16.msra.mxu0 %v5159
        %5425 = vmatprep.subr.bf16.mxu0 %v5172
        %5426 = vmatpush1.bf16.msra.mxu0 %v5171
        %5427 = vmatprep.subr.bf16.mxu0 %v5184
        %5428 = vmatpush1.bf16.msra.mxu0 %v5183
        %5429 = vmatprep.subr.bf16.mxu0 %v5196
        %5430 = vmatpush1.bf16.msra.mxu0 %v5195
        %5431 = vmatprep.mubr.bf16.mxu0 %v4424
        %5432 = vmatmul.mubr.bf16.gmra.mrb[0].mxu0 %v4423
        %v5433 = vpop.f32.mrb[0].mxu0
        %v5434 = vadd.f32 0.0, %v5433
        %v5435 = vpop.f32.mrb[0].mxu0
        %v5436 = vadd.f32 0.0, %v5435
        %v5437 = vpop.f32.mrb[0].mxu0
        %v5438 = vadd.f32 0.0, %v5437
        %v5439 = vpop.f32.mrb[0].mxu0
        %v5440 = vadd.f32 0.0, %v5439
        %5441 = vmatprep.mubr.bf16.mxu0 %v4426
        %5442 = vmatmul.mubr.bf16.gmra.mrb[0].mxu0 %v4425
        %v5443 = vpop.f32.mrb[0].mxu0
        %v5444 = vadd.f32 0.0, %v5443
        %v5445 = vpop.f32.mrb[0].mxu0
        %v5446 = vadd.f32 0.0, %v5445
        %v5447 = vpop.f32.mrb[0].mxu0
        %v5448 = vadd.f32 0.0, %v5447
        %v5449 = vpop.f32.mrb[0].mxu0
        %v5450 = vadd.f32 0.0, %v5449
        %5451 = vmatprep.mubr.bf16.mxu0 %v4428
        %5452 = vmatmul.mubr.bf16.gmra.mrb[0].mxu0 %v4427
        %v5453 = vpop.f32.mrb[0].mxu0
        %v5454 = vadd.f32 0.0, %v5453
        %v5455 = vpop.f32.mrb[0].mxu0
        %v5456 = vadd.f32 0.0, %v5455
        %v5457 = vpop.f32.mrb[0].mxu0
        %v5458 = vadd.f32 0.0, %v5457
        %v5459 = vpop.f32.mrb[0].mxu0
        %v5460 = vadd.f32 0.0, %v5459
        %5461 = vmatprep.mubr.bf16.mxu0 %v4430
        %5462 = vmatmul.mubr.bf16.gmra.mrb[0].mxu0 %v4429
        %v5463 = vpop.f32.mrb[0].mxu0
        %v5464 = vadd.f32 0.0, %v5463
        %v5465 = vpop.f32.mrb[0].mxu0
        %v5466 = vadd.f32 0.0, %v5465
        %v5467 = vpop.f32.mrb[0].mxu0
        %v5468 = vadd.f32 0.0, %v5467
        %v5469 = vpop.f32.mrb[0].mxu0
        %v5470 = vadd.f32 0.0, %v5469
        %5471 = vdwg.mxu0
        %5472 = vmatprep.subr.bf16.mxu0 %v5018
        %5473 = vmatpush1.bf16.msra.mxu0 %v5017
        %5474 = vmatprep.subr.bf16.mxu0 %v5030
        %5475 = vmatpush1.bf16.msra.mxu0 %v5029
        %5476 = vmatprep.subr.bf16.mxu0 %v5042
        %5477 = vmatpush1.bf16.msra.mxu0 %v5041
        %5478 = vmatprep.subr.bf16.mxu0 %v5054
        %5479 = vmatpush1.bf16.msra.mxu0 %v5053
        %5480 = vmatprep.subr.bf16.mxu0 %v5066
        %5481 = vmatpush1.bf16.msra.mxu0 %v5065
        %5482 = vmatprep.subr.bf16.mxu0 %v5078
        %5483 = vmatpush1.bf16.msra.mxu0 %v5077
        %5484 = vmatprep.subr.bf16.mxu0 %v5090
        %5485 = vmatpush1.bf16.msra.mxu0 %v5089
        %5486 = vmatprep.subr.bf16.mxu0 %v5102
        %5487 = vmatpush1.bf16.msra.mxu0 %v5101
        %5488 = vmatprep.subr.bf16.mxu0 %v5114
        %5489 = vmatpush1.bf16.msra.mxu0 %v5113
        %5490 = vmatprep.subr.bf16.mxu0 %v5126
        %5491 = vmatpush1.bf16.msra.mxu0 %v5125
        %5492 = vmatprep.subr.bf16.mxu0 %v5138
        %5493 = vmatpush1.bf16.msra.mxu0 %v5137
        %5494 = vmatprep.subr.bf16.mxu0 %v5150
        %5495 = vmatpush1.bf16.msra.mxu0 %v5149
        %5496 = vmatprep.subr.bf16.mxu0 %v5162
        %5497 = vmatpush1.bf16.msra.mxu0 %v5161
        %5498 = vmatprep.subr.bf16.mxu0 %v5174
        %5499 = vmatpush1.bf16.msra.mxu0 %v5173
        %5500 = vmatprep.subr.bf16.mxu0 %v5186
        %5501 = vmatpush1.bf16.msra.mxu0 %v5185
        %5502 = vmatprep.subr.bf16.mxu0 %v5198
        %5503 = vmatpush1.bf16.msra.mxu0 %v5197
        %5504 = vmatprep.mubr.bf16.mxu0 %v4424
        %5505 = vmatmul.mubr.bf16.gmra.mrb[0].mxu0 %v4423
        %v5506 = vpop.f32.mrb[0].mxu0
        %v5507 = vadd.f32 0.0, %v5506
        %v5508 = vpop.f32.mrb[0].mxu0
        %v5509 = vadd.f32 0.0, %v5508
        %v5510 = vpop.f32.mrb[0].mxu0
        %v5511 = vadd.f32 0.0, %v5510
        %v5512 = vpop.f32.mrb[0].mxu0
        %v5513 = vadd.f32 0.0, %v5512
        %5514 = vmatprep.mubr.bf16.mxu0 %v4426
        %5515 = vmatmul.mubr.bf16.gmra.mrb[0].mxu0 %v4425
        %v5516 = vpop.f32.mrb[0].mxu0
        %v5517 = vadd.f32 0.0, %v5516
        %v5518 = vpop.f32.mrb[0].mxu0
        %v5519 = vadd.f32 0.0, %v5518
        %v5520 = vpop.f32.mrb[0].mxu0
        %v5521 = vadd.f32 0.0, %v5520
        %v5522 = vpop.f32.mrb[0].mxu0
        %v5523 = vadd.f32 0.0, %v5522
        %5524 = vmatprep.mubr.bf16.mxu0 %v4428
        %5525 = vmatmul.mubr.bf16.gmra.mrb[0].mxu0 %v4427
        %v5526 = vpop.f32.mrb[0].mxu0
        %v5527 = vadd.f32 0.0, %v5526
        %v5528 = vpop.f32.mrb[0].mxu0
        %v5529 = vadd.f32 0.0, %v5528
        %v5530 = vpop.f32.mrb[0].mxu0
        %v5531 = vadd.f32 0.0, %v5530
        %v5532 = vpop.f32.mrb[0].mxu0
        %v5533 = vadd.f32 0.0, %v5532
        %5534 = vmatprep.mubr.bf16.mxu0 %v4430
        %5535 = vmatmul.mubr.bf16.gmra.mrb[0].mxu0 %v4429
        %v5536 = vpop.f32.mrb[0].mxu0
        %v5537 = vadd.f32 0.0, %v5536
        %v5538 = vpop.f32.mrb[0].mxu0
        %v5539 = vadd.f32 0.0, %v5538
        %v5540 = vpop.f32.mrb[0].mxu0
        %v5541 = vadd.f32 0.0, %v5540
        %v5542 = vpop.f32.mrb[0].mxu0
        %v5543 = vadd.f32 0.0, %v5542
        %5544 = vdwg.mxu0
        %5545 = vmatprep.subr.bf16.mxu0 %v5020
        %5546 = vmatpush1.bf16.msra.mxu0 %v5019
        %5547 = vmatprep.subr.bf16.mxu0 %v5032
        %5548 = vmatpush1.bf16.msra.mxu0 %v5031
        %5549 = vmatprep.subr.bf16.mxu0 %v5044
        %5550 = vmatpush1.bf16.msra.mxu0 %v5043
        %5551 = vmatprep.subr.bf16.mxu0 %v5056
        %5552 = vmatpush1.bf16.msra.mxu0 %v5055
        %5553 = vmatprep.subr.bf16.mxu0 %v5068
        %5554 = vmatpush1.bf16.msra.mxu0 %v5067
        %5555 = vmatprep.subr.bf16.mxu0 %v5080
        %5556 = vmatpush1.bf16.msra.mxu0 %v5079
        %5557 = vmatprep.subr.bf16.mxu0 %v5092
        %5558 = vmatpush1.bf16.msra.mxu0 %v5091
        %5559 = vmatprep.subr.bf16.mxu0 %v5104
        %5560 = vmatpush1.bf16.msra.mxu0 %v5103
        %5561 = vmatprep.subr.bf16.mxu0 %v5116
        %5562 = vmatpush1.bf16.msra.mxu0 %v5115
        %5563 = vmatprep.subr.bf16.mxu0 %v5128
        %5564 = vmatpush1.bf16.msra.mxu0 %v5127
        %5565 = vmatprep.subr.bf16.mxu0 %v5140
        %5566 = vmatpush1.bf16.msra.mxu0 %v5139
        %5567 = vmatprep.subr.bf16.mxu0 %v5152
        %5568 = vmatpush1.bf16.msra.mxu0 %v5151
        %5569 = vmatprep.subr.bf16.mxu0 %v5164
        %5570 = vmatpush1.bf16.msra.mxu0 %v5163
        %5571 = vmatprep.subr.bf16.mxu0 %v5176
        %5572 = vmatpush1.bf16.msra.mxu0 %v5175
        %5573 = vmatprep.subr.bf16.mxu0 %v5188
        %5574 = vmatpush1.bf16.msra.mxu0 %v5187
        %5575 = vmatprep.subr.bf16.mxu0 %v5200
        %5576 = vmatpush1.bf16.msra.mxu0 %v5199
        %5577 = vmatprep.mubr.bf16.mxu0 %v4424
        %5578 = vmatmul.mubr.bf16.gmra.mrb[0].mxu0 %v4423
        %v5579 = vpop.f32.mrb[0].mxu0
        %v5580 = vadd.f32 0.0, %v5579
        %v5581 = vpop.f32.mrb[0].mxu0
        %v5582 = vadd.f32 0.0, %v5581
        %v5583 = vpop.f32.mrb[0].mxu0
        %v5584 = vadd.f32 0.0, %v5583
        %v5585 = vpop.f32.mrb[0].mxu0
        %v5586 = vadd.f32 0.0, %v5585
        %5587 = vmatprep.mubr.bf16.mxu0 %v4426
        %5588 = vmatmul.mubr.bf16.gmra.mrb[0].mxu0 %v4425
        %v5589 = vpop.f32.mrb[0].mxu0
        %v5590 = vadd.f32 0.0, %v5589
        %v5591 = vpop.f32.mrb[0].mxu0
        %v5592 = vadd.f32 0.0, %v5591
        %v5593 = vpop.f32.mrb[0].mxu0
        %v5594 = vadd.f32 0.0, %v5593
        %v5595 = vpop.f32.mrb[0].mxu0
        %v5596 = vadd.f32 0.0, %v5595
        %5597 = vmatprep.mubr.bf16.mxu0 %v4428
        %5598 = vmatmul.mubr.bf16.gmra.mrb[0].mxu0 %v4427
        %v5599 = vpop.f32.mrb[0].mxu0
        %v5600 = vadd.f32 0.0, %v5599
        %v5601 = vpop.f32.mrb[0].mxu0
        %v5602 = vadd.f32 0.0, %v5601
        %v5603 = vpop.f32.mrb[0].mxu0
        %v5604 = vadd.f32 0.0, %v5603
        %v5605 = vpop.f32.mrb[0].mxu0
        %v5606 = vadd.f32 0.0, %v5605
        %5607 = vmatprep.mubr.bf16.mxu0 %v4430
        %5608 = vmatmul.mubr.bf16.gmra.mrb[0].mxu0 %v4429
        %v5609 = vpop.f32.mrb[0].mxu0
        %v5610 = vadd.f32 0.0, %v5609
        %v5611 = vpop.f32.mrb[0].mxu0
        %v5612 = vadd.f32 0.0, %v5611
        %v5613 = vpop.f32.mrb[0].mxu0
        %v5614 = vadd.f32 0.0, %v5613
        %v5615 = vpop.f32.mrb[0].mxu0
        %v5616 = vadd.f32 0.0, %v5615
        %5617 = vdwg.mxu0
        %5618 = vmatprep.subr.bf16.mxu0 %v5022
        %5619 = vmatpush1.bf16.msra.mxu0 %v5021
        %5620 = vmatprep.subr.bf16.mxu0 %v5034
        %5621 = vmatpush1.bf16.msra.mxu0 %v5033
        %5622 = vmatprep.subr.bf16.mxu0 %v5046
        %5623 = vmatpush1.bf16.msra.mxu0 %v5045
        %5624 = vmatprep.subr.bf16.mxu0 %v5058
        %5625 = vmatpush1.bf16.msra.mxu0 %v5057
        %5626 = vmatprep.subr.bf16.mxu0 %v5070
        %5627 = vmatpush1.bf16.msra.mxu0 %v5069
        %5628 = vmatprep.subr.bf16.mxu0 %v5082
        %5629 = vmatpush1.bf16.msra.mxu0 %v5081
        %5630 = vmatprep.subr.bf16.mxu0 %v5094
        %5631 = vmatpush1.bf16.msra.mxu0 %v5093
        %5632 = vmatprep.subr.bf16.mxu0 %v5106
        %5633 = vmatpush1.bf16.msra.mxu0 %v5105
        %5634 = vmatprep.subr.bf16.mxu0 %v5118
        %5635 = vmatpush1.bf16.msra.mxu0 %v5117
        %5636 = vmatprep.subr.bf16.mxu0 %v5130
        %5637 = vmatpush1.bf16.msra.mxu0 %v5129
        %5638 = vmatprep.subr.bf16.mxu0 %v5142
        %5639 = vmatpush1.bf16.msra.mxu0 %v5141
        %5640 = vmatprep.subr.bf16.mxu0 %v5154
        %5641 = vmatpush1.bf16.msra.mxu0 %v5153
        %5642 = vmatprep.subr.bf16.mxu0 %v5166
        %5643 = vmatpush1.bf16.msra.mxu0 %v5165
        %5644 = vmatprep.subr.bf16.mxu0 %v5178
        %5645 = vmatpush1.bf16.msra.mxu0 %v5177
        %5646 = vmatprep.subr.bf16.mxu0 %v5190
        %5647 = vmatpush1.bf16.msra.mxu0 %v5189
        %5648 = vmatprep.subr.bf16.mxu0 %v5202
        %5649 = vmatpush1.bf16.msra.mxu0 %v5201
        %5650 = vmatprep.mubr.bf16.mxu0 %v4424
        %5651 = vmatmul.mubr.bf16.gmra.mrb[0].mxu0 %v4423
        %v5652 = vpop.f32.mrb[0].mxu0
        %v5653 = vadd.f32 0.0, %v5652
        %v5654 = vpop.f32.mrb[0].mxu0
        %v5655 = vadd.f32 0.0, %v5654
        %v5656 = vpop.f32.mrb[0].mxu0
        %v5657 = vadd.f32 0.0, %v5656
        %v5658 = vpop.f32.mrb[0].mxu0
        %v5659 = vadd.f32 0.0, %v5658
        %5660 = vmatprep.mubr.bf16.mxu0 %v4426
        %5661 = vmatmul.mubr.bf16.gmra.mrb[0].mxu0 %v4425
        %v5662 = vpop.f32.mrb[0].mxu0
        %v5663 = vadd.f32 0.0, %v5662
        %v5664 = vpop.f32.mrb[0].mxu0
        %v5665 = vadd.f32 0.0, %v5664
        %v5666 = vpop.f32.mrb[0].mxu0
        %v5667 = vadd.f32 0.0, %v5666
        %v5668 = vpop.f32.mrb[0].mxu0
        %v5669 = vadd.f32 0.0, %v5668
        %5670 = vmatprep.mubr.bf16.mxu0 %v4428
        %5671 = vmatmul.mubr.bf16.gmra.mrb[0].mxu0 %v4427
        %v5672 = vpop.f32.mrb[0].mxu0
        %v5673 = vadd.f32 0.0, %v5672
        %v5674 = vpop.f32.mrb[0].mxu0
        %v5675 = vadd.f32 0.0, %v5674
        %v5676 = vpop.f32.mrb[0].mxu0
        %v5677 = vadd.f32 0.0, %v5676
        %v5678 = vpop.f32.mrb[0].mxu0
        %v5679 = vadd.f32 0.0, %v5678
        %5680 = vmatprep.mubr.bf16.mxu0 %v4430
        %5681 = vmatmul.mubr.bf16.gmra.mrb[0].mxu0 %v4429
        %v5682 = vpop.f32.mrb[0].mxu0
        %v5683 = vadd.f32 0.0, %v5682
        %v5684 = vpop.f32.mrb[0].mxu0
        %v5685 = vadd.f32 0.0, %v5684
        %v5686 = vpop.f32.mrb[0].mxu0
        %v5687 = vadd.f32 0.0, %v5686
        %v5688 = vpop.f32.mrb[0].mxu0
        %v5689 = vadd.f32 0.0, %v5688
        %5690 = vdwg.mxu0
        %5691 = vmatprep.subr.bf16.mxu0 %v5024
        %5692 = vmatpush1.bf16.msra.mxu0 %v5023
        %5693 = vmatprep.subr.bf16.mxu0 %v5036
        %5694 = vmatpush1.bf16.msra.mxu0 %v5035
        %5695 = vmatprep.subr.bf16.mxu0 %v5048
        %5696 = vmatpush1.bf16.msra.mxu0 %v5047
        %5697 = vmatprep.subr.bf16.mxu0 %v5060
        %5698 = vmatpush1.bf16.msra.mxu0 %v5059
        %5699 = vmatprep.subr.bf16.mxu0 %v5072
        %5700 = vmatpush1.bf16.msra.mxu0 %v5071
        %5701 = vmatprep.subr.bf16.mxu0 %v5084
        %5702 = vmatpush1.bf16.msra.mxu0 %v5083
        %5703 = vmatprep.subr.bf16.mxu0 %v5096
        %5704 = vmatpush1.bf16.msra.mxu0 %v5095
        %5705 = vmatprep.subr.bf16.mxu0 %v5108
        %5706 = vmatpush1.bf16.msra.mxu0 %v5107
        %5707 = vmatprep.subr.bf16.mxu0 %v5120
        %5708 = vmatpush1.bf16.msra.mxu0 %v5119
        %5709 = vmatprep.subr.bf16.mxu0 %v5132
        %5710 = vmatpush1.bf16.msra.mxu0 %v5131
        %5711 = vmatprep.subr.bf16.mxu0 %v5144
        %5712 = vmatpush1.bf16.msra.mxu0 %v5143
        %5713 = vmatprep.subr.bf16.mxu0 %v5156
        %5714 = vmatpush1.bf16.msra.mxu0 %v5155
        %5715 = vmatprep.subr.bf16.mxu0 %v5168
        %5716 = vmatpush1.bf16.msra.mxu0 %v5167
        %5717 = vmatprep.subr.bf16.mxu0 %v5180
        %5718 = vmatpush1.bf16.msra.mxu0 %v5179
        %5719 = vmatprep.subr.bf16.mxu0 %v5192
        %5720 = vmatpush1.bf16.msra.mxu0 %v5191
        %5721 = vmatprep.subr.bf16.mxu0 %v5204
        %5722 = vmatpush1.bf16.msra.mxu0 %v5203
        %5723 = vmatprep.mubr.bf16.mxu0 %v4424
        %5724 = vmatmul.mubr.bf16.gmra.mrb[0].mxu0 %v4423
        %v5725 = vpop.f32.mrb[0].mxu0
        %v5726 = vadd.f32 0.0, %v5725
        %v5727 = vpop.f32.mrb[0].mxu0
        %v5728 = vadd.f32 0.0, %v5727
        %v5729 = vpop.f32.mrb[0].mxu0
        %v5730 = vadd.f32 0.0, %v5729
        %v5731 = vpop.f32.mrb[0].mxu0
        %v5732 = vadd.f32 0.0, %v5731
        %5733 = vmatprep.mubr.bf16.mxu0 %v4426
        %5734 = vmatmul.mubr.bf16.gmra.mrb[0].mxu0 %v4425
        %v5735 = vpop.f32.mrb[0].mxu0
        %v5736 = vadd.f32 0.0, %v5735
        %v5737 = vpop.f32.mrb[0].mxu0
        %v5738 = vadd.f32 0.0, %v5737
        %v5739 = vpop.f32.mrb[0].mxu0
        %v5740 = vadd.f32 0.0, %v5739
        %v5741 = vpop.f32.mrb[0].mxu0
        %v5742 = vadd.f32 0.0, %v5741
        %5743 = vmatprep.mubr.bf16.mxu0 %v4428
        %5744 = vmatmul.mubr.bf16.gmra.mrb[0].mxu0 %v4427
        %v5745 = vpop.f32.mrb[0].mxu0
        %v5746 = vadd.f32 0.0, %v5745
        %v5747 = vpop.f32.mrb[0].mxu0
        %v5748 = vadd.f32 0.0, %v5747
        %v5749 = vpop.f32.mrb[0].mxu0
        %v5750 = vadd.f32 0.0, %v5749
        %v5751 = vpop.f32.mrb[0].mxu0
        %v5752 = vadd.f32 0.0, %v5751
        %5753 = vmatprep.mubr.bf16.mxu0 %v4430
        %5754 = vmatmul.mubr.bf16.gmra.mrb[0].mxu0 %v4429
        %v5755 = vpop.f32.mrb[0].mxu0
        %v5756 = vadd.f32 0.0, %v5755
        %v5757 = vpop.f32.mrb[0].mxu0
        %v5758 = vadd.f32 0.0, %v5757
        %v5759 = vpop.f32.mrb[0].mxu0
        %v5760 = vadd.f32 0.0, %v5759
        %v5761 = vpop.f32.mrb[0].mxu0
        %v5762 = vadd.f32 0.0, %v5761
        %5763 = vdwg.mxu0
        %5764 = vmatprep.subr.bf16.mxu0 %v5026
        %5765 = vmatpush1.bf16.msra.mxu0 %v5025
        %5766 = vmatprep.subr.bf16.mxu0 %v5038
        %5767 = vmatpush1.bf16.msra.mxu0 %v5037
        %5768 = vmatprep.subr.bf16.mxu0 %v5050
        %5769 = vmatpush1.bf16.msra.mxu0 %v5049
        %5770 = vmatprep.subr.bf16.mxu0 %v5062
        %5771 = vmatpush1.bf16.msra.mxu0 %v5061
        %5772 = vmatprep.subr.bf16.mxu0 %v5074
        %5773 = vmatpush1.bf16.msra.mxu0 %v5073
        %5774 = vmatprep.subr.bf16.mxu0 %v5086
        %5775 = vmatpush1.bf16.msra.mxu0 %v5085
        %5776 = vmatprep.subr.bf16.mxu0 %v5098
        %5777 = vmatpush1.bf16.msra.mxu0 %v5097
        %5778 = vmatprep.subr.bf16.mxu0 %v5110
        %5779 = vmatpush1.bf16.msra.mxu0 %v5109
        %5780 = vmatprep.subr.bf16.mxu0 %v5122
        %5781 = vmatpush1.bf16.msra.mxu0 %v5121
        %5782 = vmatprep.subr.bf16.mxu0 %v5134
        %5783 = vmatpush1.bf16.msra.mxu0 %v5133
        %5784 = vmatprep.subr.bf16.mxu0 %v5146
        %5785 = vmatpush1.bf16.msra.mxu0 %v5145
        %5786 = vmatprep.subr.bf16.mxu0 %v5158
        %5787 = vmatpush1.bf16.msra.mxu0 %v5157
        %5788 = vmatprep.subr.bf16.mxu0 %v5170
        %5789 = vmatpush1.bf16.msra.mxu0 %v5169
        %5790 = vmatprep.subr.bf16.mxu0 %v5182
        %5791 = vmatpush1.bf16.msra.mxu0 %v5181
        %5792 = vmatprep.subr.bf16.mxu0 %v5194
        %5793 = vmatpush1.bf16.msra.mxu0 %v5193
        %5794 = vmatprep.subr.bf16.mxu0 %v5206
        %5795 = vmatpush1.bf16.msra.mxu0 %v5205
        %5796 = vmatprep.mubr.bf16.mxu0 %v4424
        %5797 = vmatmul.mubr.bf16.gmra.mrb[0].mxu0 %v4423
        %v5798 = vpop.f32.mrb[0].mxu0
        %v5799 = vadd.f32 0.0, %v5798
        %v5800 = vpop.f32.mrb[0].mxu0
        %v5801 = vadd.f32 0.0, %v5800
        %v5802 = vpop.f32.mrb[0].mxu0
        %v5803 = vadd.f32 0.0, %v5802
        %v5804 = vpop.f32.mrb[0].mxu0
        %v5805 = vadd.f32 0.0, %v5804
        %5806 = vmatprep.mubr.bf16.mxu0 %v4426
        %5807 = vmatmul.mubr.bf16.gmra.mrb[0].mxu0 %v4425
        %v5808 = vpop.f32.mrb[0].mxu0
        %v5809 = vadd.f32 0.0, %v5808
        %v5810 = vpop.f32.mrb[0].mxu0
        %v5811 = vadd.f32 0.0, %v5810
        %v5812 = vpop.f32.mrb[0].mxu0
        %v5813 = vadd.f32 0.0, %v5812
        %v5814 = vpop.f32.mrb[0].mxu0
        %v5815 = vadd.f32 0.0, %v5814
        %5816 = vmatprep.mubr.bf16.mxu0 %v4428
        %5817 = vmatmul.mubr.bf16.gmra.mrb[0].mxu0 %v4427
        %v5818 = vpop.f32.mrb[0].mxu0
        %v5819 = vadd.f32 0.0, %v5818
        %v5820 = vpop.f32.mrb[0].mxu0
        %v5821 = vadd.f32 0.0, %v5820
        %v5822 = vpop.f32.mrb[0].mxu0
        %v5823 = vadd.f32 0.0, %v5822
        %v5824 = vpop.f32.mrb[0].mxu0
        %v5825 = vadd.f32 0.0, %v5824
        %5826 = vmatprep.mubr.bf16.mxu0 %v4430
        %5827 = vmatmul.mubr.bf16.gmra.mrb[0].mxu0 %v4429
        %v5828 = vpop.f32.mrb[0].mxu0
        %v5829 = vadd.f32 0.0, %v5828
        %v5830 = vpop.f32.mrb[0].mxu0
        %v5831 = vadd.f32 0.0, %v5830
        %v5832 = vpop.f32.mrb[0].mxu0
        %v5833 = vadd.f32 0.0, %v5832
        %v5834 = vpop.f32.mrb[0].mxu0
        %v5835 = vadd.f32 0.0, %v5834
        %5836 = vdwg.mxu0
        %v5837 = vld [vmem:[#allocation3] sm:$0xff]
        %v5838 = vld [vmem:[#allocation3 + $0x8] sm:$0xff]
        %v5839 = vld [vmem:[#allocation3 + $0x10] sm:$0xff]
        %v5840 = vld [vmem:[#allocation3 + $0x18] sm:$0xff]
        %v5841 = vld [vmem:[#allocation3 + $0x20] sm:$0xff]
        %v5842 = vld [vmem:[#allocation3 + $0x28] sm:$0xff]
        %v5843 = vld [vmem:[#allocation3 + $0x30] sm:$0xff]
        %v5844 = vld [vmem:[#allocation3 + $0x38] sm:$0xff]
        %v5853 = vunpack.c.l.b16 %v5837
        %v5854 = vunpack.c.h.b16 %v5837
        %v5855 = vunpack.c.l.b16 %v5838
        %v5856 = vunpack.c.h.b16 %v5838
        %v5857 = vunpack.c.l.b16 %v5839
        %v5858 = vunpack.c.h.b16 %v5839
        %v5859 = vunpack.c.l.b16 %v5840
        %v5860 = vunpack.c.h.b16 %v5840
        %v5861 = vunpack.c.l.b16 %v5841
        %v5862 = vunpack.c.h.b16 %v5841
        %v5863 = vunpack.c.l.b16 %v5842
        %v5864 = vunpack.c.h.b16 %v5842
        %v5865 = vunpack.c.l.b16 %v5843
        %v5866 = vunpack.c.h.b16 %v5843
        %v5867 = vunpack.c.l.b16 %v5844
        %v5868 = vunpack.c.h.b16 %v5844
        %v5869 = vpack.c.b16 %v5855, %v5853
        %v5870 = vpack.c.b16 %v5856, %v5854
        %v5871 = vpack.c.b16 %v5859, %v5857
        %v5872 = vpack.c.b16 %v5860, %v5858
        %v5873 = vpack.c.b16 %v5863, %v5861
        %v5874 = vpack.c.b16 %v5864, %v5862
        %v5875 = vpack.c.b16 %v5867, %v5865
        %v5876 = vpack.c.b16 %v5868, %v5866
        %5885 = vmatprep.subr.bf16.mxu0 %v5016
        %5886 = vmatpush1.bf16.msra.mxu0 %v5015
        %5887 = vmatprep.subr.bf16.mxu0 %v5028
        %5888 = vmatpush1.bf16.msra.mxu0 %v5027
        %5889 = vmatprep.subr.bf16.mxu0 %v5040
        %5890 = vmatpush1.bf16.msra.mxu0 %v5039
        %5891 = vmatprep.subr.bf16.mxu0 %v5052
        %5892 = vmatpush1.bf16.msra.mxu0 %v5051
        %5893 = vmatprep.subr.bf16.mxu0 %v5064
        %5894 = vmatpush1.bf16.msra.mxu0 %v5063
        %5895 = vmatprep.subr.bf16.mxu0 %v5076
        %5896 = vmatpush1.bf16.msra.mxu0 %v5075
        %5897 = vmatprep.subr.bf16.mxu0 %v5088
        %5898 = vmatpush1.bf16.msra.mxu0 %v5087
        %5899 = vmatprep.subr.bf16.mxu0 %v5100
        %5900 = vmatpush1.bf16.msra.mxu0 %v5099
        %5901 = vmatprep.subr.bf16.mxu0 %v5112
        %5902 = vmatpush1.bf16.msra.mxu0 %v5111
        %5903 = vmatprep.subr.bf16.mxu0 %v5124
        %5904 = vmatpush1.bf16.msra.mxu0 %v5123
        %5905 = vmatprep.subr.bf16.mxu0 %v5136
        %5906 = vmatpush1.bf16.msra.mxu0 %v5135
        %5907 = vmatprep.subr.bf16.mxu0 %v5148
        %5908 = vmatpush1.bf16.msra.mxu0 %v5147
        %5909 = vmatprep.subr.bf16.mxu0 %v5160
        %5910 = vmatpush1.bf16.msra.mxu0 %v5159
        %5911 = vmatprep.subr.bf16.mxu0 %v5172
        %5912 = vmatpush1.bf16.msra.mxu0 %v5171
        %5913 = vmatprep.subr.bf16.mxu0 %v5184
        %5914 = vmatpush1.bf16.msra.mxu0 %v5183
        %5915 = vmatprep.subr.bf16.mxu0 %v5196
        %5916 = vmatpush1.bf16.msra.mxu0 %v5195
        %5917 = vmatprep.mubr.bf16.mxu0 %v5870
        %5918 = vmatmul.mubr.bf16.gmra.mrb[0].mxu0 %v5869
        %v5919 = vpop.f32.mrb[0].mxu0
        %v5920 = vadd.f32 0.0, %v5919
        %v5921 = vpop.f32.mrb[0].mxu0
        %v5922 = vadd.f32 0.0, %v5921
        %v5923 = vpop.f32.mrb[0].mxu0
        %v5924 = vadd.f32 0.0, %v5923
        %v5925 = vpop.f32.mrb[0].mxu0
        %v5926 = vadd.f32 0.0, %v5925
        %5927 = vmatprep.mubr.bf16.mxu0 %v5872
        %5928 = vmatmul.mubr.bf16.gmra.mrb[0].mxu0 %v5871
        %v5929 = vpop.f32.mrb[0].mxu0
        %v5930 = vadd.f32 0.0, %v5929
        %v5931 = vpop.f32.mrb[0].mxu0
        %v5932 = vadd.f32 0.0, %v5931
        %v5933 = vpop.f32.mrb[0].mxu0
        %v5934 = vadd.f32 0.0, %v5933
        %v5935 = vpop.f32.mrb[0].mxu0
        %v5936 = vadd.f32 0.0, %v5935
        %5937 = vmatprep.mubr.bf16.mxu0 %v5874
        %5938 = vmatmul.mubr.bf16.gmra.mrb[0].mxu0 %v5873
        %v5939 = vpop.f32.mrb[0].mxu0
        %v5940 = vadd.f32 0.0, %v5939
        %v5941 = vpop.f32.mrb[0].mxu0
        %v5942 = vadd.f32 0.0, %v5941
        %v5943 = vpop.f32.mrb[0].mxu0
        %v5944 = vadd.f32 0.0, %v5943
        %v5945 = vpop.f32.mrb[0].mxu0
        %v5946 = vadd.f32 0.0, %v5945
        %5947 = vmatprep.mubr.bf16.mxu0 %v5876
        %5948 = vmatmul.mubr.bf16.gmra.mrb[0].mxu0 %v5875
        %v5949 = vpop.f32.mrb[0].mxu0
        %v5950 = vadd.f32 0.0, %v5949
        %v5951 = vpop.f32.mrb[0].mxu0
        %v5952 = vadd.f32 0.0, %v5951
        %v5953 = vpop.f32.mrb[0].mxu0
        %v5954 = vadd.f32 0.0, %v5953
        %v5955 = vpop.f32.mrb[0].mxu0
        %v5956 = vadd.f32 0.0, %v5955
        %5957 = vdwg.mxu0
        %5958 = vmatprep.subr.bf16.mxu0 %v5018
        %5959 = vmatpush1.bf16.msra.mxu0 %v5017
        %5960 = vmatprep.subr.bf16.mxu0 %v5030
        %5961 = vmatpush1.bf16.msra.mxu0 %v5029
        %5962 = vmatprep.subr.bf16.mxu0 %v5042
        %5963 = vmatpush1.bf16.msra.mxu0 %v5041
        %5964 = vmatprep.subr.bf16.mxu0 %v5054
        %5965 = vmatpush1.bf16.msra.mxu0 %v5053
        %5966 = vmatprep.subr.bf16.mxu0 %v5066
        %5967 = vmatpush1.bf16.msra.mxu0 %v5065
        %5968 = vmatprep.subr.bf16.mxu0 %v5078
        %5969 = vmatpush1.bf16.msra.mxu0 %v5077
        %5970 = vmatprep.subr.bf16.mxu0 %v5090
        %5971 = vmatpush1.bf16.msra.mxu0 %v5089
        %5972 = vmatprep.subr.bf16.mxu0 %v5102
        %5973 = vmatpush1.bf16.msra.mxu0 %v5101
        %5974 = vmatprep.subr.bf16.mxu0 %v5114
        %5975 = vmatpush1.bf16.msra.mxu0 %v5113
        %5976 = vmatprep.subr.bf16.mxu0 %v5126
        %5977 = vmatpush1.bf16.msra.mxu0 %v5125
        %5978 = vmatprep.subr.bf16.mxu0 %v5138
        %5979 = vmatpush1.bf16.msra.mxu0 %v5137
        %5980 = vmatprep.subr.bf16.mxu0 %v5150
        %5981 = vmatpush1.bf16.msra.mxu0 %v5149
        %5982 = vmatprep.subr.bf16.mxu0 %v5162
        %5983 = vmatpush1.bf16.msra.mxu0 %v5161
        %5984 = vmatprep.subr.bf16.mxu0 %v5174
        %5985 = vmatpush1.bf16.msra.mxu0 %v5173
        %5986 = vmatprep.subr.bf16.mxu0 %v5186
        %5987 = vmatpush1.bf16.msra.mxu0 %v5185
        %5988 = vmatprep.subr.bf16.mxu0 %v5198
        %5989 = vmatpush1.bf16.msra.mxu0 %v5197
        %5990 = vmatprep.mubr.bf16.mxu0 %v5870
        %5991 = vmatmul.mubr.bf16.gmra.mrb[0].mxu0 %v5869
        %v5992 = vpop.f32.mrb[0].mxu0
        %v5993 = vadd.f32 0.0, %v5992
        %v5994 = vpop.f32.mrb[0].mxu0
        %v5995 = vadd.f32 0.0, %v5994
        %v5996 = vpop.f32.mrb[0].mxu0
        %v5997 = vadd.f32 0.0, %v5996
        %v5998 = vpop.f32.mrb[0].mxu0
        %v5999 = vadd.f32 0.0, %v5998
        %6000 = vmatprep.mubr.bf16.mxu0 %v5872
        %6001 = vmatmul.mubr.bf16.gmra.mrb[0].mxu0 %v5871
        %v6002 = vpop.f32.mrb[0].mxu0
        %v6003 = vadd.f32 0.0, %v6002
        %v6004 = vpop.f32.mrb[0].mxu0
        %v6005 = vadd.f32 0.0, %v6004
        %v6006 = vpop.f32.mrb[0].mxu0
        %v6007 = vadd.f32 0.0, %v6006
        %v6008 = vpop.f32.mrb[0].mxu0
        %v6009 = vadd.f32 0.0, %v6008
        %6010 = vmatprep.mubr.bf16.mxu0 %v5874
        %6011 = vmatmul.mubr.bf16.gmra.mrb[0].mxu0 %v5873
        %v6012 = vpop.f32.mrb[0].mxu0
        %v6013 = vadd.f32 0.0, %v6012
        %v6014 = vpop.f32.mrb[0].mxu0
        %v6015 = vadd.f32 0.0, %v6014
        %v6016 = vpop.f32.mrb[0].mxu0
        %v6017 = vadd.f32 0.0, %v6016
        %v6018 = vpop.f32.mrb[0].mxu0
        %v6019 = vadd.f32 0.0, %v6018
        %6020 = vmatprep.mubr.bf16.mxu0 %v5876
        %6021 = vmatmul.mubr.bf16.gmra.mrb[0].mxu0 %v5875
        %v6022 = vpop.f32.mrb[0].mxu0
        %v6023 = vadd.f32 0.0, %v6022
        %v6024 = vpop.f32.mrb[0].mxu0
        %v6025 = vadd.f32 0.0, %v6024
        %v6026 = vpop.f32.mrb[0].mxu0
        %v6027 = vadd.f32 0.0, %v6026
        %v6028 = vpop.f32.mrb[0].mxu0
        %v6029 = vadd.f32 0.0, %v6028
        %6030 = vdwg.mxu0
        %6031 = vmatprep.subr.bf16.mxu0 %v5020
        %6032 = vmatpush1.bf16.msra.mxu0 %v5019
        %6033 = vmatprep.subr.bf16.mxu0 %v5032
        %6034 = vmatpush1.bf16.msra.mxu0 %v5031
        %6035 = vmatprep.subr.bf16.mxu0 %v5044
        %6036 = vmatpush1.bf16.msra.mxu0 %v5043
        %6037 = vmatprep.subr.bf16.mxu0 %v5056
        %6038 = vmatpush1.bf16.msra.mxu0 %v5055
        %6039 = vmatprep.subr.bf16.mxu0 %v5068
        %6040 = vmatpush1.bf16.msra.mxu0 %v5067
        %6041 = vmatprep.subr.bf16.mxu0 %v5080
        %6042 = vmatpush1.bf16.msra.mxu0 %v5079
        %6043 = vmatprep.subr.bf16.mxu0 %v5092
        %6044 = vmatpush1.bf16.msra.mxu0 %v5091
        %6045 = vmatprep.subr.bf16.mxu0 %v5104
        %6046 = vmatpush1.bf16.msra.mxu0 %v5103
        %6047 = vmatprep.subr.bf16.mxu0 %v5116
        %6048 = vmatpush1.bf16.msra.mxu0 %v5115
        %6049 = vmatprep.subr.bf16.mxu0 %v5128
        %6050 = vmatpush1.bf16.msra.mxu0 %v5127
        %6051 = vmatprep.subr.bf16.mxu0 %v5140
        %6052 = vmatpush1.bf16.msra.mxu0 %v5139
        %6053 = vmatprep.subr.bf16.mxu0 %v5152
        %6054 = vmatpush1.bf16.msra.mxu0 %v5151
        %6055 = vmatprep.subr.bf16.mxu0 %v5164
        %6056 = vmatpush1.bf16.msra.mxu0 %v5163
        %6057 = vmatprep.subr.bf16.mxu0 %v5176
        %6058 = vmatpush1.bf16.msra.mxu0 %v5175
        %6059 = vmatprep.subr.bf16.mxu0 %v5188
        %6060 = vmatpush1.bf16.msra.mxu0 %v5187
        %6061 = vmatprep.subr.bf16.mxu0 %v5200
        %6062 = vmatpush1.bf16.msra.mxu0 %v5199
        %6063 = vmatprep.mubr.bf16.mxu0 %v5870
        %6064 = vmatmul.mubr.bf16.gmra.mrb[0].mxu0 %v5869
        %v6065 = vpop.f32.mrb[0].mxu0
        %v6066 = vadd.f32 0.0, %v6065
        %v6067 = vpop.f32.mrb[0].mxu0
        %v6068 = vadd.f32 0.0, %v6067
        %v6069 = vpop.f32.mrb[0].mxu0
        %v6070 = vadd.f32 0.0, %v6069
        %v6071 = vpop.f32.mrb[0].mxu0
        %v6072 = vadd.f32 0.0, %v6071
        %6073 = vmatprep.mubr.bf16.mxu0 %v5872
        %6074 = vmatmul.mubr.bf16.gmra.mrb[0].mxu0 %v5871
        %v6075 = vpop.f32.mrb[0].mxu0
        %v6076 = vadd.f32 0.0, %v6075
        %v6077 = vpop.f32.mrb[0].mxu0
        %v6078 = vadd.f32 0.0, %v6077
        %v6079 = vpop.f32.mrb[0].mxu0
        %v6080 = vadd.f32 0.0, %v6079
        %v6081 = vpop.f32.mrb[0].mxu0
        %v6082 = vadd.f32 0.0, %v6081
        %6083 = vmatprep.mubr.bf16.mxu0 %v5874
        %6084 = vmatmul.mubr.bf16.gmra.mrb[0].mxu0 %v5873
        %v6085 = vpop.f32.mrb[0].mxu0
        %v6086 = vadd.f32 0.0, %v6085
        %v6087 = vpop.f32.mrb[0].mxu0
        %v6088 = vadd.f32 0.0, %v6087
        %v6089 = vpop.f32.mrb[0].mxu0
        %v6090 = vadd.f32 0.0, %v6089
        %v6091 = vpop.f32.mrb[0].mxu0
        %v6092 = vadd.f32 0.0, %v6091
        %6093 = vmatprep.mubr.bf16.mxu0 %v5876
        %6094 = vmatmul.mubr.bf16.gmra.mrb[0].mxu0 %v5875
        %v6095 = vpop.f32.mrb[0].mxu0
        %v6096 = vadd.f32 0.0, %v6095
        %v6097 = vpop.f32.mrb[0].mxu0
        %v6098 = vadd.f32 0.0, %v6097
        %v6099 = vpop.f32.mrb[0].mxu0
        %v6100 = vadd.f32 0.0, %v6099
        %v6101 = vpop.f32.mrb[0].mxu0
        %v6102 = vadd.f32 0.0, %v6101
        %6103 = vdwg.mxu0
        %6104 = vmatprep.subr.bf16.mxu0 %v5022
        %6105 = vmatpush1.bf16.msra.mxu0 %v5021
        %6106 = vmatprep.subr.bf16.mxu0 %v5034
        %6107 = vmatpush1.bf16.msra.mxu0 %v5033
        %6108 = vmatprep.subr.bf16.mxu0 %v5046
        %6109 = vmatpush1.bf16.msra.mxu0 %v5045
        %6110 = vmatprep.subr.bf16.mxu0 %v5058
        %6111 = vmatpush1.bf16.msra.mxu0 %v5057
        %6112 = vmatprep.subr.bf16.mxu0 %v5070
        %6113 = vmatpush1.bf16.msra.mxu0 %v5069
        %6114 = vmatprep.subr.bf16.mxu0 %v5082
        %6115 = vmatpush1.bf16.msra.mxu0 %v5081
        %6116 = vmatprep.subr.bf16.mxu0 %v5094
        %6117 = vmatpush1.bf16.msra.mxu0 %v5093
        %6118 = vmatprep.subr.bf16.mxu0 %v5106
        %6119 = vmatpush1.bf16.msra.mxu0 %v5105
        %6120 = vmatprep.subr.bf16.mxu0 %v5118
        %6121 = vmatpush1.bf16.msra.mxu0 %v5117
        %6122 = vmatprep.subr.bf16.mxu0 %v5130
        %6123 = vmatpush1.bf16.msra.mxu0 %v5129
        %6124 = vmatprep.subr.bf16.mxu0 %v5142
        %6125 = vmatpush1.bf16.msra.mxu0 %v5141
        %6126 = vmatprep.subr.bf16.mxu0 %v5154
        %6127 = vmatpush1.bf16.msra.mxu0 %v5153
        %6128 = vmatprep.subr.bf16.mxu0 %v5166
        %6129 = vmatpush1.bf16.msra.mxu0 %v5165
        %6130 = vmatprep.subr.bf16.mxu0 %v5178
        %6131 = vmatpush1.bf16.msra.mxu0 %v5177
        %6132 = vmatprep.subr.bf16.mxu0 %v5190
        %6133 = vmatpush1.bf16.msra.mxu0 %v5189
        %6134 = vmatprep.subr.bf16.mxu0 %v5202
        %6135 = vmatpush1.bf16.msra.mxu0 %v5201
        %6136 = vmatprep.mubr.bf16.mxu0 %v5870
        %6137 = vmatmul.mubr.bf16.gmra.mrb[0].mxu0 %v5869
        %v6138 = vpop.f32.mrb[0].mxu0
        %v6139 = vadd.f32 0.0, %v6138
        %v6140 = vpop.f32.mrb[0].mxu0
        %v6141 = vadd.f32 0.0, %v6140
        %v6142 = vpop.f32.mrb[0].mxu0
        %v6143 = vadd.f32 0.0, %v6142
        %v6144 = vpop.f32.mrb[0].mxu0
        %v6145 = vadd.f32 0.0, %v6144
        %6146 = vmatprep.mubr.bf16.mxu0 %v5872
        %6147 = vmatmul.mubr.bf16.gmra.mrb[0].mxu0 %v5871
        %v6148 = vpop.f32.mrb[0].mxu0
        %v6149 = vadd.f32 0.0, %v6148
        %v6150 = vpop.f32.mrb[0].mxu0
        %v6151 = vadd.f32 0.0, %v6150
        %v6152 = vpop.f32.mrb[0].mxu0
        %v6153 = vadd.f32 0.0, %v6152
        %v6154 = vpop.f32.mrb[0].mxu0
        %v6155 = vadd.f32 0.0, %v6154
        %6156 = vmatprep.mubr.bf16.mxu0 %v5874
        %6157 = vmatmul.mubr.bf16.gmra.mrb[0].mxu0 %v5873
        %v6158 = vpop.f32.mrb[0].mxu0
        %v6159 = vadd.f32 0.0, %v6158
        %v6160 = vpop.f32.mrb[0].mxu0
        %v6161 = vadd.f32 0.0, %v6160
        %v6162 = vpop.f32.mrb[0].mxu0
        %v6163 = vadd.f32 0.0, %v6162
        %v6164 = vpop.f32.mrb[0].mxu0
        %v6165 = vadd.f32 0.0, %v6164
        %6166 = vmatprep.mubr.bf16.mxu0 %v5876
        %6167 = vmatmul.mubr.bf16.gmra.mrb[0].mxu0 %v5875
        %v6168 = vpop.f32.mrb[0].mxu0
        %v6169 = vadd.f32 0.0, %v6168
        %v6170 = vpop.f32.mrb[0].mxu0
        %v6171 = vadd.f32 0.0, %v6170
        %v6172 = vpop.f32.mrb[0].mxu0
        %v6173 = vadd.f32 0.0, %v6172
        %v6174 = vpop.f32.mrb[0].mxu0
        %v6175 = vadd.f32 0.0, %v6174
        %6176 = vdwg.mxu0
        %6177 = vmatprep.subr.bf16.mxu0 %v5024
        %6178 = vmatpush1.bf16.msra.mxu0 %v5023
        %6179 = vmatprep.subr.bf16.mxu0 %v5036
        %6180 = vmatpush1.bf16.msra.mxu0 %v5035
        %6181 = vmatprep.subr.bf16.mxu0 %v5048
        %6182 = vmatpush1.bf16.msra.mxu0 %v5047
        %6183 = vmatprep.subr.bf16.mxu0 %v5060
        %6184 = vmatpush1.bf16.msra.mxu0 %v5059
        %6185 = vmatprep.subr.bf16.mxu0 %v5072
        %6186 = vmatpush1.bf16.msra.mxu0 %v5071
        %6187 = vmatprep.subr.bf16.mxu0 %v5084
        %6188 = vmatpush1.bf16.msra.mxu0 %v5083
        %6189 = vmatprep.subr.bf16.mxu0 %v5096
        %6190 = vmatpush1.bf16.msra.mxu0 %v5095
        %6191 = vmatprep.subr.bf16.mxu0 %v5108
        %6192 = vmatpush1.bf16.msra.mxu0 %v5107
        %6193 = vmatprep.subr.bf16.mxu0 %v5120
        %6194 = vmatpush1.bf16.msra.mxu0 %v5119
        %6195 = vmatprep.subr.bf16.mxu0 %v5132
        %6196 = vmatpush1.bf16.msra.mxu0 %v5131
        %6197 = vmatprep.subr.bf16.mxu0 %v5144
        %6198 = vmatpush1.bf16.msra.mxu0 %v5143
        %6199 = vmatprep.subr.bf16.mxu0 %v5156
        %6200 = vmatpush1.bf16.msra.mxu0 %v5155
        %6201 = vmatprep.subr.bf16.mxu0 %v5168
        %6202 = vmatpush1.bf16.msra.mxu0 %v5167
        %6203 = vmatprep.subr.bf16.mxu0 %v5180
        %6204 = vmatpush1.bf16.msra.mxu0 %v5179
        %6205 = vmatprep.subr.bf16.mxu0 %v5192
        %6206 = vmatpush1.bf16.msra.mxu0 %v5191
        %6207 = vmatprep.subr.bf16.mxu0 %v5204
        %6208 = vmatpush1.bf16.msra.mxu0 %v5203
        %6209 = vmatprep.mubr.bf16.mxu0 %v5870
        %6210 = vmatmul.mubr.bf16.gmra.mrb[0].mxu0 %v5869
        %v6211 = vpop.f32.mrb[0].mxu0
        %v6212 = vadd.f32 0.0, %v6211
        %v6213 = vpop.f32.mrb[0].mxu0
        %v6214 = vadd.f32 0.0, %v6213
        %v6215 = vpop.f32.mrb[0].mxu0
        %v6216 = vadd.f32 0.0, %v6215
        %v6217 = vpop.f32.mrb[0].mxu0
        %v6218 = vadd.f32 0.0, %v6217
        %6219 = vmatprep.mubr.bf16.mxu0 %v5872
        %6220 = vmatmul.mubr.bf16.gmra.mrb[0].mxu0 %v5871
        %v6221 = vpop.f32.mrb[0].mxu0
        %v6222 = vadd.f32 0.0, %v6221
        %v6223 = vpop.f32.mrb[0].mxu0
        %v6224 = vadd.f32 0.0, %v6223
        %v6225 = vpop.f32.mrb[0].mxu0
        %v6226 = vadd.f32 0.0, %v6225
        %v6227 = vpop.f32.mrb[0].mxu0
        %v6228 = vadd.f32 0.0, %v6227
        %6229 = vmatprep.mubr.bf16.mxu0 %v5874
        %6230 = vmatmul.mubr.bf16.gmra.mrb[0].mxu0 %v5873
        %v6231 = vpop.f32.mrb[0].mxu0
        %v6232 = vadd.f32 0.0, %v6231
        %v6233 = vpop.f32.mrb[0].mxu0
        %v6234 = vadd.f32 0.0, %v6233
        %v6235 = vpop.f32.mrb[0].mxu0
        %v6236 = vadd.f32 0.0, %v6235
        %v6237 = vpop.f32.mrb[0].mxu0
        %v6238 = vadd.f32 0.0, %v6237
        %6239 = vmatprep.mubr.bf16.mxu0 %v5876
        %6240 = vmatmul.mubr.bf16.gmra.mrb[0].mxu0 %v5875
        %v6241 = vpop.f32.mrb[0].mxu0
        %v6242 = vadd.f32 0.0, %v6241
        %v6243 = vpop.f32.mrb[0].mxu0
        %v6244 = vadd.f32 0.0, %v6243
        %v6245 = vpop.f32.mrb[0].mxu0
        %v6246 = vadd.f32 0.0, %v6245
        %v6247 = vpop.f32.mrb[0].mxu0
        %v6248 = vadd.f32 0.0, %v6247
        %6249 = vdwg.mxu0
        %6250 = vmatprep.subr.bf16.mxu0 %v5026
        %6251 = vmatpush1.bf16.msra.mxu0 %v5025
        %6252 = vmatprep.subr.bf16.mxu0 %v5038
        %6253 = vmatpush1.bf16.msra.mxu0 %v5037
        %6254 = vmatprep.subr.bf16.mxu0 %v5050
        %6255 = vmatpush1.bf16.msra.mxu0 %v5049
        %6256 = vmatprep.subr.bf16.mxu0 %v5062
        %6257 = vmatpush1.bf16.msra.mxu0 %v5061
        %6258 = vmatprep.subr.bf16.mxu0 %v5074
        %6259 = vmatpush1.bf16.msra.mxu0 %v5073
        %6260 = vmatprep.subr.bf16.mxu0 %v5086
        %6261 = vmatpush1.bf16.msra.mxu0 %v5085
        %6262 = vmatprep.subr.bf16.mxu0 %v5098
        %6263 = vmatpush1.bf16.msra.mxu0 %v5097
        %6264 = vmatprep.subr.bf16.mxu0 %v5110
        %6265 = vmatpush1.bf16.msra.mxu0 %v5109
        %6266 = vmatprep.subr.bf16.mxu0 %v5122
        %6267 = vmatpush1.bf16.msra.mxu0 %v5121
        %6268 = vmatprep.subr.bf16.mxu0 %v5134
        %6269 = vmatpush1.bf16.msra.mxu0 %v5133
        %6270 = vmatprep.subr.bf16.mxu0 %v5146
        %6271 = vmatpush1.bf16.msra.mxu0 %v5145
        %6272 = vmatprep.subr.bf16.mxu0 %v5158
        %6273 = vmatpush1.bf16.msra.mxu0 %v5157
        %6274 = vmatprep.subr.bf16.mxu0 %v5170
        %6275 = vmatpush1.bf16.msra.mxu0 %v5169
        %6276 = vmatprep.subr.bf16.mxu0 %v5182
        %6277 = vmatpush1.bf16.msra.mxu0 %v5181
        %6278 = vmatprep.subr.bf16.mxu0 %v5194
        %6279 = vmatpush1.bf16.msra.mxu0 %v5193
        %6280 = vmatprep.subr.bf16.mxu0 %v5206
        %6281 = vmatpush1.bf16.msra.mxu0 %v5205
        %6282 = vmatprep.mubr.bf16.mxu0 %v5870
        %6283 = vmatmul.mubr.bf16.gmra.mrb[0].mxu0 %v5869
        %v6284 = vpop.f32.mrb[0].mxu0
        %v6285 = vadd.f32 0.0, %v6284
        %v6286 = vpop.f32.mrb[0].mxu0
        %v6287 = vadd.f32 0.0, %v6286
        %v6288 = vpop.f32.mrb[0].mxu0
        %v6289 = vadd.f32 0.0, %v6288
        %v6290 = vpop.f32.mrb[0].mxu0
        %v6291 = vadd.f32 0.0, %v6290
        %6292 = vmatprep.mubr.bf16.mxu0 %v5872
        %6293 = vmatmul.mubr.bf16.gmra.mrb[0].mxu0 %v5871
        %v6294 = vpop.f32.mrb[0].mxu0
        %v6295 = vadd.f32 0.0, %v6294
        %v6296 = vpop.f32.mrb[0].mxu0
        %v6297 = vadd.f32 0.0, %v6296
        %v6298 = vpop.f32.mrb[0].mxu0
        %v6299 = vadd.f32 0.0, %v6298
        %v6300 = vpop.f32.mrb[0].mxu0
        %v6301 = vadd.f32 0.0, %v6300
        %6302 = vmatprep.mubr.bf16.mxu0 %v5874
        %6303 = vmatmul.mubr.bf16.gmra.mrb[0].mxu0 %v5873
        %v6304 = vpop.f32.mrb[0].mxu0
        %v6305 = vadd.f32 0.0, %v6304
        %v6306 = vpop.f32.mrb[0].mxu0
        %v6307 = vadd.f32 0.0, %v6306
        %v6308 = vpop.f32.mrb[0].mxu0
        %v6309 = vadd.f32 0.0, %v6308
        %v6310 = vpop.f32.mrb[0].mxu0
        %v6311 = vadd.f32 0.0, %v6310
        %6312 = vmatprep.mubr.bf16.mxu0 %v5876
        %6313 = vmatmul.mubr.bf16.gmra.mrb[0].mxu0 %v5875
        %v6314 = vpop.f32.mrb[0].mxu0
        %v6315 = vadd.f32 0.0, %v6314
        %v6316 = vpop.f32.mrb[0].mxu0
        %v6317 = vadd.f32 0.0, %v6316
        %v6318 = vpop.f32.mrb[0].mxu0
        %v6319 = vadd.f32 0.0, %v6318
        %v6320 = vpop.f32.mrb[0].mxu0
        %v6321 = vadd.f32 0.0, %v6320
        %6322 = vdwg.mxu0
        %v6323 = vld [vmem:[%s5] sm:$0xf]
        %v6324 = vadd.f32 %v5434, %v6066
        %v6325 = vadd.f32 %v5436, %v6068
        %v6326 = vadd.f32 %v5507, %v6139
        %v6327 = vadd.f32 %v5509, %v6141
        %v6328 = vadd.f32 %v5438, %v6070
        %v6329 = vadd.f32 %v5440, %v6072
        %v6330 = vadd.f32 %v5511, %v6143
        %v6331 = vadd.f32 %v5513, %v6145
        %v6332 = vadd.f32 %v5444, %v6076
        %v6333 = vadd.f32 %v5446, %v6078
        %v6334 = vadd.f32 %v5517, %v6149
        %v6335 = vadd.f32 %v5519, %v6151
        %v6336 = vadd.f32 %v5448, %v6080
        %v6337 = vadd.f32 %v5450, %v6082
        %v6338 = vadd.f32 %v5521, %v6153
        %v6339 = vadd.f32 %v5523, %v6155
        %v6340 = vadd.f32 %v5454, %v6086
        %v6341 = vadd.f32 %v5456, %v6088
        %v6342 = vadd.f32 %v5527, %v6159
        %v6343 = vadd.f32 %v5529, %v6161
        %v6344 = vadd.f32 %v5458, %v6090
        %v6345 = vadd.f32 %v5460, %v6092
        %v6346 = vadd.f32 %v5531, %v6163
        %v6347 = vadd.f32 %v5533, %v6165
        %v6348 = vadd.f32 %v5464, %v6096
        %v6349 = vadd.f32 %v5466, %v6098
        %v6350 = vadd.f32 %v5537, %v6169
        %v6351 = vadd.f32 %v5539, %v6171
        %v6352 = vadd.f32 %v5468, %v6100
        %v6353 = vadd.f32 %v5470, %v6102
        %v6354 = vadd.f32 %v5541, %v6173
        %v6355 = vadd.f32 %v5543, %v6175
        %v6388 = vrot.slane %v5726, 1
        %v6389 = vrot.slane %v5728, 1
        %v6390 = vrot.slane %v5799, 1
        %v6391 = vrot.slane %v5801, 1
        %v6392 = vrot.slane %v5730, 1
        %v6393 = vrot.slane %v5732, 1
        %v6394 = vrot.slane %v5803, 1
        %v6395 = vrot.slane %v5805, 1
        %v6396 = vrot.slane %v5736, 1
        %v6397 = vrot.slane %v5738, 1
        %v6398 = vrot.slane %v5809, 1
        %v6399 = vrot.slane %v5811, 1
        %v6400 = vrot.slane %v5740, 1
        %v6401 = vrot.slane %v5742, 1
        %v6402 = vrot.slane %v5813, 1
        %v6403 = vrot.slane %v5815, 1
        %v6404 = vrot.slane %v5746, 1
        %v6405 = vrot.slane %v5748, 1
        %v6406 = vrot.slane %v5819, 1
        %v6407 = vrot.slane %v5821, 1
        %v6408 = vrot.slane %v5750, 1
        %v6409 = vrot.slane %v5752, 1
        %v6410 = vrot.slane %v5823, 1
        %v6411 = vrot.slane %v5825, 1
        %v6412 = vrot.slane %v5756, 1
        %v6413 = vrot.slane %v5758, 1
        %v6414 = vrot.slane %v5829, 1
        %v6415 = vrot.slane %v5831, 1
        %v6416 = vrot.slane %v5760, 1
        %v6417 = vrot.slane %v5762, 1
        %v6418 = vrot.slane %v5833, 1
        %v6419 = vrot.slane %v5835, 1
        %v6452 = vadd.f32 %v6324, %v6388
        %v6453 = vadd.f32 %v6325, %v6389
        %v6454 = vadd.f32 %v6326, %v6390
        %v6455 = vadd.f32 %v6327, %v6391
        %v6456 = vadd.f32 %v6328, %v6392
        %v6457 = vadd.f32 %v6329, %v6393
        %v6458 = vadd.f32 %v6330, %v6394
        %v6459 = vadd.f32 %v6331, %v6395
        %v6460 = vadd.f32 %v6332, %v6396
        %v6461 = vadd.f32 %v6333, %v6397
        %v6462 = vadd.f32 %v6334, %v6398
        %v6463 = vadd.f32 %v6335, %v6399
        %v6464 = vadd.f32 %v6336, %v6400
        %v6465 = vadd.f32 %v6337, %v6401
        %v6466 = vadd.f32 %v6338, %v6402
        %v6467 = vadd.f32 %v6339, %v6403
        %v6468 = vadd.f32 %v6340, %v6404
        %v6469 = vadd.f32 %v6341, %v6405
        %v6470 = vadd.f32 %v6342, %v6406
        %v6471 = vadd.f32 %v6343, %v6407
        %v6472 = vadd.f32 %v6344, %v6408
        %v6473 = vadd.f32 %v6345, %v6409
        %v6474 = vadd.f32 %v6346, %v6410
        %v6475 = vadd.f32 %v6347, %v6411
        %v6476 = vadd.f32 %v6348, %v6412
        %v6477 = vadd.f32 %v6349, %v6413
        %v6478 = vadd.f32 %v6350, %v6414
        %v6479 = vadd.f32 %v6351, %v6415
        %v6480 = vadd.f32 %v6352, %v6416
        %v6481 = vadd.f32 %v6353, %v6417
        %v6482 = vadd.f32 %v6354, %v6418
        %v6483 = vadd.f32 %v6355, %v6419
        %v6516 = vrot.slane %v5580, 1
        %v6517 = vrot.slane %v5582, 1
        %v6518 = vrot.slane %v5653, 1
        %v6519 = vrot.slane %v5655, 1
        %v6520 = vrot.slane %v5584, 1
        %v6521 = vrot.slane %v5586, 1
        %v6522 = vrot.slane %v5657, 1
        %v6523 = vrot.slane %v5659, 1
        %v6524 = vrot.slane %v5590, 1
        %v6525 = vrot.slane %v5592, 1
        %v6526 = vrot.slane %v5663, 1
        %v6527 = vrot.slane %v5665, 1
        %v6528 = vrot.slane %v5594, 1
        %v6529 = vrot.slane %v5596, 1
        %v6530 = vrot.slane %v5667, 1
        %v6531 = vrot.slane %v5669, 1
        %v6532 = vrot.slane %v5600, 1
        %v6533 = vrot.slane %v5602, 1
        %v6534 = vrot.slane %v5673, 1
        %v6535 = vrot.slane %v5675, 1
        %v6536 = vrot.slane %v5604, 1
        %v6537 = vrot.slane %v5606, 1
        %v6538 = vrot.slane %v5677, 1
        %v6539 = vrot.slane %v5679, 1
        %v6540 = vrot.slane %v5610, 1
        %v6541 = vrot.slane %v5612, 1
        %v6542 = vrot.slane %v5683, 1
        %v6543 = vrot.slane %v5685, 1
        %v6544 = vrot.slane %v5614, 1
        %v6545 = vrot.slane %v5616, 1
        %v6546 = vrot.slane %v5687, 1
        %v6547 = vrot.slane %v5689, 1
        %v6580 = vadd.f32 %v5920, %v6516
        %v6581 = vadd.f32 %v5922, %v6517
        %v6582 = vadd.f32 %v5993, %v6518
        %v6583 = vadd.f32 %v5995, %v6519
        %v6584 = vadd.f32 %v5924, %v6520
        %v6585 = vadd.f32 %v5926, %v6521
        %v6586 = vadd.f32 %v5997, %v6522
        %v6587 = vadd.f32 %v5999, %v6523
        %v6588 = vadd.f32 %v5930, %v6524
        %v6589 = vadd.f32 %v5932, %v6525
        %v6590 = vadd.f32 %v6003, %v6526
        %v6591 = vadd.f32 %v6005, %v6527
        %v6592 = vadd.f32 %v5934, %v6528
        %v6593 = vadd.f32 %v5936, %v6529
        %v6594 = vadd.f32 %v6007, %v6530
        %v6595 = vadd.f32 %v6009, %v6531
        %v6596 = vadd.f32 %v5940, %v6532
        %v6597 = vadd.f32 %v5942, %v6533
        %v6598 = vadd.f32 %v6013, %v6534
        %v6599 = vadd.f32 %v6015, %v6535
        %v6600 = vadd.f32 %v5944, %v6536
        %v6601 = vadd.f32 %v5946, %v6537
        %v6602 = vadd.f32 %v6017, %v6538
        %v6603 = vadd.f32 %v6019, %v6539
        %v6604 = vadd.f32 %v5950, %v6540
        %v6605 = vadd.f32 %v5952, %v6541
        %v6606 = vadd.f32 %v6023, %v6542
        %v6607 = vadd.f32 %v6025, %v6543
        %v6608 = vadd.f32 %v5954, %v6544
        %v6609 = vadd.f32 %v5956, %v6545
        %v6610 = vadd.f32 %v6027, %v6546
        %v6611 = vadd.f32 %v6029, %v6547
        %v6644 = vrot.slane %v6212, 1
        %v6645 = vrot.slane %v6214, 1
        %v6646 = vrot.slane %v6285, 1
        %v6647 = vrot.slane %v6287, 1
        %v6648 = vrot.slane %v6216, 1
        %v6649 = vrot.slane %v6218, 1
        %v6650 = vrot.slane %v6289, 1
        %v6651 = vrot.slane %v6291, 1
        %v6652 = vrot.slane %v6222, 1
        %v6653 = vrot.slane %v6224, 1
        %v6654 = vrot.slane %v6295, 1
        %v6655 = vrot.slane %v6297, 1
        %v6656 = vrot.slane %v6226, 1
        %v6657 = vrot.slane %v6228, 1
        %v6658 = vrot.slane %v6299, 1
        %v6659 = vrot.slane %v6301, 1
        %v6660 = vrot.slane %v6232, 1
        %v6661 = vrot.slane %v6234, 1
        %v6662 = vrot.slane %v6305, 1
        %v6663 = vrot.slane %v6307, 1
        %v6664 = vrot.slane %v6236, 1
        %v6665 = vrot.slane %v6238, 1
        %v6666 = vrot.slane %v6309, 1
        %v6667 = vrot.slane %v6311, 1
        %v6668 = vrot.slane %v6242, 1
        %v6669 = vrot.slane %v6244, 1
        %v6670 = vrot.slane %v6315, 1
        %v6671 = vrot.slane %v6317, 1
        %v6672 = vrot.slane %v6246, 1
        %v6673 = vrot.slane %v6248, 1
        %v6674 = vrot.slane %v6319, 1
        %v6675 = vrot.slane %v6321, 1
        %v6708 = vadd.f32 %v6580, %v6644
        %v6709 = vadd.f32 %v6581, %v6645
        %v6710 = vadd.f32 %v6582, %v6646
        %v6711 = vadd.f32 %v6583, %v6647
        %v6712 = vadd.f32 %v6584, %v6648
        %v6713 = vadd.f32 %v6585, %v6649
        %v6714 = vadd.f32 %v6586, %v6650
        %v6715 = vadd.f32 %v6587, %v6651
        %v6716 = vadd.f32 %v6588, %v6652
        %v6717 = vadd.f32 %v6589, %v6653
        %v6718 = vadd.f32 %v6590, %v6654
        %v6719 = vadd.f32 %v6591, %v6655
        %v6720 = vadd.f32 %v6592, %v6656
        %v6721 = vadd.f32 %v6593, %v6657
        %v6722 = vadd.f32 %v6594, %v6658
        %v6723 = vadd.f32 %v6595, %v6659
        %v6724 = vadd.f32 %v6596, %v6660
        %v6725 = vadd.f32 %v6597, %v6661
        %v6726 = vadd.f32 %v6598, %v6662
        %v6727 = vadd.f32 %v6599, %v6663
        %v6728 = vadd.f32 %v6600, %v6664
        %v6729 = vadd.f32 %v6601, %v6665
        %v6730 = vadd.f32 %v6602, %v6666
        %v6731 = vadd.f32 %v6603, %v6667
        %v6732 = vadd.f32 %v6604, %v6668
        %v6733 = vadd.f32 %v6605, %v6669
        %v6734 = vadd.f32 %v6606, %v6670
        %v6735 = vadd.f32 %v6607, %v6671
        %v6736 = vadd.f32 %v6608, %v6672
        %v6737 = vadd.f32 %v6609, %v6673
        %v6738 = vadd.f32 %v6610, %v6674
        %v6739 = vadd.f32 %v6611, %v6675
        %v6741 = vlaneseq
        %v6742 = vshrl.u32 %v6741, 7
        %v6743 = vsub.s32 0, %v6742
        %v6744 = vrot.slane %v6323, %v6743
        %v6745 = vlaneseq
        %v6746 = vshrl.u32 %v6745, 7
        %v6747 = vsub.s32 1, %v6746
        %v6748 = vrot.slane %v6323, %v6747
        %v6749 = vlaneseq
        %v6750 = vshrl.u32 %v6749, 7
        %v6751 = vsub.s32 2, %v6750
        %v6752 = vrot.slane %v6323, %v6751
        %v6753 = vlaneseq
        %v6754 = vshrl.u32 %v6753, 7
        %v6755 = vsub.s32 3, %v6754
        %v6756 = vrot.slane %v6323, %v6755
        %v6761 = vadd.f32 %v6452, %v6744
        %v6762 = vadd.f32 %v6453, %v6748
        %v6763 = vadd.f32 %v6454, %v6752
        %v6764 = vadd.f32 %v6455, %v6756
        %v6765 = vadd.f32 %v6456, %v6744
        %v6766 = vadd.f32 %v6457, %v6748
        %v6767 = vadd.f32 %v6458, %v6752
        %v6768 = vadd.f32 %v6459, %v6756
        %v6769 = vadd.f32 %v6460, %v6744
        %v6770 = vadd.f32 %v6461, %v6748
        %v6771 = vadd.f32 %v6462, %v6752
        %v6772 = vadd.f32 %v6463, %v6756
        %v6773 = vadd.f32 %v6464, %v6744
        %v6774 = vadd.f32 %v6465, %v6748
        %v6775 = vadd.f32 %v6466, %v6752
        %v6776 = vadd.f32 %v6467, %v6756
        %v6777 = vadd.f32 %v6468, %v6744
        %v6778 = vadd.f32 %v6469, %v6748
        %v6779 = vadd.f32 %v6470, %v6752
        %v6780 = vadd.f32 %v6471, %v6756
        %v6781 = vadd.f32 %v6472, %v6744
        %v6782 = vadd.f32 %v6473, %v6748
        %v6783 = vadd.f32 %v6474, %v6752
        %v6784 = vadd.f32 %v6475, %v6756
        %v6785 = vadd.f32 %v6476, %v6744
        %v6786 = vadd.f32 %v6477, %v6748
        %v6787 = vadd.f32 %v6478, %v6752
        %v6788 = vadd.f32 %v6479, %v6756
        %v6789 = vadd.f32 %v6480, %v6744
        %v6790 = vadd.f32 %v6481, %v6748
        %v6791 = vadd.f32 %v6482, %v6752
        %v6792 = vadd.f32 %v6483, %v6756
        %v6793 = vmax.f32 %v6761, 0.0
        %v6794 = vmax.f32 %v6762, 0.0
        %v6795 = vmax.f32 %v6763, 0.0
        %v6796 = vmax.f32 %v6764, 0.0
        %v6797 = vmax.f32 %v6765, 0.0
        %v6798 = vmax.f32 %v6766, 0.0
        %v6799 = vmax.f32 %v6767, 0.0
        %v6800 = vmax.f32 %v6768, 0.0
        %v6801 = vmax.f32 %v6769, 0.0
        %v6802 = vmax.f32 %v6770, 0.0
        %v6803 = vmax.f32 %v6771, 0.0
        %v6804 = vmax.f32 %v6772, 0.0
        %v6805 = vmax.f32 %v6773, 0.0
        %v6806 = vmax.f32 %v6774, 0.0
        %v6807 = vmax.f32 %v6775, 0.0
        %v6808 = vmax.f32 %v6776, 0.0
        %v6809 = vmax.f32 %v6777, 0.0
        %v6810 = vmax.f32 %v6778, 0.0
        %v6811 = vmax.f32 %v6779, 0.0
        %v6812 = vmax.f32 %v6780, 0.0
        %v6813 = vmax.f32 %v6781, 0.0
        %v6814 = vmax.f32 %v6782, 0.0
        %v6815 = vmax.f32 %v6783, 0.0
        %v6816 = vmax.f32 %v6784, 0.0
        %v6817 = vmax.f32 %v6785, 0.0
        %v6818 = vmax.f32 %v6786, 0.0
        %v6819 = vmax.f32 %v6787, 0.0
        %v6820 = vmax.f32 %v6788, 0.0
        %v6821 = vmax.f32 %v6789, 0.0
        %v6822 = vmax.f32 %v6790, 0.0
        %v6823 = vmax.f32 %v6791, 0.0
        %v6824 = vmax.f32 %v6792, 0.0
        %v6825 = vadd.f32 %v6708, %v6744
        %v6826 = vadd.f32 %v6709, %v6748
        %v6827 = vadd.f32 %v6710, %v6752
        %v6828 = vadd.f32 %v6711, %v6756
        %v6829 = vadd.f32 %v6712, %v6744
        %v6830 = vadd.f32 %v6713, %v6748
        %v6831 = vadd.f32 %v6714, %v6752
        %v6832 = vadd.f32 %v6715, %v6756
        %v6833 = vadd.f32 %v6716, %v6744
        %v6834 = vadd.f32 %v6717, %v6748
        %v6835 = vadd.f32 %v6718, %v6752
        %v6836 = vadd.f32 %v6719, %v6756
        %v6837 = vadd.f32 %v6720, %v6744
        %v6838 = vadd.f32 %v6721, %v6748
        %v6839 = vadd.f32 %v6722, %v6752
        %v6840 = vadd.f32 %v6723, %v6756
        %v6841 = vadd.f32 %v6724, %v6744
        %v6842 = vadd.f32 %v6725, %v6748
        %v6843 = vadd.f32 %v6726, %v6752
        %v6844 = vadd.f32 %v6727, %v6756
        %v6845 = vadd.f32 %v6728, %v6744
        %v6846 = vadd.f32 %v6729, %v6748
        %v6847 = vadd.f32 %v6730, %v6752
        %v6848 = vadd.f32 %v6731, %v6756
        %v6849 = vadd.f32 %v6732, %v6744
        %v6850 = vadd.f32 %v6733, %v6748
        %v6851 = vadd.f32 %v6734, %v6752
        %v6852 = vadd.f32 %v6735, %v6756
        %v6853 = vadd.f32 %v6736, %v6744
        %v6854 = vadd.f32 %v6737, %v6748
        %v6855 = vadd.f32 %v6738, %v6752
        %v6856 = vadd.f32 %v6739, %v6756
        %v6857 = vmax.f32 %v6825, 0.0
        %v6858 = vmax.f32 %v6826, 0.0
        %v6859 = vmax.f32 %v6827, 0.0
        %v6860 = vmax.f32 %v6828, 0.0
        %v6861 = vmax.f32 %v6829, 0.0
        %v6862 = vmax.f32 %v6830, 0.0
        %v6863 = vmax.f32 %v6831, 0.0
        %v6864 = vmax.f32 %v6832, 0.0
        %v6865 = vmax.f32 %v6833, 0.0
        %v6866 = vmax.f32 %v6834, 0.0
        %v6867 = vmax.f32 %v6835, 0.0
        %v6868 = vmax.f32 %v6836, 0.0
        %v6869 = vmax.f32 %v6837, 0.0
        %v6870 = vmax.f32 %v6838, 0.0
        %v6871 = vmax.f32 %v6839, 0.0
        %v6872 = vmax.f32 %v6840, 0.0
        %v6873 = vmax.f32 %v6841, 0.0
        %v6874 = vmax.f32 %v6842, 0.0
        %v6875 = vmax.f32 %v6843, 0.0
        %v6876 = vmax.f32 %v6844, 0.0
        %v6877 = vmax.f32 %v6845, 0.0
        %v6878 = vmax.f32 %v6846, 0.0
        %v6879 = vmax.f32 %v6847, 0.0
        %v6880 = vmax.f32 %v6848, 0.0
        %v6881 = vmax.f32 %v6849, 0.0
        %v6882 = vmax.f32 %v6850, 0.0
        %v6883 = vmax.f32 %v6851, 0.0
        %v6884 = vmax.f32 %v6852, 0.0
        %v6885 = vmax.f32 %v6853, 0.0
        %v6886 = vmax.f32 %v6854, 0.0
        %v6887 = vmax.f32 %v6855, 0.0
        %v6888 = vmax.f32 %v6856, 0.0
        %v6889 = vmax.f32 %v6793, %v6795
        %v6890 = vmax.f32 %v6794, %v6796
        %v6891 = vmax.f32 %v6797, %v6799
        %v6892 = vmax.f32 %v6798, %v6800
        %v6893 = vmax.f32 %v6801, %v6803
        %v6894 = vmax.f32 %v6802, %v6804
        %v6895 = vmax.f32 %v6805, %v6807
        %v6896 = vmax.f32 %v6806, %v6808
        %v6897 = vmax.f32 %v6809, %v6811
        %v6898 = vmax.f32 %v6810, %v6812
        %v6899 = vmax.f32 %v6813, %v6815
        %v6900 = vmax.f32 %v6814, %v6816
        %v6901 = vmax.f32 %v6817, %v6819
        %v6902 = vmax.f32 %v6818, %v6820
        %v6903 = vmax.f32 %v6821, %v6823
        %v6904 = vmax.f32 %v6822, %v6824
        %v6905 = vmax.f32 %v6857, %v6859
        %v6906 = vmax.f32 %v6858, %v6860
        %v6907 = vmax.f32 %v6861, %v6863
        %v6908 = vmax.f32 %v6862, %v6864
        %v6909 = vmax.f32 %v6865, %v6867
        %v6910 = vmax.f32 %v6866, %v6868
        %v6911 = vmax.f32 %v6869, %v6871
        %v6912 = vmax.f32 %v6870, %v6872
        %v6913 = vmax.f32 %v6873, %v6875
        %v6914 = vmax.f32 %v6874, %v6876
        %v6915 = vmax.f32 %v6877, %v6879
        %v6916 = vmax.f32 %v6878, %v6880
        %v6917 = vmax.f32 %v6881, %v6883
        %v6918 = vmax.f32 %v6882, %v6884
        %v6919 = vmax.f32 %v6885, %v6887
        %v6920 = vmax.f32 %v6886, %v6888
        %v6921 = vmax.f32 %v6889, %v6905
        %v6922 = vmax.f32 %v6890, %v6906
        %v6923 = vmax.f32 %v6891, %v6907
        %v6924 = vmax.f32 %v6892, %v6908
        %v6925 = vmax.f32 %v6893, %v6909
        %v6926 = vmax.f32 %v6894, %v6910
        %v6927 = vmax.f32 %v6895, %v6911
        %v6928 = vmax.f32 %v6896, %v6912
        %v6929 = vmax.f32 %v6897, %v6913
        %v6930 = vmax.f32 %v6898, %v6914
        %v6931 = vmax.f32 %v6899, %v6915
        %v6932 = vmax.f32 %v6900, %v6916
        %v6933 = vmax.f32 %v6901, %v6917
        %v6934 = vmax.f32 %v6902, %v6918
        %v6935 = vmax.f32 %v6903, %v6919
        %v6936 = vmax.f32 %v6904, %v6920
        %v6937 = vpack.c.bf16 %v6921, %v6921
        %v6938 = vpack.c.bf16 %v6922, %v6922
        %v6939 = vpack.c.bf16 %v6923, %v6923
        %v6940 = vpack.c.bf16 %v6924, %v6924
        %v6941 = vpack.c.bf16 %v6925, %v6925
        %v6942 = vpack.c.bf16 %v6926, %v6926
        %v6943 = vpack.c.bf16 %v6927, %v6927
        %v6944 = vpack.c.bf16 %v6928, %v6928
        %v6945 = vpack.c.bf16 %v6929, %v6929
        %v6946 = vpack.c.bf16 %v6930, %v6930
        %v6947 = vpack.c.bf16 %v6931, %v6931
        %v6948 = vpack.c.bf16 %v6932, %v6932
        %v6949 = vpack.c.bf16 %v6933, %v6933
        %v6950 = vpack.c.bf16 %v6934, %v6934
        %v6951 = vpack.c.bf16 %v6935, %v6935
        %v6952 = vpack.c.bf16 %v6936, %v6936
        %v6969 = vunpack.c.l.b16 %v6937
        %v6970 = vunpack.c.l.b16 %v6938
        %v6971 = vunpack.c.l.b16 %v6939
        %v6972 = vunpack.c.l.b16 %v6940
        %v6973 = vunpack.c.l.b16 %v6941
        %v6974 = vunpack.c.l.b16 %v6942
        %v6975 = vunpack.c.l.b16 %v6943
        %v6976 = vunpack.c.l.b16 %v6944
        %v6977 = vunpack.c.l.b16 %v6945
        %v6978 = vunpack.c.l.b16 %v6946
        %v6979 = vunpack.c.l.b16 %v6947
        %v6980 = vunpack.c.l.b16 %v6948
        %v6981 = vunpack.c.l.b16 %v6949
        %v6982 = vunpack.c.l.b16 %v6950
        %v6983 = vunpack.c.l.b16 %v6951
        %v6984 = vunpack.c.l.b16 %v6952
        %v6985 = vpack.c.b16 %v6970, %v6969
        %v6986 = vpack.c.b16 %v6972, %v6971
        %v6987 = vpack.c.b16 %v6974, %v6973
        %v6988 = vpack.c.b16 %v6976, %v6975
        %v6989 = vpack.c.b16 %v6978, %v6977
        %v6990 = vpack.c.b16 %v6980, %v6979
        %v6991 = vpack.c.b16 %v6982, %v6981
        %v6992 = vpack.c.b16 %v6984, %v6983
        %v6993 = vunpack.c.l.b16 %v6985
        %v6994 = vunpack.c.h.b16 %v6985
        %v6995 = vunpack.c.l.b16 %v6986
        %v6996 = vunpack.c.h.b16 %v6986
        %v6997 = vunpack.c.l.b16 %v6987
        %v6998 = vunpack.c.h.b16 %v6987
        %v6999 = vunpack.c.l.b16 %v6988
        %v7000 = vunpack.c.h.b16 %v6988
        %v7001 = vunpack.c.l.b16 %v6989
        %v7002 = vunpack.c.h.b16 %v6989
        %v7003 = vunpack.c.l.b16 %v6990
        %v7004 = vunpack.c.h.b16 %v6990
        %v7005 = vunpack.c.l.b16 %v6991
        %v7006 = vunpack.c.h.b16 %v6991
        %v7007 = vunpack.c.l.b16 %v6992
        %v7008 = vunpack.c.h.b16 %v6992
        %v7009 = vrot.slane %v6995, 7
        %vm7010 = vcmask 1041409
        %v7011 = vsel %vm7010, %v7009, %v6993
        %v7012 = vrot.slane %v6997, 6
        %vm7013 = vcmask 1042434
        %v7014 = vsel %vm7013, %v7012, %v7011
        %v7015 = vrot.slane %v6999, 5
        %vm7016 = vcmask 1043459
        %v7017 = vsel %vm7016, %v7015, %v7014
        %v7018 = vrot.slane %v7001, 4
        %vm7019 = vcmask 1044484
        %v7020 = vsel %vm7019, %v7018, %v7017
        %v7021 = vrot.slane %v7003, 3
        %vm7022 = vcmask 1045509
        %v7023 = vsel %vm7022, %v7021, %v7020
        %v7024 = vrot.slane %v7005, 2
        %vm7025 = vcmask 1046534
        %v7026 = vsel %vm7025, %v7024, %v7023
        %v7027 = vrot.slane %v7007, 1
        %vm7028 = vcmask 1047559
        %v7029 = vsel %vm7028, %v7027, %v7026
        %v7030 = vrot.slane %v6996, 7
        %v7031 = vsel %vm7010, %v7030, %v6994
        %v7032 = vrot.slane %v6998, 6
        %v7033 = vsel %vm7013, %v7032, %v7031
        %v7034 = vrot.slane %v7000, 5
        %v7035 = vsel %vm7016, %v7034, %v7033
        %v7036 = vrot.slane %v7002, 4
        %v7037 = vsel %vm7019, %v7036, %v7035
        %v7038 = vrot.slane %v7004, 3
        %v7039 = vsel %vm7022, %v7038, %v7037
        %v7040 = vrot.slane %v7006, 2
        %v7041 = vsel %vm7025, %v7040, %v7039
        %v7042 = vrot.slane %v7008, 1
        %v7043 = vsel %vm7028, %v7042, %v7041
        %v7044 = vpack.c.b16 %v7043, %v7029
        %7046 = vst [vmem:[#allocation4] sm:$0xff] %v7044
        %v7047 = vrot.slane %v6993, 1
        %v7048 = vsel %vm7010, %v6995, %v7047
        %v7049 = vrot.slane %v6997, 7
        %v7050 = vsel %vm7013, %v7049, %v7048
        %v7051 = vrot.slane %v6999, 6
        %v7052 = vsel %vm7016, %v7051, %v7050
        %v7053 = vrot.slane %v7001, 5
        %v7054 = vsel %vm7019, %v7053, %v7052
        %v7055 = vrot.slane %v7003, 4
        %v7056 = vsel %vm7022, %v7055, %v7054
        %v7057 = vrot.slane %v7005, 3
        %v7058 = vsel %vm7025, %v7057, %v7056
        %v7059 = vrot.slane %v7007, 2
        %v7060 = vsel %vm7028, %v7059, %v7058
        %v7061 = vrot.slane %v6994, 1
        %v7062 = vsel %vm7010, %v6996, %v7061
        %v7063 = vrot.slane %v6998, 7
        %v7064 = vsel %vm7013, %v7063, %v7062
        %v7065 = vrot.slane %v7000, 6
        %v7066 = vsel %vm7016, %v7065, %v7064
        %v7067 = vrot.slane %v7002, 5
        %v7068 = vsel %vm7019, %v7067, %v7066
        %v7069 = vrot.slane %v7004, 4
        %v7070 = vsel %vm7022, %v7069, %v7068
        %v7071 = vrot.slane %v7006, 3
        %v7072 = vsel %vm7025, %v7071, %v7070
        %v7073 = vrot.slane %v7008, 2
        %v7074 = vsel %vm7028, %v7073, %v7072
        %v7075 = vpack.c.b16 %v7074, %v7060
        %7077 = vst [vmem:[#allocation4 + $0x8] sm:$0xff] %v7075
        %v7078 = vrot.slane %v6993, 2
        %v7079 = vrot.slane %v6995, 1
        %v7080 = vsel %vm7010, %v7079, %v7078
        %v7081 = vsel %vm7013, %v6997, %v7080
        %v7082 = vrot.slane %v6999, 7
        %v7083 = vsel %vm7016, %v7082, %v7081
        %v7084 = vrot.slane %v7001, 6
        %v7085 = vsel %vm7019, %v7084, %v7083
        %v7086 = vrot.slane %v7003, 5
        %v7087 = vsel %vm7022, %v7086, %v7085
        %v7088 = vrot.slane %v7005, 4
        %v7089 = vsel %vm7025, %v7088, %v7087
        %v7090 = vrot.slane %v7007, 3
        %v7091 = vsel %vm7028, %v7090, %v7089
        %v7092 = vrot.slane %v6994, 2
        %v7093 = vrot.slane %v6996, 1
        %v7094 = vsel %vm7010, %v7093, %v7092
        %v7095 = vsel %vm7013, %v6998, %v7094
        %v7096 = vrot.slane %v7000, 7
        %v7097 = vsel %vm7016, %v7096, %v7095
        %v7098 = vrot.slane %v7002, 6
        %v7099 = vsel %vm7019, %v7098, %v7097
        %v7100 = vrot.slane %v7004, 5
        %v7101 = vsel %vm7022, %v7100, %v7099
        %v7102 = vrot.slane %v7006, 4
        %v7103 = vsel %vm7025, %v7102, %v7101
        %v7104 = vrot.slane %v7008, 3
        %v7105 = vsel %vm7028, %v7104, %v7103
        %v7106 = vpack.c.b16 %v7105, %v7091
        %7108 = vst [vmem:[#allocation4 + $0x10] sm:$0xff] %v7106
        %v7109 = vrot.slane %v6993, 3
        %v7110 = vrot.slane %v6995, 2
        %v7111 = vsel %vm7010, %v7110, %v7109
        %v7112 = vrot.slane %v6997, 1
        %v7113 = vsel %vm7013, %v7112, %v7111
        %v7114 = vsel %vm7016, %v6999, %v7113
        %v7115 = vrot.slane %v7001, 7
        %v7116 = vsel %vm7019, %v7115, %v7114
        %v7117 = vrot.slane %v7003, 6
        %v7118 = vsel %vm7022, %v7117, %v7116
        %v7119 = vrot.slane %v7005, 5
        %v7120 = vsel %vm7025, %v7119, %v7118
        %v7121 = vrot.slane %v7007, 4
        %v7122 = vsel %vm7028, %v7121, %v7120
        %v7123 = vrot.slane %v6994, 3
        %v7124 = vrot.slane %v6996, 2
        %v7125 = vsel %vm7010, %v7124, %v7123
        %v7126 = vrot.slane %v6998, 1
        %v7127 = vsel %vm7013, %v7126, %v7125
        %v7128 = vsel %vm7016, %v7000, %v7127
        %v7129 = vrot.slane %v7002, 7
        %v7130 = vsel %vm7019, %v7129, %v7128
        %v7131 = vrot.slane %v7004, 6
        %v7132 = vsel %vm7022, %v7131, %v7130
        %v7133 = vrot.slane %v7006, 5
        %v7134 = vsel %vm7025, %v7133, %v7132
        %v7135 = vrot.slane %v7008, 4
        %v7136 = vsel %vm7028, %v7135, %v7134
        %v7137 = vpack.c.b16 %v7136, %v7122
        %7139 = vst [vmem:[#allocation4 + $0x18] sm:$0xff] %v7137
        %v7140 = vrot.slane %v6993, 4
        %v7141 = vrot.slane %v6995, 3
        %v7142 = vsel %vm7010, %v7141, %v7140
        %v7143 = vrot.slane %v6997, 2
        %v7144 = vsel %vm7013, %v7143, %v7142
        %v7145 = vrot.slane %v6999, 1
        %v7146 = vsel %vm7016, %v7145, %v7144
        %v7147 = vsel %vm7019, %v7001, %v7146
        %v7148 = vrot.slane %v7003, 7
        %v7149 = vsel %vm7022, %v7148, %v7147
        %v7150 = vrot.slane %v7005, 6
        %v7151 = vsel %vm7025, %v7150, %v7149
        %v7152 = vrot.slane %v7007, 5
        %v7153 = vsel %vm7028, %v7152, %v7151
        %v7154 = vrot.slane %v6994, 4
        %v7155 = vrot.slane %v6996, 3
        %v7156 = vsel %vm7010, %v7155, %v7154
        %v7157 = vrot.slane %v6998, 2
        %v7158 = vsel %vm7013, %v7157, %v7156
        %v7159 = vrot.slane %v7000, 1
        %v7160 = vsel %vm7016, %v7159, %v7158
        %v7161 = vsel %vm7019, %v7002, %v7160
        %v7162 = vrot.slane %v7004, 7
        %v7163 = vsel %vm7022, %v7162, %v7161
        %v7164 = vrot.slane %v7006, 6
        %v7165 = vsel %vm7025, %v7164, %v7163
        %v7166 = vrot.slane %v7008, 5
        %v7167 = vsel %vm7028, %v7166, %v7165
        %v7168 = vpack.c.b16 %v7167, %v7153
        %7170 = vst [vmem:[#allocation4 + $0x20] sm:$0xff] %v7168
        %v7171 = vrot.slane %v6993, 5
        %v7172 = vrot.slane %v6995, 4
        %v7173 = vsel %vm7010, %v7172, %v7171
        %v7174 = vrot.slane %v6997, 3
        %v7175 = vsel %vm7013, %v7174, %v7173
        %v7176 = vrot.slane %v6999, 2
        %v7177 = vsel %vm7016, %v7176, %v7175
        %v7178 = vrot.slane %v7001, 1
        %v7179 = vsel %vm7019, %v7178, %v7177
        %v7180 = vsel %vm7022, %v7003, %v7179
        %v7181 = vrot.slane %v7005, 7
        %v7182 = vsel %vm7025, %v7181, %v7180
        %v7183 = vrot.slane %v7007, 6
        %v7184 = vsel %vm7028, %v7183, %v7182
        %v7185 = vrot.slane %v6994, 5
        %v7186 = vrot.slane %v6996, 4
        %v7187 = vsel %vm7010, %v7186, %v7185
        %v7188 = vrot.slane %v6998, 3
        %v7189 = vsel %vm7013, %v7188, %v7187
        %v7190 = vrot.slane %v7000, 2
        %v7191 = vsel %vm7016, %v7190, %v7189
        %v7192 = vrot.slane %v7002, 1
        %v7193 = vsel %vm7019, %v7192, %v7191
        %v7194 = vsel %vm7022, %v7004, %v7193
        %v7195 = vrot.slane %v7006, 7
        %v7196 = vsel %vm7025, %v7195, %v7194
        %v7197 = vrot.slane %v7008, 6
        %v7198 = vsel %vm7028, %v7197, %v7196
        %v7199 = vpack.c.b16 %v7198, %v7184
        %7201 = vst [vmem:[#allocation4 + $0x28] sm:$0xff] %v7199
        %v7202 = vrot.slane %v6993, 6
        %v7203 = vrot.slane %v6995, 5
        %v7204 = vsel %vm7010, %v7203, %v7202
        %v7205 = vrot.slane %v6997, 4
        %v7206 = vsel %vm7013, %v7205, %v7204
        %v7207 = vrot.slane %v6999, 3
        %v7208 = vsel %vm7016, %v7207, %v7206
        %v7209 = vrot.slane %v7001, 2
        %v7210 = vsel %vm7019, %v7209, %v7208
        %v7211 = vrot.slane %v7003, 1
        %v7212 = vsel %vm7022, %v7211, %v7210
        %v7213 = vsel %vm7025, %v7005, %v7212
        %v7214 = vrot.slane %v7007, 7
        %v7215 = vsel %vm7028, %v7214, %v7213
        %v7216 = vrot.slane %v6994, 6
        %v7217 = vrot.slane %v6996, 5
        %v7218 = vsel %vm7010, %v7217, %v7216
        %v7219 = vrot.slane %v6998, 4
        %v7220 = vsel %vm7013, %v7219, %v7218
        %v7221 = vrot.slane %v7000, 3
        %v7222 = vsel %vm7016, %v7221, %v7220
        %v7223 = vrot.slane %v7002, 2
        %v7224 = vsel %vm7019, %v7223, %v7222
        %v7225 = vrot.slane %v7004, 1
        %v7226 = vsel %vm7022, %v7225, %v7224
        %v7227 = vsel %vm7025, %v7006, %v7226
        %v7228 = vrot.slane %v7008, 7
        %v7229 = vsel %vm7028, %v7228, %v7227
        %v7230 = vpack.c.b16 %v7229, %v7215
        %7232 = vst [vmem:[#allocation4 + $0x30] sm:$0xff] %v7230
        %v7233 = vld [vmem:[#allocation4] sm:$0xff]
        %v7234 = vld [vmem:[#allocation4 + $0x8] sm:$0xff]
        %v7235 = vld [vmem:[#allocation4 + $0x10] sm:$0xff]
        %v7236 = vld [vmem:[#allocation4 + $0x18] sm:$0xff]
        %v7237 = vld [vmem:[#allocation4 + $0x20] sm:$0xff]
        %v7238 = vld [vmem:[#allocation4 + $0x28] sm:$0xff]
        %v7239 = vld [vmem:[#allocation4 + $0x30] sm:$0xff]
        %v7240 = vld [vmem:[#allocation7] sm:$0xff]
        %v7241 = vld [vmem:[#allocation7 + $0x8] sm:$0xff]
        %v7242 = vld [vmem:[#allocation7 + $0x10] sm:$0xff]
        %v7243 = vld [vmem:[#allocation7 + $0x18] sm:$0xff]
        %v7244 = vld [vmem:[#allocation7 + $0x20] sm:$0xff]
        %v7245 = vld [vmem:[#allocation7 + $0x28] sm:$0xff]
        %v7246 = vld [vmem:[#allocation7 + $0x30] sm:$0xff]
        %v7247 = vld [vmem:[#allocation7 + $0x38] sm:$0xff]
        %v7248 = vld [vmem:[#allocation7 + $0x40] sm:$0xff]
        %v7249 = vld [vmem:[#allocation7 + $0x48] sm:$0xff]
        %v7250 = vld [vmem:[#allocation7 + $0x50] sm:$0xff]
        %v7251 = vld [vmem:[#allocation7 + $0x58] sm:$0xff]
        %v7252 = vld [vmem:[#allocation7 + $0x60] sm:$0xff]
        %v7253 = vld [vmem:[#allocation7 + $0x68] sm:$0xff]
        %v7254 = vld [vmem:[#allocation7 + $0x70] sm:$0xff]
        %v7255 = vld [vmem:[#allocation7 + $0x78] sm:$0xff]
        %v7256 = vld [vmem:[#allocation7 + $0x80] sm:$0xff]
        %v7257 = vld [vmem:[#allocation7 + $0x88] sm:$0xff]
        %v7258 = vld [vmem:[#allocation7 + $0x90] sm:$0xff]
        %v7259 = vld [vmem:[#allocation7 + $0x98] sm:$0xff]
        %v7260 = vld [vmem:[#allocation7 + $0xa0] sm:$0xff]
        %v7261 = vld [vmem:[#allocation7 + $0xa8] sm:$0xff]
        %v7262 = vld [vmem:[#allocation7 + $0xb0] sm:$0xff]
        %v7263 = vld [vmem:[#allocation7 + $0xb8] sm:$0xff]
        %v7264 = vld [vmem:[#allocation7 + $0xc0] sm:$0xff]
        %v7265 = vld [vmem:[#allocation7 + $0xc8] sm:$0xff]
        %v7266 = vld [vmem:[#allocation7 + $0xd0] sm:$0xff]
        %v7267 = vld [vmem:[#allocation7 + $0xd8] sm:$0xff]
        %v7268 = vld [vmem:[#allocation7 + $0xe0] sm:$0xff]
        %v7269 = vld [vmem:[#allocation7 + $0xe8] sm:$0xff]
        %v7270 = vld [vmem:[#allocation7 + $0xf0] sm:$0xff]
        %v7271 = vld [vmem:[#allocation7 + $0xf8] sm:$0xff]
        %v7272 = vld [vmem:[#allocation7 + $0x100] sm:$0xff]
        %v7273 = vld [vmem:[#allocation7 + $0x108] sm:$0xff]
        %v7274 = vld [vmem:[#allocation7 + $0x110] sm:$0xff]
        %v7275 = vld [vmem:[#allocation7 + $0x118] sm:$0xff]
        %v7276 = vld [vmem:[#allocation7 + $0x120] sm:$0xff]
        %v7277 = vld [vmem:[#allocation7 + $0x128] sm:$0xff]
        %v7278 = vld [vmem:[#allocation7 + $0x130] sm:$0xff]
        %v7279 = vld [vmem:[#allocation7 + $0x138] sm:$0xff]
        %v7280 = vld [vmem:[#allocation7 + $0x140] sm:$0xff]
        %v7281 = vld [vmem:[#allocation7 + $0x148] sm:$0xff]
        %v7282 = vld [vmem:[#allocation7 + $0x150] sm:$0xff]
        %v7283 = vld [vmem:[#allocation7 + $0x158] sm:$0xff]
        %v7284 = vld [vmem:[#allocation7 + $0x160] sm:$0xff]
        %v7285 = vld [vmem:[#allocation7 + $0x168] sm:$0xff]
        %v7286 = vld [vmem:[#allocation7 + $0x170] sm:$0xff]
        %v7287 = vld [vmem:[#allocation7 + $0x178] sm:$0xff]
        %v7288 = vld [vmem:[#allocation7 + $0x180] sm:$0xff]
        %v7289 = vld [vmem:[#allocation7 + $0x188] sm:$0xff]
        %v7290 = vld [vmem:[#allocation7 + $0x190] sm:$0xff]
        %v7291 = vld [vmem:[#allocation7 + $0x198] sm:$0xff]
        %v7292 = vld [vmem:[#allocation7 + $0x1a0] sm:$0xff]
        %v7293 = vld [vmem:[#allocation7 + $0x1a8] sm:$0xff]
        %v7294 = vld [vmem:[#allocation7 + $0x1b0] sm:$0xff]
        %v7295 = vld [vmem:[#allocation7 + $0x1b8] sm:$0xff]
        %v7296 = vld [vmem:[#allocation7 + $0x1c0] sm:$0xff]
        %v7297 = vld [vmem:[#allocation7 + $0x1c8] sm:$0xff]
        %v7298 = vld [vmem:[#allocation7 + $0x1d0] sm:$0xff]
        %v7299 = vld [vmem:[#allocation7 + $0x1d8] sm:$0xff]
        %v7300 = vld [vmem:[#allocation7 + $0x1e0] sm:$0xff]
        %v7301 = vld [vmem:[#allocation7 + $0x1e8] sm:$0xff]
        %v7302 = vld [vmem:[#allocation7 + $0x1f0] sm:$0xff]
        %v7303 = vld [vmem:[#allocation7 + $0x1f8] sm:$0xff]
        %v7304 = vld [vmem:[#allocation7 + $0x200] sm:$0xff]
        %v7305 = vld [vmem:[#allocation7 + $0x208] sm:$0xff]
        %v7306 = vld [vmem:[#allocation7 + $0x210] sm:$0xff]
        %v7307 = vld [vmem:[#allocation7 + $0x218] sm:$0xff]
        %v7308 = vld [vmem:[#allocation7 + $0x220] sm:$0xff]
        %v7309 = vld [vmem:[#allocation7 + $0x228] sm:$0xff]
        %v7310 = vld [vmem:[#allocation7 + $0x230] sm:$0xff]
        %v7311 = vld [vmem:[#allocation7 + $0x238] sm:$0xff]
        %v7312 = vld [vmem:[#allocation7 + $0x240] sm:$0xff]
        %v7313 = vld [vmem:[#allocation7 + $0x248] sm:$0xff]
        %v7314 = vld [vmem:[#allocation7 + $0x250] sm:$0xff]
        %v7315 = vld [vmem:[#allocation7 + $0x258] sm:$0xff]
        %v7316 = vld [vmem:[#allocation7 + $0x260] sm:$0xff]
        %v7317 = vld [vmem:[#allocation7 + $0x268] sm:$0xff]
        %v7318 = vld [vmem:[#allocation7 + $0x270] sm:$0xff]
        %v7319 = vld [vmem:[#allocation7 + $0x278] sm:$0xff]
        %v7320 = vld [vmem:[#allocation7 + $0x280] sm:$0xff]
        %v7321 = vld [vmem:[#allocation7 + $0x288] sm:$0xff]
        %v7322 = vld [vmem:[#allocation7 + $0x290] sm:$0xff]
        %v7323 = vld [vmem:[#allocation7 + $0x298] sm:$0xff]
        %v7324 = vld [vmem:[#allocation7 + $0x2a0] sm:$0xff]
        %v7325 = vld [vmem:[#allocation7 + $0x2a8] sm:$0xff]
        %v7326 = vld [vmem:[#allocation7 + $0x2b0] sm:$0xff]
        %v7327 = vld [vmem:[#allocation7 + $0x2b8] sm:$0xff]
        %v7328 = vld [vmem:[#allocation7 + $0x2c0] sm:$0xff]
        %v7329 = vld [vmem:[#allocation7 + $0x2c8] sm:$0xff]
        %v7330 = vld [vmem:[#allocation7 + $0x2d0] sm:$0xff]
        %v7331 = vld [vmem:[#allocation7 + $0x2d8] sm:$0xff]
        %v7332 = vld [vmem:[#allocation7 + $0x2e0] sm:$0xff]
        %v7333 = vld [vmem:[#allocation7 + $0x2e8] sm:$0xff]
        %v7334 = vld [vmem:[#allocation7 + $0x2f0] sm:$0xff]
        %v7335 = vld [vmem:[#allocation7 + $0x2f8] sm:$0xff]
        %v7336 = vld [vmem:[#allocation7 + $0x300] sm:$0xff]
        %v7337 = vld [vmem:[#allocation7 + $0x308] sm:$0xff]
        %v7338 = vld [vmem:[#allocation7 + $0x310] sm:$0xff]
        %v7339 = vld [vmem:[#allocation7 + $0x318] sm:$0xff]
        %v7340 = vld [vmem:[#allocation7 + $0x320] sm:$0xff]
        %v7341 = vld [vmem:[#allocation7 + $0x328] sm:$0xff]
        %v7342 = vld [vmem:[#allocation7 + $0x330] sm:$0xff]
        %v7343 = vld [vmem:[#allocation7 + $0x338] sm:$0xff]
        %v7344 = vld [vmem:[#allocation7 + $0x340] sm:$0xff]
        %v7345 = vld [vmem:[#allocation7 + $0x348] sm:$0xff]
        %v7346 = vld [vmem:[#allocation7 + $0x350] sm:$0xff]
        %v7347 = vld [vmem:[#allocation7 + $0x358] sm:$0xff]
        %v7348 = vld [vmem:[#allocation7 + $0x360] sm:$0xff]
        %v7349 = vld [vmem:[#allocation7 + $0x368] sm:$0xff]
        %v7350 = vld [vmem:[#allocation7 + $0x370] sm:$0xff]
        %v7351 = vld [vmem:[#allocation7 + $0x378] sm:$0xff]
        %v7352 = vld [vmem:[#allocation7 + $0x380] sm:$0xff]
        %v7353 = vld [vmem:[#allocation7 + $0x388] sm:$0xff]
        %v7354 = vld [vmem:[#allocation7 + $0x390] sm:$0xff]
        %v7355 = vld [vmem:[#allocation7 + $0x398] sm:$0xff]
        %v7356 = vld [vmem:[#allocation7 + $0x3a0] sm:$0xff]
        %v7357 = vld [vmem:[#allocation7 + $0x3a8] sm:$0xff]
        %v7358 = vld [vmem:[#allocation7 + $0x3b0] sm:$0xff]
        %v7359 = vld [vmem:[#allocation7 + $0x3b8] sm:$0xff]
        %v7360 = vld [vmem:[#allocation7 + $0x3c0] sm:$0xff]
        %v7361 = vld [vmem:[#allocation7 + $0x3c8] sm:$0xff]
        %v7362 = vld [vmem:[#allocation7 + $0x3d0] sm:$0xff]
        %v7363 = vld [vmem:[#allocation7 + $0x3d8] sm:$0xff]
        %v7364 = vld [vmem:[#allocation7 + $0x3e0] sm:$0xff]
        %v7365 = vld [vmem:[#allocation7 + $0x3e8] sm:$0xff]
        %v7366 = vld [vmem:[#allocation7 + $0x3f0] sm:$0xff]
        %v7367 = vld [vmem:[#allocation7 + $0x3f8] sm:$0xff]
        %v7368 = vld [vmem:[#allocation7 + $0x400] sm:$0xff]
        %v7369 = vld [vmem:[#allocation7 + $0x408] sm:$0xff]
        %v7370 = vld [vmem:[#allocation7 + $0x410] sm:$0xff]
        %v7371 = vld [vmem:[#allocation7 + $0x418] sm:$0xff]
        %v7372 = vld [vmem:[#allocation7 + $0x420] sm:$0xff]
        %v7373 = vld [vmem:[#allocation7 + $0x428] sm:$0xff]
        %v7374 = vld [vmem:[#allocation7 + $0x430] sm:$0xff]
        %v7375 = vld [vmem:[#allocation7 + $0x438] sm:$0xff]
        %v7376 = vld [vmem:[#allocation7 + $0x440] sm:$0xff]
        %v7377 = vld [vmem:[#allocation7 + $0x448] sm:$0xff]
        %v7378 = vld [vmem:[#allocation7 + $0x450] sm:$0xff]
        %v7379 = vld [vmem:[#allocation7 + $0x458] sm:$0xff]
        %v7380 = vld [vmem:[#allocation7 + $0x460] sm:$0xff]
        %v7381 = vld [vmem:[#allocation7 + $0x468] sm:$0xff]
        %v7382 = vld [vmem:[#allocation7 + $0x470] sm:$0xff]
        %v7383 = vld [vmem:[#allocation7 + $0x478] sm:$0xff]
        %v7384 = vld [vmem:[#allocation7 + $0x480] sm:$0xff]
        %v7385 = vld [vmem:[#allocation7 + $0x488] sm:$0xff]
        %v7386 = vld [vmem:[#allocation7 + $0x490] sm:$0xff]
        %v7387 = vld [vmem:[#allocation7 + $0x498] sm:$0xff]
        %v7388 = vld [vmem:[#allocation7 + $0x4a0] sm:$0xff]
        %v7389 = vld [vmem:[#allocation7 + $0x4a8] sm:$0xff]
        %v7390 = vld [vmem:[#allocation7 + $0x4b0] sm:$0xff]
        %v7391 = vld [vmem:[#allocation7 + $0x4b8] sm:$0xff]
        %v7392 = vld [vmem:[#allocation7 + $0x4c0] sm:$0xff]
        %v7393 = vld [vmem:[#allocation7 + $0x4c8] sm:$0xff]
        %v7394 = vld [vmem:[#allocation7 + $0x4d0] sm:$0xff]
        %v7395 = vld [vmem:[#allocation7 + $0x4d8] sm:$0xff]
        %v7396 = vld [vmem:[#allocation7 + $0x4e0] sm:$0xff]
        %v7397 = vld [vmem:[#allocation7 + $0x4e8] sm:$0xff]
        %v7398 = vld [vmem:[#allocation7 + $0x4f0] sm:$0xff]
        %v7399 = vld [vmem:[#allocation7 + $0x4f8] sm:$0xff]
        %v7400 = vld [vmem:[#allocation7 + $0x500] sm:$0xff]
        %v7401 = vld [vmem:[#allocation7 + $0x508] sm:$0xff]
        %v7402 = vld [vmem:[#allocation7 + $0x510] sm:$0xff]
        %v7403 = vld [vmem:[#allocation7 + $0x518] sm:$0xff]
        %v7404 = vld [vmem:[#allocation7 + $0x520] sm:$0xff]
        %v7405 = vld [vmem:[#allocation7 + $0x528] sm:$0xff]
        %v7406 = vld [vmem:[#allocation7 + $0x530] sm:$0xff]
        %v7407 = vld [vmem:[#allocation7 + $0x538] sm:$0xff]
        %v7408 = vld [vmem:[#allocation7 + $0x540] sm:$0xff]
        %v7409 = vld [vmem:[#allocation7 + $0x548] sm:$0xff]
        %v7410 = vld [vmem:[#allocation7 + $0x550] sm:$0xff]
        %v7411 = vld [vmem:[#allocation7 + $0x558] sm:$0xff]
        %v7412 = vld [vmem:[#allocation7 + $0x560] sm:$0xff]
        %v7413 = vld [vmem:[#allocation7 + $0x568] sm:$0xff]
        %v7414 = vld [vmem:[#allocation7 + $0x570] sm:$0xff]
        %v7415 = vld [vmem:[#allocation7 + $0x578] sm:$0xff]
        %v7416 = vld [vmem:[#allocation7 + $0x580] sm:$0xff]
        %v7417 = vld [vmem:[#allocation7 + $0x588] sm:$0xff]
        %v7418 = vld [vmem:[#allocation7 + $0x590] sm:$0xff]
        %v7419 = vld [vmem:[#allocation7 + $0x598] sm:$0xff]
        %v7420 = vld [vmem:[#allocation7 + $0x5a0] sm:$0xff]
        %v7421 = vld [vmem:[#allocation7 + $0x5a8] sm:$0xff]
        %v7422 = vld [vmem:[#allocation7 + $0x5b0] sm:$0xff]
        %v7423 = vld [vmem:[#allocation7 + $0x5b8] sm:$0xff]
        %v7424 = vld [vmem:[#allocation7 + $0x5c0] sm:$0xff]
        %v7425 = vld [vmem:[#allocation7 + $0x5c8] sm:$0xff]
        %v7426 = vld [vmem:[#allocation7 + $0x5d0] sm:$0xff]
        %v7427 = vld [vmem:[#allocation7 + $0x5d8] sm:$0xff]
        %v7428 = vld [vmem:[#allocation7 + $0x5e0] sm:$0xff]
        %v7429 = vld [vmem:[#allocation7 + $0x5e8] sm:$0xff]
        %v7430 = vld [vmem:[#allocation7 + $0x5f0] sm:$0xff]
        %v7431 = vld [vmem:[#allocation7 + $0x5f8] sm:$0xff]
        %v7432 = vld [vmem:[#allocation7 + $0x600] sm:$0xff]
        %v7433 = vld [vmem:[#allocation7 + $0x608] sm:$0xff]
        %v7434 = vld [vmem:[#allocation7 + $0x610] sm:$0xff]
        %v7435 = vld [vmem:[#allocation7 + $0x618] sm:$0xff]
        %v7436 = vld [vmem:[#allocation7 + $0x620] sm:$0xff]
        %v7437 = vld [vmem:[#allocation7 + $0x628] sm:$0xff]
        %v7438 = vld [vmem:[#allocation7 + $0x630] sm:$0xff]
        %v7439 = vld [vmem:[#allocation7 + $0x638] sm:$0xff]
        %v7440 = vld [vmem:[#allocation7 + $0x640] sm:$0xff]
        %v7441 = vld [vmem:[#allocation7 + $0x648] sm:$0xff]
        %v7442 = vld [vmem:[#allocation7 + $0x650] sm:$0xff]
        %v7443 = vld [vmem:[#allocation7 + $0x658] sm:$0xff]
        %v7444 = vld [vmem:[#allocation7 + $0x660] sm:$0xff]
        %v7445 = vld [vmem:[#allocation7 + $0x668] sm:$0xff]
        %v7446 = vld [vmem:[#allocation7 + $0x670] sm:$0xff]
        %v7447 = vld [vmem:[#allocation7 + $0x678] sm:$0xff]
        %v7448 = vld [vmem:[#allocation7 + $0x680] sm:$0xff]
        %v7449 = vld [vmem:[#allocation7 + $0x688] sm:$0xff]
        %v7450 = vld [vmem:[#allocation7 + $0x690] sm:$0xff]
        %v7451 = vld [vmem:[#allocation7 + $0x698] sm:$0xff]
        %v7452 = vld [vmem:[#allocation7 + $0x6a0] sm:$0xff]
        %v7453 = vld [vmem:[#allocation7 + $0x6a8] sm:$0xff]
        %v7454 = vld [vmem:[#allocation7 + $0x6b0] sm:$0xff]
        %v7455 = vld [vmem:[#allocation7 + $0x6b8] sm:$0xff]
        %v7456 = vld [vmem:[#allocation7 + $0x6c0] sm:$0xff]
        %v7457 = vld [vmem:[#allocation7 + $0x6c8] sm:$0xff]
        %v7458 = vld [vmem:[#allocation7 + $0x6d0] sm:$0xff]
        %v7459 = vld [vmem:[#allocation7 + $0x6d8] sm:$0xff]
        %v7460 = vld [vmem:[#allocation7 + $0x6e0] sm:$0xff]
        %v7461 = vld [vmem:[#allocation7 + $0x6e8] sm:$0xff]
        %v7462 = vld [vmem:[#allocation7 + $0x6f0] sm:$0xff]
        %v7463 = vld [vmem:[#allocation7 + $0x6f8] sm:$0xff]
        %v7464 = vld [vmem:[%s7] sm:$0x3]
        %v7466 = vlaneseq
        %v7467 = vshrl.u32 %v7466, 7
        %v7468 = vsub.s32 0, %v7467
        %v7469 = vrot.slane %v7464, %v7468
        %v7470 = vlaneseq
        %v7471 = vshrl.u32 %v7470, 7
        %v7472 = vsub.s32 1, %v7471
        %v7473 = vrot.slane %v7464, %v7472
        %v7483 = vunpack.c.l.b16 %v7233
        %v7484 = vunpack.c.h.b16 %v7233
        %v7485 = vunpack.c.l.b16 %v7234
        %v7486 = vunpack.c.h.b16 %v7234
        %v7487 = vunpack.c.l.b16 %v7235
        %v7488 = vunpack.c.h.b16 %v7235
        %v7489 = vunpack.c.l.b16 %v7236
        %v7490 = vunpack.c.h.b16 %v7236
        %v7491 = vunpack.c.l.b16 %v7237
        %v7492 = vunpack.c.h.b16 %v7237
        %v7493 = vunpack.c.l.b16 %v7238
        %v7494 = vunpack.c.h.b16 %v7238
        %v7495 = vunpack.c.l.b16 %v7239
        %v7496 = vunpack.c.h.b16 %v7239
        %v7497 = vpack.c.b16 %v7483, %v7483
        %v7498 = vpack.c.b16 %v7484, %v7484
        %v7499 = vpack.c.b16 %v7485, %v7485
        %v7500 = vpack.c.b16 %v7486, %v7486
        %v7501 = vpack.c.b16 %v7487, %v7487
        %v7502 = vpack.c.b16 %v7488, %v7488
        %v7503 = vpack.c.b16 %v7489, %v7489
        %v7504 = vpack.c.b16 %v7490, %v7490
        %v7505 = vpack.c.b16 %v7491, %v7491
        %v7506 = vpack.c.b16 %v7492, %v7492
        %v7507 = vpack.c.b16 %v7493, %v7493
        %v7508 = vpack.c.b16 %v7494, %v7494
        %v7509 = vpack.c.b16 %v7495, %v7495
        %v7510 = vpack.c.b16 %v7496, %v7496
        %v7749 = vunpack.c.l.b16 %v7240
        %v7750 = vunpack.c.h.b16 %v7240
        %v7751 = vunpack.c.l.b16 %v7241
        %v7752 = vunpack.c.h.b16 %v7241
        %v7753 = vunpack.c.l.b16 %v7242
        %v7754 = vunpack.c.h.b16 %v7242
        %v7755 = vunpack.c.l.b16 %v7243
        %v7756 = vunpack.c.h.b16 %v7243
        %v7757 = vunpack.c.l.b16 %v7244
        %v7758 = vunpack.c.h.b16 %v7244
        %v7759 = vunpack.c.l.b16 %v7245
        %v7760 = vunpack.c.h.b16 %v7245
        %v7761 = vunpack.c.l.b16 %v7246
        %v7762 = vunpack.c.h.b16 %v7246
        %v7763 = vunpack.c.l.b16 %v7247
        %v7764 = vunpack.c.h.b16 %v7247
        %v7765 = vunpack.c.l.b16 %v7248
        %v7766 = vunpack.c.h.b16 %v7248
        %v7767 = vunpack.c.l.b16 %v7249
        %v7768 = vunpack.c.h.b16 %v7249
        %v7769 = vunpack.c.l.b16 %v7250
        %v7770 = vunpack.c.h.b16 %v7250
        %v7771 = vunpack.c.l.b16 %v7251
        %v7772 = vunpack.c.h.b16 %v7251
        %v7773 = vunpack.c.l.b16 %v7252
        %v7774 = vunpack.c.h.b16 %v7252
        %v7775 = vunpack.c.l.b16 %v7253
        %v7776 = vunpack.c.h.b16 %v7253
        %v7777 = vunpack.c.l.b16 %v7254
        %v7778 = vunpack.c.h.b16 %v7254
        %v7779 = vunpack.c.l.b16 %v7255
        %v7780 = vunpack.c.h.b16 %v7255
        %v7781 = vunpack.c.l.b16 %v7256
        %v7782 = vunpack.c.h.b16 %v7256
        %v7783 = vunpack.c.l.b16 %v7257
        %v7784 = vunpack.c.h.b16 %v7257
        %v7785 = vunpack.c.l.b16 %v7258
        %v7786 = vunpack.c.h.b16 %v7258
        %v7787 = vunpack.c.l.b16 %v7259
        %v7788 = vunpack.c.h.b16 %v7259
        %v7789 = vunpack.c.l.b16 %v7260
        %v7790 = vunpack.c.h.b16 %v7260
        %v7791 = vunpack.c.l.b16 %v7261
        %v7792 = vunpack.c.h.b16 %v7261
        %v7793 = vunpack.c.l.b16 %v7262
        %v7794 = vunpack.c.h.b16 %v7262
        %v7795 = vunpack.c.l.b16 %v7263
        %v7796 = vunpack.c.h.b16 %v7263
        %v7797 = vunpack.c.l.b16 %v7264
        %v7798 = vunpack.c.h.b16 %v7264
        %v7799 = vunpack.c.l.b16 %v7265
        %v7800 = vunpack.c.h.b16 %v7265
        %v7801 = vunpack.c.l.b16 %v7266
        %v7802 = vunpack.c.h.b16 %v7266
        %v7803 = vunpack.c.l.b16 %v7267
        %v7804 = vunpack.c.h.b16 %v7267
        %v7805 = vunpack.c.l.b16 %v7268
        %v7806 = vunpack.c.h.b16 %v7268
        %v7807 = vunpack.c.l.b16 %v7269
        %v7808 = vunpack.c.h.b16 %v7269
        %v7809 = vunpack.c.l.b16 %v7270
        %v7810 = vunpack.c.h.b16 %v7270
        %v7811 = vunpack.c.l.b16 %v7271
        %v7812 = vunpack.c.h.b16 %v7271
        %v7813 = vunpack.c.l.b16 %v7272
        %v7814 = vunpack.c.h.b16 %v7272
        %v7815 = vunpack.c.l.b16 %v7273
        %v7816 = vunpack.c.h.b16 %v7273
        %v7817 = vunpack.c.l.b16 %v7274
        %v7818 = vunpack.c.h.b16 %v7274
        %v7819 = vunpack.c.l.b16 %v7275
        %v7820 = vunpack.c.h.b16 %v7275
        %v7821 = vunpack.c.l.b16 %v7276
        %v7822 = vunpack.c.h.b16 %v7276
        %v7823 = vunpack.c.l.b16 %v7277
        %v7824 = vunpack.c.h.b16 %v7277
        %v7825 = vunpack.c.l.b16 %v7278
        %v7826 = vunpack.c.h.b16 %v7278
        %v7827 = vunpack.c.l.b16 %v7279
        %v7828 = vunpack.c.h.b16 %v7279
        %v7829 = vunpack.c.l.b16 %v7280
        %v7830 = vunpack.c.h.b16 %v7280
        %v7831 = vunpack.c.l.b16 %v7281
        %v7832 = vunpack.c.h.b16 %v7281
        %v7833 = vunpack.c.l.b16 %v7282
        %v7834 = vunpack.c.h.b16 %v7282
        %v7835 = vunpack.c.l.b16 %v7283
        %v7836 = vunpack.c.h.b16 %v7283
        %v7837 = vunpack.c.l.b16 %v7284
        %v7838 = vunpack.c.h.b16 %v7284
        %v7839 = vunpack.c.l.b16 %v7285
        %v7840 = vunpack.c.h.b16 %v7285
        %v7841 = vunpack.c.l.b16 %v7286
        %v7842 = vunpack.c.h.b16 %v7286
        %v7843 = vunpack.c.l.b16 %v7287
        %v7844 = vunpack.c.h.b16 %v7287
        %v7845 = vunpack.c.l.b16 %v7288
        %v7846 = vunpack.c.h.b16 %v7288
        %v7847 = vunpack.c.l.b16 %v7289
        %v7848 = vunpack.c.h.b16 %v7289
        %v7849 = vunpack.c.l.b16 %v7290
        %v7850 = vunpack.c.h.b16 %v7290
        %v7851 = vunpack.c.l.b16 %v7291
        %v7852 = vunpack.c.h.b16 %v7291
        %v7853 = vunpack.c.l.b16 %v7292
        %v7854 = vunpack.c.h.b16 %v7292
        %v7855 = vunpack.c.l.b16 %v7293
        %v7856 = vunpack.c.h.b16 %v7293
        %v7857 = vunpack.c.l.b16 %v7294
        %v7858 = vunpack.c.h.b16 %v7294
        %v7859 = vunpack.c.l.b16 %v7295
        %v7860 = vunpack.c.h.b16 %v7295
        %v7861 = vunpack.c.l.b16 %v7296
        %v7862 = vunpack.c.h.b16 %v7296
        %v7863 = vunpack.c.l.b16 %v7297
        %v7864 = vunpack.c.h.b16 %v7297
        %v7865 = vunpack.c.l.b16 %v7298
        %v7866 = vunpack.c.h.b16 %v7298
        %v7867 = vunpack.c.l.b16 %v7299
        %v7868 = vunpack.c.h.b16 %v7299
        %v7869 = vunpack.c.l.b16 %v7300
        %v7870 = vunpack.c.h.b16 %v7300
        %v7871 = vunpack.c.l.b16 %v7301
        %v7872 = vunpack.c.h.b16 %v7301
        %v7873 = vunpack.c.l.b16 %v7302
        %v7874 = vunpack.c.h.b16 %v7302
        %v7875 = vunpack.c.l.b16 %v7303
        %v7876 = vunpack.c.h.b16 %v7303
        %v7877 = vunpack.c.l.b16 %v7304
        %v7878 = vunpack.c.h.b16 %v7304
        %v7879 = vunpack.c.l.b16 %v7305
        %v7880 = vunpack.c.h.b16 %v7305
        %v7881 = vunpack.c.l.b16 %v7306
        %v7882 = vunpack.c.h.b16 %v7306
        %v7883 = vunpack.c.l.b16 %v7307
        %v7884 = vunpack.c.h.b16 %v7307
        %v7885 = vunpack.c.l.b16 %v7308
        %v7886 = vunpack.c.h.b16 %v7308
        %v7887 = vunpack.c.l.b16 %v7309
        %v7888 = vunpack.c.h.b16 %v7309
        %v7889 = vunpack.c.l.b16 %v7310
        %v7890 = vunpack.c.h.b16 %v7310
        %v7891 = vunpack.c.l.b16 %v7311
        %v7892 = vunpack.c.h.b16 %v7311
        %v7893 = vunpack.c.l.b16 %v7312
        %v7894 = vunpack.c.h.b16 %v7312
        %v7895 = vunpack.c.l.b16 %v7313
        %v7896 = vunpack.c.h.b16 %v7313
        %v7897 = vunpack.c.l.b16 %v7314
        %v7898 = vunpack.c.h.b16 %v7314
        %v7899 = vunpack.c.l.b16 %v7315
        %v7900 = vunpack.c.h.b16 %v7315
        %v7901 = vunpack.c.l.b16 %v7316
        %v7902 = vunpack.c.h.b16 %v7316
        %v7903 = vunpack.c.l.b16 %v7317
        %v7904 = vunpack.c.h.b16 %v7317
        %v7905 = vunpack.c.l.b16 %v7318
        %v7906 = vunpack.c.h.b16 %v7318
        %v7907 = vunpack.c.l.b16 %v7319
        %v7908 = vunpack.c.h.b16 %v7319
        %v7909 = vunpack.c.l.b16 %v7320
        %v7910 = vunpack.c.h.b16 %v7320
        %v7911 = vunpack.c.l.b16 %v7321
        %v7912 = vunpack.c.h.b16 %v7321
        %v7913 = vunpack.c.l.b16 %v7322
        %v7914 = vunpack.c.h.b16 %v7322
        %v7915 = vunpack.c.l.b16 %v7323
        %v7916 = vunpack.c.h.b16 %v7323
        %v7917 = vunpack.c.l.b16 %v7324
        %v7918 = vunpack.c.h.b16 %v7324
        %v7919 = vunpack.c.l.b16 %v7325
        %v7920 = vunpack.c.h.b16 %v7325
        %v7921 = vunpack.c.l.b16 %v7326
        %v7922 = vunpack.c.h.b16 %v7326
        %v7923 = vunpack.c.l.b16 %v7327
        %v7924 = vunpack.c.h.b16 %v7327
        %v7925 = vunpack.c.l.b16 %v7328
        %v7926 = vunpack.c.h.b16 %v7328
        %v7927 = vunpack.c.l.b16 %v7329
        %v7928 = vunpack.c.h.b16 %v7329
        %v7929 = vunpack.c.l.b16 %v7330
        %v7930 = vunpack.c.h.b16 %v7330
        %v7931 = vunpack.c.l.b16 %v7331
        %v7932 = vunpack.c.h.b16 %v7331
        %v7933 = vunpack.c.l.b16 %v7332
        %v7934 = vunpack.c.h.b16 %v7332
        %v7935 = vunpack.c.l.b16 %v7333
        %v7936 = vunpack.c.h.b16 %v7333
        %v7937 = vunpack.c.l.b16 %v7334
        %v7938 = vunpack.c.h.b16 %v7334
        %v7939 = vunpack.c.l.b16 %v7335
        %v7940 = vunpack.c.h.b16 %v7335
        %v7941 = vunpack.c.l.b16 %v7336
        %v7942 = vunpack.c.h.b16 %v7336
        %v7943 = vunpack.c.l.b16 %v7337
        %v7944 = vunpack.c.h.b16 %v7337
        %v7945 = vunpack.c.l.b16 %v7338
        %v7946 = vunpack.c.h.b16 %v7338
        %v7947 = vunpack.c.l.b16 %v7339
        %v7948 = vunpack.c.h.b16 %v7339
        %v7949 = vunpack.c.l.b16 %v7340
        %v7950 = vunpack.c.h.b16 %v7340
        %v7951 = vunpack.c.l.b16 %v7341
        %v7952 = vunpack.c.h.b16 %v7341
        %v7953 = vunpack.c.l.b16 %v7342
        %v7954 = vunpack.c.h.b16 %v7342
        %v7955 = vunpack.c.l.b16 %v7343
        %v7956 = vunpack.c.h.b16 %v7343
        %v7957 = vunpack.c.l.b16 %v7344
        %v7958 = vunpack.c.h.b16 %v7344
        %v7959 = vunpack.c.l.b16 %v7345
        %v7960 = vunpack.c.h.b16 %v7345
        %v7961 = vunpack.c.l.b16 %v7346
        %v7962 = vunpack.c.h.b16 %v7346
        %v7963 = vunpack.c.l.b16 %v7347
        %v7964 = vunpack.c.h.b16 %v7347
        %v7965 = vunpack.c.l.b16 %v7348
        %v7966 = vunpack.c.h.b16 %v7348
        %v7967 = vunpack.c.l.b16 %v7349
        %v7968 = vunpack.c.h.b16 %v7349
        %v7969 = vunpack.c.l.b16 %v7350
        %v7970 = vunpack.c.h.b16 %v7350
        %v7971 = vunpack.c.l.b16 %v7351
        %v7972 = vunpack.c.h.b16 %v7351
        %v7973 = vunpack.c.l.b16 %v7352
        %v7974 = vunpack.c.h.b16 %v7352
        %v7975 = vunpack.c.l.b16 %v7353
        %v7976 = vunpack.c.h.b16 %v7353
        %v7977 = vunpack.c.l.b16 %v7354
        %v7978 = vunpack.c.h.b16 %v7354
        %v7979 = vunpack.c.l.b16 %v7355
        %v7980 = vunpack.c.h.b16 %v7355
        %v7981 = vunpack.c.l.b16 %v7356
        %v7982 = vunpack.c.h.b16 %v7356
        %v7983 = vunpack.c.l.b16 %v7357
        %v7984 = vunpack.c.h.b16 %v7357
        %v7985 = vunpack.c.l.b16 %v7358
        %v7986 = vunpack.c.h.b16 %v7358
        %v7987 = vunpack.c.l.b16 %v7359
        %v7988 = vunpack.c.h.b16 %v7359
        %v7989 = vunpack.c.l.b16 %v7360
        %v7990 = vunpack.c.h.b16 %v7360
        %v7991 = vunpack.c.l.b16 %v7361
        %v7992 = vunpack.c.h.b16 %v7361
        %v7993 = vunpack.c.l.b16 %v7362
        %v7994 = vunpack.c.h.b16 %v7362
        %v7995 = vunpack.c.l.b16 %v7363
        %v7996 = vunpack.c.h.b16 %v7363
        %v7997 = vunpack.c.l.b16 %v7364
        %v7998 = vunpack.c.h.b16 %v7364
        %v7999 = vunpack.c.l.b16 %v7365
        %v8000 = vunpack.c.h.b16 %v7365
        %v8001 = vunpack.c.l.b16 %v7366
        %v8002 = vunpack.c.h.b16 %v7366
        %v8003 = vunpack.c.l.b16 %v7367
        %v8004 = vunpack.c.h.b16 %v7367
        %v8005 = vunpack.c.l.b16 %v7368
        %v8006 = vunpack.c.h.b16 %v7368
        %v8007 = vunpack.c.l.b16 %v7369
        %v8008 = vunpack.c.h.b16 %v7369
        %v8009 = vunpack.c.l.b16 %v7370
        %v8010 = vunpack.c.h.b16 %v7370
        %v8011 = vunpack.c.l.b16 %v7371
        %v8012 = vunpack.c.h.b16 %v7371
        %v8013 = vunpack.c.l.b16 %v7372
        %v8014 = vunpack.c.h.b16 %v7372
        %v8015 = vunpack.c.l.b16 %v7373
        %v8016 = vunpack.c.h.b16 %v7373
        %v8017 = vunpack.c.l.b16 %v7374
        %v8018 = vunpack.c.h.b16 %v7374
        %v8019 = vunpack.c.l.b16 %v7375
        %v8020 = vunpack.c.h.b16 %v7375
        %v8021 = vunpack.c.l.b16 %v7376
        %v8022 = vunpack.c.h.b16 %v7376
        %v8023 = vunpack.c.l.b16 %v7377
        %v8024 = vunpack.c.h.b16 %v7377
        %v8025 = vunpack.c.l.b16 %v7378
        %v8026 = vunpack.c.h.b16 %v7378
        %v8027 = vunpack.c.l.b16 %v7379
        %v8028 = vunpack.c.h.b16 %v7379
        %v8029 = vunpack.c.l.b16 %v7380
        %v8030 = vunpack.c.h.b16 %v7380
        %v8031 = vunpack.c.l.b16 %v7381
        %v8032 = vunpack.c.h.b16 %v7381
        %v8033 = vunpack.c.l.b16 %v7382
        %v8034 = vunpack.c.h.b16 %v7382
        %v8035 = vunpack.c.l.b16 %v7383
        %v8036 = vunpack.c.h.b16 %v7383
        %v8037 = vunpack.c.l.b16 %v7384
        %v8038 = vunpack.c.h.b16 %v7384
        %v8039 = vunpack.c.l.b16 %v7385
        %v8040 = vunpack.c.h.b16 %v7385
        %v8041 = vunpack.c.l.b16 %v7386
        %v8042 = vunpack.c.h.b16 %v7386
        %v8043 = vunpack.c.l.b16 %v7387
        %v8044 = vunpack.c.h.b16 %v7387
        %v8045 = vunpack.c.l.b16 %v7388
        %v8046 = vunpack.c.h.b16 %v7388
        %v8047 = vunpack.c.l.b16 %v7389
        %v8048 = vunpack.c.h.b16 %v7389
        %v8049 = vunpack.c.l.b16 %v7390
        %v8050 = vunpack.c.h.b16 %v7390
        %v8051 = vunpack.c.l.b16 %v7391
        %v8052 = vunpack.c.h.b16 %v7391
        %v8053 = vunpack.c.l.b16 %v7392
        %v8054 = vunpack.c.h.b16 %v7392
        %v8055 = vunpack.c.l.b16 %v7393
        %v8056 = vunpack.c.h.b16 %v7393
        %v8057 = vunpack.c.l.b16 %v7394
        %v8058 = vunpack.c.h.b16 %v7394
        %v8059 = vunpack.c.l.b16 %v7395
        %v8060 = vunpack.c.h.b16 %v7395
        %v8061 = vunpack.c.l.b16 %v7396
        %v8062 = vunpack.c.h.b16 %v7396
        %v8063 = vunpack.c.l.b16 %v7397
        %v8064 = vunpack.c.h.b16 %v7397
        %v8065 = vunpack.c.l.b16 %v7398
        %v8066 = vunpack.c.h.b16 %v7398
        %v8067 = vunpack.c.l.b16 %v7399
        %v8068 = vunpack.c.h.b16 %v7399
        %v8069 = vunpack.c.l.b16 %v7400
        %v8070 = vunpack.c.h.b16 %v7400
        %v8071 = vunpack.c.l.b16 %v7401
        %v8072 = vunpack.c.h.b16 %v7401
        %v8073 = vunpack.c.l.b16 %v7402
        %v8074 = vunpack.c.h.b16 %v7402
        %v8075 = vunpack.c.l.b16 %v7403
        %v8076 = vunpack.c.h.b16 %v7403
        %v8077 = vunpack.c.l.b16 %v7404
        %v8078 = vunpack.c.h.b16 %v7404
        %v8079 = vunpack.c.l.b16 %v7405
        %v8080 = vunpack.c.h.b16 %v7405
        %v8081 = vunpack.c.l.b16 %v7406
        %v8082 = vunpack.c.h.b16 %v7406
        %v8083 = vunpack.c.l.b16 %v7407
        %v8084 = vunpack.c.h.b16 %v7407
        %v8085 = vunpack.c.l.b16 %v7408
        %v8086 = vunpack.c.h.b16 %v7408
        %v8087 = vunpack.c.l.b16 %v7409
        %v8088 = vunpack.c.h.b16 %v7409
        %v8089 = vunpack.c.l.b16 %v7410
        %v8090 = vunpack.c.h.b16 %v7410
        %v8091 = vunpack.c.l.b16 %v7411
        %v8092 = vunpack.c.h.b16 %v7411
        %v8093 = vunpack.c.l.b16 %v7412
        %v8094 = vunpack.c.h.b16 %v7412
        %v8095 = vunpack.c.l.b16 %v7413
        %v8096 = vunpack.c.h.b16 %v7413
        %v8097 = vunpack.c.l.b16 %v7414
        %v8098 = vunpack.c.h.b16 %v7414
        %v8099 = vunpack.c.l.b16 %v7415
        %v8100 = vunpack.c.h.b16 %v7415
        %v8101 = vunpack.c.l.b16 %v7416
        %v8102 = vunpack.c.h.b16 %v7416
        %v8103 = vunpack.c.l.b16 %v7417
        %v8104 = vunpack.c.h.b16 %v7417
        %v8105 = vunpack.c.l.b16 %v7418
        %v8106 = vunpack.c.h.b16 %v7418
        %v8107 = vunpack.c.l.b16 %v7419
        %v8108 = vunpack.c.h.b16 %v7419
        %v8109 = vunpack.c.l.b16 %v7420
        %v8110 = vunpack.c.h.b16 %v7420
        %v8111 = vunpack.c.l.b16 %v7421
        %v8112 = vunpack.c.h.b16 %v7421
        %v8113 = vunpack.c.l.b16 %v7422
        %v8114 = vunpack.c.h.b16 %v7422
        %v8115 = vunpack.c.l.b16 %v7423
        %v8116 = vunpack.c.h.b16 %v7423
        %v8117 = vunpack.c.l.b16 %v7424
        %v8118 = vunpack.c.h.b16 %v7424
        %v8119 = vunpack.c.l.b16 %v7425
        %v8120 = vunpack.c.h.b16 %v7425
        %v8121 = vunpack.c.l.b16 %v7426
        %v8122 = vunpack.c.h.b16 %v7426
        %v8123 = vunpack.c.l.b16 %v7427
        %v8124 = vunpack.c.h.b16 %v7427
        %v8125 = vunpack.c.l.b16 %v7428
        %v8126 = vunpack.c.h.b16 %v7428
        %v8127 = vunpack.c.l.b16 %v7429
        %v8128 = vunpack.c.h.b16 %v7429
        %v8129 = vunpack.c.l.b16 %v7430
        %v8130 = vunpack.c.h.b16 %v7430
        %v8131 = vunpack.c.l.b16 %v7431
        %v8132 = vunpack.c.h.b16 %v7431
        %v8133 = vunpack.c.l.b16 %v7432
        %v8134 = vunpack.c.h.b16 %v7432
        %v8135 = vunpack.c.l.b16 %v7433
        %v8136 = vunpack.c.h.b16 %v7433
        %v8137 = vunpack.c.l.b16 %v7434
        %v8138 = vunpack.c.h.b16 %v7434
        %v8139 = vunpack.c.l.b16 %v7435
        %v8140 = vunpack.c.h.b16 %v7435
        %v8141 = vunpack.c.l.b16 %v7436
        %v8142 = vunpack.c.h.b16 %v7436
        %v8143 = vunpack.c.l.b16 %v7437
        %v8144 = vunpack.c.h.b16 %v7437
        %v8145 = vunpack.c.l.b16 %v7438
        %v8146 = vunpack.c.h.b16 %v7438
        %v8147 = vunpack.c.l.b16 %v7439
        %v8148 = vunpack.c.h.b16 %v7439
        %v8149 = vunpack.c.l.b16 %v7440
        %v8150 = vunpack.c.h.b16 %v7440
        %v8151 = vunpack.c.l.b16 %v7441
        %v8152 = vunpack.c.h.b16 %v7441
        %v8153 = vunpack.c.l.b16 %v7442
        %v8154 = vunpack.c.h.b16 %v7442
        %v8155 = vunpack.c.l.b16 %v7443
        %v8156 = vunpack.c.h.b16 %v7443
        %v8157 = vunpack.c.l.b16 %v7444
        %v8158 = vunpack.c.h.b16 %v7444
        %v8159 = vunpack.c.l.b16 %v7445
        %v8160 = vunpack.c.h.b16 %v7445
        %v8161 = vunpack.c.l.b16 %v7446
        %v8162 = vunpack.c.h.b16 %v7446
        %v8163 = vunpack.c.l.b16 %v7447
        %v8164 = vunpack.c.h.b16 %v7447
        %v8165 = vunpack.c.l.b16 %v7448
        %v8166 = vunpack.c.h.b16 %v7448
        %v8167 = vunpack.c.l.b16 %v7449
        %v8168 = vunpack.c.h.b16 %v7449
        %v8169 = vunpack.c.l.b16 %v7450
        %v8170 = vunpack.c.h.b16 %v7450
        %v8171 = vunpack.c.l.b16 %v7451
        %v8172 = vunpack.c.h.b16 %v7451
        %v8173 = vunpack.c.l.b16 %v7452
        %v8174 = vunpack.c.h.b16 %v7452
        %v8175 = vunpack.c.l.b16 %v7453
        %v8176 = vunpack.c.h.b16 %v7453
        %v8177 = vunpack.c.l.b16 %v7454
        %v8178 = vunpack.c.h.b16 %v7454
        %v8179 = vunpack.c.l.b16 %v7455
        %v8180 = vunpack.c.h.b16 %v7455
        %v8181 = vunpack.c.l.b16 %v7456
        %v8182 = vunpack.c.h.b16 %v7456
        %v8183 = vunpack.c.l.b16 %v7457
        %v8184 = vunpack.c.h.b16 %v7457
        %v8185 = vunpack.c.l.b16 %v7458
        %v8186 = vunpack.c.h.b16 %v7458
        %v8187 = vunpack.c.l.b16 %v7459
        %v8188 = vunpack.c.h.b16 %v7459
        %v8189 = vunpack.c.l.b16 %v7460
        %v8190 = vunpack.c.h.b16 %v7460
        %v8191 = vunpack.c.l.b16 %v7461
        %v8192 = vunpack.c.h.b16 %v7461
        %v8193 = vunpack.c.l.b16 %v7462
        %v8194 = vunpack.c.h.b16 %v7462
        %v8195 = vunpack.c.l.b16 %v7463
        %v8196 = vunpack.c.h.b16 %v7463
        %v8197 = vpack.c.b16 %v7751, %v7749
        %v8198 = vpack.c.b16 %v7752, %v7750
        %v8199 = vpack.c.b16 %v7755, %v7753
        %v8200 = vpack.c.b16 %v7756, %v7754
        %v8201 = vpack.c.b16 %v7759, %v7757
        %v8202 = vpack.c.b16 %v7760, %v7758
        %v8203 = vpack.c.b16 %v7763, %v7761
        %v8204 = vpack.c.b16 %v7764, %v7762
        %v8205 = vpack.c.b16 %v7767, %v7765
        %v8206 = vpack.c.b16 %v7768, %v7766
        %v8207 = vpack.c.b16 %v7771, %v7769
        %v8208 = vpack.c.b16 %v7772, %v7770
        %v8209 = vpack.c.b16 %v7775, %v7773
        %v8210 = vpack.c.b16 %v7776, %v7774
        %v8211 = vpack.c.b16 %v7779, %v7777
        %v8212 = vpack.c.b16 %v7780, %v7778
        %v8213 = vpack.c.b16 %v7783, %v7781
        %v8214 = vpack.c.b16 %v7784, %v7782
        %v8215 = vpack.c.b16 %v7787, %v7785
        %v8216 = vpack.c.b16 %v7788, %v7786
        %v8217 = vpack.c.b16 %v7791, %v7789
        %v8218 = vpack.c.b16 %v7792, %v7790
        %v8219 = vpack.c.b16 %v7795, %v7793
        %v8220 = vpack.c.b16 %v7796, %v7794
        %v8221 = vpack.c.b16 %v7799, %v7797
        %v8222 = vpack.c.b16 %v7800, %v7798
        %v8223 = vpack.c.b16 %v7803, %v7801
        %v8224 = vpack.c.b16 %v7804, %v7802
        %v8225 = vpack.c.b16 %v7807, %v7805
        %v8226 = vpack.c.b16 %v7808, %v7806
        %v8227 = vpack.c.b16 %v7811, %v7809
        %v8228 = vpack.c.b16 %v7812, %v7810
        %v8229 = vpack.c.b16 %v7815, %v7813
        %v8230 = vpack.c.b16 %v7816, %v7814
        %v8231 = vpack.c.b16 %v7819, %v7817
        %v8232 = vpack.c.b16 %v7820, %v7818
        %v8233 = vpack.c.b16 %v7823, %v7821
        %v8234 = vpack.c.b16 %v7824, %v7822
        %v8235 = vpack.c.b16 %v7827, %v7825
        %v8236 = vpack.c.b16 %v7828, %v7826
        %v8237 = vpack.c.b16 %v7831, %v7829
        %v8238 = vpack.c.b16 %v7832, %v7830
        %v8239 = vpack.c.b16 %v7835, %v7833
        %v8240 = vpack.c.b16 %v7836, %v7834
        %v8241 = vpack.c.b16 %v7839, %v7837
        %v8242 = vpack.c.b16 %v7840, %v7838
        %v8243 = vpack.c.b16 %v7843, %v7841
        %v8244 = vpack.c.b16 %v7844, %v7842
        %v8245 = vpack.c.b16 %v7847, %v7845
        %v8246 = vpack.c.b16 %v7848, %v7846
        %v8247 = vpack.c.b16 %v7851, %v7849
        %v8248 = vpack.c.b16 %v7852, %v7850
        %v8249 = vpack.c.b16 %v7855, %v7853
        %v8250 = vpack.c.b16 %v7856, %v7854
        %v8251 = vpack.c.b16 %v7859, %v7857
        %v8252 = vpack.c.b16 %v7860, %v7858
        %v8253 = vpack.c.b16 %v7863, %v7861
        %v8254 = vpack.c.b16 %v7864, %v7862
        %v8255 = vpack.c.b16 %v7867, %v7865
        %v8256 = vpack.c.b16 %v7868, %v7866
        %v8257 = vpack.c.b16 %v7871, %v7869
        %v8258 = vpack.c.b16 %v7872, %v7870
        %v8259 = vpack.c.b16 %v7875, %v7873
        %v8260 = vpack.c.b16 %v7876, %v7874
        %v8261 = vpack.c.b16 %v7879, %v7877
        %v8262 = vpack.c.b16 %v7880, %v7878
        %v8263 = vpack.c.b16 %v7883, %v7881
        %v8264 = vpack.c.b16 %v7884, %v7882
        %v8265 = vpack.c.b16 %v7887, %v7885
        %v8266 = vpack.c.b16 %v7888, %v7886
        %v8267 = vpack.c.b16 %v7891, %v7889
        %v8268 = vpack.c.b16 %v7892, %v7890
        %v8269 = vpack.c.b16 %v7895, %v7893
        %v8270 = vpack.c.b16 %v7896, %v7894
        %v8271 = vpack.c.b16 %v7899, %v7897
        %v8272 = vpack.c.b16 %v7900, %v7898
        %v8273 = vpack.c.b16 %v7903, %v7901
        %v8274 = vpack.c.b16 %v7904, %v7902
        %v8275 = vpack.c.b16 %v7907, %v7905
        %v8276 = vpack.c.b16 %v7908, %v7906
        %v8277 = vpack.c.b16 %v7911, %v7909
        %v8278 = vpack.c.b16 %v7912, %v7910
        %v8279 = vpack.c.b16 %v7915, %v7913
        %v8280 = vpack.c.b16 %v7916, %v7914
        %v8281 = vpack.c.b16 %v7919, %v7917
        %v8282 = vpack.c.b16 %v7920, %v7918
        %v8283 = vpack.c.b16 %v7923, %v7921
        %v8284 = vpack.c.b16 %v7924, %v7922
        %v8285 = vpack.c.b16 %v7927, %v7925
        %v8286 = vpack.c.b16 %v7928, %v7926
        %v8287 = vpack.c.b16 %v7931, %v7929
        %v8288 = vpack.c.b16 %v7932, %v7930
        %v8289 = vpack.c.b16 %v7935, %v7933
        %v8290 = vpack.c.b16 %v7936, %v7934
        %v8291 = vpack.c.b16 %v7939, %v7937
        %v8292 = vpack.c.b16 %v7940, %v7938
        %v8293 = vpack.c.b16 %v7943, %v7941
        %v8294 = vpack.c.b16 %v7944, %v7942
        %v8295 = vpack.c.b16 %v7947, %v7945
        %v8296 = vpack.c.b16 %v7948, %v7946
        %v8297 = vpack.c.b16 %v7951, %v7949
        %v8298 = vpack.c.b16 %v7952, %v7950
        %v8299 = vpack.c.b16 %v7955, %v7953
        %v8300 = vpack.c.b16 %v7956, %v7954
        %v8301 = vpack.c.b16 %v7959, %v7957
        %v8302 = vpack.c.b16 %v7960, %v7958
        %v8303 = vpack.c.b16 %v7963, %v7961
        %v8304 = vpack.c.b16 %v7964, %v7962
        %v8305 = vpack.c.b16 %v7967, %v7965
        %v8306 = vpack.c.b16 %v7968, %v7966
        %v8307 = vpack.c.b16 %v7971, %v7969
        %v8308 = vpack.c.b16 %v7972, %v7970
        %v8309 = vpack.c.b16 %v7975, %v7973
        %v8310 = vpack.c.b16 %v7976, %v7974
        %v8311 = vpack.c.b16 %v7979, %v7977
        %v8312 = vpack.c.b16 %v7980, %v7978
        %v8313 = vpack.c.b16 %v7983, %v7981
        %v8314 = vpack.c.b16 %v7984, %v7982
        %v8315 = vpack.c.b16 %v7987, %v7985
        %v8316 = vpack.c.b16 %v7988, %v7986
        %v8317 = vpack.c.b16 %v7991, %v7989
        %v8318 = vpack.c.b16 %v7992, %v7990
        %v8319 = vpack.c.b16 %v7995, %v7993
        %v8320 = vpack.c.b16 %v7996, %v7994
        %v8321 = vpack.c.b16 %v7999, %v7997
        %v8322 = vpack.c.b16 %v8000, %v7998
        %v8323 = vpack.c.b16 %v8003, %v8001
        %v8324 = vpack.c.b16 %v8004, %v8002
        %v8325 = vpack.c.b16 %v8007, %v8005
        %v8326 = vpack.c.b16 %v8008, %v8006
        %v8327 = vpack.c.b16 %v8011, %v8009
        %v8328 = vpack.c.b16 %v8012, %v8010
        %v8329 = vpack.c.b16 %v8015, %v8013
        %v8330 = vpack.c.b16 %v8016, %v8014
        %v8331 = vpack.c.b16 %v8019, %v8017
        %v8332 = vpack.c.b16 %v8020, %v8018
        %v8333 = vpack.c.b16 %v8023, %v8021
        %v8334 = vpack.c.b16 %v8024, %v8022
        %v8335 = vpack.c.b16 %v8027, %v8025
        %v8336 = vpack.c.b16 %v8028, %v8026
        %v8337 = vpack.c.b16 %v8031, %v8029
        %v8338 = vpack.c.b16 %v8032, %v8030
        %v8339 = vpack.c.b16 %v8035, %v8033
        %v8340 = vpack.c.b16 %v8036, %v8034
        %v8341 = vpack.c.b16 %v8039, %v8037
        %v8342 = vpack.c.b16 %v8040, %v8038
        %v8343 = vpack.c.b16 %v8043, %v8041
        %v8344 = vpack.c.b16 %v8044, %v8042
        %v8345 = vpack.c.b16 %v8047, %v8045
        %v8346 = vpack.c.b16 %v8048, %v8046
        %v8347 = vpack.c.b16 %v8051, %v8049
        %v8348 = vpack.c.b16 %v8052, %v8050
        %v8349 = vpack.c.b16 %v8055, %v8053
        %v8350 = vpack.c.b16 %v8056, %v8054
        %v8351 = vpack.c.b16 %v8059, %v8057
        %v8352 = vpack.c.b16 %v8060, %v8058
        %v8353 = vpack.c.b16 %v8063, %v8061
        %v8354 = vpack.c.b16 %v8064, %v8062
        %v8355 = vpack.c.b16 %v8067, %v8065
        %v8356 = vpack.c.b16 %v8068, %v8066
        %v8357 = vpack.c.b16 %v8071, %v8069
        %v8358 = vpack.c.b16 %v8072, %v8070
        %v8359 = vpack.c.b16 %v8075, %v8073
        %v8360 = vpack.c.b16 %v8076, %v8074
        %v8361 = vpack.c.b16 %v8079, %v8077
        %v8362 = vpack.c.b16 %v8080, %v8078
        %v8363 = vpack.c.b16 %v8083, %v8081
        %v8364 = vpack.c.b16 %v8084, %v8082
        %v8365 = vpack.c.b16 %v8087, %v8085
        %v8366 = vpack.c.b16 %v8088, %v8086
        %v8367 = vpack.c.b16 %v8091, %v8089
        %v8368 = vpack.c.b16 %v8092, %v8090
        %v8369 = vpack.c.b16 %v8095, %v8093
        %v8370 = vpack.c.b16 %v8096, %v8094
        %v8371 = vpack.c.b16 %v8099, %v8097
        %v8372 = vpack.c.b16 %v8100, %v8098
        %v8373 = vpack.c.b16 %v8103, %v8101
        %v8374 = vpack.c.b16 %v8104, %v8102
        %v8375 = vpack.c.b16 %v8107, %v8105
        %v8376 = vpack.c.b16 %v8108, %v8106
        %v8377 = vpack.c.b16 %v8111, %v8109
        %v8378 = vpack.c.b16 %v8112, %v8110
        %v8379 = vpack.c.b16 %v8115, %v8113
        %v8380 = vpack.c.b16 %v8116, %v8114
        %v8381 = vpack.c.b16 %v8119, %v8117
        %v8382 = vpack.c.b16 %v8120, %v8118
        %v8383 = vpack.c.b16 %v8123, %v8121
        %v8384 = vpack.c.b16 %v8124, %v8122
        %v8385 = vpack.c.b16 %v8127, %v8125
        %v8386 = vpack.c.b16 %v8128, %v8126
        %v8387 = vpack.c.b16 %v8131, %v8129
        %v8388 = vpack.c.b16 %v8132, %v8130
        %v8389 = vpack.c.b16 %v8135, %v8133
        %v8390 = vpack.c.b16 %v8136, %v8134
        %v8391 = vpack.c.b16 %v8139, %v8137
        %v8392 = vpack.c.b16 %v8140, %v8138
        %v8393 = vpack.c.b16 %v8143, %v8141
        %v8394 = vpack.c.b16 %v8144, %v8142
        %v8395 = vpack.c.b16 %v8147, %v8145
        %v8396 = vpack.c.b16 %v8148, %v8146
        %v8397 = vpack.c.b16 %v8151, %v8149
        %v8398 = vpack.c.b16 %v8152, %v8150
        %v8399 = vpack.c.b16 %v8155, %v8153
        %v8400 = vpack.c.b16 %v8156, %v8154
        %v8401 = vpack.c.b16 %v8159, %v8157
        %v8402 = vpack.c.b16 %v8160, %v8158
        %v8403 = vpack.c.b16 %v8163, %v8161
        %v8404 = vpack.c.b16 %v8164, %v8162
        %v8405 = vpack.c.b16 %v8167, %v8165
        %v8406 = vpack.c.b16 %v8168, %v8166
        %v8407 = vpack.c.b16 %v8171, %v8169
        %v8408 = vpack.c.b16 %v8172, %v8170
        %v8409 = vpack.c.b16 %v8175, %v8173
        %v8410 = vpack.c.b16 %v8176, %v8174
        %v8411 = vpack.c.b16 %v8179, %v8177
        %v8412 = vpack.c.b16 %v8180, %v8178
        %v8413 = vpack.c.b16 %v8183, %v8181
        %v8414 = vpack.c.b16 %v8184, %v8182
        %v8415 = vpack.c.b16 %v8187, %v8185
        %v8416 = vpack.c.b16 %v8188, %v8186
        %v8417 = vpack.c.b16 %v8191, %v8189
        %v8418 = vpack.c.b16 %v8192, %v8190
        %v8419 = vpack.c.b16 %v8195, %v8193
        %v8420 = vpack.c.b16 %v8196, %v8194
        %8645 = vmatprep.subr.bf16.mxu0 %v8198
        %8646 = vmatpush1.bf16.msra.mxu0 %v8197
        %8647 = vmatprep.subr.bf16.mxu0 %v8200
        %8648 = vmatpush1.bf16.msra.mxu0 %v8199
        %8649 = vmatprep.subr.bf16.mxu0 %v8202
        %8650 = vmatpush1.bf16.msra.mxu0 %v8201
        %8651 = vmatprep.subr.bf16.mxu0 %v8204
        %8652 = vmatpush1.bf16.msra.mxu0 %v8203
        %8653 = vmatprep.subr.bf16.mxu0 %v8206
        %8654 = vmatpush1.bf16.msra.mxu0 %v8205
        %8655 = vmatprep.subr.bf16.mxu0 %v8208
        %8656 = vmatpush1.bf16.msra.mxu0 %v8207
        %8657 = vmatprep.subr.bf16.mxu0 %v8210
        %8658 = vmatpush1.bf16.msra.mxu0 %v8209
        %8659 = vmatprep.subr.bf16.mxu0 %v8212
        %8660 = vmatpush1.bf16.msra.mxu0 %v8211
        %8661 = vmatprep.subr.bf16.mxu0 %v8214
        %8662 = vmatpush1.bf16.msra.mxu0 %v8213
        %8663 = vmatprep.subr.bf16.mxu0 %v8216
        %8664 = vmatpush1.bf16.msra.mxu0 %v8215
        %8665 = vmatprep.subr.bf16.mxu0 %v8218
        %8666 = vmatpush1.bf16.msra.mxu0 %v8217
        %8667 = vmatprep.subr.bf16.mxu0 %v8220
        %8668 = vmatpush1.bf16.msra.mxu0 %v8219
        %8669 = vmatprep.subr.bf16.mxu0 %v8222
        %8670 = vmatpush1.bf16.msra.mxu0 %v8221
        %8671 = vmatprep.subr.bf16.mxu0 %v8224
        %8672 = vmatpush1.bf16.msra.mxu0 %v8223
        %8673 = vmatprep.subr.bf16.mxu0 %v8226
        %8674 = vmatpush1.bf16.msra.mxu0 %v8225
        %8675 = vmatprep.subr.bf16.mxu0 %v8228
        %8676 = vmatpush1.bf16.msra.mxu0 %v8227
        %8677 = vmatprep.mubr.bf16.mxu0 %v7498
        %8678 = vmatmul.mubr.bf16.gmra.mrb[0].mxu0 %v7497
        %v8679 = vpop.f32.mrb[0].mxu0
        %v8680 = vadd.f32 %v7469, %v8679
        %v8681 = vpop.f32.mrb[0].mxu0
        %v8682 = vadd.f32 %v7473, %v8681
        %v8683 = vpop.f32.mrb[0].mxu0
        %v8684 = vpop.f32.mrb[0].mxu0
        %8685 = vdwg.mxu0
        %8686 = vmatprep.subr.bf16.mxu0 %v8230
        %8687 = vmatpush1.bf16.msra.mxu0 %v8229
        %8688 = vmatprep.subr.bf16.mxu0 %v8232
        %8689 = vmatpush1.bf16.msra.mxu0 %v8231
        %8690 = vmatprep.subr.bf16.mxu0 %v8234
        %8691 = vmatpush1.bf16.msra.mxu0 %v8233
        %8692 = vmatprep.subr.bf16.mxu0 %v8236
        %8693 = vmatpush1.bf16.msra.mxu0 %v8235
        %8694 = vmatprep.subr.bf16.mxu0 %v8238
        %8695 = vmatpush1.bf16.msra.mxu0 %v8237
        %8696 = vmatprep.subr.bf16.mxu0 %v8240
        %8697 = vmatpush1.bf16.msra.mxu0 %v8239
        %8698 = vmatprep.subr.bf16.mxu0 %v8242
        %8699 = vmatpush1.bf16.msra.mxu0 %v8241
        %8700 = vmatprep.subr.bf16.mxu0 %v8244
        %8701 = vmatpush1.bf16.msra.mxu0 %v8243
        %8702 = vmatprep.subr.bf16.mxu0 %v8246
        %8703 = vmatpush1.bf16.msra.mxu0 %v8245
        %8704 = vmatprep.subr.bf16.mxu0 %v8248
        %8705 = vmatpush1.bf16.msra.mxu0 %v8247
        %8706 = vmatprep.subr.bf16.mxu0 %v8250
        %8707 = vmatpush1.bf16.msra.mxu0 %v8249
        %8708 = vmatprep.subr.bf16.mxu0 %v8252
        %8709 = vmatpush1.bf16.msra.mxu0 %v8251
        %8710 = vmatprep.subr.bf16.mxu0 %v8254
        %8711 = vmatpush1.bf16.msra.mxu0 %v8253
        %8712 = vmatprep.subr.bf16.mxu0 %v8256
        %8713 = vmatpush1.bf16.msra.mxu0 %v8255
        %8714 = vmatprep.subr.bf16.mxu0 %v8258
        %8715 = vmatpush1.bf16.msra.mxu0 %v8257
        %8716 = vmatprep.subr.bf16.mxu0 %v8260
        %8717 = vmatpush1.bf16.msra.mxu0 %v8259
        %8718 = vmatprep.mubr.bf16.mxu0 %v7500
        %8719 = vmatmul.mubr.bf16.gmra.mrb[0].mxu0 %v7499
        %v8720 = vpop.f32.mrb[0].mxu0
        %v8721 = vadd.f32 %v8680, %v8720
        %v8722 = vpop.f32.mrb[0].mxu0
        %v8723 = vadd.f32 %v8682, %v8722
        %v8724 = vpop.f32.mrb[0].mxu0
        %v8725 = vpop.f32.mrb[0].mxu0
        %8726 = vdwg.mxu0
        %8727 = vmatprep.subr.bf16.mxu0 %v8262
        %8728 = vmatpush1.bf16.msra.mxu0 %v8261
        %8729 = vmatprep.subr.bf16.mxu0 %v8264
        %8730 = vmatpush1.bf16.msra.mxu0 %v8263
        %8731 = vmatprep.subr.bf16.mxu0 %v8266
        %8732 = vmatpush1.bf16.msra.mxu0 %v8265
        %8733 = vmatprep.subr.bf16.mxu0 %v8268
        %8734 = vmatpush1.bf16.msra.mxu0 %v8267
        %8735 = vmatprep.subr.bf16.mxu0 %v8270
        %8736 = vmatpush1.bf16.msra.mxu0 %v8269
        %8737 = vmatprep.subr.bf16.mxu0 %v8272
        %8738 = vmatpush1.bf16.msra.mxu0 %v8271
        %8739 = vmatprep.subr.bf16.mxu0 %v8274
        %8740 = vmatpush1.bf16.msra.mxu0 %v8273
        %8741 = vmatprep.subr.bf16.mxu0 %v8276
        %8742 = vmatpush1.bf16.msra.mxu0 %v8275
        %8743 = vmatprep.subr.bf16.mxu0 %v8278
        %8744 = vmatpush1.bf16.msra.mxu0 %v8277
        %8745 = vmatprep.subr.bf16.mxu0 %v8280
        %8746 = vmatpush1.bf16.msra.mxu0 %v8279
        %8747 = vmatprep.subr.bf16.mxu0 %v8282
        %8748 = vmatpush1.bf16.msra.mxu0 %v8281
        %8749 = vmatprep.subr.bf16.mxu0 %v8284
        %8750 = vmatpush1.bf16.msra.mxu0 %v8283
        %8751 = vmatprep.subr.bf16.mxu0 %v8286
        %8752 = vmatpush1.bf16.msra.mxu0 %v8285
        %8753 = vmatprep.subr.bf16.mxu0 %v8288
        %8754 = vmatpush1.bf16.msra.mxu0 %v8287
        %8755 = vmatprep.subr.bf16.mxu0 %v8290
        %8756 = vmatpush1.bf16.msra.mxu0 %v8289
        %8757 = vmatprep.subr.bf16.mxu0 %v8292
        %8758 = vmatpush1.bf16.msra.mxu0 %v8291
        %8759 = vmatprep.mubr.bf16.mxu0 %v7502
        %8760 = vmatmul.mubr.bf16.gmra.mrb[0].mxu0 %v7501
        %v8761 = vpop.f32.mrb[0].mxu0
        %v8762 = vadd.f32 %v8721, %v8761
        %v8763 = vpop.f32.mrb[0].mxu0
        %v8764 = vadd.f32 %v8723, %v8763
        %v8765 = vpop.f32.mrb[0].mxu0
        %v8766 = vpop.f32.mrb[0].mxu0
        %8767 = vdwg.mxu0
        %8768 = vmatprep.subr.bf16.mxu0 %v8294
        %8769 = vmatpush1.bf16.msra.mxu0 %v8293
        %8770 = vmatprep.subr.bf16.mxu0 %v8296
        %8771 = vmatpush1.bf16.msra.mxu0 %v8295
        %8772 = vmatprep.subr.bf16.mxu0 %v8298
        %8773 = vmatpush1.bf16.msra.mxu0 %v8297
        %8774 = vmatprep.subr.bf16.mxu0 %v8300
        %8775 = vmatpush1.bf16.msra.mxu0 %v8299
        %8776 = vmatprep.subr.bf16.mxu0 %v8302
        %8777 = vmatpush1.bf16.msra.mxu0 %v8301
        %8778 = vmatprep.subr.bf16.mxu0 %v8304
        %8779 = vmatpush1.bf16.msra.mxu0 %v8303
        %8780 = vmatprep.subr.bf16.mxu0 %v8306
        %8781 = vmatpush1.bf16.msra.mxu0 %v8305
        %8782 = vmatprep.subr.bf16.mxu0 %v8308
        %8783 = vmatpush1.bf16.msra.mxu0 %v8307
        %8784 = vmatprep.subr.bf16.mxu0 %v8310
        %8785 = vmatpush1.bf16.msra.mxu0 %v8309
        %8786 = vmatprep.subr.bf16.mxu0 %v8312
        %8787 = vmatpush1.bf16.msra.mxu0 %v8311
        %8788 = vmatprep.subr.bf16.mxu0 %v8314
        %8789 = vmatpush1.bf16.msra.mxu0 %v8313
        %8790 = vmatprep.subr.bf16.mxu0 %v8316
        %8791 = vmatpush1.bf16.msra.mxu0 %v8315
        %8792 = vmatprep.subr.bf16.mxu0 %v8318
        %8793 = vmatpush1.bf16.msra.mxu0 %v8317
        %8794 = vmatprep.subr.bf16.mxu0 %v8320
        %8795 = vmatpush1.bf16.msra.mxu0 %v8319
        %8796 = vmatprep.subr.bf16.mxu0 %v8322
        %8797 = vmatpush1.bf16.msra.mxu0 %v8321
        %8798 = vmatprep.subr.bf16.mxu0 %v8324
        %8799 = vmatpush1.bf16.msra.mxu0 %v8323
        %8800 = vmatprep.mubr.bf16.mxu0 %v7504
        %8801 = vmatmul.mubr.bf16.gmra.mrb[0].mxu0 %v7503
        %v8802 = vpop.f32.mrb[0].mxu0
        %v8803 = vadd.f32 %v8762, %v8802
        %v8804 = vpop.f32.mrb[0].mxu0
        %v8805 = vadd.f32 %v8764, %v8804
        %v8806 = vpop.f32.mrb[0].mxu0
        %v8807 = vpop.f32.mrb[0].mxu0
        %8808 = vdwg.mxu0
        %8809 = vmatprep.subr.bf16.mxu0 %v8326
        %8810 = vmatpush1.bf16.msra.mxu0 %v8325
        %8811 = vmatprep.subr.bf16.mxu0 %v8328
        %8812 = vmatpush1.bf16.msra.mxu0 %v8327
        %8813 = vmatprep.subr.bf16.mxu0 %v8330
        %8814 = vmatpush1.bf16.msra.mxu0 %v8329
        %8815 = vmatprep.subr.bf16.mxu0 %v8332
        %8816 = vmatpush1.bf16.msra.mxu0 %v8331
        %8817 = vmatprep.subr.bf16.mxu0 %v8334
        %8818 = vmatpush1.bf16.msra.mxu0 %v8333
        %8819 = vmatprep.subr.bf16.mxu0 %v8336
        %8820 = vmatpush1.bf16.msra.mxu0 %v8335
        %8821 = vmatprep.subr.bf16.mxu0 %v8338
        %8822 = vmatpush1.bf16.msra.mxu0 %v8337
        %8823 = vmatprep.subr.bf16.mxu0 %v8340
        %8824 = vmatpush1.bf16.msra.mxu0 %v8339
        %8825 = vmatprep.subr.bf16.mxu0 %v8342
        %8826 = vmatpush1.bf16.msra.mxu0 %v8341
        %8827 = vmatprep.subr.bf16.mxu0 %v8344
        %8828 = vmatpush1.bf16.msra.mxu0 %v8343
        %8829 = vmatprep.subr.bf16.mxu0 %v8346
        %8830 = vmatpush1.bf16.msra.mxu0 %v8345
        %8831 = vmatprep.subr.bf16.mxu0 %v8348
        %8832 = vmatpush1.bf16.msra.mxu0 %v8347
        %8833 = vmatprep.subr.bf16.mxu0 %v8350
        %8834 = vmatpush1.bf16.msra.mxu0 %v8349
        %8835 = vmatprep.subr.bf16.mxu0 %v8352
        %8836 = vmatpush1.bf16.msra.mxu0 %v8351
        %8837 = vmatprep.subr.bf16.mxu0 %v8354
        %8838 = vmatpush1.bf16.msra.mxu0 %v8353
        %8839 = vmatprep.subr.bf16.mxu0 %v8356
        %8840 = vmatpush1.bf16.msra.mxu0 %v8355
        %8841 = vmatprep.mubr.bf16.mxu0 %v7506
        %8842 = vmatmul.mubr.bf16.gmra.mrb[0].mxu0 %v7505
        %v8843 = vpop.f32.mrb[0].mxu0
        %v8844 = vadd.f32 %v8803, %v8843
        %v8845 = vpop.f32.mrb[0].mxu0
        %v8846 = vadd.f32 %v8805, %v8845
        %v8847 = vpop.f32.mrb[0].mxu0
        %v8848 = vpop.f32.mrb[0].mxu0
        %8849 = vdwg.mxu0
        %8850 = vmatprep.subr.bf16.mxu0 %v8358
        %8851 = vmatpush1.bf16.msra.mxu0 %v8357
        %8852 = vmatprep.subr.bf16.mxu0 %v8360
        %8853 = vmatpush1.bf16.msra.mxu0 %v8359
        %8854 = vmatprep.subr.bf16.mxu0 %v8362
        %8855 = vmatpush1.bf16.msra.mxu0 %v8361
        %8856 = vmatprep.subr.bf16.mxu0 %v8364
        %8857 = vmatpush1.bf16.msra.mxu0 %v8363
        %8858 = vmatprep.subr.bf16.mxu0 %v8366
        %8859 = vmatpush1.bf16.msra.mxu0 %v8365
        %8860 = vmatprep.subr.bf16.mxu0 %v8368
        %8861 = vmatpush1.bf16.msra.mxu0 %v8367
        %8862 = vmatprep.subr.bf16.mxu0 %v8370
        %8863 = vmatpush1.bf16.msra.mxu0 %v8369
        %8864 = vmatprep.subr.bf16.mxu0 %v8372
        %8865 = vmatpush1.bf16.msra.mxu0 %v8371
        %8866 = vmatprep.subr.bf16.mxu0 %v8374
        %8867 = vmatpush1.bf16.msra.mxu0 %v8373
        %8868 = vmatprep.subr.bf16.mxu0 %v8376
        %8869 = vmatpush1.bf16.msra.mxu0 %v8375
        %8870 = vmatprep.subr.bf16.mxu0 %v8378
        %8871 = vmatpush1.bf16.msra.mxu0 %v8377
        %8872 = vmatprep.subr.bf16.mxu0 %v8380
        %8873 = vmatpush1.bf16.msra.mxu0 %v8379
        %8874 = vmatprep.subr.bf16.mxu0 %v8382
        %8875 = vmatpush1.bf16.msra.mxu0 %v8381
        %8876 = vmatprep.subr.bf16.mxu0 %v8384
        %8877 = vmatpush1.bf16.msra.mxu0 %v8383
        %8878 = vmatprep.subr.bf16.mxu0 %v8386
        %8879 = vmatpush1.bf16.msra.mxu0 %v8385
        %8880 = vmatprep.subr.bf16.mxu0 %v8388
        %8881 = vmatpush1.bf16.msra.mxu0 %v8387
        %8882 = vmatprep.mubr.bf16.mxu0 %v7508
        %8883 = vmatmul.mubr.bf16.gmra.mrb[0].mxu0 %v7507
        %v8884 = vpop.f32.mrb[0].mxu0
        %v8885 = vadd.f32 %v8844, %v8884
        %v8886 = vpop.f32.mrb[0].mxu0
        %v8887 = vadd.f32 %v8846, %v8886
        %v8888 = vpop.f32.mrb[0].mxu0
        %v8889 = vpop.f32.mrb[0].mxu0
        %8890 = vdwg.mxu0
        %8891 = vmatprep.subr.bf16.mxu0 %v8390
        %8892 = vmatpush1.bf16.msra.mxu0 %v8389
        %8893 = vmatprep.subr.bf16.mxu0 %v8392
        %8894 = vmatpush1.bf16.msra.mxu0 %v8391
        %8895 = vmatprep.subr.bf16.mxu0 %v8394
        %8896 = vmatpush1.bf16.msra.mxu0 %v8393
        %8897 = vmatprep.subr.bf16.mxu0 %v8396
        %8898 = vmatpush1.bf16.msra.mxu0 %v8395
        %8899 = vmatprep.subr.bf16.mxu0 %v8398
        %8900 = vmatpush1.bf16.msra.mxu0 %v8397
        %8901 = vmatprep.subr.bf16.mxu0 %v8400
        %8902 = vmatpush1.bf16.msra.mxu0 %v8399
        %8903 = vmatprep.subr.bf16.mxu0 %v8402
        %8904 = vmatpush1.bf16.msra.mxu0 %v8401
        %8905 = vmatprep.subr.bf16.mxu0 %v8404
        %8906 = vmatpush1.bf16.msra.mxu0 %v8403
        %8907 = vmatprep.subr.bf16.mxu0 %v8406
        %8908 = vmatpush1.bf16.msra.mxu0 %v8405
        %8909 = vmatprep.subr.bf16.mxu0 %v8408
        %8910 = vmatpush1.bf16.msra.mxu0 %v8407
        %8911 = vmatprep.subr.bf16.mxu0 %v8410
        %8912 = vmatpush1.bf16.msra.mxu0 %v8409
        %8913 = vmatprep.subr.bf16.mxu0 %v8412
        %8914 = vmatpush1.bf16.msra.mxu0 %v8411
        %8915 = vmatprep.subr.bf16.mxu0 %v8414
        %8916 = vmatpush1.bf16.msra.mxu0 %v8413
        %8917 = vmatprep.subr.bf16.mxu0 %v8416
        %8918 = vmatpush1.bf16.msra.mxu0 %v8415
        %8919 = vmatprep.subr.bf16.mxu0 %v8418
        %8920 = vmatpush1.bf16.msra.mxu0 %v8417
        %8921 = vmatprep.subr.bf16.mxu0 %v8420
        %8922 = vmatpush1.bf16.msra.mxu0 %v8419
        %8923 = vmatprep.mubr.bf16.mxu0 %v7510
        %8924 = vmatmul.mubr.bf16.gmra.mrb[0].mxu0 %v7509
        %v8925 = vpop.f32.mrb[0].mxu0
        %v8926 = vadd.f32 %v8885, %v8925
        %v8927 = vpop.f32.mrb[0].mxu0
        %v8928 = vadd.f32 %v8887, %v8927
        %v8929 = vpop.f32.mrb[0].mxu0
        %v8930 = vpop.f32.mrb[0].mxu0
        %8931 = vdwg.mxu0
        %v8932 = vmax.f32 %v8926, 0.0
        %v8933 = vmax.f32 %v8928, 0.0
        %v8934 = vpack.c.bf16 %v8932, %v8932
        %v8935 = vpack.c.bf16 %v8933, %v8933
        %v8936 = vld [vmem:[%s8] sm:$0xf]
        %v8937 = vld [vmem:[%s8 + $0x4] sm:$0xf]
        %v8938 = vld [vmem:[%s8 + $0x8] sm:$0xf]
        %v8939 = vld [vmem:[%s8 + $0xc] sm:$0xf]
        %v8940 = vld [vmem:[%s8 + $0x10] sm:$0xf]
        %v8941 = vld [vmem:[%s8 + $0x14] sm:$0xf]
        %v8942 = vld [vmem:[%s8 + $0x18] sm:$0xf]
        %v8943 = vld [vmem:[%s8 + $0x1c] sm:$0xf]
        %v8944 = vld [vmem:[%s8 + $0x20] sm:$0xf]
        %v8945 = vld [vmem:[%s8 + $0x24] sm:$0xf]
        %v8946 = vld [vmem:[%s8 + $0x28] sm:$0xf]
        %v8947 = vld [vmem:[%s8 + $0x2c] sm:$0xf]
        %v8948 = vld [vmem:[%s8 + $0x30] sm:$0xf]
        %v8949 = vld [vmem:[%s8 + $0x34] sm:$0xf]
        %v8950 = vld [vmem:[%s8 + $0x38] sm:$0xf]
        %v8951 = vld [vmem:[%s8 + $0x3c] sm:$0xf]
        %v8952 = vld [vmem:[%s8 + $0x40] sm:$0xf]
        %v8953 = vld [vmem:[%s8 + $0x44] sm:$0xf]
        %v8954 = vld [vmem:[%s8 + $0x48] sm:$0xf]
        %v8955 = vld [vmem:[%s8 + $0x4c] sm:$0xf]
        %v8956 = vld [vmem:[%s8 + $0x50] sm:$0xf]
        %v8957 = vld [vmem:[%s8 + $0x54] sm:$0xf]
        %v8958 = vld [vmem:[%s8 + $0x58] sm:$0xf]
        %v8959 = vld [vmem:[%s8 + $0x5c] sm:$0xf]
        %v8960 = vld [vmem:[%s8 + $0x60] sm:$0xf]
        %v8961 = vld [vmem:[%s8 + $0x64] sm:$0xf]
        %v8962 = vld [vmem:[%s8 + $0x68] sm:$0xf]
        %v8963 = vld [vmem:[%s8 + $0x6c] sm:$0xf]
        %v8964 = vld [vmem:[%s8 + $0x70] sm:$0xf]
        %v8965 = vld [vmem:[%s8 + $0x74] sm:$0xf]
        %v8966 = vld [vmem:[%s8 + $0x78] sm:$0xf]
        %v8967 = vld [vmem:[%s8 + $0x7c] sm:$0xf]
        %v8968 = vld [vmem:[%s9] sm:$0x1]
        %v8970 = vlaneseq
        %v8971 = vshrl.u32 %v8970, 7
        %v8972 = vsub.s32 0, %v8971
        %v8973 = vrot.slane %v8968, %v8972
        %v9007 = vunpack.c.l.b16 %v8936
        %v9008 = vunpack.c.l.b16 %v8937
        %v9009 = vunpack.c.l.b16 %v8938
        %v9010 = vunpack.c.l.b16 %v8939
        %v9011 = vunpack.c.l.b16 %v8940
        %v9012 = vunpack.c.l.b16 %v8941
        %v9013 = vunpack.c.l.b16 %v8942
        %v9014 = vunpack.c.l.b16 %v8943
        %v9015 = vunpack.c.l.b16 %v8944
        %v9016 = vunpack.c.l.b16 %v8945
        %v9017 = vunpack.c.l.b16 %v8946
        %v9018 = vunpack.c.l.b16 %v8947
        %v9019 = vunpack.c.l.b16 %v8948
        %v9020 = vunpack.c.l.b16 %v8949
        %v9021 = vunpack.c.l.b16 %v8950
        %v9022 = vunpack.c.l.b16 %v8951
        %v9023 = vunpack.c.l.b16 %v8952
        %v9024 = vunpack.c.l.b16 %v8953
        %v9025 = vunpack.c.l.b16 %v8954
        %v9026 = vunpack.c.l.b16 %v8955
        %v9027 = vunpack.c.l.b16 %v8956
        %v9028 = vunpack.c.l.b16 %v8957
        %v9029 = vunpack.c.l.b16 %v8958
        %v9030 = vunpack.c.l.b16 %v8959
        %v9031 = vunpack.c.l.b16 %v8960
        %v9032 = vunpack.c.l.b16 %v8961
        %v9033 = vunpack.c.l.b16 %v8962
        %v9034 = vunpack.c.l.b16 %v8963
        %v9035 = vunpack.c.l.b16 %v8964
        %v9036 = vunpack.c.l.b16 %v8965
        %v9037 = vunpack.c.l.b16 %v8966
        %v9038 = vunpack.c.l.b16 %v8967
        %v9039 = vpack.c.b16 %v9008, %v9007
        %v9040 = vpack.c.b16 %v9010, %v9009
        %v9041 = vpack.c.b16 %v9012, %v9011
        %v9042 = vpack.c.b16 %v9014, %v9013
        %v9043 = vpack.c.b16 %v9016, %v9015
        %v9044 = vpack.c.b16 %v9018, %v9017
        %v9045 = vpack.c.b16 %v9020, %v9019
        %v9046 = vpack.c.b16 %v9022, %v9021
        %v9047 = vpack.c.b16 %v9024, %v9023
        %v9048 = vpack.c.b16 %v9026, %v9025
        %v9049 = vpack.c.b16 %v9028, %v9027
        %v9050 = vpack.c.b16 %v9030, %v9029
        %v9051 = vpack.c.b16 %v9032, %v9031
        %v9052 = vpack.c.b16 %v9034, %v9033
        %v9053 = vpack.c.b16 %v9036, %v9035
        %v9054 = vpack.c.b16 %v9038, %v9037
        %9071 = vmatprep.subr.bf16.mxu0 0
        %9072 = vmatpush1.bf16.msra.mxu0 %v9039
        %9073 = vmatprep.subr.bf16.mxu0 0
        %9074 = vmatpush1.bf16.msra.mxu0 %v9040
        %9075 = vmatprep.subr.bf16.mxu0 0
        %9076 = vmatpush1.bf16.msra.mxu0 %v9041
        %9077 = vmatprep.subr.bf16.mxu0 0
        %9078 = vmatpush1.bf16.msra.mxu0 %v9042
        %9079 = vmatprep.subr.bf16.mxu0 0
        %9080 = vmatpush1.bf16.msra.mxu0 %v9043
        %9081 = vmatprep.subr.bf16.mxu0 0
        %9082 = vmatpush1.bf16.msra.mxu0 %v9044
        %9083 = vmatprep.subr.bf16.mxu0 0
        %9084 = vmatpush1.bf16.msra.mxu0 %v9045
        %9085 = vmatprep.subr.bf16.mxu0 0
        %9086 = vmatpush1.bf16.msra.mxu0 %v9046
        %9087 = vmatprep.subr.bf16.mxu0 0
        %9088 = vmatpush1.bf16.msra.mxu0 %v9047
        %9089 = vmatprep.subr.bf16.mxu0 0
        %9090 = vmatpush1.bf16.msra.mxu0 %v9048
        %9091 = vmatprep.subr.bf16.mxu0 0
        %9092 = vmatpush1.bf16.msra.mxu0 %v9049
        %9093 = vmatprep.subr.bf16.mxu0 0
        %9094 = vmatpush1.bf16.msra.mxu0 %v9050
        %9095 = vmatprep.subr.bf16.mxu0 0
        %9096 = vmatpush1.bf16.msra.mxu0 %v9051
        %9097 = vmatprep.subr.bf16.mxu0 0
        %9098 = vmatpush1.bf16.msra.mxu0 %v9052
        %9099 = vmatprep.subr.bf16.mxu0 0
        %9100 = vmatpush1.bf16.msra.mxu0 %v9053
        %9101 = vmatprep.subr.bf16.mxu0 0
        %9102 = vmatpush1.bf16.msra.mxu0 %v9054
        %9103 = vmatprep.mubr.bf16.mxu0 %v8935
        %9104 = vmatmul.mubr.bf16.gmra.mrb[0].mxu0 %v8934
        %v9105 = vpop.f32.mrb[0].mxu0
        %v9106 = vadd.f32 %v8973, %v9105
        %v9107 = vpop.f32.mrb[0].mxu0
        %v9108 = vpop.f32.mrb[0].mxu0
        %v9109 = vpop.f32.mrb[0].mxu0
        %9110 = vdwg.mxu0
        %9111 = vst [vmem:[%s417] sm:$0xff] %v9106
        %p9112 = scmp.lt.s32.totalorder %s23, 1
        %s9113 = scalar_select %p9112, %s23, 1
        %s9114 = smul.addr %s9113, 8
        %s9115 = scalar_lea.vmem %s10, %s9114
        // Predicated region
        $region69: #{cnn_forward.1} parent=59 // pred_check
          %p9116 = pneg %p261
        $region70: #{cnn_forward.1} parent=59 // pred_check_branch
          %9118 = sbr.rel (%p9116) target = $region72
        $region71: #{cnn_forward.1} parent=59 // pred_region
          _
        $region72: #{cnn_forward.1} parent=59 // pred_fallthru
          _
      $region60: #{cnn_forward.1} parent=5 // pred_fallthru
        _
      %p9119 = scmp.le.s32.totalorder 2, %s18
      // Predicated region
      $region73: #{cnn_forward.1} parent=5 // pred_check
        %p9120 = pneg %p9119
      $region74: #{cnn_forward.1} parent=5 // pred_check_branch
        %9122 = sbr.rel (%p9120) target = $region76
      $region75: #{cnn_forward.1} parent=5 // pred_region
        %s9123 = ssub.s32 %s18, 2
        // Predicated region
        $region77: #{cnn_forward.1} parent=75 // pred_check
          %p9124 = pneg %p267
        $region78: #{cnn_forward.1} parent=75 // pred_check_branch
          %9126 = sbr.rel (%p9124) target = $region80
        $region79: #{cnn_forward.1} parent=75 // pred_region
          %p9127 = scmp.lt.s32.totalorder %s24, 1
          %s9128 = scalar_select %p9127, %s24, 1
          %s9129 = smul.addr %s9128, 8
          %s9130 = scalar_lea.vmem %s10, %s9129
        $region80: #{cnn_forward.1} parent=75 // pred_fallthru
          _
      $region76: #{cnn_forward.1} parent=5 // pred_fallthru
        _
    $region6: #{cnn_forward.1} parent=1 // loop_footer
      %s22 = sadd.s32 1, %s18
    $region7: #{cnn_forward.1} parent=1 // loop_footer_branch
      %17 = sbr.rel target = $region3
    $region8: #{cnn_forward.1} parent=1 // loop_exit
      _
    %9131 = vsyncpa [#allocation6], 1
    %s9132 = scalar_lea.sflag [#allocation6], 1
    %9133 = vsyncpa %s9132, 1
    %9134 = vsyncpa [#allocation8], 1

</llo_original>
